<compile_context>
chip_gen: v7x
topology: tpu7x:2x2x1
jax: 0.10.0
libtpu: 0.0.40
codegen_flags: <defaults>
</compile_context>

<pallas_src>
import jax
import jax.numpy as jnp
from jax import lax
from jax.experimental import pallas as pl
from jax.experimental.pallas import tpu as pltpu


# ------------------------------- fused kernel ------------------------------- #

def _stdc_fused_kernel(x_ref, w1_ref, w2_ref, w3_ref, w4_ref,
                       b1_ref, b2_ref, b3_ref, b4_ref,
                       o_ref, pad1_ref, pad2_ref, pad3_ref):
    # x_ref    : (1, H, W, Cin)          bf16
    # w1_ref   : (Cin, C1)               bf16  (BN scale folded in)
    # wK_ref   : (9*C_{K-1}, C_K)        bf16  (im2col layout, BN scale folded in)
    # bK_ref   : (1, C_K)                f32   (folded BN bias)
    # o_ref    : (1, H, W, C1+C2+C3+C4)  f32   (concatenated branches)
    # padK_ref : (H+2, W+2, C_K)         bf16  VMEM scratch with zero halo
    _, H, W, Cin = x_ref.shape
    C1 = w1_ref.shape[1]
    C2 = w2_ref.shape[1]
    C3 = w3_ref.shape[1]
    C4 = w4_ref.shape[1]

    def store_padded(pad_ref, val_hwc):
        # Zero halo + interior write, all inside VMEM (replaces wrapper jnp.pad).
        pad_ref[...] = jnp.zeros_like(pad_ref)
        pad_ref[pl.ds(1, H), pl.ds(1, W), :] = val_hwc.astype(pad_ref.dtype)

    def conv3x3_bias_relu(pad_ref, w_ref, b_ref):
        cin = pad_ref.shape[2]
        # im2col: 9 shifted views concatenated on the channel (lane) axis,
        # contracted in a single MXU matmul with K = 9*cin.
        taps = [pad_ref[pl.ds(kh, H), pl.ds(kw, W), :]
                for kh in range(3) for kw in range(3)]
        patch = jnp.concatenate(taps, axis=-1).reshape(H * W, 9 * cin)
        y = jnp.dot(patch, w_ref[...], preferred_element_type=jnp.float32)
        return jnp.maximum(y + b_ref[0], 0.0)              # (H*W, Cout) f32

    # block1: 1x1 conv + folded BN + ReLU
    x = x_ref[0].reshape(H * W, Cin)
    y1 = jnp.dot(x, w1_ref[...], preferred_element_type=jnp.float32)
    y1 = jnp.maximum(y1 + b1_ref[0], 0.0)
    store_padded(pad1_ref, y1.reshape(H, W, C1))

    # block2..block4: 3x3 convs, intermediates never leave VMEM
    y2 = conv3x3_bias_relu(pad1_ref, w2_ref, b2_ref)
    store_padded(pad2_ref, y2.reshape(H, W, C2))

    y3 = conv3x3_bias_relu(pad2_ref, w3_ref, b3_ref)
    store_padded(pad3_ref, y3.reshape(H, W, C3))

    y4 = conv3x3_bias_relu(pad3_ref, w4_ref, b4_ref)

    # Channel concat folded into the single output write.  The module's final
    # ReLU is omitted: every branch is already non-negative (identity).
    out = jnp.concatenate([y1.reshape(H, W, C1), y2.reshape(H, W, C2),
                           y3.reshape(H, W, C3), y4.reshape(H, W, C4)], axis=-1)
    o_ref[...] = out.reshape(1, H, W, C1 + C2 + C3 + C4).astype(o_ref.dtype)


# ------------------------------ Pallas wrapper ------------------------------ #

def stdc_module_forward(x_nchw, params, stride=1):
    # TODO(synk): stride=2 path (AvgPool2d(3,2,1) on x1 + strided block2) not implemented;
    #             only the stride=1 configuration of STDCModule is exercised here.
    assert stride == 1
    x = jnp.transpose(x_nchw, (0, 2, 3, 1)).astype(jnp.bfloat16)   # NCHW -> NHWC, bf16 operands
    N, H, W, Cin = x.shape
    C1 = params['w1'].shape[1]
    C2 = params['w2'].shape[1]
    C3 = params['w3'].shape[1]
    C4 = params['w4'].shape[1]
    Cout = C1 + C2 + C3 + C4

    # TODO(synk): for large H*W resolutions, add an H-row grid axis with overlapping
    #             halo blocks so per-step VMEM fits the v7x 32 MiB scoped budget.
    out = pl.pallas_call(
        _stdc_fused_kernel,
        out_shape=jax.ShapeDtypeStruct((N, H, W, Cout), jnp.float32),
        grid_spec=pltpu.PrefetchScalarGridSpec(
            num_scalar_prefetch=0,
            grid=(N,),
            in_specs=[
                pl.BlockSpec((1, H, W, Cin), lambda n: (n, 0, 0, 0)),
                pl.BlockSpec(params['w1'].shape, lambda n: (0, 0)),
                pl.BlockSpec(params['w2'].shape, lambda n: (0, 0)),
                pl.BlockSpec(params['w3'].shape, lambda n: (0, 0)),
                pl.BlockSpec(params['w4'].shape, lambda n: (0, 0)),
                pl.BlockSpec((1, C1), lambda n: (0, 0)),
                pl.BlockSpec((1, C2), lambda n: (0, 0)),
                pl.BlockSpec((1, C3), lambda n: (0, 0)),
                pl.BlockSpec((1, C4), lambda n: (0, 0)),
            ],
            out_specs=pl.BlockSpec((1, H, W, Cout), lambda n: (n, 0, 0, 0)),
            scratch_shapes=[
                pltpu.VMEM((H + 2, W + 2, C1), jnp.bfloat16),   # padded x1
                pltpu.VMEM((H + 2, W + 2, C2), jnp.bfloat16),   # padded x2
                pltpu.VMEM((H + 2, W + 2, C3), jnp.bfloat16),   # padded x3
            ],
        ),
        compiler_params=pltpu.CompilerParams(dimension_semantics=("parallel",)),
    )(x, params['w1'], params['w2'], params['w3'], params['w4'],
      params['bias1'], params['bias2'], params['bias3'], params['bias4'])
    return jnp.transpose(out, (0, 3, 1, 2))                        # NHWC -> NCHW


# ------------------------------- parameters --------------------------------- #

def init_params(key, in_ch, out_ch):
    # Deterministic synthetic parameters. Conv weights created in PyTorch OIHW
    # layout; eval-mode BatchNorm is folded: scale goes into the conv weight,
    # bias is kept separately in f32.  MXU operands are bf16.
    assert out_ch % 8 == 0
    blocks = [(in_ch, out_ch // 2, 1),
              (out_ch // 2, out_ch // 4, 3),
              (out_ch // 4, out_ch // 8, 3),
              (out_ch // 8, out_ch // 8, 3)]
    params = {}
    for i, (cin, cout, k) in enumerate(blocks, start=1):
        key, kw_, kg, kb, km, kv = jax.random.split(key, 6)
        w_oihw = jax.random.normal(kw_, (cout, cin, k, k), jnp.float32) * 0.1
        gamma = jax.random.uniform(kg, (cout,), jnp.float32, 0.5, 1.5)
        beta = jax.random.normal(kb, (cout,), jnp.float32) * 0.1
        mean = jax.random.normal(km, (cout,), jnp.float32) * 0.1
        var = jax.random.uniform(kv, (cout,), jnp.float32, 0.5, 1.5)
        scale = gamma / jnp.sqrt(var + 1e-5)
        bias = beta - mean * scale
        w_scaled_oihw = w_oihw * scale.reshape(-1, 1, 1, 1)        # BN scale folded in
        w_hwio = jnp.transpose(w_scaled_oihw, (2, 3, 1, 0))        # (kh, kw, Cin, Cout)
        params[f'w{i}'] = w_hwio.reshape(k * k * cin, cout).astype(jnp.bfloat16)
        params[f'bias{i}'] = bias.reshape(1, cout)                 # f32 epilogue bias
        params[f'ref_w{i}'] = w_scaled_oihw.astype(jnp.bfloat16)   # for the pure-JAX reference
        params[f'k{i}'] = k
    return params


# --------------------------- pure-JAX reference ----------------------------- #

def ref_forward(x_nchw, params):
    # Matches the kernel's numerics: bf16 operands, f32 accumulation/epilogue.
    def block(x_f32, i):
        k = params[f'k{i}']
        y = lax.conv_general_dilated(
            x_f32.astype(jnp.bfloat16), params[f'ref_w{i}'],
            window_strides=(1, 1), padding=[(k // 2, k // 2)] * 2,
            dimension_numbers=('NCHW', 'OIHW', 'NCHW'),
            preferred_element_type=jnp.float32)
        b = params[f'bias{i}'].reshape(1, -1, 1, 1)
        return jnp.maximum(y + b, 0.0)

    x1 = block(x_nchw, 1)
    x2 = block(x1, 2)
    x3 = block(x2, 3)
    x4 = block(x3, 4)
    return jnp.maximum(jnp.concatenate([x1, x2, x3, x4], axis=1), 0.0)


# ---------------------------------- main ------------------------------------ #

if __name__ == "__main__":
    key = jax.random.PRNGKey(0)
    N, in_ch, H, W = 2, 8, 16, 16
    out_ch = 32
    stride = 1

    kx, kp = jax.random.split(key)
    x = jax.random.normal(kx, (N, in_ch, H, W), jnp.float32)
    params = init_params(kp, in_ch, out_ch)

    out = jax.block_until_ready(stdc_module_forward(x, params, stride=stride))
    assert out.shape == (N, out_ch, H, W), out.shape

    ref = ref_forward(x, params)
    if not jnp.allclose(out, ref, rtol=1e-2, atol=1e-2):
        max_err = float(jnp.max(jnp.abs(out - ref)))
        raise AssertionError(f"Pallas output mismatch vs reference, max err {max_err}")

    print("KERNEL_OK")
</pallas_src>

<mosaic_0001>
module attributes {stable_mosaic.version = 11 : i64} {
  func.func @_stdc_fused_kernel(%arg0: i32, %arg1: memref<1x16x16x8xbf16, #tpu.memory_space<vmem>>, %arg2: memref<8x16xbf16, #tpu.memory_space<vmem>>, %arg3: memref<144x8xbf16, #tpu.memory_space<vmem>>, %arg4: memref<72x4xbf16, #tpu.memory_space<vmem>>, %arg5: memref<36x4xbf16, #tpu.memory_space<vmem>>, %arg6: memref<1x16xf32, #tpu.memory_space<vmem>>, %arg7: memref<1x8xf32, #tpu.memory_space<vmem>>, %arg8: memref<1x4xf32, #tpu.memory_space<vmem>>, %arg9: memref<1x4xf32, #tpu.memory_space<vmem>>, %arg10: memref<1x16x16x32xf32, #tpu.memory_space<vmem>>, %arg11: memref<18x18x16xbf16, #tpu.memory_space<vmem>>, %arg12: memref<18x18x8xbf16, #tpu.memory_space<vmem>>, %arg13: memref<18x18x4xbf16, #tpu.memory_space<vmem>>) attributes {dimension_semantics = [#tpu.dimension_semantics<parallel>], iteration_bounds = array<i64: 2>, scalar_prefetch = 0 : i64, scratch_operands = 3 : i64, tpu.core_type = #tpu.core_type<tc>, window_params = [{transform_indices = @transform_0, window_bounds = array<i64: 1, 16, 16, 8>}, {pipeline_mode = #tpu.pipeline_mode<synchronous>, transform_indices = @transform_1, window_bounds = array<i64: 8, 16>}, {pipeline_mode = #tpu.pipeline_mode<synchronous>, transform_indices = @transform_2, window_bounds = array<i64: 144, 8>}, {pipeline_mode = #tpu.pipeline_mode<synchronous>, transform_indices = @transform_3, window_bounds = array<i64: 72, 4>}, {pipeline_mode = #tpu.pipeline_mode<synchronous>, transform_indices = @transform_4, window_bounds = array<i64: 36, 4>}, {pipeline_mode = #tpu.pipeline_mode<synchronous>, transform_indices = @transform_5, window_bounds = array<i64: 1, 16>}, {pipeline_mode = #tpu.pipeline_mode<synchronous>, transform_indices = @transform_6, window_bounds = array<i64: 1, 8>}, {pipeline_mode = #tpu.pipeline_mode<synchronous>, transform_indices = @transform_7, window_bounds = array<i64: 1, 4>}, {pipeline_mode = #tpu.pipeline_mode<synchronous>, transform_indices = @transform_8, window_bounds = array<i64: 1, 4>}, {transform_indices = @transform_9, window_bounds = array<i64: 1, 16, 16, 32>}]} {
    %c0 = arith.constant 0 : index
    %c0_0 = arith.constant 0 : index
    %c0_1 = arith.constant 0 : index
    %c0_2 = arith.constant 0 : index
    %0 = vector.load %arg1[%c0, %c0_0, %c0_1, %c0_2] : memref<1x16x16x8xbf16, #tpu.memory_space<vmem>>, vector<1x16x16x8xbf16>
    %1 = vector.shape_cast %0 : vector<1x16x16x8xbf16> to vector<16x16x8xbf16>
    %2 = vector.shape_cast %1 : vector<16x16x8xbf16> to vector<256x8xbf16>
    %c0_3 = arith.constant 0 : index
    %c0_4 = arith.constant 0 : index
    %3 = vector.load %arg2[%c0_3, %c0_4] : memref<8x16xbf16, #tpu.memory_space<vmem>>, vector<8x16xbf16>
    %cst = arith.constant dense<0.000000e+00> : vector<256x16xf32>
    %4 = tpu.matmul %2, %3, %cst {dimension_numbers = #tpu.dot_dimension_numbers<[1], [0], [0], [1], [0, 0, 1, 1], [], []>} : vector<256x8xbf16>, vector<8x16xbf16>, vector<256x16xf32> -> vector<256x16xf32>
    %c0_5 = arith.constant 0 : index
    %c0_6 = arith.constant 0 : index
    %5 = vector.load %arg6[%c0_5, %c0_6] : memref<1x16xf32, #tpu.memory_space<vmem>>, vector<1x16xf32>
    %6 = vector.shape_cast %5 : vector<1x16xf32> to vector<16xf32>
    %7 = vector.shape_cast %6 : vector<16xf32> to vector<1x16xf32>
    %8 = vector.broadcast %7 : vector<1x16xf32> to vector<256x16xf32>
    %9 = arith.addf %4, %8 : vector<256x16xf32>
    %cst_7 = arith.constant 0.000000e+00 : f32
    %10 = vector.broadcast %cst_7 : f32 to vector<256x16xf32>
    %11 = arith.maximumf %9, %10 : vector<256x16xf32>
    %12 = vector.shape_cast %11 : vector<256x16xf32> to vector<16x16x16xf32>
    %cst_8 = arith.constant 0.000000e+00 : bf16
    %13 = vector.broadcast %cst_8 : bf16 to vector<18x18x16xbf16>
    %c0_9 = arith.constant 0 : index
    %c0_10 = arith.constant 0 : index
    %c0_11 = arith.constant 0 : index
    %14 = vector.load %arg11[%c0_9, %c0_10, %c0_11] : memref<18x18x16xbf16, #tpu.memory_space<vmem>>, vector<18x18x16xbf16>
    tpu.vector_store %arg11[%c0_9, %c0_10, %c0_11], %13 {strides = array<i32>} : memref<18x18x16xbf16, #tpu.memory_space<vmem>>, vector<18x18x16xbf16>,
    %15 = arith.truncf %12 : vector<16x16x16xf32> to vector<16x16x16xbf16>
    %c1 = arith.constant 1 : index
    %c1_12 = arith.constant 1 : index
    %c0_13 = arith.constant 0 : index
    %16 = vector.load %arg11[%c1, %c1_12, %c0_13] : memref<18x18x16xbf16, #tpu.memory_space<vmem>>, vector<16x16x16xbf16>
    tpu.vector_store %arg11[%c1, %c1_12, %c0_13], %15 {strides = array<i32>} : memref<18x18x16xbf16, #tpu.memory_space<vmem>>, vector<16x16x16xbf16>,
    %c0_14 = arith.constant 0 : index
    %c0_15 = arith.constant 0 : index
    %c0_16 = arith.constant 0 : index
    %17 = vector.load %arg11[%c0_14, %c0_15, %c0_16] : memref<18x18x16xbf16, #tpu.memory_space<vmem>>, vector<16x16x16xbf16>
    %c0_17 = arith.constant 0 : index
    %c1_18 = arith.constant 1 : index
    %c0_19 = arith.constant 0 : index
    %18 = vector.load %arg11[%c0_17, %c1_18, %c0_19] : memref<18x18x16xbf16, #tpu.memory_space<vmem>>, vector<16x16x16xbf16>
    %c0_20 = arith.constant 0 : index
    %c2 = arith.constant 2 : index
    %c0_21 = arith.constant 0 : index
    %19 = vector.load %arg11[%c0_20, %c2, %c0_21] : memref<18x18x16xbf16, #tpu.memory_space<vmem>>, vector<16x16x16xbf16>
    %c1_22 = arith.constant 1 : index
    %c0_23 = arith.constant 0 : index
    %c0_24 = arith.constant 0 : index
    %20 = vector.load %arg11[%c1_22, %c0_23, %c0_24] : memref<18x18x16xbf16, #tpu.memory_space<vmem>>, vector<16x16x16xbf16>
    %c1_25 = arith.constant 1 : index
    %c1_26 = arith.constant 1 : index
    %c0_27 = arith.constant 0 : index
    %21 = vector.load %arg11[%c1_25, %c1_26, %c0_27] : memref<18x18x16xbf16, #tpu.memory_space<vmem>>, vector<16x16x16xbf16>
    %c1_28 = arith.constant 1 : index
    %c2_29 = arith.constant 2 : index
    %c0_30 = arith.constant 0 : index
    %22 = vector.load %arg11[%c1_28, %c2_29, %c0_30] : memref<18x18x16xbf16, #tpu.memory_space<vmem>>, vector<16x16x16xbf16>
    %c2_31 = arith.constant 2 : index
    %c0_32 = arith.constant 0 : index
    %c0_33 = arith.constant 0 : index
    %23 = vector.load %arg11[%c2_31, %c0_32, %c0_33] : memref<18x18x16xbf16, #tpu.memory_space<vmem>>, vector<16x16x16xbf16>
    %c2_34 = arith.constant 2 : index
    %c1_35 = arith.constant 1 : index
    %c0_36 = arith.constant 0 : index
    %24 = vector.load %arg11[%c2_34, %c1_35, %c0_36] : memref<18x18x16xbf16, #tpu.memory_space<vmem>>, vector<16x16x16xbf16>
    %c2_37 = arith.constant 2 : index
    %c2_38 = arith.constant 2 : index
    %c0_39 = arith.constant 0 : index
    %25 = vector.load %arg11[%c2_37, %c2_38, %c0_39] : memref<18x18x16xbf16, #tpu.memory_space<vmem>>, vector<16x16x16xbf16>
    %26 = tpu.concatenate %17, %18, %19, %20, %21, %22, %23, %24, %25 in 2 : vector<16x16x16xbf16>, vector<16x16x16xbf16>, vector<16x16x16xbf16>, vector<16x16x16xbf16>, vector<16x16x16xbf16>, vector<16x16x16xbf16>, vector<16x16x16xbf16>, vector<16x16x16xbf16>, vector<16x16x16xbf16> -> vector<16x16x144xbf16>
    %27 = vector.shape_cast %26 : vector<16x16x144xbf16> to vector<256x144xbf16>
    %c0_40 = arith.constant 0 : index
    %c0_41 = arith.constant 0 : index
    %28 = vector.load %arg3[%c0_40, %c0_41] : memref<144x8xbf16, #tpu.memory_space<vmem>>, vector<144x8xbf16>
    %cst_42 = arith.constant dense<0.000000e+00> : vector<256x8xf32>
    %29 = tpu.matmul %27, %28, %cst_42 {dimension_numbers = #tpu.dot_dimension_numbers<[1], [0], [0], [1], [0, 0, 1, 1], [], []>} : vector<256x144xbf16>, vector<144x8xbf16>, vector<256x8xf32> -> vector<256x8xf32>
    %c0_43 = arith.constant 0 : index
    %c0_44 = arith.constant 0 : index
    %30 = vector.load %arg7[%c0_43, %c0_44] : memref<1x8xf32, #tpu.memory_space<vmem>>, vector<1x8xf32>
    %31 = vector.shape_cast %30 : vector<1x8xf32> to vector<8xf32>
    %32 = vector.shape_cast %31 : vector<8xf32> to vector<1x8xf32>
    %33 = vector.broadcast %32 : vector<1x8xf32> to vector<256x8xf32>
    %34 = arith.addf %29, %33 : vector<256x8xf32>
    %cst_45 = arith.constant 0.000000e+00 : f32
    %35 = vector.broadcast %cst_45 : f32 to vector<256x8xf32>
    %36 = arith.maximumf %34, %35 : vector<256x8xf32>
    %37 = vector.shape_cast %36 : vector<256x8xf32> to vector<16x16x8xf32>
    %cst_46 = arith.constant 0.000000e+00 : bf16
    %38 = vector.broadcast %cst_46 : bf16 to vector<18x18x8xbf16>
    %c0_47 = arith.constant 0 : index
    %c0_48 = arith.constant 0 : index
    %c0_49 = arith.constant 0 : index
    %39 = vector.load %arg12[%c0_47, %c0_48, %c0_49] : memref<18x18x8xbf16, #tpu.memory_space<vmem>>, vector<18x18x8xbf16>
    tpu.vector_store %arg12[%c0_47, %c0_48, %c0_49], %38 {strides = array<i32>} : memref<18x18x8xbf16, #tpu.memory_space<vmem>>, vector<18x18x8xbf16>,
    %40 = arith.truncf %37 : vector<16x16x8xf32> to vector<16x16x8xbf16>
    %c1_50 = arith.constant 1 : index
    %c1_51 = arith.constant 1 : index
    %c0_52 = arith.constant 0 : index
    %41 = vector.load %arg12[%c1_50, %c1_51, %c0_52] : memref<18x18x8xbf16, #tpu.memory_space<vmem>>, vector<16x16x8xbf16>
    tpu.vector_store %arg12[%c1_50, %c1_51, %c0_52], %40 {strides = array<i32>} : memref<18x18x8xbf16, #tpu.memory_space<vmem>>, vector<16x16x8xbf16>,
    %c0_53 = arith.constant 0 : index
    %c0_54 = arith.constant 0 : index
    %c0_55 = arith.constant 0 : index
    %42 = vector.load %arg12[%c0_53, %c0_54, %c0_55] : memref<18x18x8xbf16, #tpu.memory_space<vmem>>, vector<16x16x8xbf16>
    %c0_56 = arith.constant 0 : index
    %c1_57 = arith.constant 1 : index
    %c0_58 = arith.constant 0 : index
    %43 = vector.load %arg12[%c0_56, %c1_57, %c0_58] : memref<18x18x8xbf16, #tpu.memory_space<vmem>>, vector<16x16x8xbf16>
    %c0_59 = arith.constant 0 : index
    %c2_60 = arith.constant 2 : index
    %c0_61 = arith.constant 0 : index
    %44 = vector.load %arg12[%c0_59, %c2_60, %c0_61] : memref<18x18x8xbf16, #tpu.memory_space<vmem>>, vector<16x16x8xbf16>
    %c1_62 = arith.constant 1 : index
    %c0_63 = arith.constant 0 : index
    %c0_64 = arith.constant 0 : index
    %45 = vector.load %arg12[%c1_62, %c0_63, %c0_64] : memref<18x18x8xbf16, #tpu.memory_space<vmem>>, vector<16x16x8xbf16>
    %c1_65 = arith.constant 1 : index
    %c1_66 = arith.constant 1 : index
    %c0_67 = arith.constant 0 : index
    %46 = vector.load %arg12[%c1_65, %c1_66, %c0_67] : memref<18x18x8xbf16, #tpu.memory_space<vmem>>, vector<16x16x8xbf16>
    %c1_68 = arith.constant 1 : index
    %c2_69 = arith.constant 2 : index
    %c0_70 = arith.constant 0 : index
    %47 = vector.load %arg12[%c1_68, %c2_69, %c0_70] : memref<18x18x8xbf16, #tpu.memory_space<vmem>>, vector<16x16x8xbf16>
    %c2_71 = arith.constant 2 : index
    %c0_72 = arith.constant 0 : index
    %c0_73 = arith.constant 0 : index
    %48 = vector.load %arg12[%c2_71, %c0_72, %c0_73] : memref<18x18x8xbf16, #tpu.memory_space<vmem>>, vector<16x16x8xbf16>
    %c2_74 = arith.constant 2 : index
    %c1_75 = arith.constant 1 : index
    %c0_76 = arith.constant 0 : index
    %49 = vector.load %arg12[%c2_74, %c1_75, %c0_76] : memref<18x18x8xbf16, #tpu.memory_space<vmem>>, vector<16x16x8xbf16>
    %c2_77 = arith.constant 2 : index
    %c2_78 = arith.constant 2 : index
    %c0_79 = arith.constant 0 : index
    %50 = vector.load %arg12[%c2_77, %c2_78, %c0_79] : memref<18x18x8xbf16, #tpu.memory_space<vmem>>, vector<16x16x8xbf16>
    %51 = tpu.concatenate %42, %43, %44, %45, %46, %47, %48, %49, %50 in 2 : vector<16x16x8xbf16>, vector<16x16x8xbf16>, vector<16x16x8xbf16>, vector<16x16x8xbf16>, vector<16x16x8xbf16>, vector<16x16x8xbf16>, vector<16x16x8xbf16>, vector<16x16x8xbf16>, vector<16x16x8xbf16> -> vector<16x16x72xbf16>
    %52 = vector.shape_cast %51 : vector<16x16x72xbf16> to vector<256x72xbf16>
    %c0_80 = arith.constant 0 : index
    %c0_81 = arith.constant 0 : index
    %53 = vector.load %arg4[%c0_80, %c0_81] : memref<72x4xbf16, #tpu.memory_space<vmem>>, vector<72x4xbf16>
    %cst_82 = arith.constant dense<0.000000e+00> : vector<256x4xf32>
    %54 = tpu.matmul %52, %53, %cst_82 {dimension_numbers = #tpu.dot_dimension_numbers<[1], [0], [0], [1], [0, 0, 1, 1], [], []>} : vector<256x72xbf16>, vector<72x4xbf16>, vector<256x4xf32> -> vector<256x4xf32>
    %c0_83 = arith.constant 0 : index
    %c0_84 = arith.constant 0 : index
    %55 = vector.load %arg8[%c0_83, %c0_84] : memref<1x4xf32, #tpu.memory_space<vmem>>, vector<1x4xf32>
    %56 = vector.shape_cast %55 : vector<1x4xf32> to vector<4xf32>
    %57 = vector.shape_cast %56 : vector<4xf32> to vector<1x4xf32>
    %58 = vector.broadcast %57 : vector<1x4xf32> to vector<256x4xf32>
    %59 = arith.addf %54, %58 : vector<256x4xf32>
    %cst_85 = arith.constant 0.000000e+00 : f32
    %60 = vector.broadcast %cst_85 : f32 to vector<256x4xf32>
    %61 = arith.maximumf %59, %60 : vector<256x4xf32>
    %62 = vector.shape_cast %61 : vector<256x4xf32> to vector<16x16x4xf32>
    %cst_86 = arith.constant 0.000000e+00 : bf16
    %63 = vector.broadcast %cst_86 : bf16 to vector<18x18x4xbf16>
    %c0_87 = arith.constant 0 : index
    %c0_88 = arith.constant 0 : index
    %c0_89 = arith.constant 0 : index
    %64 = vector.load %arg13[%c0_87, %c0_88, %c0_89] : memref<18x18x4xbf16, #tpu.memory_space<vmem>>, vector<18x18x4xbf16>
    tpu.vector_store %arg13[%c0_87, %c0_88, %c0_89], %63 {strides = array<i32>} : memref<18x18x4xbf16, #tpu.memory_space<vmem>>, vector<18x18x4xbf16>,
    %65 = arith.truncf %62 : vector<16x16x4xf32> to vector<16x16x4xbf16>
    %c1_90 = arith.constant 1 : index
    %c1_91 = arith.constant 1 : index
    %c0_92 = arith.constant 0 : index
    %66 = vector.load %arg13[%c1_90, %c1_91, %c0_92] : memref<18x18x4xbf16, #tpu.memory_space<vmem>>, vector<16x16x4xbf16>
    tpu.vector_store %arg13[%c1_90, %c1_91, %c0_92], %65 {strides = array<i32>} : memref<18x18x4xbf16, #tpu.memory_space<vmem>>, vector<16x16x4xbf16>,
    %c0_93 = arith.constant 0 : index
    %c0_94 = arith.constant 0 : index
    %c0_95 = arith.constant 0 : index
    %67 = vector.load %arg13[%c0_93, %c0_94, %c0_95] : memref<18x18x4xbf16, #tpu.memory_space<vmem>>, vector<16x16x4xbf16>
    %c0_96 = arith.constant 0 : index
    %c1_97 = arith.constant 1 : index
    %c0_98 = arith.constant 0 : index
    %68 = vector.load %arg13[%c0_96, %c1_97, %c0_98] : memref<18x18x4xbf16, #tpu.memory_space<vmem>>, vector<16x16x4xbf16>
    %c0_99 = arith.constant 0 : index
    %c2_100 = arith.constant 2 : index
    %c0_101 = arith.constant 0 : index
    %69 = vector.load %arg13[%c0_99, %c2_100, %c0_101] : memref<18x18x4xbf16, #tpu.memory_space<vmem>>, vector<16x16x4xbf16>
    %c1_102 = arith.constant 1 : index
    %c0_103 = arith.constant 0 : index
    %c0_104 = arith.constant 0 : index
    %70 = vector.load %arg13[%c1_102, %c0_103, %c0_104] : memref<18x18x4xbf16, #tpu.memory_space<vmem>>, vector<16x16x4xbf16>
    %c1_105 = arith.constant 1 : index
    %c1_106 = arith.constant 1 : index
    %c0_107 = arith.constant 0 : index
    %71 = vector.load %arg13[%c1_105, %c1_106, %c0_107] : memref<18x18x4xbf16, #tpu.memory_space<vmem>>, vector<16x16x4xbf16>
    %c1_108 = arith.constant 1 : index
    %c2_109 = arith.constant 2 : index
    %c0_110 = arith.constant 0 : index
    %72 = vector.load %arg13[%c1_108, %c2_109, %c0_110] : memref<18x18x4xbf16, #tpu.memory_space<vmem>>, vector<16x16x4xbf16>
    %c2_111 = arith.constant 2 : index
    %c0_112 = arith.constant 0 : index
    %c0_113 = arith.constant 0 : index
    %73 = vector.load %arg13[%c2_111, %c0_112, %c0_113] : memref<18x18x4xbf16, #tpu.memory_space<vmem>>, vector<16x16x4xbf16>
    %c2_114 = arith.constant 2 : index
    %c1_115 = arith.constant 1 : index
    %c0_116 = arith.constant 0 : index
    %74 = vector.load %arg13[%c2_114, %c1_115, %c0_116] : memref<18x18x4xbf16, #tpu.memory_space<vmem>>, vector<16x16x4xbf16>
    %c2_117 = arith.constant 2 : index
    %c2_118 = arith.constant 2 : index
    %c0_119 = arith.constant 0 : index
    %75 = vector.load %arg13[%c2_117, %c2_118, %c0_119] : memref<18x18x4xbf16, #tpu.memory_space<vmem>>, vector<16x16x4xbf16>
    %76 = tpu.concatenate %67, %68, %69, %70, %71, %72, %73, %74, %75 in 2 : vector<16x16x4xbf16>, vector<16x16x4xbf16>, vector<16x16x4xbf16>, vector<16x16x4xbf16>, vector<16x16x4xbf16>, vector<16x16x4xbf16>, vector<16x16x4xbf16>, vector<16x16x4xbf16>, vector<16x16x4xbf16> -> vector<16x16x36xbf16>
    %77 = vector.shape_cast %76 : vector<16x16x36xbf16> to vector<256x36xbf16>
    %c0_120 = arith.constant 0 : index
    %c0_121 = arith.constant 0 : index
    %78 = vector.load %arg5[%c0_120, %c0_121] : memref<36x4xbf16, #tpu.memory_space<vmem>>, vector<36x4xbf16>
    %cst_122 = arith.constant dense<0.000000e+00> : vector<256x4xf32>
    %79 = tpu.matmul %77, %78, %cst_122 {dimension_numbers = #tpu.dot_dimension_numbers<[1], [0], [0], [1], [0, 0, 1, 1], [], []>} : vector<256x36xbf16>, vector<36x4xbf16>, vector<256x4xf32> -> vector<256x4xf32>
    %c0_123 = arith.constant 0 : index
    %c0_124 = arith.constant 0 : index
    %80 = vector.load %arg9[%c0_123, %c0_124] : memref<1x4xf32, #tpu.memory_space<vmem>>, vector<1x4xf32>
    %81 = vector.shape_cast %80 : vector<1x4xf32> to vector<4xf32>
    %82 = vector.shape_cast %81 : vector<4xf32> to vector<1x4xf32>
    %83 = vector.broadcast %82 : vector<1x4xf32> to vector<256x4xf32>
    %84 = arith.addf %79, %83 : vector<256x4xf32>
    %cst_125 = arith.constant 0.000000e+00 : f32
    %85 = vector.broadcast %cst_125 : f32 to vector<256x4xf32>
    %86 = arith.maximumf %84, %85 : vector<256x4xf32>
    %87 = vector.shape_cast %11 : vector<256x16xf32> to vector<16x16x16xf32>
    %88 = vector.shape_cast %36 : vector<256x8xf32> to vector<16x16x8xf32>
    %89 = vector.shape_cast %61 : vector<256x4xf32> to vector<16x16x4xf32>
    %90 = vector.shape_cast %86 : vector<256x4xf32> to vector<16x16x4xf32>
    %91 = tpu.concatenate %87, %88, %89, %90 in 2 : vector<16x16x16xf32>, vector<16x16x8xf32>, vector<16x16x4xf32>, vector<16x16x4xf32> -> vector<16x16x32xf32>
    %92 = vector.shape_cast %91 : vector<16x16x32xf32> to vector<1x16x16x32xf32>
    %c0_126 = arith.constant 0 : index
    %c0_127 = arith.constant 0 : index
    %c0_128 = arith.constant 0 : index
    %c0_129 = arith.constant 0 : index
    %93 = vector.load %arg10[%c0_126, %c0_127, %c0_128, %c0_129] : memref<1x16x16x32xf32, #tpu.memory_space<vmem>>, vector<1x16x16x32xf32>
    tpu.vector_store %arg10[%c0_126, %c0_127, %c0_128, %c0_129], %92 {strides = array<i32>} : memref<1x16x16x32xf32, #tpu.memory_space<vmem>>, vector<1x16x16x32xf32>,
    return
  }
  func.func @transform_0(%arg0: i32) -> (i32, i32, i32, i32) {
    %c0_i32 = arith.constant 0 : i32
    %c0_i32_0 = arith.constant 0 : i32
    %c0_i32_1 = arith.constant 0 : i32
    %c0_i32_2 = arith.constant 0 : i32
    return %arg0, %c0_i32, %c0_i32_0, %c0_i32_1 : i32, i32, i32, i32
  }
  func.func @transform_1(%arg0: i32) -> (i32, i32) {
    %c0_i32 = arith.constant 0 : i32
    %c0_i32_0 = arith.constant 0 : i32
    %c0_i32_1 = arith.constant 0 : i32
    return %c0_i32, %c0_i32_0 : i32, i32
  }
  func.func @transform_2(%arg0: i32) -> (i32, i32) {
    %c0_i32 = arith.constant 0 : i32
    %c0_i32_0 = arith.constant 0 : i32
    %c0_i32_1 = arith.constant 0 : i32
    return %c0_i32, %c0_i32_0 : i32, i32
  }
  func.func @transform_3(%arg0: i32) -> (i32, i32) {
    %c0_i32 = arith.constant 0 : i32
    %c0_i32_0 = arith.constant 0 : i32
    %c0_i32_1 = arith.constant 0 : i32
    return %c0_i32, %c0_i32_0 : i32, i32
  }
  func.func @transform_4(%arg0: i32) -> (i32, i32) {
    %c0_i32 = arith.constant 0 : i32
    %c0_i32_0 = arith.constant 0 : i32
    %c0_i32_1 = arith.constant 0 : i32
    return %c0_i32, %c0_i32_0 : i32, i32
  }
  func.func @transform_5(%arg0: i32) -> (i32, i32) {
    %c0_i32 = arith.constant 0 : i32
    %c0_i32_0 = arith.constant 0 : i32
    %c0_i32_1 = arith.constant 0 : i32
    return %c0_i32, %c0_i32_0 : i32, i32
  }
  func.func @transform_6(%arg0: i32) -> (i32, i32) {
    %c0_i32 = arith.constant 0 : i32
    %c0_i32_0 = arith.constant 0 : i32
    %c0_i32_1 = arith.constant 0 : i32
    return %c0_i32, %c0_i32_0 : i32, i32
  }
  func.func @transform_7(%arg0: i32) -> (i32, i32) {
    %c0_i32 = arith.constant 0 : i32
    %c0_i32_0 = arith.constant 0 : i32
    %c0_i32_1 = arith.constant 0 : i32
    return %c0_i32, %c0_i32_0 : i32, i32
  }
  func.func @transform_8(%arg0: i32) -> (i32, i32) {
    %c0_i32 = arith.constant 0 : i32
    %c0_i32_0 = arith.constant 0 : i32
    %c0_i32_1 = arith.constant 0 : i32
    return %c0_i32, %c0_i32_0 : i32, i32
  }
  func.func @transform_9(%arg0: i32) -> (i32, i32, i32, i32) {
    %c0_i32 = arith.constant 0 : i32
    %c0_i32_0 = arith.constant 0 : i32
    %c0_i32_1 = arith.constant 0 : i32
    %c0_i32_2 = arith.constant 0 : i32
    return %arg0, %c0_i32, %c0_i32_0, %c0_i32_1 : i32, i32, i32, i32
  }
}

</mosaic_0001>

<llo_original>
// kernel: tpu_custom_call.1
$region0: #{tpu_custom_call.1}
  #allocation0 [shape = 'u32[]', space=smem, size = 0x4, offset = 0x4, fixed_abs, tag = 'smem constant byte address 0x4 - core index']
  #allocation1 [shape = 'u32[144,128]{1,0:T(1,128)}', space=vmem, size = 0x12000, scoped, tag = 'internal scratch']
  #allocation2 [shape = 'bf16[18,18,16]{2,1,0:T(8,128)(2,1)}', space=vmem, size = 0x1b000, scoped, tag = 'scratch operand']
  #allocation3 [shape = 'bf16[18,18,8]{2,1,0:T(8,128)(2,1)}', space=vmem, size = 0x1b000, scoped, tag = 'scratch operand']
  #allocation4 [shape = 'bf16[18,18,4]{2,1,0:T(8,128)(2,1)}', space=vmem, size = 0x1b000, scoped, tag = 'scratch operand']
  %s0 = inlined_call_operand.vmem [shape: bf16[2,16,16,8], index: 0, kind: input, shape index: {}]
  %s1 = inlined_call_operand.vmem [shape: bf16[8,16], index: 1, kind: input, shape index: {}]
  %s2 = inlined_call_operand.vmem [shape: bf16[144,8], index: 2, kind: input, shape index: {}]
  %s3 = inlined_call_operand.vmem [shape: bf16[72,4], index: 3, kind: input, shape index: {}]
  %s4 = inlined_call_operand.vmem [shape: bf16[36,4], index: 4, kind: input, shape index: {}]
  %s5 = inlined_call_operand.vmem [shape: f32[1,16], index: 5, kind: input, shape index: {}]
  %s6 = inlined_call_operand.vmem [shape: f32[1,8], index: 6, kind: input, shape index: {}]
  %s7 = inlined_call_operand.vmem [shape: f32[1,4], index: 7, kind: input, shape index: {}]
  %s8 = inlined_call_operand.vmem [shape: f32[1,4], index: 8, kind: input, shape index: {}]
  %s9 = inlined_call_operand.hbm [shape: f32[2,16,16,32], index: 9, kind: output, shape index: {}]
  %s10 = sld [smem:[#allocation0]]
  $region69: #{tpu_custom_call.1} parent=0
    _
  %s12 = ssub.s32 1, %s10
  %s13 = scalar_select 0, %s12, %s10
  $region1: #{tpu_custom_call.1} parent=0
    #allocation5 [shape = 'u8[262144]{0}', space=vmem, size = 0x40000, scoped, tag = 'output window, operand 0']
    #allocation6 [shape = 's32[2]{0}', space=sflag, size = 0x8, scoped, tag = 'scoped memory for tpu_custom_call.1']
    %14 = vsyncpa [#allocation6], 0
    %s15 = scalar_lea.sflag [#allocation6], 1
    %16 = vsyncpa %s15, 0
    loop: start=0, step=1, limit=4
    $region2: #{tpu_custom_call.1} parent=1 // loop_pre_header
      _
    $region3: #{tpu_custom_call.1} parent=1 // loop_header
      %s18 = sphi 0, %s22
      %p19 = scmp.ge.s32.totalorder %s18, 4
      %s28 = sphi 0, %s30
      %s31 = sphi 0, %s28
      %s32 = sphi 0, %s31
      %s48 = sphi 0, %s32
      %s52 = sphi 0, %s52
      %s54 = sphi 0, %s52
      %s55 = sphi 0, %s54
      %s69 = sphi 0, %s55
      %s73 = sphi 0, %s73
      %s75 = sphi 0, %s73
      %s76 = sphi 0, %s75
      %s90 = sphi 0, %s76
      %s94 = sphi 0, %s94
      %s96 = sphi 0, %s94
      %s97 = sphi 0, %s96
      %s111 = sphi 0, %s97
      %s115 = sphi 0, %s115
      %s117 = sphi 0, %s115
      %s118 = sphi 0, %s117
      %s132 = sphi 0, %s118
      %s136 = sphi 0, %s136
      %s138 = sphi 0, %s136
      %s139 = sphi 0, %s138
      %s153 = sphi 0, %s139
      %s157 = sphi 0, %s157
      %s159 = sphi 0, %s157
      %s160 = sphi 0, %s159
      %s174 = sphi 0, %s160
      %s178 = sphi 0, %s178
      %s180 = sphi 0, %s178
      %s181 = sphi 0, %s180
      %s195 = sphi 0, %s181
      %s199 = sphi 0, %s199
      %s201 = sphi 0, %s199
      %s202 = sphi 0, %s201
      %s216 = sphi 0, %s202
      %s222 = sphi 0, %s224
      %s225 = sphi 0, %s222
      %s226 = sphi 0, %s225
      %s242 = sphi 0, %s226
    $region4: #{tpu_custom_call.1} parent=1 // loop_header_branch
      %21 = sbr.rel (%p19) target = $region8
    $region5: #{tpu_custom_call.1} parent=1 // loop_body
      %s23 = ssub.s32 %s18, 1
      %s24 = ssub.s32 %s18, 2
      %s25 = sadd.s32 %s18, 1
      %s26 = ssub.s32 %s18, %s25
      %p27 = scmp.eq.s32.totalorder %s26, 0
      %s29 = sadd.s32 %s28, 1
      %s30 = scalar_select %p27, %s28, %s29
      %p33 = pneg %p27
      %p34 = scmp.eq.s32.totalorder %s18, 1
      %p35 = por %p33, %p34
      %p36 = scmp.ne.s32.totalorder %s28, %s31
      %p37 = scmp.eq.s32.totalorder %s18, 0
      %p38 = por %p36, %p37
      %p39 = scmp.ne.s32.totalorder %s28, %s31
      %p40 = scmp.eq.s32.totalorder %s23, 1
      %p41 = por %p39, %p40
      %p42 = scmp.ne.s32.totalorder %s31, %s32
      %p43 = scmp.eq.s32.totalorder %s23, 0
      %p44 = por %p42, %p43
      %p45 = scmp.ne.s32.totalorder %s31, %s32
      %p46 = scmp.eq.s32.totalorder %s24, 1
      %p47 = por %p45, %p46
      %p49 = scmp.ne.s32.totalorder %s32, %s48
      %p50 = scmp.eq.s32.totalorder %s24, 0
      %p51 = por %p49, %p50
      %s53 = sadd.s32 %s52, 1
      %p56 = scmp.eq.s32.totalorder %s18, 1
      %p57 = scmp.ne.s32.totalorder %s52, %s54
      %p58 = scmp.eq.s32.totalorder %s18, 0
      %p59 = por %p57, %p58
      %p60 = scmp.ne.s32.totalorder %s52, %s54
      %p61 = scmp.eq.s32.totalorder %s23, 1
      %p62 = por %p60, %p61
      %p63 = scmp.ne.s32.totalorder %s54, %s55
      %p64 = scmp.eq.s32.totalorder %s23, 0
      %p65 = por %p63, %p64
      %p66 = scmp.ne.s32.totalorder %s54, %s55
      %p67 = scmp.eq.s32.totalorder %s24, 1
      %p68 = por %p66, %p67
      %p70 = scmp.ne.s32.totalorder %s55, %s69
      %p71 = scmp.eq.s32.totalorder %s24, 0
      %p72 = por %p70, %p71
      %s74 = sadd.s32 %s73, 1
      %p77 = scmp.eq.s32.totalorder %s18, 1
      %p78 = scmp.ne.s32.totalorder %s73, %s75
      %p79 = scmp.eq.s32.totalorder %s18, 0
      %p80 = por %p78, %p79
      %p81 = scmp.ne.s32.totalorder %s73, %s75
      %p82 = scmp.eq.s32.totalorder %s23, 1
      %p83 = por %p81, %p82
      %p84 = scmp.ne.s32.totalorder %s75, %s76
      %p85 = scmp.eq.s32.totalorder %s23, 0
      %p86 = por %p84, %p85
      %p87 = scmp.ne.s32.totalorder %s75, %s76
      %p88 = scmp.eq.s32.totalorder %s24, 1
      %p89 = por %p87, %p88
      %p91 = scmp.ne.s32.totalorder %s76, %s90
      %p92 = scmp.eq.s32.totalorder %s24, 0
      %p93 = por %p91, %p92
      %s95 = sadd.s32 %s94, 1
      %p98 = scmp.eq.s32.totalorder %s18, 1
      %p99 = scmp.ne.s32.totalorder %s94, %s96
      %p100 = scmp.eq.s32.totalorder %s18, 0
      %p101 = por %p99, %p100
      %p102 = scmp.ne.s32.totalorder %s94, %s96
      %p103 = scmp.eq.s32.totalorder %s23, 1
      %p104 = por %p102, %p103
      %p105 = scmp.ne.s32.totalorder %s96, %s97
      %p106 = scmp.eq.s32.totalorder %s23, 0
      %p107 = por %p105, %p106
      %p108 = scmp.ne.s32.totalorder %s96, %s97
      %p109 = scmp.eq.s32.totalorder %s24, 1
      %p110 = por %p108, %p109
      %p112 = scmp.ne.s32.totalorder %s97, %s111
      %p113 = scmp.eq.s32.totalorder %s24, 0
      %p114 = por %p112, %p113
      %s116 = sadd.s32 %s115, 1
      %p119 = scmp.eq.s32.totalorder %s18, 1
      %p120 = scmp.ne.s32.totalorder %s115, %s117
      %p121 = scmp.eq.s32.totalorder %s18, 0
      %p122 = por %p120, %p121
      %p123 = scmp.ne.s32.totalorder %s115, %s117
      %p124 = scmp.eq.s32.totalorder %s23, 1
      %p125 = por %p123, %p124
      %p126 = scmp.ne.s32.totalorder %s117, %s118
      %p127 = scmp.eq.s32.totalorder %s23, 0
      %p128 = por %p126, %p127
      %p129 = scmp.ne.s32.totalorder %s117, %s118
      %p130 = scmp.eq.s32.totalorder %s24, 1
      %p131 = por %p129, %p130
      %p133 = scmp.ne.s32.totalorder %s118, %s132
      %p134 = scmp.eq.s32.totalorder %s24, 0
      %p135 = por %p133, %p134
      %s137 = sadd.s32 %s136, 1
      %p140 = scmp.eq.s32.totalorder %s18, 1
      %p141 = scmp.ne.s32.totalorder %s136, %s138
      %p142 = scmp.eq.s32.totalorder %s18, 0
      %p143 = por %p141, %p142
      %p144 = scmp.ne.s32.totalorder %s136, %s138
      %p145 = scmp.eq.s32.totalorder %s23, 1
      %p146 = por %p144, %p145
      %p147 = scmp.ne.s32.totalorder %s138, %s139
      %p148 = scmp.eq.s32.totalorder %s23, 0
      %p149 = por %p147, %p148
      %p150 = scmp.ne.s32.totalorder %s138, %s139
      %p151 = scmp.eq.s32.totalorder %s24, 1
      %p152 = por %p150, %p151
      %p154 = scmp.ne.s32.totalorder %s139, %s153
      %p155 = scmp.eq.s32.totalorder %s24, 0
      %p156 = por %p154, %p155
      %s158 = sadd.s32 %s157, 1
      %p161 = scmp.eq.s32.totalorder %s18, 1
      %p162 = scmp.ne.s32.totalorder %s157, %s159
      %p163 = scmp.eq.s32.totalorder %s18, 0
      %p164 = por %p162, %p163
      %p165 = scmp.ne.s32.totalorder %s157, %s159
      %p166 = scmp.eq.s32.totalorder %s23, 1
      %p167 = por %p165, %p166
      %p168 = scmp.ne.s32.totalorder %s159, %s160
      %p169 = scmp.eq.s32.totalorder %s23, 0
      %p170 = por %p168, %p169
      %p171 = scmp.ne.s32.totalorder %s159, %s160
      %p172 = scmp.eq.s32.totalorder %s24, 1
      %p173 = por %p171, %p172
      %p175 = scmp.ne.s32.totalorder %s160, %s174
      %p176 = scmp.eq.s32.totalorder %s24, 0
      %p177 = por %p175, %p176
      %s179 = sadd.s32 %s178, 1
      %p182 = scmp.eq.s32.totalorder %s18, 1
      %p183 = scmp.ne.s32.totalorder %s178, %s180
      %p184 = scmp.eq.s32.totalorder %s18, 0
      %p185 = por %p183, %p184
      %p186 = scmp.ne.s32.totalorder %s178, %s180
      %p187 = scmp.eq.s32.totalorder %s23, 1
      %p188 = por %p186, %p187
      %p189 = scmp.ne.s32.totalorder %s180, %s181
      %p190 = scmp.eq.s32.totalorder %s23, 0
      %p191 = por %p189, %p190
      %p192 = scmp.ne.s32.totalorder %s180, %s181
      %p193 = scmp.eq.s32.totalorder %s24, 1
      %p194 = por %p192, %p193
      %p196 = scmp.ne.s32.totalorder %s181, %s195
      %p197 = scmp.eq.s32.totalorder %s24, 0
      %p198 = por %p196, %p197
      %s200 = sadd.s32 %s199, 1
      %p203 = scmp.eq.s32.totalorder %s18, 1
      %p204 = scmp.ne.s32.totalorder %s199, %s201
      %p205 = scmp.eq.s32.totalorder %s18, 0
      %p206 = por %p204, %p205
      %p207 = scmp.ne.s32.totalorder %s199, %s201
      %p208 = scmp.eq.s32.totalorder %s23, 1
      %p209 = por %p207, %p208
      %p210 = scmp.ne.s32.totalorder %s201, %s202
      %p211 = scmp.eq.s32.totalorder %s23, 0
      %p212 = por %p210, %p211
      %p213 = scmp.ne.s32.totalorder %s201, %s202
      %p214 = scmp.eq.s32.totalorder %s24, 1
      %p215 = por %p213, %p214
      %p217 = scmp.ne.s32.totalorder %s202, %s216
      %p218 = scmp.eq.s32.totalorder %s24, 0
      %p219 = por %p217, %p218
      %s220 = ssub.s32 %s18, %s25
      %p221 = scmp.eq.s32.totalorder %s220, 0
      %s223 = sadd.s32 %s222, 1
      %s224 = scalar_select %p221, %s222, %s223
      %p227 = pneg %p221
      %p228 = scmp.eq.s32.totalorder %s18, 1
      %p229 = por %p227, %p228
      %p230 = scmp.ne.s32.totalorder %s222, %s225
      %p231 = scmp.eq.s32.totalorder %s18, 0
      %p232 = por %p230, %p231
      %p233 = scmp.ne.s32.totalorder %s222, %s225
      %p234 = scmp.eq.s32.totalorder %s23, 1
      %p235 = por %p233, %p234
      %p236 = scmp.ne.s32.totalorder %s225, %s226
      %p237 = scmp.eq.s32.totalorder %s23, 0
      %p238 = por %p236, %p237
      %p239 = scmp.ne.s32.totalorder %s225, %s226
      %p240 = scmp.eq.s32.totalorder %s24, 1
      %p241 = por %p239, %p240
      %p243 = scmp.ne.s32.totalorder %s226, %s242
      %p244 = scmp.eq.s32.totalorder %s24, 0
      %p245 = por %p243, %p244
      %p246 = scmp.le.s32.totalorder 1, %s18
      %p247 = scmp.lt.s32.totalorder %s18, 3
      %p248 = pnand %p246, %p247
      %p249 = pneg %p248
      // Predicated region
      $region9: #{tpu_custom_call.1} parent=5 // pred_check
        _
      $region10: #{tpu_custom_call.1} parent=5 // pred_check_branch
        %251 = sbr.rel (%p248) target = $region12
      $region11: #{tpu_custom_call.1} parent=5 // pred_region
        %s252 = ssub.s32 %s18, 1
        // Predicated region
        $region13: #{tpu_custom_call.1} parent=11 // pred_check
          %p253 = pneg %p65
        $region14: #{tpu_custom_call.1} parent=11 // pred_check_branch
          %255 = sbr.rel (%p253) target = $region16
        $region15: #{tpu_custom_call.1} parent=11 // pred_region
          _
        $region16: #{tpu_custom_call.1} parent=11 // pred_fallthru
          _
        // Predicated region
        $region17: #{tpu_custom_call.1} parent=11 // pred_check
          %p256 = pneg %p86
        $region18: #{tpu_custom_call.1} parent=11 // pred_check_branch
          %258 = sbr.rel (%p256) target = $region20
        $region19: #{tpu_custom_call.1} parent=11 // pred_region
          _
        $region20: #{tpu_custom_call.1} parent=11 // pred_fallthru
          _
        // Predicated region
        $region21: #{tpu_custom_call.1} parent=11 // pred_check
          %p259 = pneg %p107
        $region22: #{tpu_custom_call.1} parent=11 // pred_check_branch
          %261 = sbr.rel (%p259) target = $region24
        $region23: #{tpu_custom_call.1} parent=11 // pred_region
          _
        $region24: #{tpu_custom_call.1} parent=11 // pred_fallthru
          _
        // Predicated region
        $region25: #{tpu_custom_call.1} parent=11 // pred_check
          %p262 = pneg %p128
        $region26: #{tpu_custom_call.1} parent=11 // pred_check_branch
          %264 = sbr.rel (%p262) target = $region28
        $region27: #{tpu_custom_call.1} parent=11 // pred_region
          _
        $region28: #{tpu_custom_call.1} parent=11 // pred_fallthru
          _
        // Predicated region
        $region29: #{tpu_custom_call.1} parent=11 // pred_check
          %p265 = pneg %p149
        $region30: #{tpu_custom_call.1} parent=11 // pred_check_branch
          %267 = sbr.rel (%p265) target = $region32
        $region31: #{tpu_custom_call.1} parent=11 // pred_region
          _
        $region32: #{tpu_custom_call.1} parent=11 // pred_fallthru
          _
        // Predicated region
        $region33: #{tpu_custom_call.1} parent=11 // pred_check
          %p268 = pneg %p170
        $region34: #{tpu_custom_call.1} parent=11 // pred_check_branch
          %270 = sbr.rel (%p268) target = $region36
        $region35: #{tpu_custom_call.1} parent=11 // pred_region
          _
        $region36: #{tpu_custom_call.1} parent=11 // pred_fallthru
          _
        // Predicated region
        $region37: #{tpu_custom_call.1} parent=11 // pred_check
          %p271 = pneg %p191
        $region38: #{tpu_custom_call.1} parent=11 // pred_check_branch
          %273 = sbr.rel (%p271) target = $region40
        $region39: #{tpu_custom_call.1} parent=11 // pred_region
          _
        $region40: #{tpu_custom_call.1} parent=11 // pred_fallthru
          _
        // Predicated region
        $region41: #{tpu_custom_call.1} parent=11 // pred_check
          %p274 = pneg %p212
        $region42: #{tpu_custom_call.1} parent=11 // pred_check_branch
          %276 = sbr.rel (%p274) target = $region44
        $region43: #{tpu_custom_call.1} parent=11 // pred_region
          _
        $region44: #{tpu_custom_call.1} parent=11 // pred_fallthru
          _
      $region12: #{tpu_custom_call.1} parent=5 // pred_fallthru
        _
      %p277 = scmp.lt.s32.totalorder %s18, 2
      // Predicated region
      $region45: #{tpu_custom_call.1} parent=5 // pred_check
        %p278 = pneg %p277
      $region46: #{tpu_custom_call.1} parent=5 // pred_check_branch
        %280 = sbr.rel (%p278) target = $region48
      $region47: #{tpu_custom_call.1} parent=5 // pred_region
        // Predicated region
        $region49: #{tpu_custom_call.1} parent=47 // pred_check
          %p281 = pneg %p38
        $region50: #{tpu_custom_call.1} parent=47 // pred_check_branch
          %283 = sbr.rel (%p281) target = $region52
        $region51: #{tpu_custom_call.1} parent=47 // pred_region
          %p284 = scmp.lt.s32.totalorder %s18, 1
          %s285 = scalar_select %p284, %s18, 1
          %s286 = smul.addr %s285, 32
          %s287 = smul.addr %s286, 4
          %s288 = scalar_lea.vmem %s0, %s287
        $region52: #{tpu_custom_call.1} parent=47 // pred_fallthru
          _
      $region48: #{tpu_custom_call.1} parent=5 // pred_fallthru
        _
      %p289 = scmp.le.s32.totalorder 1, %s18
      %p290 = scmp.lt.s32.totalorder %s18, 3
      %p291 = pnand %p289, %p290
      %p292 = pneg %p291
      // Predicated region
      $region53: #{tpu_custom_call.1} parent=5 // pred_check
        _
      $region54: #{tpu_custom_call.1} parent=5 // pred_check_branch
        %294 = sbr.rel (%p291) target = $region56
      $region55: #{tpu_custom_call.1} parent=5 // pred_region
        %s295 = ssub.s32 %s18, 1
        %p296 = scmp.lt.s32.totalorder %s23, 1
        %s297 = scalar_select %p296, %s23, 1
        %s298 = smul.addr %s297, 32
        %s299 = smul.addr %s298, 4
        %s300 = scalar_lea.vmem %s0, %s299
        %p301 = pneg %p44
        %p302 = pneg %p41
        %p303 = pneg %p65
        %p304 = pneg %p62
        %p305 = pneg %p86
        %p306 = pneg %p83
        %p307 = pneg %p107
        %p308 = pneg %p104
        %p309 = pneg %p128
        %p310 = pneg %p125
        %p311 = pneg %p149
        %p312 = pneg %p146
        %p313 = pneg %p170
        %p314 = pneg %p167
        %p315 = pneg %p191
        %p316 = pneg %p188
        %p317 = pneg %p212
        %p318 = pneg %p209
        %p319 = pneg %p238
        %p320 = pneg %p235
        %s321 = sand.u32 %s225, 1
        %s322 = scalar_lea.sflag [#allocation6], %s321
        %s323 = sand.u32 %s225, 1
        %s324 = smul.addr %s323, 256
        %s325 = scalar_lea.vmem [#allocation5], %s324
        %p326 = scmp.lt.s32.totalorder %s23, 1
        %s327 = scalar_select %p326, %s23, 1
        %s328 = smul.addr %s327, 32
        %s329 = smul.addr %s328, 4
        %s330 = scalar_lea.vmem %s0, %s329
        %v332 = vld [vmem:[%s330] sm:$0xf]
        %v333 = vld [vmem:[%s330 + $0x4] sm:$0xf]
        %v334 = vld [vmem:[%s330 + $0x8] sm:$0xf]
        %v335 = vld [vmem:[%s330 + $0xc] sm:$0xf]
        %v336 = vld [vmem:[%s330 + $0x10] sm:$0xf]
        %v337 = vld [vmem:[%s330 + $0x14] sm:$0xf]
        %v338 = vld [vmem:[%s330 + $0x18] sm:$0xf]
        %v339 = vld [vmem:[%s330 + $0x1c] sm:$0xf]
        %v340 = vld [vmem:[%s330 + $0x20] sm:$0xf]
        %v341 = vld [vmem:[%s330 + $0x24] sm:$0xf]
        %v342 = vld [vmem:[%s330 + $0x28] sm:$0xf]
        %v343 = vld [vmem:[%s330 + $0x2c] sm:$0xf]
        %v344 = vld [vmem:[%s330 + $0x30] sm:$0xf]
        %v345 = vld [vmem:[%s330 + $0x34] sm:$0xf]
        %v346 = vld [vmem:[%s330 + $0x38] sm:$0xf]
        %v347 = vld [vmem:[%s330 + $0x3c] sm:$0xf]
        %v348 = vld [vmem:[%s330 + $0x40] sm:$0xf]
        %v349 = vld [vmem:[%s330 + $0x44] sm:$0xf]
        %v350 = vld [vmem:[%s330 + $0x48] sm:$0xf]
        %v351 = vld [vmem:[%s330 + $0x4c] sm:$0xf]
        %v352 = vld [vmem:[%s330 + $0x50] sm:$0xf]
        %v353 = vld [vmem:[%s330 + $0x54] sm:$0xf]
        %v354 = vld [vmem:[%s330 + $0x58] sm:$0xf]
        %v355 = vld [vmem:[%s330 + $0x5c] sm:$0xf]
        %v356 = vld [vmem:[%s330 + $0x60] sm:$0xf]
        %v357 = vld [vmem:[%s330 + $0x64] sm:$0xf]
        %v358 = vld [vmem:[%s330 + $0x68] sm:$0xf]
        %v359 = vld [vmem:[%s330 + $0x6c] sm:$0xf]
        %v360 = vld [vmem:[%s330 + $0x70] sm:$0xf]
        %v361 = vld [vmem:[%s330 + $0x74] sm:$0xf]
        %v362 = vld [vmem:[%s330 + $0x78] sm:$0xf]
        %v363 = vld [vmem:[%s330 + $0x7c] sm:$0xf]
        %v364 = vld [vmem:[%s1] sm:$0xf]
        %v365 = vld [vmem:[%s5] sm:$0x1]
        %v367 = vlaneseq
        %v368 = vshrl.u32 %v367, 7
        %v369 = vsub.s32 0, %v368
        %v370 = vrot.slane %v365, %v369
        %v404 = vunpack.c.l.b16 %v332
        %v405 = vunpack.c.l.b16 %v333
        %v406 = vunpack.c.l.b16 %v334
        %v407 = vunpack.c.l.b16 %v335
        %v408 = vunpack.c.l.b16 %v336
        %v409 = vunpack.c.l.b16 %v337
        %v410 = vunpack.c.l.b16 %v338
        %v411 = vunpack.c.l.b16 %v339
        %v412 = vunpack.c.l.b16 %v340
        %v413 = vunpack.c.l.b16 %v341
        %v414 = vunpack.c.l.b16 %v342
        %v415 = vunpack.c.l.b16 %v343
        %v416 = vunpack.c.l.b16 %v344
        %v417 = vunpack.c.l.b16 %v345
        %v418 = vunpack.c.l.b16 %v346
        %v419 = vunpack.c.l.b16 %v347
        %v420 = vunpack.c.l.b16 %v348
        %v421 = vunpack.c.l.b16 %v349
        %v422 = vunpack.c.l.b16 %v350
        %v423 = vunpack.c.l.b16 %v351
        %v424 = vunpack.c.l.b16 %v352
        %v425 = vunpack.c.l.b16 %v353
        %v426 = vunpack.c.l.b16 %v354
        %v427 = vunpack.c.l.b16 %v355
        %v428 = vunpack.c.l.b16 %v356
        %v429 = vunpack.c.l.b16 %v357
        %v430 = vunpack.c.l.b16 %v358
        %v431 = vunpack.c.l.b16 %v359
        %v432 = vunpack.c.l.b16 %v360
        %v433 = vunpack.c.l.b16 %v361
        %v434 = vunpack.c.l.b16 %v362
        %v435 = vunpack.c.l.b16 %v363
        %v436 = vpack.c.b16 %v405, %v404
        %v437 = vpack.c.b16 %v407, %v406
        %v438 = vpack.c.b16 %v409, %v408
        %v439 = vpack.c.b16 %v411, %v410
        %v440 = vpack.c.b16 %v413, %v412
        %v441 = vpack.c.b16 %v415, %v414
        %v442 = vpack.c.b16 %v417, %v416
        %v443 = vpack.c.b16 %v419, %v418
        %v444 = vpack.c.b16 %v421, %v420
        %v445 = vpack.c.b16 %v423, %v422
        %v446 = vpack.c.b16 %v425, %v424
        %v447 = vpack.c.b16 %v427, %v426
        %v448 = vpack.c.b16 %v429, %v428
        %v449 = vpack.c.b16 %v431, %v430
        %v450 = vpack.c.b16 %v433, %v432
        %v451 = vpack.c.b16 %v435, %v434
        %vm452 = vcmask 64512
        %v454 = vsel %vm452, %v436, 0
        %v457 = vsel %vm452, %v437, 0
        %v460 = vsel %vm452, %v438, 0
        %v463 = vsel %vm452, %v439, 0
        %v466 = vsel %vm452, %v440, 0
        %v469 = vsel %vm452, %v441, 0
        %v472 = vsel %vm452, %v442, 0
        %v475 = vsel %vm452, %v443, 0
        %v478 = vsel %vm452, %v444, 0
        %v481 = vsel %vm452, %v445, 0
        %v484 = vsel %vm452, %v446, 0
        %v487 = vsel %vm452, %v447, 0
        %v490 = vsel %vm452, %v448, 0
        %v493 = vsel %vm452, %v449, 0
        %v496 = vsel %vm452, %v450, 0
        %v499 = vsel %vm452, %v451, 0
        %vm501 = vcmask 1043456
        %v503 = vsel %vm501, %v364, 0
        %505 = vmatprep.subr.bf16.mxu0 0
        %506 = vmatpush1.bf16.msra.mxu0 %v503
        %507 = vmatprep.subr.bf16.mxu0 0
        %508 = vmatpush1.bf16.msra.mxu0 0
        %509 = vmatprep.subr.bf16.mxu0 0
        %510 = vmatpush1.bf16.msra.mxu0 0
        %511 = vmatprep.subr.bf16.mxu0 0
        %512 = vmatpush1.bf16.msra.mxu0 0
        %513 = vmatprep.subr.bf16.mxu0 0
        %514 = vmatpush1.bf16.msra.mxu0 0
        %515 = vmatprep.subr.bf16.mxu0 0
        %516 = vmatpush1.bf16.msra.mxu0 0
        %517 = vmatprep.subr.bf16.mxu0 0
        %518 = vmatpush1.bf16.msra.mxu0 0
        %519 = vmatprep.subr.bf16.mxu0 0
        %520 = vmatpush1.bf16.msra.mxu0 0
        %521 = vmatprep.subr.bf16.mxu0 0
        %522 = vmatpush1.bf16.msra.mxu0 0
        %523 = vmatprep.subr.bf16.mxu0 0
        %524 = vmatpush1.bf16.msra.mxu0 0
        %525 = vmatprep.subr.bf16.mxu0 0
        %526 = vmatpush1.bf16.msra.mxu0 0
        %527 = vmatprep.subr.bf16.mxu0 0
        %528 = vmatpush1.bf16.msra.mxu0 0
        %529 = vmatprep.subr.bf16.mxu0 0
        %530 = vmatpush1.bf16.msra.mxu0 0
        %531 = vmatprep.subr.bf16.mxu0 0
        %532 = vmatpush1.bf16.msra.mxu0 0
        %533 = vmatprep.subr.bf16.mxu0 0
        %534 = vmatpush1.bf16.msra.mxu0 0
        %535 = vmatprep.subr.bf16.mxu0 0
        %536 = vmatpush1.bf16.msra.mxu0 0
        %537 = vmatprep.mubr.bf16.mxu0 0
        %538 = vmatmul.mubr.bf16.gmra.mrb[0].mxu0 %v454
        %v539 = vpop.f32.mrb[0].mxu0
        %v540 = vadd.f32 %v370, %v539
        %v541 = vpop.f32.mrb[0].mxu0
        %v542 = vpop.f32.mrb[0].mxu0
        %v543 = vadd.f32 %v370, %v542
        %v544 = vpop.f32.mrb[0].mxu0
        %545 = vmatprep.mubr.bf16.mxu0 0
        %546 = vmatmul.mubr.bf16.gmra.mrb[0].mxu0 %v457
        %v547 = vpop.f32.mrb[0].mxu0
        %v548 = vadd.f32 %v370, %v547
        %v549 = vpop.f32.mrb[0].mxu0
        %v550 = vpop.f32.mrb[0].mxu0
        %v551 = vadd.f32 %v370, %v550
        %v552 = vpop.f32.mrb[0].mxu0
        %553 = vmatprep.mubr.bf16.mxu0 0
        %554 = vmatmul.mubr.bf16.gmra.mrb[0].mxu0 %v460
        %v555 = vpop.f32.mrb[0].mxu0
        %v556 = vadd.f32 %v370, %v555
        %v557 = vpop.f32.mrb[0].mxu0
        %v558 = vpop.f32.mrb[0].mxu0
        %v559 = vadd.f32 %v370, %v558
        %v560 = vpop.f32.mrb[0].mxu0
        %561 = vmatprep.mubr.bf16.mxu0 0
        %562 = vmatmul.mubr.bf16.gmra.mrb[0].mxu0 %v463
        %v563 = vpop.f32.mrb[0].mxu0
        %v564 = vadd.f32 %v370, %v563
        %v565 = vpop.f32.mrb[0].mxu0
        %v566 = vpop.f32.mrb[0].mxu0
        %v567 = vadd.f32 %v370, %v566
        %v568 = vpop.f32.mrb[0].mxu0
        %569 = vmatprep.mubr.bf16.mxu0 0
        %570 = vmatmul.mubr.bf16.gmra.mrb[0].mxu0 %v466
        %v571 = vpop.f32.mrb[0].mxu0
        %v572 = vadd.f32 %v370, %v571
        %v573 = vpop.f32.mrb[0].mxu0
        %v574 = vpop.f32.mrb[0].mxu0
        %v575 = vadd.f32 %v370, %v574
        %v576 = vpop.f32.mrb[0].mxu0
        %577 = vmatprep.mubr.bf16.mxu0 0
        %578 = vmatmul.mubr.bf16.gmra.mrb[0].mxu0 %v469
        %v579 = vpop.f32.mrb[0].mxu0
        %v580 = vadd.f32 %v370, %v579
        %v581 = vpop.f32.mrb[0].mxu0
        %v582 = vpop.f32.mrb[0].mxu0
        %v583 = vadd.f32 %v370, %v582
        %v584 = vpop.f32.mrb[0].mxu0
        %585 = vmatprep.mubr.bf16.mxu0 0
        %586 = vmatmul.mubr.bf16.gmra.mrb[0].mxu0 %v472
        %v587 = vpop.f32.mrb[0].mxu0
        %v588 = vadd.f32 %v370, %v587
        %v589 = vpop.f32.mrb[0].mxu0
        %v590 = vpop.f32.mrb[0].mxu0
        %v591 = vadd.f32 %v370, %v590
        %v592 = vpop.f32.mrb[0].mxu0
        %593 = vmatprep.mubr.bf16.mxu0 0
        %594 = vmatmul.mubr.bf16.gmra.mrb[0].mxu0 %v475
        %v595 = vpop.f32.mrb[0].mxu0
        %v596 = vadd.f32 %v370, %v595
        %v597 = vpop.f32.mrb[0].mxu0
        %v598 = vpop.f32.mrb[0].mxu0
        %v599 = vadd.f32 %v370, %v598
        %v600 = vpop.f32.mrb[0].mxu0
        %601 = vmatprep.mubr.bf16.mxu0 0
        %602 = vmatmul.mubr.bf16.gmra.mrb[0].mxu0 %v478
        %v603 = vpop.f32.mrb[0].mxu0
        %v604 = vadd.f32 %v370, %v603
        %v605 = vpop.f32.mrb[0].mxu0
        %v606 = vpop.f32.mrb[0].mxu0
        %v607 = vadd.f32 %v370, %v606
        %v608 = vpop.f32.mrb[0].mxu0
        %609 = vmatprep.mubr.bf16.mxu0 0
        %610 = vmatmul.mubr.bf16.gmra.mrb[0].mxu0 %v481
        %v611 = vpop.f32.mrb[0].mxu0
        %v612 = vadd.f32 %v370, %v611
        %v613 = vpop.f32.mrb[0].mxu0
        %v614 = vpop.f32.mrb[0].mxu0
        %v615 = vadd.f32 %v370, %v614
        %v616 = vpop.f32.mrb[0].mxu0
        %617 = vmatprep.mubr.bf16.mxu0 0
        %618 = vmatmul.mubr.bf16.gmra.mrb[0].mxu0 %v484
        %v619 = vpop.f32.mrb[0].mxu0
        %v620 = vadd.f32 %v370, %v619
        %v621 = vpop.f32.mrb[0].mxu0
        %v622 = vpop.f32.mrb[0].mxu0
        %v623 = vadd.f32 %v370, %v622
        %v624 = vpop.f32.mrb[0].mxu0
        %625 = vmatprep.mubr.bf16.mxu0 0
        %626 = vmatmul.mubr.bf16.gmra.mrb[0].mxu0 %v487
        %v627 = vpop.f32.mrb[0].mxu0
        %v628 = vadd.f32 %v370, %v627
        %v629 = vpop.f32.mrb[0].mxu0
        %v630 = vpop.f32.mrb[0].mxu0
        %v631 = vadd.f32 %v370, %v630
        %v632 = vpop.f32.mrb[0].mxu0
        %633 = vmatprep.mubr.bf16.mxu0 0
        %634 = vmatmul.mubr.bf16.gmra.mrb[0].mxu0 %v490
        %v635 = vpop.f32.mrb[0].mxu0
        %v636 = vadd.f32 %v370, %v635
        %v637 = vpop.f32.mrb[0].mxu0
        %v638 = vpop.f32.mrb[0].mxu0
        %v639 = vadd.f32 %v370, %v638
        %v640 = vpop.f32.mrb[0].mxu0
        %641 = vmatprep.mubr.bf16.mxu0 0
        %642 = vmatmul.mubr.bf16.gmra.mrb[0].mxu0 %v493
        %v643 = vpop.f32.mrb[0].mxu0
        %v644 = vadd.f32 %v370, %v643
        %v645 = vpop.f32.mrb[0].mxu0
        %v646 = vpop.f32.mrb[0].mxu0
        %v647 = vadd.f32 %v370, %v646
        %v648 = vpop.f32.mrb[0].mxu0
        %649 = vmatprep.mubr.bf16.mxu0 0
        %650 = vmatmul.mubr.bf16.gmra.mrb[0].mxu0 %v496
        %v651 = vpop.f32.mrb[0].mxu0
        %v652 = vadd.f32 %v370, %v651
        %v653 = vpop.f32.mrb[0].mxu0
        %v654 = vpop.f32.mrb[0].mxu0
        %v655 = vadd.f32 %v370, %v654
        %v656 = vpop.f32.mrb[0].mxu0
        %657 = vmatprep.mubr.bf16.mxu0 0
        %658 = vmatmul.mubr.bf16.gmra.mrb[0].mxu0 %v499
        %v659 = vpop.f32.mrb[0].mxu0
        %v660 = vadd.f32 %v370, %v659
        %v661 = vpop.f32.mrb[0].mxu0
        %v662 = vpop.f32.mrb[0].mxu0
        %v663 = vadd.f32 %v370, %v662
        %v664 = vpop.f32.mrb[0].mxu0
        %665 = vdwg.mxu0
        %v666 = vmax.f32 %v540, 0.0
        %v667 = vmax.f32 %v543, 0.0
        %v668 = vmax.f32 %v548, 0.0
        %v669 = vmax.f32 %v551, 0.0
        %v670 = vmax.f32 %v556, 0.0
        %v671 = vmax.f32 %v559, 0.0
        %v672 = vmax.f32 %v564, 0.0
        %v673 = vmax.f32 %v567, 0.0
        %v674 = vmax.f32 %v572, 0.0
        %v675 = vmax.f32 %v575, 0.0
        %v676 = vmax.f32 %v580, 0.0
        %v677 = vmax.f32 %v583, 0.0
        %v678 = vmax.f32 %v588, 0.0
        %v679 = vmax.f32 %v591, 0.0
        %v680 = vmax.f32 %v596, 0.0
        %v681 = vmax.f32 %v599, 0.0
        %v682 = vmax.f32 %v604, 0.0
        %v683 = vmax.f32 %v607, 0.0
        %v684 = vmax.f32 %v612, 0.0
        %v685 = vmax.f32 %v615, 0.0
        %v686 = vmax.f32 %v620, 0.0
        %v687 = vmax.f32 %v623, 0.0
        %v688 = vmax.f32 %v628, 0.0
        %v689 = vmax.f32 %v631, 0.0
        %v690 = vmax.f32 %v636, 0.0
        %v691 = vmax.f32 %v639, 0.0
        %v692 = vmax.f32 %v644, 0.0
        %v693 = vmax.f32 %v647, 0.0
        %v694 = vmax.f32 %v652, 0.0
        %v695 = vmax.f32 %v655, 0.0
        %v696 = vmax.f32 %v660, 0.0
        %v697 = vmax.f32 %v663, 0.0
        %vm698 = vcmask 125952
        %699 = vst.msk [vmem:[#allocation2] sm:$0xf] %vm698, 0
        %700 = vst.msk [vmem:[#allocation2 + $0x4] sm:$0xf] %vm698, 0
        %vm701 = vcmask 122880
        %702 = vst.msk [vmem:[#allocation2 + $0x8] sm:$0x1] %vm701, 0
        %703 = vst.msk [vmem:[#allocation2 + $0xc] sm:$0xf] %vm698, 0
        %704 = vst.msk [vmem:[#allocation2 + $0x10] sm:$0xf] %vm698, 0
        %705 = vst.msk [vmem:[#allocation2 + $0x14] sm:$0x1] %vm701, 0
        %706 = vst.msk [vmem:[#allocation2 + $0x18] sm:$0xf] %vm698, 0
        %707 = vst.msk [vmem:[#allocation2 + $0x1c] sm:$0xf] %vm698, 0
        %708 = vst.msk [vmem:[#allocation2 + $0x20] sm:$0x1] %vm701, 0
        %709 = vst.msk [vmem:[#allocation2 + $0x24] sm:$0xf] %vm698, 0
        %710 = vst.msk [vmem:[#allocation2 + $0x28] sm:$0xf] %vm698, 0
        %711 = vst.msk [vmem:[#allocation2 + $0x2c] sm:$0x1] %vm701, 0
        %712 = vst.msk [vmem:[#allocation2 + $0x30] sm:$0xf] %vm698, 0
        %713 = vst.msk [vmem:[#allocation2 + $0x34] sm:$0xf] %vm698, 0
        %714 = vst.msk [vmem:[#allocation2 + $0x38] sm:$0x1] %vm701, 0
        %715 = vst.msk [vmem:[#allocation2 + $0x3c] sm:$0xf] %vm698, 0
        %716 = vst.msk [vmem:[#allocation2 + $0x40] sm:$0xf] %vm698, 0
        %717 = vst.msk [vmem:[#allocation2 + $0x44] sm:$0x1] %vm701, 0
        %718 = vst.msk [vmem:[#allocation2 + $0x48] sm:$0xf] %vm698, 0
        %719 = vst.msk [vmem:[#allocation2 + $0x4c] sm:$0xf] %vm698, 0
        %720 = vst.msk [vmem:[#allocation2 + $0x50] sm:$0x1] %vm701, 0
        %721 = vst.msk [vmem:[#allocation2 + $0x54] sm:$0xf] %vm698, 0
        %722 = vst.msk [vmem:[#allocation2 + $0x58] sm:$0xf] %vm698, 0
        %723 = vst.msk [vmem:[#allocation2 + $0x5c] sm:$0x1] %vm701, 0
        %724 = vst.msk [vmem:[#allocation2 + $0x60] sm:$0xf] %vm698, 0
        %725 = vst.msk [vmem:[#allocation2 + $0x64] sm:$0xf] %vm698, 0
        %726 = vst.msk [vmem:[#allocation2 + $0x68] sm:$0x1] %vm701, 0
        %727 = vst.msk [vmem:[#allocation2 + $0x6c] sm:$0xf] %vm698, 0
        %728 = vst.msk [vmem:[#allocation2 + $0x70] sm:$0xf] %vm698, 0
        %729 = vst.msk [vmem:[#allocation2 + $0x74] sm:$0x1] %vm701, 0
        %730 = vst.msk [vmem:[#allocation2 + $0x78] sm:$0xf] %vm698, 0
        %731 = vst.msk [vmem:[#allocation2 + $0x7c] sm:$0xf] %vm698, 0
        %732 = vst.msk [vmem:[#allocation2 + $0x80] sm:$0x1] %vm701, 0
        %733 = vst.msk [vmem:[#allocation2 + $0x84] sm:$0xf] %vm698, 0
        %734 = vst.msk [vmem:[#allocation2 + $0x88] sm:$0xf] %vm698, 0
        %735 = vst.msk [vmem:[#allocation2 + $0x8c] sm:$0x1] %vm701, 0
        %736 = vst.msk [vmem:[#allocation2 + $0x90] sm:$0xf] %vm698, 0
        %737 = vst.msk [vmem:[#allocation2 + $0x94] sm:$0xf] %vm698, 0
        %738 = vst.msk [vmem:[#allocation2 + $0x98] sm:$0x1] %vm701, 0
        %739 = vst.msk [vmem:[#allocation2 + $0x9c] sm:$0xf] %vm698, 0
        %740 = vst.msk [vmem:[#allocation2 + $0xa0] sm:$0xf] %vm698, 0
        %741 = vst.msk [vmem:[#allocation2 + $0xa4] sm:$0x1] %vm701, 0
        %742 = vst.msk [vmem:[#allocation2 + $0xa8] sm:$0xf] %vm698, 0
        %743 = vst.msk [vmem:[#allocation2 + $0xac] sm:$0xf] %vm698, 0
        %744 = vst.msk [vmem:[#allocation2 + $0xb0] sm:$0x1] %vm701, 0
        %745 = vst.msk [vmem:[#allocation2 + $0xb4] sm:$0xf] %vm698, 0
        %746 = vst.msk [vmem:[#allocation2 + $0xb8] sm:$0xf] %vm698, 0
        %747 = vst.msk [vmem:[#allocation2 + $0xbc] sm:$0x1] %vm701, 0
        %748 = vst.msk [vmem:[#allocation2 + $0xc0] sm:$0xf] %vm698, 0
        %749 = vst.msk [vmem:[#allocation2 + $0xc4] sm:$0xf] %vm698, 0
        %750 = vst.msk [vmem:[#allocation2 + $0xc8] sm:$0x1] %vm701, 0
        %751 = vst.msk [vmem:[#allocation2 + $0xcc] sm:$0xf] %vm698, 0
        %752 = vst.msk [vmem:[#allocation2 + $0xd0] sm:$0xf] %vm698, 0
        %753 = vst.msk [vmem:[#allocation2 + $0xd4] sm:$0x1] %vm701, 0
        %v754 = vpack.c.bf16 %v667, %v666
        %v755 = vpack.c.bf16 %v669, %v668
        %v756 = vpack.c.bf16 %v671, %v670
        %v757 = vpack.c.bf16 %v673, %v672
        %v758 = vpack.c.bf16 %v675, %v674
        %v759 = vpack.c.bf16 %v677, %v676
        %v760 = vpack.c.bf16 %v679, %v678
        %v761 = vpack.c.bf16 %v681, %v680
        %v762 = vpack.c.bf16 %v683, %v682
        %v763 = vpack.c.bf16 %v685, %v684
        %v764 = vpack.c.bf16 %v687, %v686
        %v765 = vpack.c.bf16 %v689, %v688
        %v766 = vpack.c.bf16 %v691, %v690
        %v767 = vpack.c.bf16 %v693, %v692
        %v768 = vpack.c.bf16 %v695, %v694
        %v769 = vpack.c.bf16 %v697, %v696
        %v786 = vunpack.c.l.b16 %v754
        %v787 = vunpack.c.h.b16 %v754
        %v788 = vunpack.c.l.b16 %v755
        %v789 = vunpack.c.h.b16 %v755
        %v790 = vunpack.c.l.b16 %v756
        %v791 = vunpack.c.h.b16 %v756
        %v792 = vunpack.c.l.b16 %v757
        %v793 = vunpack.c.h.b16 %v757
        %v794 = vunpack.c.l.b16 %v758
        %v795 = vunpack.c.h.b16 %v758
        %v796 = vunpack.c.l.b16 %v759
        %v797 = vunpack.c.h.b16 %v759
        %v798 = vunpack.c.l.b16 %v760
        %v799 = vunpack.c.h.b16 %v760
        %v800 = vunpack.c.l.b16 %v761
        %v801 = vunpack.c.h.b16 %v761
        %v802 = vunpack.c.l.b16 %v762
        %v803 = vunpack.c.h.b16 %v762
        %v804 = vunpack.c.l.b16 %v763
        %v805 = vunpack.c.h.b16 %v763
        %v806 = vunpack.c.l.b16 %v764
        %v807 = vunpack.c.h.b16 %v764
        %v808 = vunpack.c.l.b16 %v765
        %v809 = vunpack.c.h.b16 %v765
        %v810 = vunpack.c.l.b16 %v766
        %v811 = vunpack.c.h.b16 %v766
        %v812 = vunpack.c.l.b16 %v767
        %v813 = vunpack.c.h.b16 %v767
        %v814 = vunpack.c.l.b16 %v768
        %v815 = vunpack.c.h.b16 %v768
        %v816 = vunpack.c.l.b16 %v769
        %v817 = vunpack.c.h.b16 %v769
        %v818 = vpack.c.b16 %v786, %v786
        %v819 = vpack.c.b16 %v787, %v787
        %v820 = vpack.c.b16 %v788, %v788
        %v821 = vpack.c.b16 %v789, %v789
        %v822 = vpack.c.b16 %v790, %v790
        %v823 = vpack.c.b16 %v791, %v791
        %v824 = vpack.c.b16 %v792, %v792
        %v825 = vpack.c.b16 %v793, %v793
        %v826 = vpack.c.b16 %v794, %v794
        %v827 = vpack.c.b16 %v795, %v795
        %v828 = vpack.c.b16 %v796, %v796
        %v829 = vpack.c.b16 %v797, %v797
        %v830 = vpack.c.b16 %v798, %v798
        %v831 = vpack.c.b16 %v799, %v799
        %v832 = vpack.c.b16 %v800, %v800
        %v833 = vpack.c.b16 %v801, %v801
        %v834 = vpack.c.b16 %v802, %v802
        %v835 = vpack.c.b16 %v803, %v803
        %v836 = vpack.c.b16 %v804, %v804
        %v837 = vpack.c.b16 %v805, %v805
        %v838 = vpack.c.b16 %v806, %v806
        %v839 = vpack.c.b16 %v807, %v807
        %v840 = vpack.c.b16 %v808, %v808
        %v841 = vpack.c.b16 %v809, %v809
        %v842 = vpack.c.b16 %v810, %v810
        %v843 = vpack.c.b16 %v811, %v811
        %v844 = vpack.c.b16 %v812, %v812
        %v845 = vpack.c.b16 %v813, %v813
        %v846 = vpack.c.b16 %v814, %v814
        %v847 = vpack.c.b16 %v815, %v815
        %v848 = vpack.c.b16 %v816, %v816
        %v849 = vpack.c.b16 %v817, %v817
        %vm850 = vsmask.f32 256
        %vm851 = vsmask.f32 4368
        %vm852 = vmor %vm850, %vm851
        %v854 = vshrl.u32 %v818, 16
        %v856 = vrot.slane %v854, 7
        %v857 = vshll.u32 %v818, 16
        %v859 = vor.u32 %v856, %v857
        %v860 = vrot.slane %v856, 4
        %v862 = vshrl.u32 %v819, 16
        %v864 = vrot.slane %v862, 7
        %v865 = vshll.u32 %v819, 16
        %v867 = vor.u32 %v864, %v865
        %v868 = vsel %vm852, %v860, %v867
        %v869 = vrot.slane %v864, 4
        %v871 = vshrl.u32 %v820, 16
        %v873 = vrot.slane %v871, 7
        %v874 = vshll.u32 %v820, 16
        %v876 = vor.u32 %v873, %v874
        %v877 = vrot.slane %v873, 4
        %v879 = vshrl.u32 %v821, 16
        %v881 = vrot.slane %v879, 7
        %v882 = vshll.u32 %v821, 16
        %v884 = vor.u32 %v881, %v882
        %v885 = vsel %vm852, %v877, %v884
        %v886 = vrot.slane %v881, 4
        %v888 = vshrl.u32 %v822, 16
        %v890 = vrot.slane %v888, 7
        %v891 = vshll.u32 %v822, 16
        %v893 = vor.u32 %v890, %v891
        %v894 = vrot.slane %v890, 4
        %v896 = vshrl.u32 %v823, 16
        %v898 = vrot.slane %v896, 7
        %v899 = vshll.u32 %v823, 16
        %v901 = vor.u32 %v898, %v899
        %v902 = vsel %vm852, %v894, %v901
        %v903 = vrot.slane %v898, 4
        %v905 = vshrl.u32 %v824, 16
        %v907 = vrot.slane %v905, 7
        %v908 = vshll.u32 %v824, 16
        %v910 = vor.u32 %v907, %v908
        %v911 = vrot.slane %v907, 4
        %v913 = vshrl.u32 %v825, 16
        %v915 = vrot.slane %v913, 7
        %v916 = vshll.u32 %v825, 16
        %v918 = vor.u32 %v915, %v916
        %v919 = vsel %vm852, %v911, %v918
        %v920 = vrot.slane %v915, 4
        %v922 = vshrl.u32 %v826, 16
        %v924 = vrot.slane %v922, 7
        %v925 = vshll.u32 %v826, 16
        %v927 = vor.u32 %v924, %v925
        %v928 = vrot.slane %v924, 4
        %v930 = vshrl.u32 %v827, 16
        %v932 = vrot.slane %v930, 7
        %v933 = vshll.u32 %v827, 16
        %v935 = vor.u32 %v932, %v933
        %v936 = vsel %vm852, %v928, %v935
        %v937 = vrot.slane %v932, 4
        %v939 = vshrl.u32 %v828, 16
        %v941 = vrot.slane %v939, 7
        %v942 = vshll.u32 %v828, 16
        %v944 = vor.u32 %v941, %v942
        %v945 = vrot.slane %v941, 4
        %v947 = vshrl.u32 %v829, 16
        %v949 = vrot.slane %v947, 7
        %v950 = vshll.u32 %v829, 16
        %v952 = vor.u32 %v949, %v950
        %v953 = vsel %vm852, %v945, %v952
        %v954 = vrot.slane %v949, 4
        %v956 = vshrl.u32 %v830, 16
        %v958 = vrot.slane %v956, 7
        %v959 = vshll.u32 %v830, 16
        %v961 = vor.u32 %v958, %v959
        %v962 = vrot.slane %v958, 4
        %v964 = vshrl.u32 %v831, 16
        %v966 = vrot.slane %v964, 7
        %v967 = vshll.u32 %v831, 16
        %v969 = vor.u32 %v966, %v967
        %v970 = vsel %vm852, %v962, %v969
        %v971 = vrot.slane %v966, 4
        %v973 = vshrl.u32 %v832, 16
        %v975 = vrot.slane %v973, 7
        %v976 = vshll.u32 %v832, 16
        %v978 = vor.u32 %v975, %v976
        %v979 = vrot.slane %v975, 4
        %v981 = vshrl.u32 %v833, 16
        %v983 = vrot.slane %v981, 7
        %v984 = vshll.u32 %v833, 16
        %v986 = vor.u32 %v983, %v984
        %v987 = vsel %vm852, %v979, %v986
        %v988 = vrot.slane %v983, 4
        %v990 = vshrl.u32 %v834, 16
        %v992 = vrot.slane %v990, 7
        %v993 = vshll.u32 %v834, 16
        %v995 = vor.u32 %v992, %v993
        %v996 = vrot.slane %v992, 4
        %v998 = vshrl.u32 %v835, 16
        %v1000 = vrot.slane %v998, 7
        %v1001 = vshll.u32 %v835, 16
        %v1003 = vor.u32 %v1000, %v1001
        %v1004 = vsel %vm852, %v996, %v1003
        %v1005 = vrot.slane %v1000, 4
        %v1007 = vshrl.u32 %v836, 16
        %v1009 = vrot.slane %v1007, 7
        %v1010 = vshll.u32 %v836, 16
        %v1012 = vor.u32 %v1009, %v1010
        %v1013 = vrot.slane %v1009, 4
        %v1015 = vshrl.u32 %v837, 16
        %v1017 = vrot.slane %v1015, 7
        %v1018 = vshll.u32 %v837, 16
        %v1020 = vor.u32 %v1017, %v1018
        %v1021 = vsel %vm852, %v1013, %v1020
        %v1022 = vrot.slane %v1017, 4
        %v1024 = vshrl.u32 %v838, 16
        %v1026 = vrot.slane %v1024, 7
        %v1027 = vshll.u32 %v838, 16
        %v1029 = vor.u32 %v1026, %v1027
        %v1030 = vrot.slane %v1026, 4
        %v1032 = vshrl.u32 %v839, 16
        %v1034 = vrot.slane %v1032, 7
        %v1035 = vshll.u32 %v839, 16
        %v1037 = vor.u32 %v1034, %v1035
        %v1038 = vsel %vm852, %v1030, %v1037
        %v1039 = vrot.slane %v1034, 4
        %v1041 = vshrl.u32 %v840, 16
        %v1043 = vrot.slane %v1041, 7
        %v1044 = vshll.u32 %v840, 16
        %v1046 = vor.u32 %v1043, %v1044
        %v1047 = vrot.slane %v1043, 4
        %v1049 = vshrl.u32 %v841, 16
        %v1051 = vrot.slane %v1049, 7
        %v1052 = vshll.u32 %v841, 16
        %v1054 = vor.u32 %v1051, %v1052
        %v1055 = vsel %vm852, %v1047, %v1054
        %v1056 = vrot.slane %v1051, 4
        %v1058 = vshrl.u32 %v842, 16
        %v1060 = vrot.slane %v1058, 7
        %v1061 = vshll.u32 %v842, 16
        %v1063 = vor.u32 %v1060, %v1061
        %v1064 = vrot.slane %v1060, 4
        %v1066 = vshrl.u32 %v843, 16
        %v1068 = vrot.slane %v1066, 7
        %v1069 = vshll.u32 %v843, 16
        %v1071 = vor.u32 %v1068, %v1069
        %v1072 = vsel %vm852, %v1064, %v1071
        %v1073 = vrot.slane %v1068, 4
        %v1075 = vshrl.u32 %v844, 16
        %v1077 = vrot.slane %v1075, 7
        %v1078 = vshll.u32 %v844, 16
        %v1080 = vor.u32 %v1077, %v1078
        %v1081 = vrot.slane %v1077, 4
        %v1083 = vshrl.u32 %v845, 16
        %v1085 = vrot.slane %v1083, 7
        %v1086 = vshll.u32 %v845, 16
        %v1088 = vor.u32 %v1085, %v1086
        %v1089 = vsel %vm852, %v1081, %v1088
        %v1090 = vrot.slane %v1085, 4
        %v1092 = vshrl.u32 %v846, 16
        %v1094 = vrot.slane %v1092, 7
        %v1095 = vshll.u32 %v846, 16
        %v1097 = vor.u32 %v1094, %v1095
        %v1098 = vrot.slane %v1094, 4
        %v1100 = vshrl.u32 %v847, 16
        %v1102 = vrot.slane %v1100, 7
        %v1103 = vshll.u32 %v847, 16
        %v1105 = vor.u32 %v1102, %v1103
        %v1106 = vsel %vm852, %v1098, %v1105
        %v1107 = vrot.slane %v1102, 4
        %v1109 = vshrl.u32 %v848, 16
        %v1111 = vrot.slane %v1109, 7
        %v1112 = vshll.u32 %v848, 16
        %v1114 = vor.u32 %v1111, %v1112
        %v1115 = vrot.slane %v1111, 4
        %v1117 = vshrl.u32 %v849, 16
        %v1119 = vrot.slane %v1117, 7
        %v1120 = vshll.u32 %v849, 16
        %v1122 = vor.u32 %v1119, %v1120
        %v1123 = vsel %vm852, %v1115, %v1122
        %v1124 = vrot.slane %v1119, 4
        %s1173 = scalar_lea.vmem [#allocation2], 12
        %vm1174 = vcmask 125952
        %vm1175 = vsmask.f32 7938
        %vm1176 = vmand %vm1174, %vm1175
        %v1177 = vld [vmem:[%s1173] sm:$0xf]
        %v1178 = vsel %vm1176, %v859, %v1177
        %1179 = vst [vmem:[%s1173] sm:$0xf] %v1178
        %1180 = vst.msk [vmem:[%s1173 + $0x4] sm:$0xf] %vm698, %v868
        %vm1181 = vcmask 122880
        %vm1182 = vmand %vm1181, %vm850
        %v1183 = vld [vmem:[%s1173 + $0x8] sm:$0x1]
        %v1184 = vsel %vm1182, %v869, %v1183
        %1185 = vst [vmem:[%s1173 + $0x8] sm:$0x1] %v1184
        %v1186 = vld [vmem:[%s1173 + $0xc] sm:$0xf]
        %v1187 = vsel %vm1176, %v876, %v1186
        %1188 = vst [vmem:[%s1173 + $0xc] sm:$0xf] %v1187
        %1189 = vst.msk [vmem:[%s1173 + $0x10] sm:$0xf] %vm698, %v885
        %v1190 = vld [vmem:[%s1173 + $0x14] sm:$0x1]
        %v1191 = vsel %vm1182, %v886, %v1190
        %1192 = vst [vmem:[%s1173 + $0x14] sm:$0x1] %v1191
        %v1193 = vld [vmem:[%s1173 + $0x18] sm:$0xf]
        %v1194 = vsel %vm1176, %v893, %v1193
        %1195 = vst [vmem:[%s1173 + $0x18] sm:$0xf] %v1194
        %1196 = vst.msk [vmem:[%s1173 + $0x1c] sm:$0xf] %vm698, %v902
        %v1197 = vld [vmem:[%s1173 + $0x20] sm:$0x1]
        %v1198 = vsel %vm1182, %v903, %v1197
        %1199 = vst [vmem:[%s1173 + $0x20] sm:$0x1] %v1198
        %v1200 = vld [vmem:[%s1173 + $0x24] sm:$0xf]
        %v1201 = vsel %vm1176, %v910, %v1200
        %1202 = vst [vmem:[%s1173 + $0x24] sm:$0xf] %v1201
        %1203 = vst.msk [vmem:[%s1173 + $0x28] sm:$0xf] %vm698, %v919
        %v1204 = vld [vmem:[%s1173 + $0x2c] sm:$0x1]
        %v1205 = vsel %vm1182, %v920, %v1204
        %1206 = vst [vmem:[%s1173 + $0x2c] sm:$0x1] %v1205
        %v1207 = vld [vmem:[%s1173 + $0x30] sm:$0xf]
        %v1208 = vsel %vm1176, %v927, %v1207
        %1209 = vst [vmem:[%s1173 + $0x30] sm:$0xf] %v1208
        %1210 = vst.msk [vmem:[%s1173 + $0x34] sm:$0xf] %vm698, %v936
        %v1211 = vld [vmem:[%s1173 + $0x38] sm:$0x1]
        %v1212 = vsel %vm1182, %v937, %v1211
        %1213 = vst [vmem:[%s1173 + $0x38] sm:$0x1] %v1212
        %v1214 = vld [vmem:[%s1173 + $0x3c] sm:$0xf]
        %v1215 = vsel %vm1176, %v944, %v1214
        %1216 = vst [vmem:[%s1173 + $0x3c] sm:$0xf] %v1215
        %1217 = vst.msk [vmem:[%s1173 + $0x40] sm:$0xf] %vm698, %v953
        %v1218 = vld [vmem:[%s1173 + $0x44] sm:$0x1]
        %v1219 = vsel %vm1182, %v954, %v1218
        %1220 = vst [vmem:[%s1173 + $0x44] sm:$0x1] %v1219
        %v1221 = vld [vmem:[%s1173 + $0x48] sm:$0xf]
        %v1222 = vsel %vm1176, %v961, %v1221
        %1223 = vst [vmem:[%s1173 + $0x48] sm:$0xf] %v1222
        %1224 = vst.msk [vmem:[%s1173 + $0x4c] sm:$0xf] %vm698, %v970
        %v1225 = vld [vmem:[%s1173 + $0x50] sm:$0x1]
        %v1226 = vsel %vm1182, %v971, %v1225
        %1227 = vst [vmem:[%s1173 + $0x50] sm:$0x1] %v1226
        %v1228 = vld [vmem:[%s1173 + $0x54] sm:$0xf]
        %v1229 = vsel %vm1176, %v978, %v1228
        %1230 = vst [vmem:[%s1173 + $0x54] sm:$0xf] %v1229
        %1231 = vst.msk [vmem:[%s1173 + $0x58] sm:$0xf] %vm698, %v987
        %v1232 = vld [vmem:[%s1173 + $0x5c] sm:$0x1]
        %v1233 = vsel %vm1182, %v988, %v1232
        %1234 = vst [vmem:[%s1173 + $0x5c] sm:$0x1] %v1233
        %v1235 = vld [vmem:[%s1173 + $0x60] sm:$0xf]
        %v1236 = vsel %vm1176, %v995, %v1235
        %1237 = vst [vmem:[%s1173 + $0x60] sm:$0xf] %v1236
        %1238 = vst.msk [vmem:[%s1173 + $0x64] sm:$0xf] %vm698, %v1004
        %v1239 = vld [vmem:[%s1173 + $0x68] sm:$0x1]
        %v1240 = vsel %vm1182, %v1005, %v1239
        %1241 = vst [vmem:[%s1173 + $0x68] sm:$0x1] %v1240
        %v1242 = vld [vmem:[%s1173 + $0x6c] sm:$0xf]
        %v1243 = vsel %vm1176, %v1012, %v1242
        %1244 = vst [vmem:[%s1173 + $0x6c] sm:$0xf] %v1243
        %1245 = vst.msk [vmem:[%s1173 + $0x70] sm:$0xf] %vm698, %v1021
        %v1246 = vld [vmem:[%s1173 + $0x74] sm:$0x1]
        %v1247 = vsel %vm1182, %v1022, %v1246
        %1248 = vst [vmem:[%s1173 + $0x74] sm:$0x1] %v1247
        %v1249 = vld [vmem:[%s1173 + $0x78] sm:$0xf]
        %v1250 = vsel %vm1176, %v1029, %v1249
        %1251 = vst [vmem:[%s1173 + $0x78] sm:$0xf] %v1250
        %1252 = vst.msk [vmem:[%s1173 + $0x7c] sm:$0xf] %vm698, %v1038
        %v1253 = vld [vmem:[%s1173 + $0x80] sm:$0x1]
        %v1254 = vsel %vm1182, %v1039, %v1253
        %1255 = vst [vmem:[%s1173 + $0x80] sm:$0x1] %v1254
        %v1256 = vld [vmem:[%s1173 + $0x84] sm:$0xf]
        %v1257 = vsel %vm1176, %v1046, %v1256
        %1258 = vst [vmem:[%s1173 + $0x84] sm:$0xf] %v1257
        %1259 = vst.msk [vmem:[%s1173 + $0x88] sm:$0xf] %vm698, %v1055
        %v1260 = vld [vmem:[%s1173 + $0x8c] sm:$0x1]
        %v1261 = vsel %vm1182, %v1056, %v1260
        %1262 = vst [vmem:[%s1173 + $0x8c] sm:$0x1] %v1261
        %v1263 = vld [vmem:[%s1173 + $0x90] sm:$0xf]
        %v1264 = vsel %vm1176, %v1063, %v1263
        %1265 = vst [vmem:[%s1173 + $0x90] sm:$0xf] %v1264
        %1266 = vst.msk [vmem:[%s1173 + $0x94] sm:$0xf] %vm698, %v1072
        %v1267 = vld [vmem:[%s1173 + $0x98] sm:$0x1]
        %v1268 = vsel %vm1182, %v1073, %v1267
        %1269 = vst [vmem:[%s1173 + $0x98] sm:$0x1] %v1268
        %v1270 = vld [vmem:[%s1173 + $0x9c] sm:$0xf]
        %v1271 = vsel %vm1176, %v1080, %v1270
        %1272 = vst [vmem:[%s1173 + $0x9c] sm:$0xf] %v1271
        %1273 = vst.msk [vmem:[%s1173 + $0xa0] sm:$0xf] %vm698, %v1089
        %v1274 = vld [vmem:[%s1173 + $0xa4] sm:$0x1]
        %v1275 = vsel %vm1182, %v1090, %v1274
        %1276 = vst [vmem:[%s1173 + $0xa4] sm:$0x1] %v1275
        %v1277 = vld [vmem:[%s1173 + $0xa8] sm:$0xf]
        %v1278 = vsel %vm1176, %v1097, %v1277
        %1279 = vst [vmem:[%s1173 + $0xa8] sm:$0xf] %v1278
        %1280 = vst.msk [vmem:[%s1173 + $0xac] sm:$0xf] %vm698, %v1106
        %v1281 = vld [vmem:[%s1173 + $0xb0] sm:$0x1]
        %v1282 = vsel %vm1182, %v1107, %v1281
        %1283 = vst [vmem:[%s1173 + $0xb0] sm:$0x1] %v1282
        %v1284 = vld [vmem:[%s1173 + $0xb4] sm:$0xf]
        %v1285 = vsel %vm1176, %v1114, %v1284
        %1286 = vst [vmem:[%s1173 + $0xb4] sm:$0xf] %v1285
        %1287 = vst.msk [vmem:[%s1173 + $0xb8] sm:$0xf] %vm698, %v1123
        %v1288 = vld [vmem:[%s1173 + $0xbc] sm:$0x1]
        %v1289 = vsel %vm1182, %v1124, %v1288
        %1290 = vst [vmem:[%s1173 + $0xbc] sm:$0x1] %v1289
        %v1291 = vld [vmem:[#allocation2] sm:$0xf]
        %v1292 = vld [vmem:[#allocation2 + $0x4] sm:$0xf]
        %v1293 = vld [vmem:[#allocation2 + $0xc] sm:$0xf]
        %v1294 = vld [vmem:[#allocation2 + $0x10] sm:$0xf]
        %v1295 = vld [vmem:[#allocation2 + $0x18] sm:$0xf]
        %v1296 = vld [vmem:[#allocation2 + $0x1c] sm:$0xf]
        %v1297 = vld [vmem:[#allocation2 + $0x24] sm:$0xf]
        %v1298 = vld [vmem:[#allocation2 + $0x28] sm:$0xf]
        %v1299 = vld [vmem:[#allocation2 + $0x30] sm:$0xf]
        %v1300 = vld [vmem:[#allocation2 + $0x34] sm:$0xf]
        %v1301 = vld [vmem:[#allocation2 + $0x3c] sm:$0xf]
        %v1302 = vld [vmem:[#allocation2 + $0x40] sm:$0xf]
        %v1303 = vld [vmem:[#allocation2 + $0x48] sm:$0xf]
        %v1304 = vld [vmem:[#allocation2 + $0x4c] sm:$0xf]
        %v1305 = vld [vmem:[#allocation2 + $0x54] sm:$0xf]
        %v1306 = vld [vmem:[#allocation2 + $0x58] sm:$0xf]
        %v1307 = vld [vmem:[#allocation2 + $0x60] sm:$0xf]
        %v1308 = vld [vmem:[#allocation2 + $0x64] sm:$0xf]
        %v1309 = vld [vmem:[#allocation2 + $0x6c] sm:$0xf]
        %v1310 = vld [vmem:[#allocation2 + $0x70] sm:$0xf]
        %v1311 = vld [vmem:[#allocation2 + $0x78] sm:$0xf]
        %v1312 = vld [vmem:[#allocation2 + $0x7c] sm:$0xf]
        %v1313 = vld [vmem:[#allocation2 + $0x84] sm:$0xf]
        %v1314 = vld [vmem:[#allocation2 + $0x88] sm:$0xf]
        %v1315 = vld [vmem:[#allocation2 + $0x90] sm:$0xf]
        %v1316 = vld [vmem:[#allocation2 + $0x94] sm:$0xf]
        %v1317 = vld [vmem:[#allocation2 + $0x9c] sm:$0xf]
        %v1318 = vld [vmem:[#allocation2 + $0xa0] sm:$0xf]
        %v1319 = vld [vmem:[#allocation2 + $0xa8] sm:$0xf]
        %v1320 = vld [vmem:[#allocation2 + $0xac] sm:$0xf]
        %v1321 = vld [vmem:[#allocation2 + $0xb4] sm:$0xf]
        %v1322 = vld [vmem:[#allocation2 + $0xb8] sm:$0xf]
        %v1323 = vld [vmem:[#allocation2 + $0x8] sm:$0x1]
        %v1324 = vld [vmem:[#allocation2 + $0x14] sm:$0x1]
        %v1325 = vld [vmem:[#allocation2 + $0x20] sm:$0x1]
        %v1326 = vld [vmem:[#allocation2 + $0x2c] sm:$0x1]
        %v1327 = vld [vmem:[#allocation2 + $0x38] sm:$0x1]
        %v1328 = vld [vmem:[#allocation2 + $0x44] sm:$0x1]
        %v1329 = vld [vmem:[#allocation2 + $0x50] sm:$0x1]
        %v1330 = vld [vmem:[#allocation2 + $0x5c] sm:$0x1]
        %v1331 = vld [vmem:[#allocation2 + $0x68] sm:$0x1]
        %v1332 = vld [vmem:[#allocation2 + $0x74] sm:$0x1]
        %v1333 = vld [vmem:[#allocation2 + $0x80] sm:$0x1]
        %v1334 = vld [vmem:[#allocation2 + $0x8c] sm:$0x1]
        %v1335 = vld [vmem:[#allocation2 + $0x98] sm:$0x1]
        %v1336 = vld [vmem:[#allocation2 + $0xa4] sm:$0x1]
        %v1337 = vld [vmem:[#allocation2 + $0xb0] sm:$0x1]
        %v1338 = vld [vmem:[#allocation2 + $0xbc] sm:$0x1]
        %v1339 = vld [vmem:[#allocation2] sm:$0xe]
        %v1340 = vld [vmem:[#allocation2 + $0xc] sm:$0xe]
        %v1341 = vld [vmem:[#allocation2 + $0x18] sm:$0xe]
        %v1342 = vld [vmem:[#allocation2 + $0x24] sm:$0xe]
        %v1343 = vld [vmem:[#allocation2 + $0x30] sm:$0xe]
        %v1344 = vld [vmem:[#allocation2 + $0x3c] sm:$0xe]
        %v1345 = vld [vmem:[#allocation2 + $0x48] sm:$0xe]
        %v1346 = vld [vmem:[#allocation2 + $0x54] sm:$0xe]
        %v1347 = vld [vmem:[#allocation2 + $0x60] sm:$0xe]
        %v1348 = vld [vmem:[#allocation2 + $0x6c] sm:$0xe]
        %v1349 = vld [vmem:[#allocation2 + $0x78] sm:$0xe]
        %v1350 = vld [vmem:[#allocation2 + $0x84] sm:$0xe]
        %v1351 = vld [vmem:[#allocation2 + $0x90] sm:$0xe]
        %v1352 = vld [vmem:[#allocation2 + $0x9c] sm:$0xe]
        %v1353 = vld [vmem:[#allocation2 + $0xa8] sm:$0xe]
        %v1354 = vld [vmem:[#allocation2 + $0xb4] sm:$0xe]
        %v1355 = vld [vmem:[%s1173] sm:$0xf]
        %v1356 = vld [vmem:[%s1173 + $0x4] sm:$0xf]
        %v1357 = vld [vmem:[%s1173 + $0xc] sm:$0xf]
        %v1358 = vld [vmem:[%s1173 + $0x10] sm:$0xf]
        %v1359 = vld [vmem:[%s1173 + $0x18] sm:$0xf]
        %v1360 = vld [vmem:[%s1173 + $0x1c] sm:$0xf]
        %v1361 = vld [vmem:[%s1173 + $0x24] sm:$0xf]
        %v1362 = vld [vmem:[%s1173 + $0x28] sm:$0xf]
        %v1363 = vld [vmem:[%s1173 + $0x30] sm:$0xf]
        %v1364 = vld [vmem:[%s1173 + $0x34] sm:$0xf]
        %v1365 = vld [vmem:[%s1173 + $0x3c] sm:$0xf]
        %v1366 = vld [vmem:[%s1173 + $0x40] sm:$0xf]
        %v1367 = vld [vmem:[%s1173 + $0x48] sm:$0xf]
        %v1368 = vld [vmem:[%s1173 + $0x4c] sm:$0xf]
        %v1369 = vld [vmem:[%s1173 + $0x54] sm:$0xf]
        %v1370 = vld [vmem:[%s1173 + $0x58] sm:$0xf]
        %v1371 = vld [vmem:[%s1173 + $0x60] sm:$0xf]
        %v1372 = vld [vmem:[%s1173 + $0x64] sm:$0xf]
        %v1373 = vld [vmem:[%s1173 + $0x6c] sm:$0xf]
        %v1374 = vld [vmem:[%s1173 + $0x70] sm:$0xf]
        %v1375 = vld [vmem:[%s1173 + $0x78] sm:$0xf]
        %v1376 = vld [vmem:[%s1173 + $0x7c] sm:$0xf]
        %v1377 = vld [vmem:[%s1173 + $0x84] sm:$0xf]
        %v1378 = vld [vmem:[%s1173 + $0x88] sm:$0xf]
        %v1379 = vld [vmem:[%s1173 + $0x90] sm:$0xf]
        %v1380 = vld [vmem:[%s1173 + $0x94] sm:$0xf]
        %v1381 = vld [vmem:[%s1173 + $0x9c] sm:$0xf]
        %v1382 = vld [vmem:[%s1173 + $0xa0] sm:$0xf]
        %v1383 = vld [vmem:[%s1173 + $0xa8] sm:$0xf]
        %v1384 = vld [vmem:[%s1173 + $0xac] sm:$0xf]
        %v1385 = vld [vmem:[%s1173 + $0xb4] sm:$0xf]
        %v1386 = vld [vmem:[%s1173 + $0xb8] sm:$0xf]
        %v1387 = vld [vmem:[%s1173 + $0x8] sm:$0x1]
        %v1388 = vld [vmem:[%s1173 + $0x14] sm:$0x1]
        %v1389 = vld [vmem:[%s1173 + $0x20] sm:$0x1]
        %v1390 = vld [vmem:[%s1173 + $0x2c] sm:$0x1]
        %v1391 = vld [vmem:[%s1173 + $0x38] sm:$0x1]
        %v1392 = vld [vmem:[%s1173 + $0x44] sm:$0x1]
        %v1393 = vld [vmem:[%s1173 + $0x50] sm:$0x1]
        %v1394 = vld [vmem:[%s1173 + $0x5c] sm:$0x1]
        %v1395 = vld [vmem:[%s1173 + $0x68] sm:$0x1]
        %v1396 = vld [vmem:[%s1173 + $0x74] sm:$0x1]
        %v1397 = vld [vmem:[%s1173 + $0x80] sm:$0x1]
        %v1398 = vld [vmem:[%s1173 + $0x8c] sm:$0x1]
        %v1399 = vld [vmem:[%s1173 + $0x98] sm:$0x1]
        %v1400 = vld [vmem:[%s1173 + $0xa4] sm:$0x1]
        %v1401 = vld [vmem:[%s1173 + $0xb0] sm:$0x1]
        %v1402 = vld [vmem:[%s1173 + $0xbc] sm:$0x1]
        %v1403 = vld [vmem:[%s1173] sm:$0xe]
        %v1404 = vld [vmem:[%s1173 + $0xc] sm:$0xe]
        %v1405 = vld [vmem:[%s1173 + $0x18] sm:$0xe]
        %v1406 = vld [vmem:[%s1173 + $0x24] sm:$0xe]
        %v1407 = vld [vmem:[%s1173 + $0x30] sm:$0xe]
        %v1408 = vld [vmem:[%s1173 + $0x3c] sm:$0xe]
        %v1409 = vld [vmem:[%s1173 + $0x48] sm:$0xe]
        %v1410 = vld [vmem:[%s1173 + $0x54] sm:$0xe]
        %v1411 = vld [vmem:[%s1173 + $0x60] sm:$0xe]
        %v1412 = vld [vmem:[%s1173 + $0x6c] sm:$0xe]
        %v1413 = vld [vmem:[%s1173 + $0x78] sm:$0xe]
        %v1414 = vld [vmem:[%s1173 + $0x84] sm:$0xe]
        %v1415 = vld [vmem:[%s1173 + $0x90] sm:$0xe]
        %v1416 = vld [vmem:[%s1173 + $0x9c] sm:$0xe]
        %v1417 = vld [vmem:[%s1173 + $0xa8] sm:$0xe]
        %v1418 = vld [vmem:[%s1173 + $0xb4] sm:$0xe]
        %s1419 = scalar_lea.vmem [#allocation2], 24
        %v1420 = vld [vmem:[%s1419] sm:$0xf]
        %v1421 = vld [vmem:[%s1419 + $0x4] sm:$0xf]
        %v1422 = vld [vmem:[%s1419 + $0xc] sm:$0xf]
        %v1423 = vld [vmem:[%s1419 + $0x10] sm:$0xf]
        %v1424 = vld [vmem:[%s1419 + $0x18] sm:$0xf]
        %v1425 = vld [vmem:[%s1419 + $0x1c] sm:$0xf]
        %v1426 = vld [vmem:[%s1419 + $0x24] sm:$0xf]
        %v1427 = vld [vmem:[%s1419 + $0x28] sm:$0xf]
        %v1428 = vld [vmem:[%s1419 + $0x30] sm:$0xf]
        %v1429 = vld [vmem:[%s1419 + $0x34] sm:$0xf]
        %v1430 = vld [vmem:[%s1419 + $0x3c] sm:$0xf]
        %v1431 = vld [vmem:[%s1419 + $0x40] sm:$0xf]
        %v1432 = vld [vmem:[%s1419 + $0x48] sm:$0xf]
        %v1433 = vld [vmem:[%s1419 + $0x4c] sm:$0xf]
        %v1434 = vld [vmem:[%s1419 + $0x54] sm:$0xf]
        %v1435 = vld [vmem:[%s1419 + $0x58] sm:$0xf]
        %v1436 = vld [vmem:[%s1419 + $0x60] sm:$0xf]
        %v1437 = vld [vmem:[%s1419 + $0x64] sm:$0xf]
        %v1438 = vld [vmem:[%s1419 + $0x6c] sm:$0xf]
        %v1439 = vld [vmem:[%s1419 + $0x70] sm:$0xf]
        %v1440 = vld [vmem:[%s1419 + $0x78] sm:$0xf]
        %v1441 = vld [vmem:[%s1419 + $0x7c] sm:$0xf]
        %v1442 = vld [vmem:[%s1419 + $0x84] sm:$0xf]
        %v1443 = vld [vmem:[%s1419 + $0x88] sm:$0xf]
        %v1444 = vld [vmem:[%s1419 + $0x90] sm:$0xf]
        %v1445 = vld [vmem:[%s1419 + $0x94] sm:$0xf]
        %v1446 = vld [vmem:[%s1419 + $0x9c] sm:$0xf]
        %v1447 = vld [vmem:[%s1419 + $0xa0] sm:$0xf]
        %v1448 = vld [vmem:[%s1419 + $0xa8] sm:$0xf]
        %v1449 = vld [vmem:[%s1419 + $0xac] sm:$0xf]
        %v1450 = vld [vmem:[%s1419 + $0xb4] sm:$0xf]
        %v1451 = vld [vmem:[%s1419 + $0xb8] sm:$0xf]
        %v1452 = vld [vmem:[%s1419 + $0x8] sm:$0x1]
        %v1453 = vld [vmem:[%s1419 + $0x14] sm:$0x1]
        %v1454 = vld [vmem:[%s1419 + $0x20] sm:$0x1]
        %v1455 = vld [vmem:[%s1419 + $0x2c] sm:$0x1]
        %v1456 = vld [vmem:[%s1419 + $0x38] sm:$0x1]
        %v1457 = vld [vmem:[%s1419 + $0x44] sm:$0x1]
        %v1458 = vld [vmem:[%s1419 + $0x50] sm:$0x1]
        %v1459 = vld [vmem:[%s1419 + $0x5c] sm:$0x1]
        %v1460 = vld [vmem:[%s1419 + $0x68] sm:$0x1]
        %v1461 = vld [vmem:[%s1419 + $0x74] sm:$0x1]
        %v1462 = vld [vmem:[%s1419 + $0x80] sm:$0x1]
        %v1463 = vld [vmem:[%s1419 + $0x8c] sm:$0x1]
        %v1464 = vld [vmem:[%s1419 + $0x98] sm:$0x1]
        %v1465 = vld [vmem:[%s1419 + $0xa4] sm:$0x1]
        %v1466 = vld [vmem:[%s1419 + $0xb0] sm:$0x1]
        %v1467 = vld [vmem:[%s1419 + $0xbc] sm:$0x1]
        %v1468 = vld [vmem:[%s1419] sm:$0xe]
        %v1469 = vld [vmem:[%s1419 + $0xc] sm:$0xe]
        %v1470 = vld [vmem:[%s1419 + $0x18] sm:$0xe]
        %v1471 = vld [vmem:[%s1419 + $0x24] sm:$0xe]
        %v1472 = vld [vmem:[%s1419 + $0x30] sm:$0xe]
        %v1473 = vld [vmem:[%s1419 + $0x3c] sm:$0xe]
        %v1474 = vld [vmem:[%s1419 + $0x48] sm:$0xe]
        %v1475 = vld [vmem:[%s1419 + $0x54] sm:$0xe]
        %v1476 = vld [vmem:[%s1419 + $0x60] sm:$0xe]
        %v1477 = vld [vmem:[%s1419 + $0x6c] sm:$0xe]
        %v1478 = vld [vmem:[%s1419 + $0x78] sm:$0xe]
        %v1479 = vld [vmem:[%s1419 + $0x84] sm:$0xe]
        %v1480 = vld [vmem:[%s1419 + $0x90] sm:$0xe]
        %v1481 = vld [vmem:[%s1419 + $0x9c] sm:$0xe]
        %v1482 = vld [vmem:[%s1419 + $0xa8] sm:$0xe]
        %v1483 = vld [vmem:[%s1419 + $0xb4] sm:$0xe]
        %v1516 = vunpack.c.l.b16 %v1291
        %v1517 = vunpack.c.l.b16 %v1292
        %v1518 = vunpack.c.l.b16 %v1293
        %v1519 = vunpack.c.l.b16 %v1294
        %v1520 = vunpack.c.l.b16 %v1295
        %v1521 = vunpack.c.l.b16 %v1296
        %v1522 = vunpack.c.l.b16 %v1297
        %v1523 = vunpack.c.l.b16 %v1298
        %v1524 = vunpack.c.l.b16 %v1299
        %v1525 = vunpack.c.l.b16 %v1300
        %v1526 = vunpack.c.l.b16 %v1301
        %v1527 = vunpack.c.l.b16 %v1302
        %v1528 = vunpack.c.l.b16 %v1303
        %v1529 = vunpack.c.l.b16 %v1304
        %v1530 = vunpack.c.l.b16 %v1305
        %v1531 = vunpack.c.l.b16 %v1306
        %v1532 = vunpack.c.l.b16 %v1307
        %v1533 = vunpack.c.l.b16 %v1308
        %v1534 = vunpack.c.l.b16 %v1309
        %v1535 = vunpack.c.l.b16 %v1310
        %v1536 = vunpack.c.l.b16 %v1311
        %v1537 = vunpack.c.l.b16 %v1312
        %v1538 = vunpack.c.l.b16 %v1313
        %v1539 = vunpack.c.l.b16 %v1314
        %v1540 = vunpack.c.l.b16 %v1315
        %v1541 = vunpack.c.l.b16 %v1316
        %v1542 = vunpack.c.l.b16 %v1317
        %v1543 = vunpack.c.l.b16 %v1318
        %v1544 = vunpack.c.l.b16 %v1319
        %v1545 = vunpack.c.l.b16 %v1320
        %v1546 = vunpack.c.l.b16 %v1321
        %v1547 = vunpack.c.l.b16 %v1322
        %v1548 = vpack.c.b16 %v1517, %v1516
        %v1549 = vpack.c.b16 %v1519, %v1518
        %v1550 = vpack.c.b16 %v1521, %v1520
        %v1551 = vpack.c.b16 %v1523, %v1522
        %v1552 = vpack.c.b16 %v1525, %v1524
        %v1553 = vpack.c.b16 %v1527, %v1526
        %v1554 = vpack.c.b16 %v1529, %v1528
        %v1555 = vpack.c.b16 %v1531, %v1530
        %v1556 = vpack.c.b16 %v1533, %v1532
        %v1557 = vpack.c.b16 %v1535, %v1534
        %v1558 = vpack.c.b16 %v1537, %v1536
        %v1559 = vpack.c.b16 %v1539, %v1538
        %v1560 = vpack.c.b16 %v1541, %v1540
        %v1561 = vpack.c.b16 %v1543, %v1542
        %v1562 = vpack.c.b16 %v1545, %v1544
        %v1563 = vpack.c.b16 %v1547, %v1546
        %v1580 = vunpack.c.l.b16 %v1323
        %v1581 = vunpack.c.l.b16 %v1324
        %v1582 = vunpack.c.l.b16 %v1325
        %v1583 = vunpack.c.l.b16 %v1326
        %v1584 = vunpack.c.l.b16 %v1327
        %v1585 = vunpack.c.l.b16 %v1328
        %v1586 = vunpack.c.l.b16 %v1329
        %v1587 = vunpack.c.l.b16 %v1330
        %v1588 = vunpack.c.l.b16 %v1331
        %v1589 = vunpack.c.l.b16 %v1332
        %v1590 = vunpack.c.l.b16 %v1333
        %v1591 = vunpack.c.l.b16 %v1334
        %v1592 = vunpack.c.l.b16 %v1335
        %v1593 = vunpack.c.l.b16 %v1336
        %v1594 = vunpack.c.l.b16 %v1337
        %v1595 = vunpack.c.l.b16 %v1338
        %v1596 = vpack.c.b16 %v1580, %v1580
        %v1597 = vpack.c.b16 %v1581, %v1581
        %v1598 = vpack.c.b16 %v1582, %v1582
        %v1599 = vpack.c.b16 %v1583, %v1583
        %v1600 = vpack.c.b16 %v1584, %v1584
        %v1601 = vpack.c.b16 %v1585, %v1585
        %v1602 = vpack.c.b16 %v1586, %v1586
        %v1603 = vpack.c.b16 %v1587, %v1587
        %v1604 = vpack.c.b16 %v1588, %v1588
        %v1605 = vpack.c.b16 %v1589, %v1589
        %v1606 = vpack.c.b16 %v1590, %v1590
        %v1607 = vpack.c.b16 %v1591, %v1591
        %v1608 = vpack.c.b16 %v1592, %v1592
        %v1609 = vpack.c.b16 %v1593, %v1593
        %v1610 = vpack.c.b16 %v1594, %v1594
        %v1611 = vpack.c.b16 %v1595, %v1595
        %vm1612 = vsmask.f32 7424
        %v1614 = vshrl.u32 %v1548, 16
        %v1616 = vshll.u32 %v1548, 16
        %v1618 = vrot.slane %v1616, 1
        %v1619 = vor.u32 %v1614, %v1618
        %v1621 = vshll.u32 %v1596, 16
        %v1623 = vrot.slane %v1621, 1
        %v1624 = vsel %vm1612, %v1619, %v1623
        %v1626 = vshrl.u32 %v1549, 16
        %v1628 = vshll.u32 %v1549, 16
        %v1630 = vrot.slane %v1628, 1
        %v1631 = vor.u32 %v1626, %v1630
        %v1633 = vshll.u32 %v1597, 16
        %v1635 = vrot.slane %v1633, 1
        %v1636 = vsel %vm1612, %v1631, %v1635
        %v1638 = vshrl.u32 %v1550, 16
        %v1640 = vshll.u32 %v1550, 16
        %v1642 = vrot.slane %v1640, 1
        %v1643 = vor.u32 %v1638, %v1642
        %v1645 = vshll.u32 %v1598, 16
        %v1647 = vrot.slane %v1645, 1
        %v1648 = vsel %vm1612, %v1643, %v1647
        %v1650 = vshrl.u32 %v1551, 16
        %v1652 = vshll.u32 %v1551, 16
        %v1654 = vrot.slane %v1652, 1
        %v1655 = vor.u32 %v1650, %v1654
        %v1657 = vshll.u32 %v1599, 16
        %v1659 = vrot.slane %v1657, 1
        %v1660 = vsel %vm1612, %v1655, %v1659
        %v1662 = vshrl.u32 %v1552, 16
        %v1664 = vshll.u32 %v1552, 16
        %v1666 = vrot.slane %v1664, 1
        %v1667 = vor.u32 %v1662, %v1666
        %v1669 = vshll.u32 %v1600, 16
        %v1671 = vrot.slane %v1669, 1
        %v1672 = vsel %vm1612, %v1667, %v1671
        %v1674 = vshrl.u32 %v1553, 16
        %v1676 = vshll.u32 %v1553, 16
        %v1678 = vrot.slane %v1676, 1
        %v1679 = vor.u32 %v1674, %v1678
        %v1681 = vshll.u32 %v1601, 16
        %v1683 = vrot.slane %v1681, 1
        %v1684 = vsel %vm1612, %v1679, %v1683
        %v1686 = vshrl.u32 %v1554, 16
        %v1688 = vshll.u32 %v1554, 16
        %v1690 = vrot.slane %v1688, 1
        %v1691 = vor.u32 %v1686, %v1690
        %v1693 = vshll.u32 %v1602, 16
        %v1695 = vrot.slane %v1693, 1
        %v1696 = vsel %vm1612, %v1691, %v1695
        %v1698 = vshrl.u32 %v1555, 16
        %v1700 = vshll.u32 %v1555, 16
        %v1702 = vrot.slane %v1700, 1
        %v1703 = vor.u32 %v1698, %v1702
        %v1705 = vshll.u32 %v1603, 16
        %v1707 = vrot.slane %v1705, 1
        %v1708 = vsel %vm1612, %v1703, %v1707
        %v1710 = vshrl.u32 %v1556, 16
        %v1712 = vshll.u32 %v1556, 16
        %v1714 = vrot.slane %v1712, 1
        %v1715 = vor.u32 %v1710, %v1714
        %v1717 = vshll.u32 %v1604, 16
        %v1719 = vrot.slane %v1717, 1
        %v1720 = vsel %vm1612, %v1715, %v1719
        %v1722 = vshrl.u32 %v1557, 16
        %v1724 = vshll.u32 %v1557, 16
        %v1726 = vrot.slane %v1724, 1
        %v1727 = vor.u32 %v1722, %v1726
        %v1729 = vshll.u32 %v1605, 16
        %v1731 = vrot.slane %v1729, 1
        %v1732 = vsel %vm1612, %v1727, %v1731
        %v1734 = vshrl.u32 %v1558, 16
        %v1736 = vshll.u32 %v1558, 16
        %v1738 = vrot.slane %v1736, 1
        %v1739 = vor.u32 %v1734, %v1738
        %v1741 = vshll.u32 %v1606, 16
        %v1743 = vrot.slane %v1741, 1
        %v1744 = vsel %vm1612, %v1739, %v1743
        %v1746 = vshrl.u32 %v1559, 16
        %v1748 = vshll.u32 %v1559, 16
        %v1750 = vrot.slane %v1748, 1
        %v1751 = vor.u32 %v1746, %v1750
        %v1753 = vshll.u32 %v1607, 16
        %v1755 = vrot.slane %v1753, 1
        %v1756 = vsel %vm1612, %v1751, %v1755
        %v1758 = vshrl.u32 %v1560, 16
        %v1760 = vshll.u32 %v1560, 16
        %v1762 = vrot.slane %v1760, 1
        %v1763 = vor.u32 %v1758, %v1762
        %v1765 = vshll.u32 %v1608, 16
        %v1767 = vrot.slane %v1765, 1
        %v1768 = vsel %vm1612, %v1763, %v1767
        %v1770 = vshrl.u32 %v1561, 16
        %v1772 = vshll.u32 %v1561, 16
        %v1774 = vrot.slane %v1772, 1
        %v1775 = vor.u32 %v1770, %v1774
        %v1777 = vshll.u32 %v1609, 16
        %v1779 = vrot.slane %v1777, 1
        %v1780 = vsel %vm1612, %v1775, %v1779
        %v1782 = vshrl.u32 %v1562, 16
        %v1784 = vshll.u32 %v1562, 16
        %v1786 = vrot.slane %v1784, 1
        %v1787 = vor.u32 %v1782, %v1786
        %v1789 = vshll.u32 %v1610, 16
        %v1791 = vrot.slane %v1789, 1
        %v1792 = vsel %vm1612, %v1787, %v1791
        %v1794 = vshrl.u32 %v1563, 16
        %v1796 = vshll.u32 %v1563, 16
        %v1798 = vrot.slane %v1796, 1
        %v1799 = vor.u32 %v1794, %v1798
        %v1801 = vshll.u32 %v1611, 16
        %v1803 = vrot.slane %v1801, 1
        %v1804 = vsel %vm1612, %v1799, %v1803
        %1805 = vrot.lane.b32.xlu0 %v1624, 16
        %v1806 = vpop.permute.xlu0 %1805
        %1807 = vrot.lane.b32.xlu0 %v1636, 16
        %v1808 = vpop.permute.xlu0 %1807
        %1809 = vrot.lane.b32.xlu0 %v1648, 16
        %v1810 = vpop.permute.xlu0 %1809
        %1811 = vrot.lane.b32.xlu0 %v1660, 16
        %v1812 = vpop.permute.xlu0 %1811
        %1813 = vrot.lane.b32.xlu0 %v1672, 16
        %v1814 = vpop.permute.xlu0 %1813
        %1815 = vrot.lane.b32.xlu0 %v1684, 16
        %v1816 = vpop.permute.xlu0 %1815
        %1817 = vrot.lane.b32.xlu0 %v1696, 16
        %v1818 = vpop.permute.xlu0 %1817
        %1819 = vrot.lane.b32.xlu0 %v1708, 16
        %v1820 = vpop.permute.xlu0 %1819
        %1821 = vrot.lane.b32.xlu0 %v1720, 16
        %v1822 = vpop.permute.xlu0 %1821
        %1823 = vrot.lane.b32.xlu0 %v1732, 16
        %v1824 = vpop.permute.xlu0 %1823
        %1825 = vrot.lane.b32.xlu0 %v1744, 16
        %v1826 = vpop.permute.xlu0 %1825
        %1827 = vrot.lane.b32.xlu0 %v1756, 16
        %v1828 = vpop.permute.xlu0 %1827
        %1829 = vrot.lane.b32.xlu0 %v1768, 16
        %v1830 = vpop.permute.xlu0 %1829
        %1831 = vrot.lane.b32.xlu0 %v1780, 16
        %v1832 = vpop.permute.xlu0 %1831
        %1833 = vrot.lane.b32.xlu0 %v1792, 16
        %v1834 = vpop.permute.xlu0 %1833
        %1835 = vrot.lane.b32.xlu0 %v1804, 16
        %v1836 = vpop.permute.xlu0 %1835
        %v1853 = vunpack.c.l.b16 %v1339
        %v1854 = vunpack.c.l.b16 %v1340
        %v1855 = vunpack.c.l.b16 %v1341
        %v1856 = vunpack.c.l.b16 %v1342
        %v1857 = vunpack.c.l.b16 %v1343
        %v1858 = vunpack.c.l.b16 %v1344
        %v1859 = vunpack.c.l.b16 %v1345
        %v1860 = vunpack.c.l.b16 %v1346
        %v1861 = vunpack.c.l.b16 %v1347
        %v1862 = vunpack.c.l.b16 %v1348
        %v1863 = vunpack.c.l.b16 %v1349
        %v1864 = vunpack.c.l.b16 %v1350
        %v1865 = vunpack.c.l.b16 %v1351
        %v1866 = vunpack.c.l.b16 %v1352
        %v1867 = vunpack.c.l.b16 %v1353
        %v1868 = vunpack.c.l.b16 %v1354
        %v1869 = vpack.c.b16 %v1517, %v1853
        %v1870 = vpack.c.b16 %v1519, %v1854
        %v1871 = vpack.c.b16 %v1521, %v1855
        %v1872 = vpack.c.b16 %v1523, %v1856
        %v1873 = vpack.c.b16 %v1525, %v1857
        %v1874 = vpack.c.b16 %v1527, %v1858
        %v1875 = vpack.c.b16 %v1529, %v1859
        %v1876 = vpack.c.b16 %v1531, %v1860
        %v1877 = vpack.c.b16 %v1533, %v1861
        %v1878 = vpack.c.b16 %v1535, %v1862
        %v1879 = vpack.c.b16 %v1537, %v1863
        %v1880 = vpack.c.b16 %v1539, %v1864
        %v1881 = vpack.c.b16 %v1541, %v1865
        %v1882 = vpack.c.b16 %v1543, %v1866
        %v1883 = vpack.c.b16 %v1545, %v1867
        %v1884 = vpack.c.b16 %v1547, %v1868
        %vm1885 = vcmask 1046528
        %v1886 = vrot.slane %v1869, 1
        %v1887 = vrot.slane %v1596, 1
        %v1888 = vsel %vm1885, %v1886, %v1887
        %v1889 = vrot.slane %v1870, 1
        %v1890 = vrot.slane %v1597, 1
        %v1891 = vsel %vm1885, %v1889, %v1890
        %v1892 = vrot.slane %v1871, 1
        %v1893 = vrot.slane %v1598, 1
        %v1894 = vsel %vm1885, %v1892, %v1893
        %v1895 = vrot.slane %v1872, 1
        %v1896 = vrot.slane %v1599, 1
        %v1897 = vsel %vm1885, %v1895, %v1896
        %v1898 = vrot.slane %v1873, 1
        %v1899 = vrot.slane %v1600, 1
        %v1900 = vsel %vm1885, %v1898, %v1899
        %v1901 = vrot.slane %v1874, 1
        %v1902 = vrot.slane %v1601, 1
        %v1903 = vsel %vm1885, %v1901, %v1902
        %v1904 = vrot.slane %v1875, 1
        %v1905 = vrot.slane %v1602, 1
        %v1906 = vsel %vm1885, %v1904, %v1905
        %v1907 = vrot.slane %v1876, 1
        %v1908 = vrot.slane %v1603, 1
        %v1909 = vsel %vm1885, %v1907, %v1908
        %v1910 = vrot.slane %v1877, 1
        %v1911 = vrot.slane %v1604, 1
        %v1912 = vsel %vm1885, %v1910, %v1911
        %v1913 = vrot.slane %v1878, 1
        %v1914 = vrot.slane %v1605, 1
        %v1915 = vsel %vm1885, %v1913, %v1914
        %v1916 = vrot.slane %v1879, 1
        %v1917 = vrot.slane %v1606, 1
        %v1918 = vsel %vm1885, %v1916, %v1917
        %v1919 = vrot.slane %v1880, 1
        %v1920 = vrot.slane %v1607, 1
        %v1921 = vsel %vm1885, %v1919, %v1920
        %v1922 = vrot.slane %v1881, 1
        %v1923 = vrot.slane %v1608, 1
        %v1924 = vsel %vm1885, %v1922, %v1923
        %v1925 = vrot.slane %v1882, 1
        %v1926 = vrot.slane %v1609, 1
        %v1927 = vsel %vm1885, %v1925, %v1926
        %v1928 = vrot.slane %v1883, 1
        %v1929 = vrot.slane %v1610, 1
        %v1930 = vsel %vm1885, %v1928, %v1929
        %v1931 = vrot.slane %v1884, 1
        %v1932 = vrot.slane %v1611, 1
        %v1933 = vsel %vm1885, %v1931, %v1932
        %1934 = vrot.lane.b32.xlu0 %v1888, 32
        %v1935 = vpop.permute.xlu0 %1934
        %1936 = vrot.lane.b32.xlu0 %v1891, 32
        %v1937 = vpop.permute.xlu0 %1936
        %1938 = vrot.lane.b32.xlu0 %v1894, 32
        %v1939 = vpop.permute.xlu0 %1938
        %1940 = vrot.lane.b32.xlu0 %v1897, 32
        %v1941 = vpop.permute.xlu0 %1940
        %1942 = vrot.lane.b32.xlu0 %v1900, 32
        %v1943 = vpop.permute.xlu0 %1942
        %1944 = vrot.lane.b32.xlu0 %v1903, 32
        %v1945 = vpop.permute.xlu0 %1944
        %1946 = vrot.lane.b32.xlu0 %v1906, 32
        %v1947 = vpop.permute.xlu0 %1946
        %1948 = vrot.lane.b32.xlu0 %v1909, 32
        %v1949 = vpop.permute.xlu0 %1948
        %1950 = vrot.lane.b32.xlu0 %v1912, 32
        %v1951 = vpop.permute.xlu0 %1950
        %1952 = vrot.lane.b32.xlu0 %v1915, 32
        %v1953 = vpop.permute.xlu0 %1952
        %1954 = vrot.lane.b32.xlu0 %v1918, 32
        %v1955 = vpop.permute.xlu0 %1954
        %1956 = vrot.lane.b32.xlu0 %v1921, 32
        %v1957 = vpop.permute.xlu0 %1956
        %1958 = vrot.lane.b32.xlu0 %v1924, 32
        %v1959 = vpop.permute.xlu0 %1958
        %1960 = vrot.lane.b32.xlu0 %v1927, 32
        %v1961 = vpop.permute.xlu0 %1960
        %1962 = vrot.lane.b32.xlu0 %v1930, 32
        %v1963 = vpop.permute.xlu0 %1962
        %1964 = vrot.lane.b32.xlu0 %v1933, 32
        %v1965 = vpop.permute.xlu0 %1964
        %v1998 = vunpack.c.l.b16 %v1355
        %v1999 = vunpack.c.l.b16 %v1356
        %v2000 = vunpack.c.l.b16 %v1357
        %v2001 = vunpack.c.l.b16 %v1358
        %v2002 = vunpack.c.l.b16 %v1359
        %v2003 = vunpack.c.l.b16 %v1360
        %v2004 = vunpack.c.l.b16 %v1361
        %v2005 = vunpack.c.l.b16 %v1362
        %v2006 = vunpack.c.l.b16 %v1363
        %v2007 = vunpack.c.l.b16 %v1364
        %v2008 = vunpack.c.l.b16 %v1365
        %v2009 = vunpack.c.l.b16 %v1366
        %v2010 = vunpack.c.l.b16 %v1367
        %v2011 = vunpack.c.l.b16 %v1368
        %v2012 = vunpack.c.l.b16 %v1369
        %v2013 = vunpack.c.l.b16 %v1370
        %v2014 = vunpack.c.l.b16 %v1371
        %v2015 = vunpack.c.l.b16 %v1372
        %v2016 = vunpack.c.l.b16 %v1373
        %v2017 = vunpack.c.l.b16 %v1374
        %v2018 = vunpack.c.l.b16 %v1375
        %v2019 = vunpack.c.l.b16 %v1376
        %v2020 = vunpack.c.l.b16 %v1377
        %v2021 = vunpack.c.l.b16 %v1378
        %v2022 = vunpack.c.l.b16 %v1379
        %v2023 = vunpack.c.l.b16 %v1380
        %v2024 = vunpack.c.l.b16 %v1381
        %v2025 = vunpack.c.l.b16 %v1382
        %v2026 = vunpack.c.l.b16 %v1383
        %v2027 = vunpack.c.l.b16 %v1384
        %v2028 = vunpack.c.l.b16 %v1385
        %v2029 = vunpack.c.l.b16 %v1386
        %v2030 = vpack.c.b16 %v1999, %v1998
        %v2031 = vpack.c.b16 %v2001, %v2000
        %v2032 = vpack.c.b16 %v2003, %v2002
        %v2033 = vpack.c.b16 %v2005, %v2004
        %v2034 = vpack.c.b16 %v2007, %v2006
        %v2035 = vpack.c.b16 %v2009, %v2008
        %v2036 = vpack.c.b16 %v2011, %v2010
        %v2037 = vpack.c.b16 %v2013, %v2012
        %v2038 = vpack.c.b16 %v2015, %v2014
        %v2039 = vpack.c.b16 %v2017, %v2016
        %v2040 = vpack.c.b16 %v2019, %v2018
        %v2041 = vpack.c.b16 %v2021, %v2020
        %v2042 = vpack.c.b16 %v2023, %v2022
        %v2043 = vpack.c.b16 %v2025, %v2024
        %v2044 = vpack.c.b16 %v2027, %v2026
        %v2045 = vpack.c.b16 %v2029, %v2028
        %2046 = vrot.lane.b32.xlu0 %v2030, 48
        %v2047 = vpop.permute.xlu0 %2046
        %2048 = vrot.lane.b32.xlu0 %v2031, 48
        %v2049 = vpop.permute.xlu0 %2048
        %2050 = vrot.lane.b32.xlu0 %v2032, 48
        %v2051 = vpop.permute.xlu0 %2050
        %2052 = vrot.lane.b32.xlu0 %v2033, 48
        %v2053 = vpop.permute.xlu0 %2052
        %2054 = vrot.lane.b32.xlu0 %v2034, 48
        %v2055 = vpop.permute.xlu0 %2054
        %2056 = vrot.lane.b32.xlu0 %v2035, 48
        %v2057 = vpop.permute.xlu0 %2056
        %2058 = vrot.lane.b32.xlu0 %v2036, 48
        %v2059 = vpop.permute.xlu0 %2058
        %2060 = vrot.lane.b32.xlu0 %v2037, 48
        %v2061 = vpop.permute.xlu0 %2060
        %2062 = vrot.lane.b32.xlu0 %v2038, 48
        %v2063 = vpop.permute.xlu0 %2062
        %2064 = vrot.lane.b32.xlu0 %v2039, 48
        %v2065 = vpop.permute.xlu0 %2064
        %2066 = vrot.lane.b32.xlu0 %v2040, 48
        %v2067 = vpop.permute.xlu0 %2066
        %2068 = vrot.lane.b32.xlu0 %v2041, 48
        %v2069 = vpop.permute.xlu0 %2068
        %2070 = vrot.lane.b32.xlu0 %v2042, 48
        %v2071 = vpop.permute.xlu0 %2070
        %2072 = vrot.lane.b32.xlu0 %v2043, 48
        %v2073 = vpop.permute.xlu0 %2072
        %2074 = vrot.lane.b32.xlu0 %v2044, 48
        %v2075 = vpop.permute.xlu0 %2074
        %2076 = vrot.lane.b32.xlu0 %v2045, 48
        %v2077 = vpop.permute.xlu0 %2076
        %v2094 = vunpack.c.l.b16 %v1387
        %v2095 = vunpack.c.l.b16 %v1388
        %v2096 = vunpack.c.l.b16 %v1389
        %v2097 = vunpack.c.l.b16 %v1390
        %v2098 = vunpack.c.l.b16 %v1391
        %v2099 = vunpack.c.l.b16 %v1392
        %v2100 = vunpack.c.l.b16 %v1393
        %v2101 = vunpack.c.l.b16 %v1394
        %v2102 = vunpack.c.l.b16 %v1395
        %v2103 = vunpack.c.l.b16 %v1396
        %v2104 = vunpack.c.l.b16 %v1397
        %v2105 = vunpack.c.l.b16 %v1398
        %v2106 = vunpack.c.l.b16 %v1399
        %v2107 = vunpack.c.l.b16 %v1400
        %v2108 = vunpack.c.l.b16 %v1401
        %v2109 = vunpack.c.l.b16 %v1402
        %v2110 = vpack.c.b16 %v2094, %v2094
        %v2111 = vpack.c.b16 %v2095, %v2095
        %v2112 = vpack.c.b16 %v2096, %v2096
        %v2113 = vpack.c.b16 %v2097, %v2097
        %v2114 = vpack.c.b16 %v2098, %v2098
        %v2115 = vpack.c.b16 %v2099, %v2099
        %v2116 = vpack.c.b16 %v2100, %v2100
        %v2117 = vpack.c.b16 %v2101, %v2101
        %v2118 = vpack.c.b16 %v2102, %v2102
        %v2119 = vpack.c.b16 %v2103, %v2103
        %v2120 = vpack.c.b16 %v2104, %v2104
        %v2121 = vpack.c.b16 %v2105, %v2105
        %v2122 = vpack.c.b16 %v2106, %v2106
        %v2123 = vpack.c.b16 %v2107, %v2107
        %v2124 = vpack.c.b16 %v2108, %v2108
        %v2125 = vpack.c.b16 %v2109, %v2109
        %v2127 = vshrl.u32 %v2030, 16
        %v2129 = vshll.u32 %v2030, 16
        %v2131 = vrot.slane %v2129, 1
        %v2132 = vor.u32 %v2127, %v2131
        %v2134 = vshll.u32 %v2110, 16
        %v2136 = vrot.slane %v2134, 1
        %v2137 = vsel %vm1612, %v2132, %v2136
        %v2139 = vshrl.u32 %v2031, 16
        %v2141 = vshll.u32 %v2031, 16
        %v2143 = vrot.slane %v2141, 1
        %v2144 = vor.u32 %v2139, %v2143
        %v2146 = vshll.u32 %v2111, 16
        %v2148 = vrot.slane %v2146, 1
        %v2149 = vsel %vm1612, %v2144, %v2148
        %v2151 = vshrl.u32 %v2032, 16
        %v2153 = vshll.u32 %v2032, 16
        %v2155 = vrot.slane %v2153, 1
        %v2156 = vor.u32 %v2151, %v2155
        %v2158 = vshll.u32 %v2112, 16
        %v2160 = vrot.slane %v2158, 1
        %v2161 = vsel %vm1612, %v2156, %v2160
        %v2163 = vshrl.u32 %v2033, 16
        %v2165 = vshll.u32 %v2033, 16
        %v2167 = vrot.slane %v2165, 1
        %v2168 = vor.u32 %v2163, %v2167
        %v2170 = vshll.u32 %v2113, 16
        %v2172 = vrot.slane %v2170, 1
        %v2173 = vsel %vm1612, %v2168, %v2172
        %v2175 = vshrl.u32 %v2034, 16
        %v2177 = vshll.u32 %v2034, 16
        %v2179 = vrot.slane %v2177, 1
        %v2180 = vor.u32 %v2175, %v2179
        %v2182 = vshll.u32 %v2114, 16
        %v2184 = vrot.slane %v2182, 1
        %v2185 = vsel %vm1612, %v2180, %v2184
        %v2187 = vshrl.u32 %v2035, 16
        %v2189 = vshll.u32 %v2035, 16
        %v2191 = vrot.slane %v2189, 1
        %v2192 = vor.u32 %v2187, %v2191
        %v2194 = vshll.u32 %v2115, 16
        %v2196 = vrot.slane %v2194, 1
        %v2197 = vsel %vm1612, %v2192, %v2196
        %v2199 = vshrl.u32 %v2036, 16
        %v2201 = vshll.u32 %v2036, 16
        %v2203 = vrot.slane %v2201, 1
        %v2204 = vor.u32 %v2199, %v2203
        %v2206 = vshll.u32 %v2116, 16
        %v2208 = vrot.slane %v2206, 1
        %v2209 = vsel %vm1612, %v2204, %v2208
        %v2211 = vshrl.u32 %v2037, 16
        %v2213 = vshll.u32 %v2037, 16
        %v2215 = vrot.slane %v2213, 1
        %v2216 = vor.u32 %v2211, %v2215
        %v2218 = vshll.u32 %v2117, 16
        %v2220 = vrot.slane %v2218, 1
        %v2221 = vsel %vm1612, %v2216, %v2220
        %v2223 = vshrl.u32 %v2038, 16
        %v2225 = vshll.u32 %v2038, 16
        %v2227 = vrot.slane %v2225, 1
        %v2228 = vor.u32 %v2223, %v2227
        %v2230 = vshll.u32 %v2118, 16
        %v2232 = vrot.slane %v2230, 1
        %v2233 = vsel %vm1612, %v2228, %v2232
        %v2235 = vshrl.u32 %v2039, 16
        %v2237 = vshll.u32 %v2039, 16
        %v2239 = vrot.slane %v2237, 1
        %v2240 = vor.u32 %v2235, %v2239
        %v2242 = vshll.u32 %v2119, 16
        %v2244 = vrot.slane %v2242, 1
        %v2245 = vsel %vm1612, %v2240, %v2244
        %v2247 = vshrl.u32 %v2040, 16
        %v2249 = vshll.u32 %v2040, 16
        %v2251 = vrot.slane %v2249, 1
        %v2252 = vor.u32 %v2247, %v2251
        %v2254 = vshll.u32 %v2120, 16
        %v2256 = vrot.slane %v2254, 1
        %v2257 = vsel %vm1612, %v2252, %v2256
        %v2259 = vshrl.u32 %v2041, 16
        %v2261 = vshll.u32 %v2041, 16
        %v2263 = vrot.slane %v2261, 1
        %v2264 = vor.u32 %v2259, %v2263
        %v2266 = vshll.u32 %v2121, 16
        %v2268 = vrot.slane %v2266, 1
        %v2269 = vsel %vm1612, %v2264, %v2268
        %v2271 = vshrl.u32 %v2042, 16
        %v2273 = vshll.u32 %v2042, 16
        %v2275 = vrot.slane %v2273, 1
        %v2276 = vor.u32 %v2271, %v2275
        %v2278 = vshll.u32 %v2122, 16
        %v2280 = vrot.slane %v2278, 1
        %v2281 = vsel %vm1612, %v2276, %v2280
        %v2283 = vshrl.u32 %v2043, 16
        %v2285 = vshll.u32 %v2043, 16
        %v2287 = vrot.slane %v2285, 1
        %v2288 = vor.u32 %v2283, %v2287
        %v2290 = vshll.u32 %v2123, 16
        %v2292 = vrot.slane %v2290, 1
        %v2293 = vsel %vm1612, %v2288, %v2292
        %v2295 = vshrl.u32 %v2044, 16
        %v2297 = vshll.u32 %v2044, 16
        %v2299 = vrot.slane %v2297, 1
        %v2300 = vor.u32 %v2295, %v2299
        %v2302 = vshll.u32 %v2124, 16
        %v2304 = vrot.slane %v2302, 1
        %v2305 = vsel %vm1612, %v2300, %v2304
        %v2307 = vshrl.u32 %v2045, 16
        %v2309 = vshll.u32 %v2045, 16
        %v2311 = vrot.slane %v2309, 1
        %v2312 = vor.u32 %v2307, %v2311
        %v2314 = vshll.u32 %v2125, 16
        %v2316 = vrot.slane %v2314, 1
        %v2317 = vsel %vm1612, %v2312, %v2316
        %2318 = vrot.lane.b32.xlu0 %v2137, 64
        %v2319 = vpop.permute.xlu0 %2318
        %2320 = vrot.lane.b32.xlu0 %v2149, 64
        %v2321 = vpop.permute.xlu0 %2320
        %2322 = vrot.lane.b32.xlu0 %v2161, 64
        %v2323 = vpop.permute.xlu0 %2322
        %2324 = vrot.lane.b32.xlu0 %v2173, 64
        %v2325 = vpop.permute.xlu0 %2324
        %2326 = vrot.lane.b32.xlu0 %v2185, 64
        %v2327 = vpop.permute.xlu0 %2326
        %2328 = vrot.lane.b32.xlu0 %v2197, 64
        %v2329 = vpop.permute.xlu0 %2328
        %2330 = vrot.lane.b32.xlu0 %v2209, 64
        %v2331 = vpop.permute.xlu0 %2330
        %2332 = vrot.lane.b32.xlu0 %v2221, 64
        %v2333 = vpop.permute.xlu0 %2332
        %2334 = vrot.lane.b32.xlu0 %v2233, 64
        %v2335 = vpop.permute.xlu0 %2334
        %2336 = vrot.lane.b32.xlu0 %v2245, 64
        %v2337 = vpop.permute.xlu0 %2336
        %2338 = vrot.lane.b32.xlu0 %v2257, 64
        %v2339 = vpop.permute.xlu0 %2338
        %2340 = vrot.lane.b32.xlu0 %v2269, 64
        %v2341 = vpop.permute.xlu0 %2340
        %2342 = vrot.lane.b32.xlu0 %v2281, 64
        %v2343 = vpop.permute.xlu0 %2342
        %2344 = vrot.lane.b32.xlu0 %v2293, 64
        %v2345 = vpop.permute.xlu0 %2344
        %2346 = vrot.lane.b32.xlu0 %v2305, 64
        %v2347 = vpop.permute.xlu0 %2346
        %2348 = vrot.lane.b32.xlu0 %v2317, 64
        %v2349 = vpop.permute.xlu0 %2348
        %v2366 = vunpack.c.l.b16 %v1403
        %v2367 = vunpack.c.l.b16 %v1404
        %v2368 = vunpack.c.l.b16 %v1405
        %v2369 = vunpack.c.l.b16 %v1406
        %v2370 = vunpack.c.l.b16 %v1407
        %v2371 = vunpack.c.l.b16 %v1408
        %v2372 = vunpack.c.l.b16 %v1409
        %v2373 = vunpack.c.l.b16 %v1410
        %v2374 = vunpack.c.l.b16 %v1411
        %v2375 = vunpack.c.l.b16 %v1412
        %v2376 = vunpack.c.l.b16 %v1413
        %v2377 = vunpack.c.l.b16 %v1414
        %v2378 = vunpack.c.l.b16 %v1415
        %v2379 = vunpack.c.l.b16 %v1416
        %v2380 = vunpack.c.l.b16 %v1417
        %v2381 = vunpack.c.l.b16 %v1418
        %v2382 = vpack.c.b16 %v1999, %v2366
        %v2383 = vpack.c.b16 %v2001, %v2367
        %v2384 = vpack.c.b16 %v2003, %v2368
        %v2385 = vpack.c.b16 %v2005, %v2369
        %v2386 = vpack.c.b16 %v2007, %v2370
        %v2387 = vpack.c.b16 %v2009, %v2371
        %v2388 = vpack.c.b16 %v2011, %v2372
        %v2389 = vpack.c.b16 %v2013, %v2373
        %v2390 = vpack.c.b16 %v2015, %v2374
        %v2391 = vpack.c.b16 %v2017, %v2375
        %v2392 = vpack.c.b16 %v2019, %v2376
        %v2393 = vpack.c.b16 %v2021, %v2377
        %v2394 = vpack.c.b16 %v2023, %v2378
        %v2395 = vpack.c.b16 %v2025, %v2379
        %v2396 = vpack.c.b16 %v2027, %v2380
        %v2397 = vpack.c.b16 %v2029, %v2381
        %v2398 = vrot.slane %v2382, 1
        %v2399 = vrot.slane %v2110, 1
        %v2400 = vsel %vm1885, %v2398, %v2399
        %v2401 = vrot.slane %v2383, 1
        %v2402 = vrot.slane %v2111, 1
        %v2403 = vsel %vm1885, %v2401, %v2402
        %v2404 = vrot.slane %v2384, 1
        %v2405 = vrot.slane %v2112, 1
        %v2406 = vsel %vm1885, %v2404, %v2405
        %v2407 = vrot.slane %v2385, 1
        %v2408 = vrot.slane %v2113, 1
        %v2409 = vsel %vm1885, %v2407, %v2408
        %v2410 = vrot.slane %v2386, 1
        %v2411 = vrot.slane %v2114, 1
        %v2412 = vsel %vm1885, %v2410, %v2411
        %v2413 = vrot.slane %v2387, 1
        %v2414 = vrot.slane %v2115, 1
        %v2415 = vsel %vm1885, %v2413, %v2414
        %v2416 = vrot.slane %v2388, 1
        %v2417 = vrot.slane %v2116, 1
        %v2418 = vsel %vm1885, %v2416, %v2417
        %v2419 = vrot.slane %v2389, 1
        %v2420 = vrot.slane %v2117, 1
        %v2421 = vsel %vm1885, %v2419, %v2420
        %v2422 = vrot.slane %v2390, 1
        %v2423 = vrot.slane %v2118, 1
        %v2424 = vsel %vm1885, %v2422, %v2423
        %v2425 = vrot.slane %v2391, 1
        %v2426 = vrot.slane %v2119, 1
        %v2427 = vsel %vm1885, %v2425, %v2426
        %v2428 = vrot.slane %v2392, 1
        %v2429 = vrot.slane %v2120, 1
        %v2430 = vsel %vm1885, %v2428, %v2429
        %v2431 = vrot.slane %v2393, 1
        %v2432 = vrot.slane %v2121, 1
        %v2433 = vsel %vm1885, %v2431, %v2432
        %v2434 = vrot.slane %v2394, 1
        %v2435 = vrot.slane %v2122, 1
        %v2436 = vsel %vm1885, %v2434, %v2435
        %v2437 = vrot.slane %v2395, 1
        %v2438 = vrot.slane %v2123, 1
        %v2439 = vsel %vm1885, %v2437, %v2438
        %v2440 = vrot.slane %v2396, 1
        %v2441 = vrot.slane %v2124, 1
        %v2442 = vsel %vm1885, %v2440, %v2441
        %v2443 = vrot.slane %v2397, 1
        %v2444 = vrot.slane %v2125, 1
        %v2445 = vsel %vm1885, %v2443, %v2444
        %2446 = vrot.lane.b32.xlu0 %v2400, 80
        %v2447 = vpop.permute.xlu0 %2446
        %2448 = vrot.lane.b32.xlu0 %v2403, 80
        %v2449 = vpop.permute.xlu0 %2448
        %2450 = vrot.lane.b32.xlu0 %v2406, 80
        %v2451 = vpop.permute.xlu0 %2450
        %2452 = vrot.lane.b32.xlu0 %v2409, 80
        %v2453 = vpop.permute.xlu0 %2452
        %2454 = vrot.lane.b32.xlu0 %v2412, 80
        %v2455 = vpop.permute.xlu0 %2454
        %2456 = vrot.lane.b32.xlu0 %v2415, 80
        %v2457 = vpop.permute.xlu0 %2456
        %2458 = vrot.lane.b32.xlu0 %v2418, 80
        %v2459 = vpop.permute.xlu0 %2458
        %2460 = vrot.lane.b32.xlu0 %v2421, 80
        %v2461 = vpop.permute.xlu0 %2460
        %2462 = vrot.lane.b32.xlu0 %v2424, 80
        %v2463 = vpop.permute.xlu0 %2462
        %2464 = vrot.lane.b32.xlu0 %v2427, 80
        %v2465 = vpop.permute.xlu0 %2464
        %2466 = vrot.lane.b32.xlu0 %v2430, 80
        %v2467 = vpop.permute.xlu0 %2466
        %2468 = vrot.lane.b32.xlu0 %v2433, 80
        %v2469 = vpop.permute.xlu0 %2468
        %2470 = vrot.lane.b32.xlu0 %v2436, 80
        %v2471 = vpop.permute.xlu0 %2470
        %2472 = vrot.lane.b32.xlu0 %v2439, 80
        %v2473 = vpop.permute.xlu0 %2472
        %2474 = vrot.lane.b32.xlu0 %v2442, 80
        %v2475 = vpop.permute.xlu0 %2474
        %2476 = vrot.lane.b32.xlu0 %v2445, 80
        %v2477 = vpop.permute.xlu0 %2476
        %v2510 = vunpack.c.l.b16 %v1420
        %v2511 = vunpack.c.l.b16 %v1421
        %v2512 = vunpack.c.l.b16 %v1422
        %v2513 = vunpack.c.l.b16 %v1423
        %v2514 = vunpack.c.l.b16 %v1424
        %v2515 = vunpack.c.l.b16 %v1425
        %v2516 = vunpack.c.l.b16 %v1426
        %v2517 = vunpack.c.l.b16 %v1427
        %v2518 = vunpack.c.l.b16 %v1428
        %v2519 = vunpack.c.l.b16 %v1429
        %v2520 = vunpack.c.l.b16 %v1430
        %v2521 = vunpack.c.l.b16 %v1431
        %v2522 = vunpack.c.l.b16 %v1432
        %v2523 = vunpack.c.l.b16 %v1433
        %v2524 = vunpack.c.l.b16 %v1434
        %v2525 = vunpack.c.l.b16 %v1435
        %v2526 = vunpack.c.l.b16 %v1436
        %v2527 = vunpack.c.l.b16 %v1437
        %v2528 = vunpack.c.l.b16 %v1438
        %v2529 = vunpack.c.l.b16 %v1439
        %v2530 = vunpack.c.l.b16 %v1440
        %v2531 = vunpack.c.l.b16 %v1441
        %v2532 = vunpack.c.l.b16 %v1442
        %v2533 = vunpack.c.l.b16 %v1443
        %v2534 = vunpack.c.l.b16 %v1444
        %v2535 = vunpack.c.l.b16 %v1445
        %v2536 = vunpack.c.l.b16 %v1446
        %v2537 = vunpack.c.l.b16 %v1447
        %v2538 = vunpack.c.l.b16 %v1448
        %v2539 = vunpack.c.l.b16 %v1449
        %v2540 = vunpack.c.l.b16 %v1450
        %v2541 = vunpack.c.l.b16 %v1451
        %v2542 = vpack.c.b16 %v2511, %v2510
        %v2543 = vpack.c.b16 %v2513, %v2512
        %v2544 = vpack.c.b16 %v2515, %v2514
        %v2545 = vpack.c.b16 %v2517, %v2516
        %v2546 = vpack.c.b16 %v2519, %v2518
        %v2547 = vpack.c.b16 %v2521, %v2520
        %v2548 = vpack.c.b16 %v2523, %v2522
        %v2549 = vpack.c.b16 %v2525, %v2524
        %v2550 = vpack.c.b16 %v2527, %v2526
        %v2551 = vpack.c.b16 %v2529, %v2528
        %v2552 = vpack.c.b16 %v2531, %v2530
        %v2553 = vpack.c.b16 %v2533, %v2532
        %v2554 = vpack.c.b16 %v2535, %v2534
        %v2555 = vpack.c.b16 %v2537, %v2536
        %v2556 = vpack.c.b16 %v2539, %v2538
        %v2557 = vpack.c.b16 %v2541, %v2540
        %2558 = vrot.lane.b32.xlu0 %v2542, 96
        %v2559 = vpop.permute.xlu0 %2558
        %2560 = vrot.lane.b32.xlu0 %v2543, 96
        %v2561 = vpop.permute.xlu0 %2560
        %2562 = vrot.lane.b32.xlu0 %v2544, 96
        %v2563 = vpop.permute.xlu0 %2562
        %2564 = vrot.lane.b32.xlu0 %v2545, 96
        %v2565 = vpop.permute.xlu0 %2564
        %2566 = vrot.lane.b32.xlu0 %v2546, 96
        %v2567 = vpop.permute.xlu0 %2566
        %2568 = vrot.lane.b32.xlu0 %v2547, 96
        %v2569 = vpop.permute.xlu0 %2568
        %2570 = vrot.lane.b32.xlu0 %v2548, 96
        %v2571 = vpop.permute.xlu0 %2570
        %2572 = vrot.lane.b32.xlu0 %v2549, 96
        %v2573 = vpop.permute.xlu0 %2572
        %2574 = vrot.lane.b32.xlu0 %v2550, 96
        %v2575 = vpop.permute.xlu0 %2574
        %2576 = vrot.lane.b32.xlu0 %v2551, 96
        %v2577 = vpop.permute.xlu0 %2576
        %2578 = vrot.lane.b32.xlu0 %v2552, 96
        %v2579 = vpop.permute.xlu0 %2578
        %2580 = vrot.lane.b32.xlu0 %v2553, 96
        %v2581 = vpop.permute.xlu0 %2580
        %2582 = vrot.lane.b32.xlu0 %v2554, 96
        %v2583 = vpop.permute.xlu0 %2582
        %2584 = vrot.lane.b32.xlu0 %v2555, 96
        %v2585 = vpop.permute.xlu0 %2584
        %2586 = vrot.lane.b32.xlu0 %v2556, 96
        %v2587 = vpop.permute.xlu0 %2586
        %2588 = vrot.lane.b32.xlu0 %v2557, 96
        %v2589 = vpop.permute.xlu0 %2588
        %v2606 = vunpack.c.l.b16 %v1452
        %v2607 = vunpack.c.l.b16 %v1453
        %v2608 = vunpack.c.l.b16 %v1454
        %v2609 = vunpack.c.l.b16 %v1455
        %v2610 = vunpack.c.l.b16 %v1456
        %v2611 = vunpack.c.l.b16 %v1457
        %v2612 = vunpack.c.l.b16 %v1458
        %v2613 = vunpack.c.l.b16 %v1459
        %v2614 = vunpack.c.l.b16 %v1460
        %v2615 = vunpack.c.l.b16 %v1461
        %v2616 = vunpack.c.l.b16 %v1462
        %v2617 = vunpack.c.l.b16 %v1463
        %v2618 = vunpack.c.l.b16 %v1464
        %v2619 = vunpack.c.l.b16 %v1465
        %v2620 = vunpack.c.l.b16 %v1466
        %v2621 = vunpack.c.l.b16 %v1467
        %v2622 = vpack.c.b16 %v2606, %v2606
        %v2623 = vpack.c.b16 %v2607, %v2607
        %v2624 = vpack.c.b16 %v2608, %v2608
        %v2625 = vpack.c.b16 %v2609, %v2609
        %v2626 = vpack.c.b16 %v2610, %v2610
        %v2627 = vpack.c.b16 %v2611, %v2611
        %v2628 = vpack.c.b16 %v2612, %v2612
        %v2629 = vpack.c.b16 %v2613, %v2613
        %v2630 = vpack.c.b16 %v2614, %v2614
        %v2631 = vpack.c.b16 %v2615, %v2615
        %v2632 = vpack.c.b16 %v2616, %v2616
        %v2633 = vpack.c.b16 %v2617, %v2617
        %v2634 = vpack.c.b16 %v2618, %v2618
        %v2635 = vpack.c.b16 %v2619, %v2619
        %v2636 = vpack.c.b16 %v2620, %v2620
        %v2637 = vpack.c.b16 %v2621, %v2621
        %v2639 = vshrl.u32 %v2542, 16
        %v2641 = vshll.u32 %v2542, 16
        %v2643 = vrot.slane %v2641, 1
        %v2644 = vor.u32 %v2639, %v2643
        %v2646 = vshll.u32 %v2622, 16
        %v2648 = vrot.slane %v2646, 1
        %v2649 = vsel %vm1612, %v2644, %v2648
        %v2651 = vshrl.u32 %v2543, 16
        %v2653 = vshll.u32 %v2543, 16
        %v2655 = vrot.slane %v2653, 1
        %v2656 = vor.u32 %v2651, %v2655
        %v2658 = vshll.u32 %v2623, 16
        %v2660 = vrot.slane %v2658, 1
        %v2661 = vsel %vm1612, %v2656, %v2660
        %v2663 = vshrl.u32 %v2544, 16
        %v2665 = vshll.u32 %v2544, 16
        %v2667 = vrot.slane %v2665, 1
        %v2668 = vor.u32 %v2663, %v2667
        %v2670 = vshll.u32 %v2624, 16
        %v2672 = vrot.slane %v2670, 1
        %v2673 = vsel %vm1612, %v2668, %v2672
        %v2675 = vshrl.u32 %v2545, 16
        %v2677 = vshll.u32 %v2545, 16
        %v2679 = vrot.slane %v2677, 1
        %v2680 = vor.u32 %v2675, %v2679
        %v2682 = vshll.u32 %v2625, 16
        %v2684 = vrot.slane %v2682, 1
        %v2685 = vsel %vm1612, %v2680, %v2684
        %v2687 = vshrl.u32 %v2546, 16
        %v2689 = vshll.u32 %v2546, 16
        %v2691 = vrot.slane %v2689, 1
        %v2692 = vor.u32 %v2687, %v2691
        %v2694 = vshll.u32 %v2626, 16
        %v2696 = vrot.slane %v2694, 1
        %v2697 = vsel %vm1612, %v2692, %v2696
        %v2699 = vshrl.u32 %v2547, 16
        %v2701 = vshll.u32 %v2547, 16
        %v2703 = vrot.slane %v2701, 1
        %v2704 = vor.u32 %v2699, %v2703
        %v2706 = vshll.u32 %v2627, 16
        %v2708 = vrot.slane %v2706, 1
        %v2709 = vsel %vm1612, %v2704, %v2708
        %v2711 = vshrl.u32 %v2548, 16
        %v2713 = vshll.u32 %v2548, 16
        %v2715 = vrot.slane %v2713, 1
        %v2716 = vor.u32 %v2711, %v2715
        %v2718 = vshll.u32 %v2628, 16
        %v2720 = vrot.slane %v2718, 1
        %v2721 = vsel %vm1612, %v2716, %v2720
        %v2723 = vshrl.u32 %v2549, 16
        %v2725 = vshll.u32 %v2549, 16
        %v2727 = vrot.slane %v2725, 1
        %v2728 = vor.u32 %v2723, %v2727
        %v2730 = vshll.u32 %v2629, 16
        %v2732 = vrot.slane %v2730, 1
        %v2733 = vsel %vm1612, %v2728, %v2732
        %v2735 = vshrl.u32 %v2550, 16
        %v2737 = vshll.u32 %v2550, 16
        %v2739 = vrot.slane %v2737, 1
        %v2740 = vor.u32 %v2735, %v2739
        %v2742 = vshll.u32 %v2630, 16
        %v2744 = vrot.slane %v2742, 1
        %v2745 = vsel %vm1612, %v2740, %v2744
        %v2747 = vshrl.u32 %v2551, 16
        %v2749 = vshll.u32 %v2551, 16
        %v2751 = vrot.slane %v2749, 1
        %v2752 = vor.u32 %v2747, %v2751
        %v2754 = vshll.u32 %v2631, 16
        %v2756 = vrot.slane %v2754, 1
        %v2757 = vsel %vm1612, %v2752, %v2756
        %v2759 = vshrl.u32 %v2552, 16
        %v2761 = vshll.u32 %v2552, 16
        %v2763 = vrot.slane %v2761, 1
        %v2764 = vor.u32 %v2759, %v2763
        %v2766 = vshll.u32 %v2632, 16
        %v2768 = vrot.slane %v2766, 1
        %v2769 = vsel %vm1612, %v2764, %v2768
        %v2771 = vshrl.u32 %v2553, 16
        %v2773 = vshll.u32 %v2553, 16
        %v2775 = vrot.slane %v2773, 1
        %v2776 = vor.u32 %v2771, %v2775
        %v2778 = vshll.u32 %v2633, 16
        %v2780 = vrot.slane %v2778, 1
        %v2781 = vsel %vm1612, %v2776, %v2780
        %v2783 = vshrl.u32 %v2554, 16
        %v2785 = vshll.u32 %v2554, 16
        %v2787 = vrot.slane %v2785, 1
        %v2788 = vor.u32 %v2783, %v2787
        %v2790 = vshll.u32 %v2634, 16
        %v2792 = vrot.slane %v2790, 1
        %v2793 = vsel %vm1612, %v2788, %v2792
        %v2795 = vshrl.u32 %v2555, 16
        %v2797 = vshll.u32 %v2555, 16
        %v2799 = vrot.slane %v2797, 1
        %v2800 = vor.u32 %v2795, %v2799
        %v2802 = vshll.u32 %v2635, 16
        %v2804 = vrot.slane %v2802, 1
        %v2805 = vsel %vm1612, %v2800, %v2804
        %v2807 = vshrl.u32 %v2556, 16
        %v2809 = vshll.u32 %v2556, 16
        %v2811 = vrot.slane %v2809, 1
        %v2812 = vor.u32 %v2807, %v2811
        %v2814 = vshll.u32 %v2636, 16
        %v2816 = vrot.slane %v2814, 1
        %v2817 = vsel %vm1612, %v2812, %v2816
        %v2819 = vshrl.u32 %v2557, 16
        %v2821 = vshll.u32 %v2557, 16
        %v2823 = vrot.slane %v2821, 1
        %v2824 = vor.u32 %v2819, %v2823
        %v2826 = vshll.u32 %v2637, 16
        %v2828 = vrot.slane %v2826, 1
        %v2829 = vsel %vm1612, %v2824, %v2828
        %2830 = vrot.lane.b32.xlu0 %v2649, 112
        %v2831 = vpop.permute.xlu0 %2830
        %2832 = vrot.lane.b32.xlu0 %v2661, 112
        %v2833 = vpop.permute.xlu0 %2832
        %2834 = vrot.lane.b32.xlu0 %v2673, 112
        %v2835 = vpop.permute.xlu0 %2834
        %2836 = vrot.lane.b32.xlu0 %v2685, 112
        %v2837 = vpop.permute.xlu0 %2836
        %2838 = vrot.lane.b32.xlu0 %v2697, 112
        %v2839 = vpop.permute.xlu0 %2838
        %2840 = vrot.lane.b32.xlu0 %v2709, 112
        %v2841 = vpop.permute.xlu0 %2840
        %2842 = vrot.lane.b32.xlu0 %v2721, 112
        %v2843 = vpop.permute.xlu0 %2842
        %2844 = vrot.lane.b32.xlu0 %v2733, 112
        %v2845 = vpop.permute.xlu0 %2844
        %2846 = vrot.lane.b32.xlu0 %v2745, 112
        %v2847 = vpop.permute.xlu0 %2846
        %2848 = vrot.lane.b32.xlu0 %v2757, 112
        %v2849 = vpop.permute.xlu0 %2848
        %2850 = vrot.lane.b32.xlu0 %v2769, 112
        %v2851 = vpop.permute.xlu0 %2850
        %2852 = vrot.lane.b32.xlu0 %v2781, 112
        %v2853 = vpop.permute.xlu0 %2852
        %2854 = vrot.lane.b32.xlu0 %v2793, 112
        %v2855 = vpop.permute.xlu0 %2854
        %2856 = vrot.lane.b32.xlu0 %v2805, 112
        %v2857 = vpop.permute.xlu0 %2856
        %2858 = vrot.lane.b32.xlu0 %v2817, 112
        %v2859 = vpop.permute.xlu0 %2858
        %2860 = vrot.lane.b32.xlu0 %v2829, 112
        %v2861 = vpop.permute.xlu0 %2860
        %v2878 = vunpack.c.l.b16 %v1468
        %v2879 = vunpack.c.l.b16 %v1469
        %v2880 = vunpack.c.l.b16 %v1470
        %v2881 = vunpack.c.l.b16 %v1471
        %v2882 = vunpack.c.l.b16 %v1472
        %v2883 = vunpack.c.l.b16 %v1473
        %v2884 = vunpack.c.l.b16 %v1474
        %v2885 = vunpack.c.l.b16 %v1475
        %v2886 = vunpack.c.l.b16 %v1476
        %v2887 = vunpack.c.l.b16 %v1477
        %v2888 = vunpack.c.l.b16 %v1478
        %v2889 = vunpack.c.l.b16 %v1479
        %v2890 = vunpack.c.l.b16 %v1480
        %v2891 = vunpack.c.l.b16 %v1481
        %v2892 = vunpack.c.l.b16 %v1482
        %v2893 = vunpack.c.l.b16 %v1483
        %v2894 = vpack.c.b16 %v2511, %v2878
        %v2895 = vpack.c.b16 %v2513, %v2879
        %v2896 = vpack.c.b16 %v2515, %v2880
        %v2897 = vpack.c.b16 %v2517, %v2881
        %v2898 = vpack.c.b16 %v2519, %v2882
        %v2899 = vpack.c.b16 %v2521, %v2883
        %v2900 = vpack.c.b16 %v2523, %v2884
        %v2901 = vpack.c.b16 %v2525, %v2885
        %v2902 = vpack.c.b16 %v2527, %v2886
        %v2903 = vpack.c.b16 %v2529, %v2887
        %v2904 = vpack.c.b16 %v2531, %v2888
        %v2905 = vpack.c.b16 %v2533, %v2889
        %v2906 = vpack.c.b16 %v2535, %v2890
        %v2907 = vpack.c.b16 %v2537, %v2891
        %v2908 = vpack.c.b16 %v2539, %v2892
        %v2909 = vpack.c.b16 %v2541, %v2893
        %v2910 = vrot.slane %v2894, 1
        %v2911 = vrot.slane %v2622, 1
        %v2912 = vsel %vm1885, %v2910, %v2911
        %v2913 = vrot.slane %v2895, 1
        %v2914 = vrot.slane %v2623, 1
        %v2915 = vsel %vm1885, %v2913, %v2914
        %v2916 = vrot.slane %v2896, 1
        %v2917 = vrot.slane %v2624, 1
        %v2918 = vsel %vm1885, %v2916, %v2917
        %v2919 = vrot.slane %v2897, 1
        %v2920 = vrot.slane %v2625, 1
        %v2921 = vsel %vm1885, %v2919, %v2920
        %v2922 = vrot.slane %v2898, 1
        %v2923 = vrot.slane %v2626, 1
        %v2924 = vsel %vm1885, %v2922, %v2923
        %v2925 = vrot.slane %v2899, 1
        %v2926 = vrot.slane %v2627, 1
        %v2927 = vsel %vm1885, %v2925, %v2926
        %v2928 = vrot.slane %v2900, 1
        %v2929 = vrot.slane %v2628, 1
        %v2930 = vsel %vm1885, %v2928, %v2929
        %v2931 = vrot.slane %v2901, 1
        %v2932 = vrot.slane %v2629, 1
        %v2933 = vsel %vm1885, %v2931, %v2932
        %v2934 = vrot.slane %v2902, 1
        %v2935 = vrot.slane %v2630, 1
        %v2936 = vsel %vm1885, %v2934, %v2935
        %v2937 = vrot.slane %v2903, 1
        %v2938 = vrot.slane %v2631, 1
        %v2939 = vsel %vm1885, %v2937, %v2938
        %v2940 = vrot.slane %v2904, 1
        %v2941 = vrot.slane %v2632, 1
        %v2942 = vsel %vm1885, %v2940, %v2941
        %v2943 = vrot.slane %v2905, 1
        %v2944 = vrot.slane %v2633, 1
        %v2945 = vsel %vm1885, %v2943, %v2944
        %v2946 = vrot.slane %v2906, 1
        %v2947 = vrot.slane %v2634, 1
        %v2948 = vsel %vm1885, %v2946, %v2947
        %v2949 = vrot.slane %v2907, 1
        %v2950 = vrot.slane %v2635, 1
        %v2951 = vsel %vm1885, %v2949, %v2950
        %v2952 = vrot.slane %v2908, 1
        %v2953 = vrot.slane %v2636, 1
        %v2954 = vsel %vm1885, %v2952, %v2953
        %v2955 = vrot.slane %v2909, 1
        %v2956 = vrot.slane %v2637, 1
        %v2957 = vsel %vm1885, %v2955, %v2956
        %vm2958 = vcmask 130048
        %v2960 = vsel %vm2958, %v1548, %v1806
        %v2962 = vsel %vm2958, %v1549, %v1808
        %v2964 = vsel %vm2958, %v1550, %v1810
        %v2966 = vsel %vm2958, %v1551, %v1812
        %v2968 = vsel %vm2958, %v1552, %v1814
        %v2970 = vsel %vm2958, %v1553, %v1816
        %v2972 = vsel %vm2958, %v1554, %v1818
        %v2974 = vsel %vm2958, %v1555, %v1820
        %v2976 = vsel %vm2958, %v1556, %v1822
        %v2978 = vsel %vm2958, %v1557, %v1824
        %v2980 = vsel %vm2958, %v1558, %v1826
        %v2982 = vsel %vm2958, %v1559, %v1828
        %v2984 = vsel %vm2958, %v1560, %v1830
        %v2986 = vsel %vm2958, %v1561, %v1832
        %v2988 = vsel %vm2958, %v1562, %v1834
        %v2990 = vsel %vm2958, %v1563, %v1836
        %vm2991 = vcmask 261120
        %v2993 = vsel %vm2991, %v2960, %v1935
        %v2995 = vsel %vm2991, %v2962, %v1937
        %v2997 = vsel %vm2991, %v2964, %v1939
        %v2999 = vsel %vm2991, %v2966, %v1941
        %v3001 = vsel %vm2991, %v2968, %v1943
        %v3003 = vsel %vm2991, %v2970, %v1945
        %v3005 = vsel %vm2991, %v2972, %v1947
        %v3007 = vsel %vm2991, %v2974, %v1949
        %v3009 = vsel %vm2991, %v2976, %v1951
        %v3011 = vsel %vm2991, %v2978, %v1953
        %v3013 = vsel %vm2991, %v2980, %v1955
        %v3015 = vsel %vm2991, %v2982, %v1957
        %v3017 = vsel %vm2991, %v2984, %v1959
        %v3019 = vsel %vm2991, %v2986, %v1961
        %v3021 = vsel %vm2991, %v2988, %v1963
        %v3023 = vsel %vm2991, %v2990, %v1965
        %vm3024 = vcmask 392192
        %v3026 = vsel %vm3024, %v2993, %v2047
        %v3028 = vsel %vm3024, %v2995, %v2049
        %v3030 = vsel %vm3024, %v2997, %v2051
        %v3032 = vsel %vm3024, %v2999, %v2053
        %v3034 = vsel %vm3024, %v3001, %v2055
        %v3036 = vsel %vm3024, %v3003, %v2057
        %v3038 = vsel %vm3024, %v3005, %v2059
        %v3040 = vsel %vm3024, %v3007, %v2061
        %v3042 = vsel %vm3024, %v3009, %v2063
        %v3044 = vsel %vm3024, %v3011, %v2065
        %v3046 = vsel %vm3024, %v3013, %v2067
        %v3048 = vsel %vm3024, %v3015, %v2069
        %v3050 = vsel %vm3024, %v3017, %v2071
        %v3052 = vsel %vm3024, %v3019, %v2073
        %v3054 = vsel %vm3024, %v3021, %v2075
        %v3056 = vsel %vm3024, %v3023, %v2077
        %vm3057 = vcmask 523264
        %v3059 = vsel %vm3057, %v3026, %v2319
        %v3061 = vsel %vm3057, %v3028, %v2321
        %v3063 = vsel %vm3057, %v3030, %v2323
        %v3065 = vsel %vm3057, %v3032, %v2325
        %v3067 = vsel %vm3057, %v3034, %v2327
        %v3069 = vsel %vm3057, %v3036, %v2329
        %v3071 = vsel %vm3057, %v3038, %v2331
        %v3073 = vsel %vm3057, %v3040, %v2333
        %v3075 = vsel %vm3057, %v3042, %v2335
        %v3077 = vsel %vm3057, %v3044, %v2337
        %v3079 = vsel %vm3057, %v3046, %v2339
        %v3081 = vsel %vm3057, %v3048, %v2341
        %v3083 = vsel %vm3057, %v3050, %v2343
        %v3085 = vsel %vm3057, %v3052, %v2345
        %v3087 = vsel %vm3057, %v3054, %v2347
        %v3089 = vsel %vm3057, %v3056, %v2349
        %vm3090 = vcmask 654336
        %v3092 = vsel %vm3090, %v3059, %v2447
        %v3094 = vsel %vm3090, %v3061, %v2449
        %v3096 = vsel %vm3090, %v3063, %v2451
        %v3098 = vsel %vm3090, %v3065, %v2453
        %v3100 = vsel %vm3090, %v3067, %v2455
        %v3102 = vsel %vm3090, %v3069, %v2457
        %v3104 = vsel %vm3090, %v3071, %v2459
        %v3106 = vsel %vm3090, %v3073, %v2461
        %v3108 = vsel %vm3090, %v3075, %v2463
        %v3110 = vsel %vm3090, %v3077, %v2465
        %v3112 = vsel %vm3090, %v3079, %v2467
        %v3114 = vsel %vm3090, %v3081, %v2469
        %v3116 = vsel %vm3090, %v3083, %v2471
        %v3118 = vsel %vm3090, %v3085, %v2473
        %v3120 = vsel %vm3090, %v3087, %v2475
        %v3122 = vsel %vm3090, %v3089, %v2477
        %vm3123 = vcmask 785408
        %v3125 = vsel %vm3123, %v3092, %v2559
        %v3127 = vsel %vm3123, %v3094, %v2561
        %v3129 = vsel %vm3123, %v3096, %v2563
        %v3131 = vsel %vm3123, %v3098, %v2565
        %v3133 = vsel %vm3123, %v3100, %v2567
        %v3135 = vsel %vm3123, %v3102, %v2569
        %v3137 = vsel %vm3123, %v3104, %v2571
        %v3139 = vsel %vm3123, %v3106, %v2573
        %v3141 = vsel %vm3123, %v3108, %v2575
        %v3143 = vsel %vm3123, %v3110, %v2577
        %v3145 = vsel %vm3123, %v3112, %v2579
        %v3147 = vsel %vm3123, %v3114, %v2581
        %v3149 = vsel %vm3123, %v3116, %v2583
        %v3151 = vsel %vm3123, %v3118, %v2585
        %v3153 = vsel %vm3123, %v3120, %v2587
        %v3155 = vsel %vm3123, %v3122, %v2589
        %vm3156 = vcmask 916480
        %v3158 = vsel %vm3156, %v3125, %v2831
        %v3161 = vsel %vm3156, %v3127, %v2833
        %v3164 = vsel %vm3156, %v3129, %v2835
        %v3167 = vsel %vm3156, %v3131, %v2837
        %v3170 = vsel %vm3156, %v3133, %v2839
        %v3173 = vsel %vm3156, %v3135, %v2841
        %v3176 = vsel %vm3156, %v3137, %v2843
        %v3179 = vsel %vm3156, %v3139, %v2845
        %v3182 = vsel %vm3156, %v3141, %v2847
        %v3185 = vsel %vm3156, %v3143, %v2849
        %v3188 = vsel %vm3156, %v3145, %v2851
        %v3191 = vsel %vm3156, %v3147, %v2853
        %v3194 = vsel %vm3156, %v3149, %v2855
        %v3197 = vsel %vm3156, %v3151, %v2857
        %v3200 = vsel %vm3156, %v3153, %v2859
        %v3203 = vsel %vm3156, %v3155, %v2861
        %v3205 = vld [vmem:[%s2] sm:$0xf]
        %v3206 = vld [vmem:[%s2 + $0x4] sm:$0xf]
        %v3207 = vld [vmem:[%s2 + $0x8] sm:$0xf]
        %v3208 = vld [vmem:[%s2 + $0xc] sm:$0xf]
        %v3209 = vld [vmem:[%s2 + $0x10] sm:$0xf]
        %v3210 = vld [vmem:[%s2 + $0x14] sm:$0xf]
        %v3211 = vld [vmem:[%s2 + $0x18] sm:$0xf]
        %v3212 = vld [vmem:[%s2 + $0x1c] sm:$0xf]
        %v3213 = vld [vmem:[%s2 + $0x20] sm:$0xf]
        %v3214 = vld [vmem:[%s2 + $0x24] sm:$0xf]
        %v3215 = vld [vmem:[%s2 + $0x28] sm:$0xf]
        %v3216 = vld [vmem:[%s2 + $0x2c] sm:$0xf]
        %v3217 = vld [vmem:[%s2 + $0x30] sm:$0xf]
        %v3218 = vld [vmem:[%s2 + $0x34] sm:$0xf]
        %v3219 = vld [vmem:[%s2 + $0x38] sm:$0xf]
        %v3220 = vld [vmem:[%s2 + $0x3c] sm:$0xf]
        %v3221 = vld [vmem:[%s2 + $0x40] sm:$0xf]
        %v3222 = vld [vmem:[%s2 + $0x44] sm:$0xf]
        %v3223 = vld [vmem:[%s6] sm:$0x1]
        %v3225 = vlaneseq
        %v3226 = vshrl.u32 %v3225, 7
        %v3227 = vsub.s32 0, %v3226
        %v3228 = vrot.slane %v3223, %v3227
        %v3248 = vunpack.c.l.b16 %v3205
        %v3249 = vunpack.c.l.b16 %v3206
        %v3250 = vunpack.c.l.b16 %v3207
        %v3251 = vunpack.c.l.b16 %v3208
        %v3252 = vunpack.c.l.b16 %v3209
        %v3253 = vunpack.c.l.b16 %v3210
        %v3254 = vunpack.c.l.b16 %v3211
        %v3255 = vunpack.c.l.b16 %v3212
        %v3256 = vunpack.c.l.b16 %v3213
        %v3257 = vunpack.c.l.b16 %v3214
        %v3258 = vunpack.c.l.b16 %v3215
        %v3259 = vunpack.c.l.b16 %v3216
        %v3260 = vunpack.c.l.b16 %v3217
        %v3261 = vunpack.c.l.b16 %v3218
        %v3262 = vunpack.c.l.b16 %v3219
        %v3263 = vunpack.c.l.b16 %v3220
        %v3264 = vunpack.c.l.b16 %v3221
        %v3265 = vunpack.c.l.b16 %v3222
        %v3266 = vpack.c.b16 %v3249, %v3248
        %v3267 = vpack.c.b16 %v3251, %v3250
        %v3268 = vpack.c.b16 %v3253, %v3252
        %v3269 = vpack.c.b16 %v3255, %v3254
        %v3270 = vpack.c.b16 %v3257, %v3256
        %v3271 = vpack.c.b16 %v3259, %v3258
        %v3272 = vpack.c.b16 %v3261, %v3260
        %v3273 = vpack.c.b16 %v3263, %v3262
        %v3274 = vpack.c.b16 %v3265, %v3264
        %v3285 = vsel %vm2958, %v2912, 0
        %v3288 = vsel %vm2958, %v2915, 0
        %v3291 = vsel %vm2958, %v2918, 0
        %v3294 = vsel %vm2958, %v2921, 0
        %v3297 = vsel %vm2958, %v2924, 0
        %v3300 = vsel %vm2958, %v2927, 0
        %v3303 = vsel %vm2958, %v2930, 0
        %v3306 = vsel %vm2958, %v2933, 0
        %v3309 = vsel %vm2958, %v2936, 0
        %v3312 = vsel %vm2958, %v2939, 0
        %v3315 = vsel %vm2958, %v2942, 0
        %v3318 = vsel %vm2958, %v2945, 0
        %v3321 = vsel %vm2958, %v2948, 0
        %v3324 = vsel %vm2958, %v2951, 0
        %v3327 = vsel %vm2958, %v2954, 0
        %v3330 = vsel %vm2958, %v2957, 0
        %3332 = vmatprep.subr.bf16.mxu0 0
        %3333 = vmatpush1.bf16.msra.mxu0 %v3266
        %3334 = vmatprep.subr.bf16.mxu0 0
        %3335 = vmatpush1.bf16.msra.mxu0 %v3267
        %3336 = vmatprep.subr.bf16.mxu0 0
        %3337 = vmatpush1.bf16.msra.mxu0 %v3268
        %3338 = vmatprep.subr.bf16.mxu0 0
        %3339 = vmatpush1.bf16.msra.mxu0 %v3269
        %3340 = vmatprep.subr.bf16.mxu0 0
        %3341 = vmatpush1.bf16.msra.mxu0 %v3270
        %3342 = vmatprep.subr.bf16.mxu0 0
        %3343 = vmatpush1.bf16.msra.mxu0 %v3271
        %3344 = vmatprep.subr.bf16.mxu0 0
        %3345 = vmatpush1.bf16.msra.mxu0 %v3272
        %3346 = vmatprep.subr.bf16.mxu0 0
        %3347 = vmatpush1.bf16.msra.mxu0 %v3273
        %3348 = vmatprep.subr.bf16.mxu0 0
        %3349 = vmatpush1.bf16.msra.mxu0 %v3274
        %3350 = vmatprep.subr.bf16.mxu0 0
        %3351 = vmatpush1.bf16.msra.mxu0 0
        %3352 = vmatprep.subr.bf16.mxu0 0
        %3353 = vmatpush1.bf16.msra.mxu0 0
        %3354 = vmatprep.subr.bf16.mxu0 0
        %3355 = vmatpush1.bf16.msra.mxu0 0
        %3356 = vmatprep.subr.bf16.mxu0 0
        %3357 = vmatpush1.bf16.msra.mxu0 0
        %3358 = vmatprep.subr.bf16.mxu0 0
        %3359 = vmatpush1.bf16.msra.mxu0 0
        %3360 = vmatprep.subr.bf16.mxu0 0
        %3361 = vmatpush1.bf16.msra.mxu0 0
        %3362 = vmatprep.subr.bf16.mxu0 0
        %3363 = vmatpush1.bf16.msra.mxu0 0
        %3364 = vmatprep.mubr.bf16.mxu0 %v3285
        %3365 = vmatmul.mubr.bf16.gmra.mrb[0].mxu0 %v3158
        %v3366 = vpop.f32.mrb[0].mxu0
        %v3367 = vadd.f32 %v3228, %v3366
        %v3368 = vpop.f32.mrb[0].mxu0
        %v3369 = vpop.f32.mrb[0].mxu0
        %v3370 = vadd.f32 %v3228, %v3369
        %v3371 = vpop.f32.mrb[0].mxu0
        %3372 = vmatprep.mubr.bf16.mxu0 %v3288
        %3373 = vmatmul.mubr.bf16.gmra.mrb[0].mxu0 %v3161
        %v3374 = vpop.f32.mrb[0].mxu0
        %v3375 = vadd.f32 %v3228, %v3374
        %v3376 = vpop.f32.mrb[0].mxu0
        %v3377 = vpop.f32.mrb[0].mxu0
        %v3378 = vadd.f32 %v3228, %v3377
        %v3379 = vpop.f32.mrb[0].mxu0
        %3380 = vmatprep.mubr.bf16.mxu0 %v3291
        %3381 = vmatmul.mubr.bf16.gmra.mrb[0].mxu0 %v3164
        %v3382 = vpop.f32.mrb[0].mxu0
        %v3383 = vadd.f32 %v3228, %v3382
        %v3384 = vpop.f32.mrb[0].mxu0
        %v3385 = vpop.f32.mrb[0].mxu0
        %v3386 = vadd.f32 %v3228, %v3385
        %v3387 = vpop.f32.mrb[0].mxu0
        %3388 = vmatprep.mubr.bf16.mxu0 %v3294
        %3389 = vmatmul.mubr.bf16.gmra.mrb[0].mxu0 %v3167
        %v3390 = vpop.f32.mrb[0].mxu0
        %v3391 = vadd.f32 %v3228, %v3390
        %v3392 = vpop.f32.mrb[0].mxu0
        %v3393 = vpop.f32.mrb[0].mxu0
        %v3394 = vadd.f32 %v3228, %v3393
        %v3395 = vpop.f32.mrb[0].mxu0
        %3396 = vmatprep.mubr.bf16.mxu0 %v3297
        %3397 = vmatmul.mubr.bf16.gmra.mrb[0].mxu0 %v3170
        %v3398 = vpop.f32.mrb[0].mxu0
        %v3399 = vadd.f32 %v3228, %v3398
        %v3400 = vpop.f32.mrb[0].mxu0
        %v3401 = vpop.f32.mrb[0].mxu0
        %v3402 = vadd.f32 %v3228, %v3401
        %v3403 = vpop.f32.mrb[0].mxu0
        %3404 = vmatprep.mubr.bf16.mxu0 %v3300
        %3405 = vmatmul.mubr.bf16.gmra.mrb[0].mxu0 %v3173
        %v3406 = vpop.f32.mrb[0].mxu0
        %v3407 = vadd.f32 %v3228, %v3406
        %v3408 = vpop.f32.mrb[0].mxu0
        %v3409 = vpop.f32.mrb[0].mxu0
        %v3410 = vadd.f32 %v3228, %v3409
        %v3411 = vpop.f32.mrb[0].mxu0
        %3412 = vmatprep.mubr.bf16.mxu0 %v3303
        %3413 = vmatmul.mubr.bf16.gmra.mrb[0].mxu0 %v3176
        %v3414 = vpop.f32.mrb[0].mxu0
        %v3415 = vadd.f32 %v3228, %v3414
        %v3416 = vpop.f32.mrb[0].mxu0
        %v3417 = vpop.f32.mrb[0].mxu0
        %v3418 = vadd.f32 %v3228, %v3417
        %v3419 = vpop.f32.mrb[0].mxu0
        %3420 = vmatprep.mubr.bf16.mxu0 %v3306
        %3421 = vmatmul.mubr.bf16.gmra.mrb[0].mxu0 %v3179
        %v3422 = vpop.f32.mrb[0].mxu0
        %v3423 = vadd.f32 %v3228, %v3422
        %v3424 = vpop.f32.mrb[0].mxu0
        %v3425 = vpop.f32.mrb[0].mxu0
        %v3426 = vadd.f32 %v3228, %v3425
        %v3427 = vpop.f32.mrb[0].mxu0
        %3428 = vmatprep.mubr.bf16.mxu0 %v3309
        %3429 = vmatmul.mubr.bf16.gmra.mrb[0].mxu0 %v3182
        %v3430 = vpop.f32.mrb[0].mxu0
        %v3431 = vadd.f32 %v3228, %v3430
        %v3432 = vpop.f32.mrb[0].mxu0
        %v3433 = vpop.f32.mrb[0].mxu0
        %v3434 = vadd.f32 %v3228, %v3433
        %v3435 = vpop.f32.mrb[0].mxu0
        %3436 = vmatprep.mubr.bf16.mxu0 %v3312
        %3437 = vmatmul.mubr.bf16.gmra.mrb[0].mxu0 %v3185
        %v3438 = vpop.f32.mrb[0].mxu0
        %v3439 = vadd.f32 %v3228, %v3438
        %v3440 = vpop.f32.mrb[0].mxu0
        %v3441 = vpop.f32.mrb[0].mxu0
        %v3442 = vadd.f32 %v3228, %v3441
        %v3443 = vpop.f32.mrb[0].mxu0
        %3444 = vmatprep.mubr.bf16.mxu0 %v3315
        %3445 = vmatmul.mubr.bf16.gmra.mrb[0].mxu0 %v3188
        %v3446 = vpop.f32.mrb[0].mxu0
        %v3447 = vadd.f32 %v3228, %v3446
        %v3448 = vpop.f32.mrb[0].mxu0
        %v3449 = vpop.f32.mrb[0].mxu0
        %v3450 = vadd.f32 %v3228, %v3449
        %v3451 = vpop.f32.mrb[0].mxu0
        %3452 = vmatprep.mubr.bf16.mxu0 %v3318
        %3453 = vmatmul.mubr.bf16.gmra.mrb[0].mxu0 %v3191
        %v3454 = vpop.f32.mrb[0].mxu0
        %v3455 = vadd.f32 %v3228, %v3454
        %v3456 = vpop.f32.mrb[0].mxu0
        %v3457 = vpop.f32.mrb[0].mxu0
        %v3458 = vadd.f32 %v3228, %v3457
        %v3459 = vpop.f32.mrb[0].mxu0
        %3460 = vmatprep.mubr.bf16.mxu0 %v3321
        %3461 = vmatmul.mubr.bf16.gmra.mrb[0].mxu0 %v3194
        %v3462 = vpop.f32.mrb[0].mxu0
        %v3463 = vadd.f32 %v3228, %v3462
        %v3464 = vpop.f32.mrb[0].mxu0
        %v3465 = vpop.f32.mrb[0].mxu0
        %v3466 = vadd.f32 %v3228, %v3465
        %v3467 = vpop.f32.mrb[0].mxu0
        %3468 = vmatprep.mubr.bf16.mxu0 %v3324
        %3469 = vmatmul.mubr.bf16.gmra.mrb[0].mxu0 %v3197
        %v3470 = vpop.f32.mrb[0].mxu0
        %v3471 = vadd.f32 %v3228, %v3470
        %v3472 = vpop.f32.mrb[0].mxu0
        %v3473 = vpop.f32.mrb[0].mxu0
        %v3474 = vadd.f32 %v3228, %v3473
        %v3475 = vpop.f32.mrb[0].mxu0
        %3476 = vmatprep.mubr.bf16.mxu0 %v3327
        %3477 = vmatmul.mubr.bf16.gmra.mrb[0].mxu0 %v3200
        %v3478 = vpop.f32.mrb[0].mxu0
        %v3479 = vadd.f32 %v3228, %v3478
        %v3480 = vpop.f32.mrb[0].mxu0
        %v3481 = vpop.f32.mrb[0].mxu0
        %v3482 = vadd.f32 %v3228, %v3481
        %v3483 = vpop.f32.mrb[0].mxu0
        %3484 = vmatprep.mubr.bf16.mxu0 %v3330
        %3485 = vmatmul.mubr.bf16.gmra.mrb[0].mxu0 %v3203
        %v3486 = vpop.f32.mrb[0].mxu0
        %v3487 = vadd.f32 %v3228, %v3486
        %v3488 = vpop.f32.mrb[0].mxu0
        %v3489 = vpop.f32.mrb[0].mxu0
        %v3490 = vadd.f32 %v3228, %v3489
        %v3491 = vpop.f32.mrb[0].mxu0
        %3492 = vdwg.mxu0
        %v3493 = vmax.f32 %v3367, 0.0
        %v3494 = vmax.f32 %v3370, 0.0
        %v3495 = vmax.f32 %v3375, 0.0
        %v3496 = vmax.f32 %v3378, 0.0
        %v3497 = vmax.f32 %v3383, 0.0
        %v3498 = vmax.f32 %v3386, 0.0
        %v3499 = vmax.f32 %v3391, 0.0
        %v3500 = vmax.f32 %v3394, 0.0
        %v3501 = vmax.f32 %v3399, 0.0
        %v3502 = vmax.f32 %v3402, 0.0
        %v3503 = vmax.f32 %v3407, 0.0
        %v3504 = vmax.f32 %v3410, 0.0
        %v3505 = vmax.f32 %v3415, 0.0
        %v3506 = vmax.f32 %v3418, 0.0
        %v3507 = vmax.f32 %v3423, 0.0
        %v3508 = vmax.f32 %v3426, 0.0
        %v3509 = vmax.f32 %v3431, 0.0
        %v3510 = vmax.f32 %v3434, 0.0
        %v3511 = vmax.f32 %v3439, 0.0
        %v3512 = vmax.f32 %v3442, 0.0
        %v3513 = vmax.f32 %v3447, 0.0
        %v3514 = vmax.f32 %v3450, 0.0
        %v3515 = vmax.f32 %v3455, 0.0
        %v3516 = vmax.f32 %v3458, 0.0
        %v3517 = vmax.f32 %v3463, 0.0
        %v3518 = vmax.f32 %v3466, 0.0
        %v3519 = vmax.f32 %v3471, 0.0
        %v3520 = vmax.f32 %v3474, 0.0
        %v3521 = vmax.f32 %v3479, 0.0
        %v3522 = vmax.f32 %v3482, 0.0
        %v3523 = vmax.f32 %v3487, 0.0
        %v3524 = vmax.f32 %v3490, 0.0
        %vm3525 = vcmask 60416
        %3526 = vst.msk [vmem:[#allocation3] sm:$0xf] %vm3525, 0
        %3527 = vst.msk [vmem:[#allocation3 + $0x4] sm:$0xf] %vm3525, 0
        %vm3528 = vcmask 57344
        %3529 = vst.msk [vmem:[#allocation3 + $0x8] sm:$0x1] %vm3528, 0
        %3530 = vst.msk [vmem:[#allocation3 + $0xc] sm:$0xf] %vm3525, 0
        %3531 = vst.msk [vmem:[#allocation3 + $0x10] sm:$0xf] %vm3525, 0
        %3532 = vst.msk [vmem:[#allocation3 + $0x14] sm:$0x1] %vm3528, 0
        %3533 = vst.msk [vmem:[#allocation3 + $0x18] sm:$0xf] %vm3525, 0
        %3534 = vst.msk [vmem:[#allocation3 + $0x1c] sm:$0xf] %vm3525, 0
        %3535 = vst.msk [vmem:[#allocation3 + $0x20] sm:$0x1] %vm3528, 0
        %3536 = vst.msk [vmem:[#allocation3 + $0x24] sm:$0xf] %vm3525, 0
        %3537 = vst.msk [vmem:[#allocation3 + $0x28] sm:$0xf] %vm3525, 0
        %3538 = vst.msk [vmem:[#allocation3 + $0x2c] sm:$0x1] %vm3528, 0
        %3539 = vst.msk [vmem:[#allocation3 + $0x30] sm:$0xf] %vm3525, 0
        %3540 = vst.msk [vmem:[#allocation3 + $0x34] sm:$0xf] %vm3525, 0
        %3541 = vst.msk [vmem:[#allocation3 + $0x38] sm:$0x1] %vm3528, 0
        %3542 = vst.msk [vmem:[#allocation3 + $0x3c] sm:$0xf] %vm3525, 0
        %3543 = vst.msk [vmem:[#allocation3 + $0x40] sm:$0xf] %vm3525, 0
        %3544 = vst.msk [vmem:[#allocation3 + $0x44] sm:$0x1] %vm3528, 0
        %3545 = vst.msk [vmem:[#allocation3 + $0x48] sm:$0xf] %vm3525, 0
        %3546 = vst.msk [vmem:[#allocation3 + $0x4c] sm:$0xf] %vm3525, 0
        %3547 = vst.msk [vmem:[#allocation3 + $0x50] sm:$0x1] %vm3528, 0
        %3548 = vst.msk [vmem:[#allocation3 + $0x54] sm:$0xf] %vm3525, 0
        %3549 = vst.msk [vmem:[#allocation3 + $0x58] sm:$0xf] %vm3525, 0
        %3550 = vst.msk [vmem:[#allocation3 + $0x5c] sm:$0x1] %vm3528, 0
        %3551 = vst.msk [vmem:[#allocation3 + $0x60] sm:$0xf] %vm3525, 0
        %3552 = vst.msk [vmem:[#allocation3 + $0x64] sm:$0xf] %vm3525, 0
        %3553 = vst.msk [vmem:[#allocation3 + $0x68] sm:$0x1] %vm3528, 0
        %3554 = vst.msk [vmem:[#allocation3 + $0x6c] sm:$0xf] %vm3525, 0
        %3555 = vst.msk [vmem:[#allocation3 + $0x70] sm:$0xf] %vm3525, 0
        %3556 = vst.msk [vmem:[#allocation3 + $0x74] sm:$0x1] %vm3528, 0
        %3557 = vst.msk [vmem:[#allocation3 + $0x78] sm:$0xf] %vm3525, 0
        %3558 = vst.msk [vmem:[#allocation3 + $0x7c] sm:$0xf] %vm3525, 0
        %3559 = vst.msk [vmem:[#allocation3 + $0x80] sm:$0x1] %vm3528, 0
        %3560 = vst.msk [vmem:[#allocation3 + $0x84] sm:$0xf] %vm3525, 0
        %3561 = vst.msk [vmem:[#allocation3 + $0x88] sm:$0xf] %vm3525, 0
        %3562 = vst.msk [vmem:[#allocation3 + $0x8c] sm:$0x1] %vm3528, 0
        %3563 = vst.msk [vmem:[#allocation3 + $0x90] sm:$0xf] %vm3525, 0
        %3564 = vst.msk [vmem:[#allocation3 + $0x94] sm:$0xf] %vm3525, 0
        %3565 = vst.msk [vmem:[#allocation3 + $0x98] sm:$0x1] %vm3528, 0
        %3566 = vst.msk [vmem:[#allocation3 + $0x9c] sm:$0xf] %vm3525, 0
        %3567 = vst.msk [vmem:[#allocation3 + $0xa0] sm:$0xf] %vm3525, 0
        %3568 = vst.msk [vmem:[#allocation3 + $0xa4] sm:$0x1] %vm3528, 0
        %3569 = vst.msk [vmem:[#allocation3 + $0xa8] sm:$0xf] %vm3525, 0
        %3570 = vst.msk [vmem:[#allocation3 + $0xac] sm:$0xf] %vm3525, 0
        %3571 = vst.msk [vmem:[#allocation3 + $0xb0] sm:$0x1] %vm3528, 0
        %3572 = vst.msk [vmem:[#allocation3 + $0xb4] sm:$0xf] %vm3525, 0
        %3573 = vst.msk [vmem:[#allocation3 + $0xb8] sm:$0xf] %vm3525, 0
        %3574 = vst.msk [vmem:[#allocation3 + $0xbc] sm:$0x1] %vm3528, 0
        %3575 = vst.msk [vmem:[#allocation3 + $0xc0] sm:$0xf] %vm3525, 0
        %3576 = vst.msk [vmem:[#allocation3 + $0xc4] sm:$0xf] %vm3525, 0
        %3577 = vst.msk [vmem:[#allocation3 + $0xc8] sm:$0x1] %vm3528, 0
        %3578 = vst.msk [vmem:[#allocation3 + $0xcc] sm:$0xf] %vm3525, 0
        %3579 = vst.msk [vmem:[#allocation3 + $0xd0] sm:$0xf] %vm3525, 0
        %3580 = vst.msk [vmem:[#allocation3 + $0xd4] sm:$0x1] %vm3528, 0
        %v3581 = vpack.c.bf16 %v3494, %v3493
        %v3582 = vpack.c.bf16 %v3496, %v3495
        %v3583 = vpack.c.bf16 %v3498, %v3497
        %v3584 = vpack.c.bf16 %v3500, %v3499
        %v3585 = vpack.c.bf16 %v3502, %v3501
        %v3586 = vpack.c.bf16 %v3504, %v3503
        %v3587 = vpack.c.bf16 %v3506, %v3505
        %v3588 = vpack.c.bf16 %v3508, %v3507
        %v3589 = vpack.c.bf16 %v3510, %v3509
        %v3590 = vpack.c.bf16 %v3512, %v3511
        %v3591 = vpack.c.bf16 %v3514, %v3513
        %v3592 = vpack.c.bf16 %v3516, %v3515
        %v3593 = vpack.c.bf16 %v3518, %v3517
        %v3594 = vpack.c.bf16 %v3520, %v3519
        %v3595 = vpack.c.bf16 %v3522, %v3521
        %v3596 = vpack.c.bf16 %v3524, %v3523
        %v3613 = vunpack.c.l.b16 %v3581
        %v3614 = vunpack.c.h.b16 %v3581
        %v3615 = vunpack.c.l.b16 %v3582
        %v3616 = vunpack.c.h.b16 %v3582
        %v3617 = vunpack.c.l.b16 %v3583
        %v3618 = vunpack.c.h.b16 %v3583
        %v3619 = vunpack.c.l.b16 %v3584
        %v3620 = vunpack.c.h.b16 %v3584
        %v3621 = vunpack.c.l.b16 %v3585
        %v3622 = vunpack.c.h.b16 %v3585
        %v3623 = vunpack.c.l.b16 %v3586
        %v3624 = vunpack.c.h.b16 %v3586
        %v3625 = vunpack.c.l.b16 %v3587
        %v3626 = vunpack.c.h.b16 %v3587
        %v3627 = vunpack.c.l.b16 %v3588
        %v3628 = vunpack.c.h.b16 %v3588
        %v3629 = vunpack.c.l.b16 %v3589
        %v3630 = vunpack.c.h.b16 %v3589
        %v3631 = vunpack.c.l.b16 %v3590
        %v3632 = vunpack.c.h.b16 %v3590
        %v3633 = vunpack.c.l.b16 %v3591
        %v3634 = vunpack.c.h.b16 %v3591
        %v3635 = vunpack.c.l.b16 %v3592
        %v3636 = vunpack.c.h.b16 %v3592
        %v3637 = vunpack.c.l.b16 %v3593
        %v3638 = vunpack.c.h.b16 %v3593
        %v3639 = vunpack.c.l.b16 %v3594
        %v3640 = vunpack.c.h.b16 %v3594
        %v3641 = vunpack.c.l.b16 %v3595
        %v3642 = vunpack.c.h.b16 %v3595
        %v3643 = vunpack.c.l.b16 %v3596
        %v3644 = vunpack.c.h.b16 %v3596
        %v3645 = vpack.c.b16 %v3613, %v3613
        %v3646 = vpack.c.b16 %v3614, %v3614
        %v3647 = vpack.c.b16 %v3615, %v3615
        %v3648 = vpack.c.b16 %v3616, %v3616
        %v3649 = vpack.c.b16 %v3617, %v3617
        %v3650 = vpack.c.b16 %v3618, %v3618
        %v3651 = vpack.c.b16 %v3619, %v3619
        %v3652 = vpack.c.b16 %v3620, %v3620
        %v3653 = vpack.c.b16 %v3621, %v3621
        %v3654 = vpack.c.b16 %v3622, %v3622
        %v3655 = vpack.c.b16 %v3623, %v3623
        %v3656 = vpack.c.b16 %v3624, %v3624
        %v3657 = vpack.c.b16 %v3625, %v3625
        %v3658 = vpack.c.b16 %v3626, %v3626
        %v3659 = vpack.c.b16 %v3627, %v3627
        %v3660 = vpack.c.b16 %v3628, %v3628
        %v3661 = vpack.c.b16 %v3629, %v3629
        %v3662 = vpack.c.b16 %v3630, %v3630
        %v3663 = vpack.c.b16 %v3631, %v3631
        %v3664 = vpack.c.b16 %v3632, %v3632
        %v3665 = vpack.c.b16 %v3633, %v3633
        %v3666 = vpack.c.b16 %v3634, %v3634
        %v3667 = vpack.c.b16 %v3635, %v3635
        %v3668 = vpack.c.b16 %v3636, %v3636
        %v3669 = vpack.c.b16 %v3637, %v3637
        %v3670 = vpack.c.b16 %v3638, %v3638
        %v3671 = vpack.c.b16 %v3639, %v3639
        %v3672 = vpack.c.b16 %v3640, %v3640
        %v3673 = vpack.c.b16 %v3641, %v3641
        %v3674 = vpack.c.b16 %v3642, %v3642
        %v3675 = vpack.c.b16 %v3643, %v3643
        %v3676 = vpack.c.b16 %v3644, %v3644
        %v3678 = vshrl.u32 %v3645, 16
        %v3680 = vrot.slane %v3678, 7
        %v3681 = vshll.u32 %v3645, 16
        %v3683 = vor.u32 %v3680, %v3681
        %v3684 = vrot.slane %v3680, 4
        %v3686 = vshrl.u32 %v3646, 16
        %v3688 = vrot.slane %v3686, 7
        %v3689 = vshll.u32 %v3646, 16
        %v3691 = vor.u32 %v3688, %v3689
        %v3692 = vsel %vm852, %v3684, %v3691
        %v3693 = vrot.slane %v3688, 4
        %v3695 = vshrl.u32 %v3647, 16
        %v3697 = vrot.slane %v3695, 7
        %v3698 = vshll.u32 %v3647, 16
        %v3700 = vor.u32 %v3697, %v3698
        %v3701 = vrot.slane %v3697, 4
        %v3703 = vshrl.u32 %v3648, 16
        %v3705 = vrot.slane %v3703, 7
        %v3706 = vshll.u32 %v3648, 16
        %v3708 = vor.u32 %v3705, %v3706
        %v3709 = vsel %vm852, %v3701, %v3708
        %v3710 = vrot.slane %v3705, 4
        %v3712 = vshrl.u32 %v3649, 16
        %v3714 = vrot.slane %v3712, 7
        %v3715 = vshll.u32 %v3649, 16
        %v3717 = vor.u32 %v3714, %v3715
        %v3718 = vrot.slane %v3714, 4
        %v3720 = vshrl.u32 %v3650, 16
        %v3722 = vrot.slane %v3720, 7
        %v3723 = vshll.u32 %v3650, 16
        %v3725 = vor.u32 %v3722, %v3723
        %v3726 = vsel %vm852, %v3718, %v3725
        %v3727 = vrot.slane %v3722, 4
        %v3729 = vshrl.u32 %v3651, 16
        %v3731 = vrot.slane %v3729, 7
        %v3732 = vshll.u32 %v3651, 16
        %v3734 = vor.u32 %v3731, %v3732
        %v3735 = vrot.slane %v3731, 4
        %v3737 = vshrl.u32 %v3652, 16
        %v3739 = vrot.slane %v3737, 7
        %v3740 = vshll.u32 %v3652, 16
        %v3742 = vor.u32 %v3739, %v3740
        %v3743 = vsel %vm852, %v3735, %v3742
        %v3744 = vrot.slane %v3739, 4
        %v3746 = vshrl.u32 %v3653, 16
        %v3748 = vrot.slane %v3746, 7
        %v3749 = vshll.u32 %v3653, 16
        %v3751 = vor.u32 %v3748, %v3749
        %v3752 = vrot.slane %v3748, 4
        %v3754 = vshrl.u32 %v3654, 16
        %v3756 = vrot.slane %v3754, 7
        %v3757 = vshll.u32 %v3654, 16
        %v3759 = vor.u32 %v3756, %v3757
        %v3760 = vsel %vm852, %v3752, %v3759
        %v3761 = vrot.slane %v3756, 4
        %v3763 = vshrl.u32 %v3655, 16
        %v3765 = vrot.slane %v3763, 7
        %v3766 = vshll.u32 %v3655, 16
        %v3768 = vor.u32 %v3765, %v3766
        %v3769 = vrot.slane %v3765, 4
        %v3771 = vshrl.u32 %v3656, 16
        %v3773 = vrot.slane %v3771, 7
        %v3774 = vshll.u32 %v3656, 16
        %v3776 = vor.u32 %v3773, %v3774
        %v3777 = vsel %vm852, %v3769, %v3776
        %v3778 = vrot.slane %v3773, 4
        %v3780 = vshrl.u32 %v3657, 16
        %v3782 = vrot.slane %v3780, 7
        %v3783 = vshll.u32 %v3657, 16
        %v3785 = vor.u32 %v3782, %v3783
        %v3786 = vrot.slane %v3782, 4
        %v3788 = vshrl.u32 %v3658, 16
        %v3790 = vrot.slane %v3788, 7
        %v3791 = vshll.u32 %v3658, 16
        %v3793 = vor.u32 %v3790, %v3791
        %v3794 = vsel %vm852, %v3786, %v3793
        %v3795 = vrot.slane %v3790, 4
        %v3797 = vshrl.u32 %v3659, 16
        %v3799 = vrot.slane %v3797, 7
        %v3800 = vshll.u32 %v3659, 16
        %v3802 = vor.u32 %v3799, %v3800
        %v3803 = vrot.slane %v3799, 4
        %v3805 = vshrl.u32 %v3660, 16
        %v3807 = vrot.slane %v3805, 7
        %v3808 = vshll.u32 %v3660, 16
        %v3810 = vor.u32 %v3807, %v3808
        %v3811 = vsel %vm852, %v3803, %v3810
        %v3812 = vrot.slane %v3807, 4
        %v3814 = vshrl.u32 %v3661, 16
        %v3816 = vrot.slane %v3814, 7
        %v3817 = vshll.u32 %v3661, 16
        %v3819 = vor.u32 %v3816, %v3817
        %v3820 = vrot.slane %v3816, 4
        %v3822 = vshrl.u32 %v3662, 16
        %v3824 = vrot.slane %v3822, 7
        %v3825 = vshll.u32 %v3662, 16
        %v3827 = vor.u32 %v3824, %v3825
        %v3828 = vsel %vm852, %v3820, %v3827
        %v3829 = vrot.slane %v3824, 4
        %v3831 = vshrl.u32 %v3663, 16
        %v3833 = vrot.slane %v3831, 7
        %v3834 = vshll.u32 %v3663, 16
        %v3836 = vor.u32 %v3833, %v3834
        %v3837 = vrot.slane %v3833, 4
        %v3839 = vshrl.u32 %v3664, 16
        %v3841 = vrot.slane %v3839, 7
        %v3842 = vshll.u32 %v3664, 16
        %v3844 = vor.u32 %v3841, %v3842
        %v3845 = vsel %vm852, %v3837, %v3844
        %v3846 = vrot.slane %v3841, 4
        %v3848 = vshrl.u32 %v3665, 16
        %v3850 = vrot.slane %v3848, 7
        %v3851 = vshll.u32 %v3665, 16
        %v3853 = vor.u32 %v3850, %v3851
        %v3854 = vrot.slane %v3850, 4
        %v3856 = vshrl.u32 %v3666, 16
        %v3858 = vrot.slane %v3856, 7
        %v3859 = vshll.u32 %v3666, 16
        %v3861 = vor.u32 %v3858, %v3859
        %v3862 = vsel %vm852, %v3854, %v3861
        %v3863 = vrot.slane %v3858, 4
        %v3865 = vshrl.u32 %v3667, 16
        %v3867 = vrot.slane %v3865, 7
        %v3868 = vshll.u32 %v3667, 16
        %v3870 = vor.u32 %v3867, %v3868
        %v3871 = vrot.slane %v3867, 4
        %v3873 = vshrl.u32 %v3668, 16
        %v3875 = vrot.slane %v3873, 7
        %v3876 = vshll.u32 %v3668, 16
        %v3878 = vor.u32 %v3875, %v3876
        %v3879 = vsel %vm852, %v3871, %v3878
        %v3880 = vrot.slane %v3875, 4
        %v3882 = vshrl.u32 %v3669, 16
        %v3884 = vrot.slane %v3882, 7
        %v3885 = vshll.u32 %v3669, 16
        %v3887 = vor.u32 %v3884, %v3885
        %v3888 = vrot.slane %v3884, 4
        %v3890 = vshrl.u32 %v3670, 16
        %v3892 = vrot.slane %v3890, 7
        %v3893 = vshll.u32 %v3670, 16
        %v3895 = vor.u32 %v3892, %v3893
        %v3896 = vsel %vm852, %v3888, %v3895
        %v3897 = vrot.slane %v3892, 4
        %v3899 = vshrl.u32 %v3671, 16
        %v3901 = vrot.slane %v3899, 7
        %v3902 = vshll.u32 %v3671, 16
        %v3904 = vor.u32 %v3901, %v3902
        %v3905 = vrot.slane %v3901, 4
        %v3907 = vshrl.u32 %v3672, 16
        %v3909 = vrot.slane %v3907, 7
        %v3910 = vshll.u32 %v3672, 16
        %v3912 = vor.u32 %v3909, %v3910
        %v3913 = vsel %vm852, %v3905, %v3912
        %v3914 = vrot.slane %v3909, 4
        %v3916 = vshrl.u32 %v3673, 16
        %v3918 = vrot.slane %v3916, 7
        %v3919 = vshll.u32 %v3673, 16
        %v3921 = vor.u32 %v3918, %v3919
        %v3922 = vrot.slane %v3918, 4
        %v3924 = vshrl.u32 %v3674, 16
        %v3926 = vrot.slane %v3924, 7
        %v3927 = vshll.u32 %v3674, 16
        %v3929 = vor.u32 %v3926, %v3927
        %v3930 = vsel %vm852, %v3922, %v3929
        %v3931 = vrot.slane %v3926, 4
        %v3933 = vshrl.u32 %v3675, 16
        %v3935 = vrot.slane %v3933, 7
        %v3936 = vshll.u32 %v3675, 16
        %v3938 = vor.u32 %v3935, %v3936
        %v3939 = vrot.slane %v3935, 4
        %v3941 = vshrl.u32 %v3676, 16
        %v3943 = vrot.slane %v3941, 7
        %v3944 = vshll.u32 %v3676, 16
        %v3946 = vor.u32 %v3943, %v3944
        %v3947 = vsel %vm852, %v3939, %v3946
        %v3948 = vrot.slane %v3943, 4
        %s3997 = scalar_lea.vmem [#allocation3], 12
        %vm3998 = vcmask 60416
        %vm3999 = vmand %vm3998, %vm1175
        %v4000 = vld [vmem:[%s3997] sm:$0xf]
        %v4001 = vsel %vm3999, %v3683, %v4000
        %4002 = vst [vmem:[%s3997] sm:$0xf] %v4001
        %4003 = vst.msk [vmem:[%s3997 + $0x4] sm:$0xf] %vm3525, %v3692
        %vm4004 = vcmask 57344
        %vm4005 = vmand %vm4004, %vm850
        %v4006 = vld [vmem:[%s3997 + $0x8] sm:$0x1]
        %v4007 = vsel %vm4005, %v3693, %v4006
        %4008 = vst [vmem:[%s3997 + $0x8] sm:$0x1] %v4007
        %v4009 = vld [vmem:[%s3997 + $0xc] sm:$0xf]
        %v4010 = vsel %vm3999, %v3700, %v4009
        %4011 = vst [vmem:[%s3997 + $0xc] sm:$0xf] %v4010
        %4012 = vst.msk [vmem:[%s3997 + $0x10] sm:$0xf] %vm3525, %v3709
        %v4013 = vld [vmem:[%s3997 + $0x14] sm:$0x1]
        %v4014 = vsel %vm4005, %v3710, %v4013
        %4015 = vst [vmem:[%s3997 + $0x14] sm:$0x1] %v4014
        %v4016 = vld [vmem:[%s3997 + $0x18] sm:$0xf]
        %v4017 = vsel %vm3999, %v3717, %v4016
        %4018 = vst [vmem:[%s3997 + $0x18] sm:$0xf] %v4017
        %4019 = vst.msk [vmem:[%s3997 + $0x1c] sm:$0xf] %vm3525, %v3726
        %v4020 = vld [vmem:[%s3997 + $0x20] sm:$0x1]
        %v4021 = vsel %vm4005, %v3727, %v4020
        %4022 = vst [vmem:[%s3997 + $0x20] sm:$0x1] %v4021
        %v4023 = vld [vmem:[%s3997 + $0x24] sm:$0xf]
        %v4024 = vsel %vm3999, %v3734, %v4023
        %4025 = vst [vmem:[%s3997 + $0x24] sm:$0xf] %v4024
        %4026 = vst.msk [vmem:[%s3997 + $0x28] sm:$0xf] %vm3525, %v3743
        %v4027 = vld [vmem:[%s3997 + $0x2c] sm:$0x1]
        %v4028 = vsel %vm4005, %v3744, %v4027
        %4029 = vst [vmem:[%s3997 + $0x2c] sm:$0x1] %v4028
        %v4030 = vld [vmem:[%s3997 + $0x30] sm:$0xf]
        %v4031 = vsel %vm3999, %v3751, %v4030
        %4032 = vst [vmem:[%s3997 + $0x30] sm:$0xf] %v4031
        %4033 = vst.msk [vmem:[%s3997 + $0x34] sm:$0xf] %vm3525, %v3760
        %v4034 = vld [vmem:[%s3997 + $0x38] sm:$0x1]
        %v4035 = vsel %vm4005, %v3761, %v4034
        %4036 = vst [vmem:[%s3997 + $0x38] sm:$0x1] %v4035
        %v4037 = vld [vmem:[%s3997 + $0x3c] sm:$0xf]
        %v4038 = vsel %vm3999, %v3768, %v4037
        %4039 = vst [vmem:[%s3997 + $0x3c] sm:$0xf] %v4038
        %4040 = vst.msk [vmem:[%s3997 + $0x40] sm:$0xf] %vm3525, %v3777
        %v4041 = vld [vmem:[%s3997 + $0x44] sm:$0x1]
        %v4042 = vsel %vm4005, %v3778, %v4041
        %4043 = vst [vmem:[%s3997 + $0x44] sm:$0x1] %v4042
        %v4044 = vld [vmem:[%s3997 + $0x48] sm:$0xf]
        %v4045 = vsel %vm3999, %v3785, %v4044
        %4046 = vst [vmem:[%s3997 + $0x48] sm:$0xf] %v4045
        %4047 = vst.msk [vmem:[%s3997 + $0x4c] sm:$0xf] %vm3525, %v3794
        %v4048 = vld [vmem:[%s3997 + $0x50] sm:$0x1]
        %v4049 = vsel %vm4005, %v3795, %v4048
        %4050 = vst [vmem:[%s3997 + $0x50] sm:$0x1] %v4049
        %v4051 = vld [vmem:[%s3997 + $0x54] sm:$0xf]
        %v4052 = vsel %vm3999, %v3802, %v4051
        %4053 = vst [vmem:[%s3997 + $0x54] sm:$0xf] %v4052
        %4054 = vst.msk [vmem:[%s3997 + $0x58] sm:$0xf] %vm3525, %v3811
        %v4055 = vld [vmem:[%s3997 + $0x5c] sm:$0x1]
        %v4056 = vsel %vm4005, %v3812, %v4055
        %4057 = vst [vmem:[%s3997 + $0x5c] sm:$0x1] %v4056
        %v4058 = vld [vmem:[%s3997 + $0x60] sm:$0xf]
        %v4059 = vsel %vm3999, %v3819, %v4058
        %4060 = vst [vmem:[%s3997 + $0x60] sm:$0xf] %v4059
        %4061 = vst.msk [vmem:[%s3997 + $0x64] sm:$0xf] %vm3525, %v3828
        %v4062 = vld [vmem:[%s3997 + $0x68] sm:$0x1]
        %v4063 = vsel %vm4005, %v3829, %v4062
        %4064 = vst [vmem:[%s3997 + $0x68] sm:$0x1] %v4063
        %v4065 = vld [vmem:[%s3997 + $0x6c] sm:$0xf]
        %v4066 = vsel %vm3999, %v3836, %v4065
        %4067 = vst [vmem:[%s3997 + $0x6c] sm:$0xf] %v4066
        %4068 = vst.msk [vmem:[%s3997 + $0x70] sm:$0xf] %vm3525, %v3845
        %v4069 = vld [vmem:[%s3997 + $0x74] sm:$0x1]
        %v4070 = vsel %vm4005, %v3846, %v4069
        %4071 = vst [vmem:[%s3997 + $0x74] sm:$0x1] %v4070
        %v4072 = vld [vmem:[%s3997 + $0x78] sm:$0xf]
        %v4073 = vsel %vm3999, %v3853, %v4072
        %4074 = vst [vmem:[%s3997 + $0x78] sm:$0xf] %v4073
        %4075 = vst.msk [vmem:[%s3997 + $0x7c] sm:$0xf] %vm3525, %v3862
        %v4076 = vld [vmem:[%s3997 + $0x80] sm:$0x1]
        %v4077 = vsel %vm4005, %v3863, %v4076
        %4078 = vst [vmem:[%s3997 + $0x80] sm:$0x1] %v4077
        %v4079 = vld [vmem:[%s3997 + $0x84] sm:$0xf]
        %v4080 = vsel %vm3999, %v3870, %v4079
        %4081 = vst [vmem:[%s3997 + $0x84] sm:$0xf] %v4080
        %4082 = vst.msk [vmem:[%s3997 + $0x88] sm:$0xf] %vm3525, %v3879
        %v4083 = vld [vmem:[%s3997 + $0x8c] sm:$0x1]
        %v4084 = vsel %vm4005, %v3880, %v4083
        %4085 = vst [vmem:[%s3997 + $0x8c] sm:$0x1] %v4084
        %v4086 = vld [vmem:[%s3997 + $0x90] sm:$0xf]
        %v4087 = vsel %vm3999, %v3887, %v4086
        %4088 = vst [vmem:[%s3997 + $0x90] sm:$0xf] %v4087
        %4089 = vst.msk [vmem:[%s3997 + $0x94] sm:$0xf] %vm3525, %v3896
        %v4090 = vld [vmem:[%s3997 + $0x98] sm:$0x1]
        %v4091 = vsel %vm4005, %v3897, %v4090
        %4092 = vst [vmem:[%s3997 + $0x98] sm:$0x1] %v4091
        %v4093 = vld [vmem:[%s3997 + $0x9c] sm:$0xf]
        %v4094 = vsel %vm3999, %v3904, %v4093
        %4095 = vst [vmem:[%s3997 + $0x9c] sm:$0xf] %v4094
        %4096 = vst.msk [vmem:[%s3997 + $0xa0] sm:$0xf] %vm3525, %v3913
        %v4097 = vld [vmem:[%s3997 + $0xa4] sm:$0x1]
        %v4098 = vsel %vm4005, %v3914, %v4097
        %4099 = vst [vmem:[%s3997 + $0xa4] sm:$0x1] %v4098
        %v4100 = vld [vmem:[%s3997 + $0xa8] sm:$0xf]
        %v4101 = vsel %vm3999, %v3921, %v4100
        %4102 = vst [vmem:[%s3997 + $0xa8] sm:$0xf] %v4101
        %4103 = vst.msk [vmem:[%s3997 + $0xac] sm:$0xf] %vm3525, %v3930
        %v4104 = vld [vmem:[%s3997 + $0xb0] sm:$0x1]
        %v4105 = vsel %vm4005, %v3931, %v4104
        %4106 = vst [vmem:[%s3997 + $0xb0] sm:$0x1] %v4105
        %v4107 = vld [vmem:[%s3997 + $0xb4] sm:$0xf]
        %v4108 = vsel %vm3999, %v3938, %v4107
        %4109 = vst [vmem:[%s3997 + $0xb4] sm:$0xf] %v4108
        %4110 = vst.msk [vmem:[%s3997 + $0xb8] sm:$0xf] %vm3525, %v3947
        %v4111 = vld [vmem:[%s3997 + $0xbc] sm:$0x1]
        %v4112 = vsel %vm4005, %v3948, %v4111
        %4113 = vst [vmem:[%s3997 + $0xbc] sm:$0x1] %v4112
        %v4114 = vld [vmem:[#allocation3] sm:$0xf]
        %v4115 = vld [vmem:[#allocation3 + $0x4] sm:$0xf]
        %v4116 = vld [vmem:[#allocation3 + $0xc] sm:$0xf]
        %v4117 = vld [vmem:[#allocation3 + $0x10] sm:$0xf]
        %v4118 = vld [vmem:[#allocation3 + $0x18] sm:$0xf]
        %v4119 = vld [vmem:[#allocation3 + $0x1c] sm:$0xf]
        %v4120 = vld [vmem:[#allocation3 + $0x24] sm:$0xf]
        %v4121 = vld [vmem:[#allocation3 + $0x28] sm:$0xf]
        %v4122 = vld [vmem:[#allocation3 + $0x30] sm:$0xf]
        %v4123 = vld [vmem:[#allocation3 + $0x34] sm:$0xf]
        %v4124 = vld [vmem:[#allocation3 + $0x3c] sm:$0xf]
        %v4125 = vld [vmem:[#allocation3 + $0x40] sm:$0xf]
        %v4126 = vld [vmem:[#allocation3 + $0x48] sm:$0xf]
        %v4127 = vld [vmem:[#allocation3 + $0x4c] sm:$0xf]
        %v4128 = vld [vmem:[#allocation3 + $0x54] sm:$0xf]
        %v4129 = vld [vmem:[#allocation3 + $0x58] sm:$0xf]
        %v4130 = vld [vmem:[#allocation3 + $0x60] sm:$0xf]
        %v4131 = vld [vmem:[#allocation3 + $0x64] sm:$0xf]
        %v4132 = vld [vmem:[#allocation3 + $0x6c] sm:$0xf]
        %v4133 = vld [vmem:[#allocation3 + $0x70] sm:$0xf]
        %v4134 = vld [vmem:[#allocation3 + $0x78] sm:$0xf]
        %v4135 = vld [vmem:[#allocation3 + $0x7c] sm:$0xf]
        %v4136 = vld [vmem:[#allocation3 + $0x84] sm:$0xf]
        %v4137 = vld [vmem:[#allocation3 + $0x88] sm:$0xf]
        %v4138 = vld [vmem:[#allocation3 + $0x90] sm:$0xf]
        %v4139 = vld [vmem:[#allocation3 + $0x94] sm:$0xf]
        %v4140 = vld [vmem:[#allocation3 + $0x9c] sm:$0xf]
        %v4141 = vld [vmem:[#allocation3 + $0xa0] sm:$0xf]
        %v4142 = vld [vmem:[#allocation3 + $0xa8] sm:$0xf]
        %v4143 = vld [vmem:[#allocation3 + $0xac] sm:$0xf]
        %v4144 = vld [vmem:[#allocation3 + $0xb4] sm:$0xf]
        %v4145 = vld [vmem:[#allocation3 + $0xb8] sm:$0xf]
        %v4146 = vld [vmem:[#allocation3 + $0x8] sm:$0x1]
        %v4147 = vld [vmem:[#allocation3 + $0x14] sm:$0x1]
        %v4148 = vld [vmem:[#allocation3 + $0x20] sm:$0x1]
        %v4149 = vld [vmem:[#allocation3 + $0x2c] sm:$0x1]
        %v4150 = vld [vmem:[#allocation3 + $0x38] sm:$0x1]
        %v4151 = vld [vmem:[#allocation3 + $0x44] sm:$0x1]
        %v4152 = vld [vmem:[#allocation3 + $0x50] sm:$0x1]
        %v4153 = vld [vmem:[#allocation3 + $0x5c] sm:$0x1]
        %v4154 = vld [vmem:[#allocation3 + $0x68] sm:$0x1]
        %v4155 = vld [vmem:[#allocation3 + $0x74] sm:$0x1]
        %v4156 = vld [vmem:[#allocation3 + $0x80] sm:$0x1]
        %v4157 = vld [vmem:[#allocation3 + $0x8c] sm:$0x1]
        %v4158 = vld [vmem:[#allocation3 + $0x98] sm:$0x1]
        %v4159 = vld [vmem:[#allocation3 + $0xa4] sm:$0x1]
        %v4160 = vld [vmem:[#allocation3 + $0xb0] sm:$0x1]
        %v4161 = vld [vmem:[#allocation3 + $0xbc] sm:$0x1]
        %v4162 = vld [vmem:[#allocation3] sm:$0xe]
        %v4163 = vld [vmem:[#allocation3 + $0xc] sm:$0xe]
        %v4164 = vld [vmem:[#allocation3 + $0x18] sm:$0xe]
        %v4165 = vld [vmem:[#allocation3 + $0x24] sm:$0xe]
        %v4166 = vld [vmem:[#allocation3 + $0x30] sm:$0xe]
        %v4167 = vld [vmem:[#allocation3 + $0x3c] sm:$0xe]
        %v4168 = vld [vmem:[#allocation3 + $0x48] sm:$0xe]
        %v4169 = vld [vmem:[#allocation3 + $0x54] sm:$0xe]
        %v4170 = vld [vmem:[#allocation3 + $0x60] sm:$0xe]
        %v4171 = vld [vmem:[#allocation3 + $0x6c] sm:$0xe]
        %v4172 = vld [vmem:[#allocation3 + $0x78] sm:$0xe]
        %v4173 = vld [vmem:[#allocation3 + $0x84] sm:$0xe]
        %v4174 = vld [vmem:[#allocation3 + $0x90] sm:$0xe]
        %v4175 = vld [vmem:[#allocation3 + $0x9c] sm:$0xe]
        %v4176 = vld [vmem:[#allocation3 + $0xa8] sm:$0xe]
        %v4177 = vld [vmem:[#allocation3 + $0xb4] sm:$0xe]
        %v4178 = vld [vmem:[%s3997] sm:$0xf]
        %v4179 = vld [vmem:[%s3997 + $0x4] sm:$0xf]
        %v4180 = vld [vmem:[%s3997 + $0xc] sm:$0xf]
        %v4181 = vld [vmem:[%s3997 + $0x10] sm:$0xf]
        %v4182 = vld [vmem:[%s3997 + $0x18] sm:$0xf]
        %v4183 = vld [vmem:[%s3997 + $0x1c] sm:$0xf]
        %v4184 = vld [vmem:[%s3997 + $0x24] sm:$0xf]
        %v4185 = vld [vmem:[%s3997 + $0x28] sm:$0xf]
        %v4186 = vld [vmem:[%s3997 + $0x30] sm:$0xf]
        %v4187 = vld [vmem:[%s3997 + $0x34] sm:$0xf]
        %v4188 = vld [vmem:[%s3997 + $0x3c] sm:$0xf]
        %v4189 = vld [vmem:[%s3997 + $0x40] sm:$0xf]
        %v4190 = vld [vmem:[%s3997 + $0x48] sm:$0xf]
        %v4191 = vld [vmem:[%s3997 + $0x4c] sm:$0xf]
        %v4192 = vld [vmem:[%s3997 + $0x54] sm:$0xf]
        %v4193 = vld [vmem:[%s3997 + $0x58] sm:$0xf]
        %v4194 = vld [vmem:[%s3997 + $0x60] sm:$0xf]
        %v4195 = vld [vmem:[%s3997 + $0x64] sm:$0xf]
        %v4196 = vld [vmem:[%s3997 + $0x6c] sm:$0xf]
        %v4197 = vld [vmem:[%s3997 + $0x70] sm:$0xf]
        %v4198 = vld [vmem:[%s3997 + $0x78] sm:$0xf]
        %v4199 = vld [vmem:[%s3997 + $0x7c] sm:$0xf]
        %v4200 = vld [vmem:[%s3997 + $0x84] sm:$0xf]
        %v4201 = vld [vmem:[%s3997 + $0x88] sm:$0xf]
        %v4202 = vld [vmem:[%s3997 + $0x90] sm:$0xf]
        %v4203 = vld [vmem:[%s3997 + $0x94] sm:$0xf]
        %v4204 = vld [vmem:[%s3997 + $0x9c] sm:$0xf]
        %v4205 = vld [vmem:[%s3997 + $0xa0] sm:$0xf]
        %v4206 = vld [vmem:[%s3997 + $0xa8] sm:$0xf]
        %v4207 = vld [vmem:[%s3997 + $0xac] sm:$0xf]
        %v4208 = vld [vmem:[%s3997 + $0xb4] sm:$0xf]
        %v4209 = vld [vmem:[%s3997 + $0xb8] sm:$0xf]
        %v4210 = vld [vmem:[%s3997 + $0x8] sm:$0x1]
        %v4211 = vld [vmem:[%s3997 + $0x14] sm:$0x1]
        %v4212 = vld [vmem:[%s3997 + $0x20] sm:$0x1]
        %v4213 = vld [vmem:[%s3997 + $0x2c] sm:$0x1]
        %v4214 = vld [vmem:[%s3997 + $0x38] sm:$0x1]
        %v4215 = vld [vmem:[%s3997 + $0x44] sm:$0x1]
        %v4216 = vld [vmem:[%s3997 + $0x50] sm:$0x1]
        %v4217 = vld [vmem:[%s3997 + $0x5c] sm:$0x1]
        %v4218 = vld [vmem:[%s3997 + $0x68] sm:$0x1]
        %v4219 = vld [vmem:[%s3997 + $0x74] sm:$0x1]
        %v4220 = vld [vmem:[%s3997 + $0x80] sm:$0x1]
        %v4221 = vld [vmem:[%s3997 + $0x8c] sm:$0x1]
        %v4222 = vld [vmem:[%s3997 + $0x98] sm:$0x1]
        %v4223 = vld [vmem:[%s3997 + $0xa4] sm:$0x1]
        %v4224 = vld [vmem:[%s3997 + $0xb0] sm:$0x1]
        %v4225 = vld [vmem:[%s3997 + $0xbc] sm:$0x1]
        %v4226 = vld [vmem:[%s3997] sm:$0xe]
        %v4227 = vld [vmem:[%s3997 + $0xc] sm:$0xe]
        %v4228 = vld [vmem:[%s3997 + $0x18] sm:$0xe]
        %v4229 = vld [vmem:[%s3997 + $0x24] sm:$0xe]
        %v4230 = vld [vmem:[%s3997 + $0x30] sm:$0xe]
        %v4231 = vld [vmem:[%s3997 + $0x3c] sm:$0xe]
        %v4232 = vld [vmem:[%s3997 + $0x48] sm:$0xe]
        %v4233 = vld [vmem:[%s3997 + $0x54] sm:$0xe]
        %v4234 = vld [vmem:[%s3997 + $0x60] sm:$0xe]
        %v4235 = vld [vmem:[%s3997 + $0x6c] sm:$0xe]
        %v4236 = vld [vmem:[%s3997 + $0x78] sm:$0xe]
        %v4237 = vld [vmem:[%s3997 + $0x84] sm:$0xe]
        %v4238 = vld [vmem:[%s3997 + $0x90] sm:$0xe]
        %v4239 = vld [vmem:[%s3997 + $0x9c] sm:$0xe]
        %v4240 = vld [vmem:[%s3997 + $0xa8] sm:$0xe]
        %v4241 = vld [vmem:[%s3997 + $0xb4] sm:$0xe]
        %s4242 = scalar_lea.vmem [#allocation3], 24
        %v4243 = vld [vmem:[%s4242] sm:$0xf]
        %v4244 = vld [vmem:[%s4242 + $0x4] sm:$0xf]
        %v4245 = vld [vmem:[%s4242 + $0xc] sm:$0xf]
        %v4246 = vld [vmem:[%s4242 + $0x10] sm:$0xf]
        %v4247 = vld [vmem:[%s4242 + $0x18] sm:$0xf]
        %v4248 = vld [vmem:[%s4242 + $0x1c] sm:$0xf]
        %v4249 = vld [vmem:[%s4242 + $0x24] sm:$0xf]
        %v4250 = vld [vmem:[%s4242 + $0x28] sm:$0xf]
        %v4251 = vld [vmem:[%s4242 + $0x30] sm:$0xf]
        %v4252 = vld [vmem:[%s4242 + $0x34] sm:$0xf]
        %v4253 = vld [vmem:[%s4242 + $0x3c] sm:$0xf]
        %v4254 = vld [vmem:[%s4242 + $0x40] sm:$0xf]
        %v4255 = vld [vmem:[%s4242 + $0x48] sm:$0xf]
        %v4256 = vld [vmem:[%s4242 + $0x4c] sm:$0xf]
        %v4257 = vld [vmem:[%s4242 + $0x54] sm:$0xf]
        %v4258 = vld [vmem:[%s4242 + $0x58] sm:$0xf]
        %v4259 = vld [vmem:[%s4242 + $0x60] sm:$0xf]
        %v4260 = vld [vmem:[%s4242 + $0x64] sm:$0xf]
        %v4261 = vld [vmem:[%s4242 + $0x6c] sm:$0xf]
        %v4262 = vld [vmem:[%s4242 + $0x70] sm:$0xf]
        %v4263 = vld [vmem:[%s4242 + $0x78] sm:$0xf]
        %v4264 = vld [vmem:[%s4242 + $0x7c] sm:$0xf]
        %v4265 = vld [vmem:[%s4242 + $0x84] sm:$0xf]
        %v4266 = vld [vmem:[%s4242 + $0x88] sm:$0xf]
        %v4267 = vld [vmem:[%s4242 + $0x90] sm:$0xf]
        %v4268 = vld [vmem:[%s4242 + $0x94] sm:$0xf]
        %v4269 = vld [vmem:[%s4242 + $0x9c] sm:$0xf]
        %v4270 = vld [vmem:[%s4242 + $0xa0] sm:$0xf]
        %v4271 = vld [vmem:[%s4242 + $0xa8] sm:$0xf]
        %v4272 = vld [vmem:[%s4242 + $0xac] sm:$0xf]
        %v4273 = vld [vmem:[%s4242 + $0xb4] sm:$0xf]
        %v4274 = vld [vmem:[%s4242 + $0xb8] sm:$0xf]
        %v4275 = vld [vmem:[%s4242 + $0x8] sm:$0x1]
        %v4276 = vld [vmem:[%s4242 + $0x14] sm:$0x1]
        %v4277 = vld [vmem:[%s4242 + $0x20] sm:$0x1]
        %v4278 = vld [vmem:[%s4242 + $0x2c] sm:$0x1]
        %v4279 = vld [vmem:[%s4242 + $0x38] sm:$0x1]
        %v4280 = vld [vmem:[%s4242 + $0x44] sm:$0x1]
        %v4281 = vld [vmem:[%s4242 + $0x50] sm:$0x1]
        %v4282 = vld [vmem:[%s4242 + $0x5c] sm:$0x1]
        %v4283 = vld [vmem:[%s4242 + $0x68] sm:$0x1]
        %v4284 = vld [vmem:[%s4242 + $0x74] sm:$0x1]
        %v4285 = vld [vmem:[%s4242 + $0x80] sm:$0x1]
        %v4286 = vld [vmem:[%s4242 + $0x8c] sm:$0x1]
        %v4287 = vld [vmem:[%s4242 + $0x98] sm:$0x1]
        %v4288 = vld [vmem:[%s4242 + $0xa4] sm:$0x1]
        %v4289 = vld [vmem:[%s4242 + $0xb0] sm:$0x1]
        %v4290 = vld [vmem:[%s4242 + $0xbc] sm:$0x1]
        %v4291 = vld [vmem:[%s4242] sm:$0xe]
        %v4292 = vld [vmem:[%s4242 + $0xc] sm:$0xe]
        %v4293 = vld [vmem:[%s4242 + $0x18] sm:$0xe]
        %v4294 = vld [vmem:[%s4242 + $0x24] sm:$0xe]
        %v4295 = vld [vmem:[%s4242 + $0x30] sm:$0xe]
        %v4296 = vld [vmem:[%s4242 + $0x3c] sm:$0xe]
        %v4297 = vld [vmem:[%s4242 + $0x48] sm:$0xe]
        %v4298 = vld [vmem:[%s4242 + $0x54] sm:$0xe]
        %v4299 = vld [vmem:[%s4242 + $0x60] sm:$0xe]
        %v4300 = vld [vmem:[%s4242 + $0x6c] sm:$0xe]
        %v4301 = vld [vmem:[%s4242 + $0x78] sm:$0xe]
        %v4302 = vld [vmem:[%s4242 + $0x84] sm:$0xe]
        %v4303 = vld [vmem:[%s4242 + $0x90] sm:$0xe]
        %v4304 = vld [vmem:[%s4242 + $0x9c] sm:$0xe]
        %v4305 = vld [vmem:[%s4242 + $0xa8] sm:$0xe]
        %v4306 = vld [vmem:[%s4242 + $0xb4] sm:$0xe]
        %v4339 = vunpack.c.l.b16 %v4114
        %v4340 = vunpack.c.l.b16 %v4115
        %v4341 = vunpack.c.l.b16 %v4116
        %v4342 = vunpack.c.l.b16 %v4117
        %v4343 = vunpack.c.l.b16 %v4118
        %v4344 = vunpack.c.l.b16 %v4119
        %v4345 = vunpack.c.l.b16 %v4120
        %v4346 = vunpack.c.l.b16 %v4121
        %v4347 = vunpack.c.l.b16 %v4122
        %v4348 = vunpack.c.l.b16 %v4123
        %v4349 = vunpack.c.l.b16 %v4124
        %v4350 = vunpack.c.l.b16 %v4125
        %v4351 = vunpack.c.l.b16 %v4126
        %v4352 = vunpack.c.l.b16 %v4127
        %v4353 = vunpack.c.l.b16 %v4128
        %v4354 = vunpack.c.l.b16 %v4129
        %v4355 = vunpack.c.l.b16 %v4130
        %v4356 = vunpack.c.l.b16 %v4131
        %v4357 = vunpack.c.l.b16 %v4132
        %v4358 = vunpack.c.l.b16 %v4133
        %v4359 = vunpack.c.l.b16 %v4134
        %v4360 = vunpack.c.l.b16 %v4135
        %v4361 = vunpack.c.l.b16 %v4136
        %v4362 = vunpack.c.l.b16 %v4137
        %v4363 = vunpack.c.l.b16 %v4138
        %v4364 = vunpack.c.l.b16 %v4139
        %v4365 = vunpack.c.l.b16 %v4140
        %v4366 = vunpack.c.l.b16 %v4141
        %v4367 = vunpack.c.l.b16 %v4142
        %v4368 = vunpack.c.l.b16 %v4143
        %v4369 = vunpack.c.l.b16 %v4144
        %v4370 = vunpack.c.l.b16 %v4145
        %v4371 = vpack.c.b16 %v4340, %v4339
        %v4372 = vpack.c.b16 %v4342, %v4341
        %v4373 = vpack.c.b16 %v4344, %v4343
        %v4374 = vpack.c.b16 %v4346, %v4345
        %v4375 = vpack.c.b16 %v4348, %v4347
        %v4376 = vpack.c.b16 %v4350, %v4349
        %v4377 = vpack.c.b16 %v4352, %v4351
        %v4378 = vpack.c.b16 %v4354, %v4353
        %v4379 = vpack.c.b16 %v4356, %v4355
        %v4380 = vpack.c.b16 %v4358, %v4357
        %v4381 = vpack.c.b16 %v4360, %v4359
        %v4382 = vpack.c.b16 %v4362, %v4361
        %v4383 = vpack.c.b16 %v4364, %v4363
        %v4384 = vpack.c.b16 %v4366, %v4365
        %v4385 = vpack.c.b16 %v4368, %v4367
        %v4386 = vpack.c.b16 %v4370, %v4369
        %v4403 = vunpack.c.l.b16 %v4146
        %v4404 = vunpack.c.l.b16 %v4147
        %v4405 = vunpack.c.l.b16 %v4148
        %v4406 = vunpack.c.l.b16 %v4149
        %v4407 = vunpack.c.l.b16 %v4150
        %v4408 = vunpack.c.l.b16 %v4151
        %v4409 = vunpack.c.l.b16 %v4152
        %v4410 = vunpack.c.l.b16 %v4153
        %v4411 = vunpack.c.l.b16 %v4154
        %v4412 = vunpack.c.l.b16 %v4155
        %v4413 = vunpack.c.l.b16 %v4156
        %v4414 = vunpack.c.l.b16 %v4157
        %v4415 = vunpack.c.l.b16 %v4158
        %v4416 = vunpack.c.l.b16 %v4159
        %v4417 = vunpack.c.l.b16 %v4160
        %v4418 = vunpack.c.l.b16 %v4161
        %v4419 = vpack.c.b16 %v4403, %v4403
        %v4420 = vpack.c.b16 %v4404, %v4404
        %v4421 = vpack.c.b16 %v4405, %v4405
        %v4422 = vpack.c.b16 %v4406, %v4406
        %v4423 = vpack.c.b16 %v4407, %v4407
        %v4424 = vpack.c.b16 %v4408, %v4408
        %v4425 = vpack.c.b16 %v4409, %v4409
        %v4426 = vpack.c.b16 %v4410, %v4410
        %v4427 = vpack.c.b16 %v4411, %v4411
        %v4428 = vpack.c.b16 %v4412, %v4412
        %v4429 = vpack.c.b16 %v4413, %v4413
        %v4430 = vpack.c.b16 %v4414, %v4414
        %v4431 = vpack.c.b16 %v4415, %v4415
        %v4432 = vpack.c.b16 %v4416, %v4416
        %v4433 = vpack.c.b16 %v4417, %v4417
        %v4434 = vpack.c.b16 %v4418, %v4418
        %v4436 = vshrl.u32 %v4371, 16
        %v4438 = vshll.u32 %v4371, 16
        %v4440 = vrot.slane %v4438, 1
        %v4441 = vor.u32 %v4436, %v4440
        %v4443 = vshll.u32 %v4419, 16
        %v4445 = vrot.slane %v4443, 1
        %v4446 = vsel %vm1612, %v4441, %v4445
        %v4448 = vshrl.u32 %v4372, 16
        %v4450 = vshll.u32 %v4372, 16
        %v4452 = vrot.slane %v4450, 1
        %v4453 = vor.u32 %v4448, %v4452
        %v4455 = vshll.u32 %v4420, 16
        %v4457 = vrot.slane %v4455, 1
        %v4458 = vsel %vm1612, %v4453, %v4457
        %v4460 = vshrl.u32 %v4373, 16
        %v4462 = vshll.u32 %v4373, 16
        %v4464 = vrot.slane %v4462, 1
        %v4465 = vor.u32 %v4460, %v4464
        %v4467 = vshll.u32 %v4421, 16
        %v4469 = vrot.slane %v4467, 1
        %v4470 = vsel %vm1612, %v4465, %v4469
        %v4472 = vshrl.u32 %v4374, 16
        %v4474 = vshll.u32 %v4374, 16
        %v4476 = vrot.slane %v4474, 1
        %v4477 = vor.u32 %v4472, %v4476
        %v4479 = vshll.u32 %v4422, 16
        %v4481 = vrot.slane %v4479, 1
        %v4482 = vsel %vm1612, %v4477, %v4481
        %v4484 = vshrl.u32 %v4375, 16
        %v4486 = vshll.u32 %v4375, 16
        %v4488 = vrot.slane %v4486, 1
        %v4489 = vor.u32 %v4484, %v4488
        %v4491 = vshll.u32 %v4423, 16
        %v4493 = vrot.slane %v4491, 1
        %v4494 = vsel %vm1612, %v4489, %v4493
        %v4496 = vshrl.u32 %v4376, 16
        %v4498 = vshll.u32 %v4376, 16
        %v4500 = vrot.slane %v4498, 1
        %v4501 = vor.u32 %v4496, %v4500
        %v4503 = vshll.u32 %v4424, 16
        %v4505 = vrot.slane %v4503, 1
        %v4506 = vsel %vm1612, %v4501, %v4505
        %v4508 = vshrl.u32 %v4377, 16
        %v4510 = vshll.u32 %v4377, 16
        %v4512 = vrot.slane %v4510, 1
        %v4513 = vor.u32 %v4508, %v4512
        %v4515 = vshll.u32 %v4425, 16
        %v4517 = vrot.slane %v4515, 1
        %v4518 = vsel %vm1612, %v4513, %v4517
        %v4520 = vshrl.u32 %v4378, 16
        %v4522 = vshll.u32 %v4378, 16
        %v4524 = vrot.slane %v4522, 1
        %v4525 = vor.u32 %v4520, %v4524
        %v4527 = vshll.u32 %v4426, 16
        %v4529 = vrot.slane %v4527, 1
        %v4530 = vsel %vm1612, %v4525, %v4529
        %v4532 = vshrl.u32 %v4379, 16
        %v4534 = vshll.u32 %v4379, 16
        %v4536 = vrot.slane %v4534, 1
        %v4537 = vor.u32 %v4532, %v4536
        %v4539 = vshll.u32 %v4427, 16
        %v4541 = vrot.slane %v4539, 1
        %v4542 = vsel %vm1612, %v4537, %v4541
        %v4544 = vshrl.u32 %v4380, 16
        %v4546 = vshll.u32 %v4380, 16
        %v4548 = vrot.slane %v4546, 1
        %v4549 = vor.u32 %v4544, %v4548
        %v4551 = vshll.u32 %v4428, 16
        %v4553 = vrot.slane %v4551, 1
        %v4554 = vsel %vm1612, %v4549, %v4553
        %v4556 = vshrl.u32 %v4381, 16
        %v4558 = vshll.u32 %v4381, 16
        %v4560 = vrot.slane %v4558, 1
        %v4561 = vor.u32 %v4556, %v4560
        %v4563 = vshll.u32 %v4429, 16
        %v4565 = vrot.slane %v4563, 1
        %v4566 = vsel %vm1612, %v4561, %v4565
        %v4568 = vshrl.u32 %v4382, 16
        %v4570 = vshll.u32 %v4382, 16
        %v4572 = vrot.slane %v4570, 1
        %v4573 = vor.u32 %v4568, %v4572
        %v4575 = vshll.u32 %v4430, 16
        %v4577 = vrot.slane %v4575, 1
        %v4578 = vsel %vm1612, %v4573, %v4577
        %v4580 = vshrl.u32 %v4383, 16
        %v4582 = vshll.u32 %v4383, 16
        %v4584 = vrot.slane %v4582, 1
        %v4585 = vor.u32 %v4580, %v4584
        %v4587 = vshll.u32 %v4431, 16
        %v4589 = vrot.slane %v4587, 1
        %v4590 = vsel %vm1612, %v4585, %v4589
        %v4592 = vshrl.u32 %v4384, 16
        %v4594 = vshll.u32 %v4384, 16
        %v4596 = vrot.slane %v4594, 1
        %v4597 = vor.u32 %v4592, %v4596
        %v4599 = vshll.u32 %v4432, 16
        %v4601 = vrot.slane %v4599, 1
        %v4602 = vsel %vm1612, %v4597, %v4601
        %v4604 = vshrl.u32 %v4385, 16
        %v4606 = vshll.u32 %v4385, 16
        %v4608 = vrot.slane %v4606, 1
        %v4609 = vor.u32 %v4604, %v4608
        %v4611 = vshll.u32 %v4433, 16
        %v4613 = vrot.slane %v4611, 1
        %v4614 = vsel %vm1612, %v4609, %v4613
        %v4616 = vshrl.u32 %v4386, 16
        %v4618 = vshll.u32 %v4386, 16
        %v4620 = vrot.slane %v4618, 1
        %v4621 = vor.u32 %v4616, %v4620
        %v4623 = vshll.u32 %v4434, 16
        %v4625 = vrot.slane %v4623, 1
        %v4626 = vsel %vm1612, %v4621, %v4625
        %4627 = vrot.lane.b32.xlu0 %v4446, 8
        %v4628 = vpop.permute.xlu0 %4627
        %4629 = vrot.lane.b32.xlu0 %v4458, 8
        %v4630 = vpop.permute.xlu0 %4629
        %4631 = vrot.lane.b32.xlu0 %v4470, 8
        %v4632 = vpop.permute.xlu0 %4631
        %4633 = vrot.lane.b32.xlu0 %v4482, 8
        %v4634 = vpop.permute.xlu0 %4633
        %4635 = vrot.lane.b32.xlu0 %v4494, 8
        %v4636 = vpop.permute.xlu0 %4635
        %4637 = vrot.lane.b32.xlu0 %v4506, 8
        %v4638 = vpop.permute.xlu0 %4637
        %4639 = vrot.lane.b32.xlu0 %v4518, 8
        %v4640 = vpop.permute.xlu0 %4639
        %4641 = vrot.lane.b32.xlu0 %v4530, 8
        %v4642 = vpop.permute.xlu0 %4641
        %4643 = vrot.lane.b32.xlu0 %v4542, 8
        %v4644 = vpop.permute.xlu0 %4643
        %4645 = vrot.lane.b32.xlu0 %v4554, 8
        %v4646 = vpop.permute.xlu0 %4645
        %4647 = vrot.lane.b32.xlu0 %v4566, 8
        %v4648 = vpop.permute.xlu0 %4647
        %4649 = vrot.lane.b32.xlu0 %v4578, 8
        %v4650 = vpop.permute.xlu0 %4649
        %4651 = vrot.lane.b32.xlu0 %v4590, 8
        %v4652 = vpop.permute.xlu0 %4651
        %4653 = vrot.lane.b32.xlu0 %v4602, 8
        %v4654 = vpop.permute.xlu0 %4653
        %4655 = vrot.lane.b32.xlu0 %v4614, 8
        %v4656 = vpop.permute.xlu0 %4655
        %4657 = vrot.lane.b32.xlu0 %v4626, 8
        %v4658 = vpop.permute.xlu0 %4657
        %v4675 = vunpack.c.l.b16 %v4162
        %v4676 = vunpack.c.l.b16 %v4163
        %v4677 = vunpack.c.l.b16 %v4164
        %v4678 = vunpack.c.l.b16 %v4165
        %v4679 = vunpack.c.l.b16 %v4166
        %v4680 = vunpack.c.l.b16 %v4167
        %v4681 = vunpack.c.l.b16 %v4168
        %v4682 = vunpack.c.l.b16 %v4169
        %v4683 = vunpack.c.l.b16 %v4170
        %v4684 = vunpack.c.l.b16 %v4171
        %v4685 = vunpack.c.l.b16 %v4172
        %v4686 = vunpack.c.l.b16 %v4173
        %v4687 = vunpack.c.l.b16 %v4174
        %v4688 = vunpack.c.l.b16 %v4175
        %v4689 = vunpack.c.l.b16 %v4176
        %v4690 = vunpack.c.l.b16 %v4177
        %v4691 = vpack.c.b16 %v4340, %v4675
        %v4692 = vpack.c.b16 %v4342, %v4676
        %v4693 = vpack.c.b16 %v4344, %v4677
        %v4694 = vpack.c.b16 %v4346, %v4678
        %v4695 = vpack.c.b16 %v4348, %v4679
        %v4696 = vpack.c.b16 %v4350, %v4680
        %v4697 = vpack.c.b16 %v4352, %v4681
        %v4698 = vpack.c.b16 %v4354, %v4682
        %v4699 = vpack.c.b16 %v4356, %v4683
        %v4700 = vpack.c.b16 %v4358, %v4684
        %v4701 = vpack.c.b16 %v4360, %v4685
        %v4702 = vpack.c.b16 %v4362, %v4686
        %v4703 = vpack.c.b16 %v4364, %v4687
        %v4704 = vpack.c.b16 %v4366, %v4688
        %v4705 = vpack.c.b16 %v4368, %v4689
        %v4706 = vpack.c.b16 %v4370, %v4690
        %v4707 = vrot.slane %v4691, 1
        %v4708 = vrot.slane %v4419, 1
        %v4709 = vsel %vm1885, %v4707, %v4708
        %v4710 = vrot.slane %v4692, 1
        %v4711 = vrot.slane %v4420, 1
        %v4712 = vsel %vm1885, %v4710, %v4711
        %v4713 = vrot.slane %v4693, 1
        %v4714 = vrot.slane %v4421, 1
        %v4715 = vsel %vm1885, %v4713, %v4714
        %v4716 = vrot.slane %v4694, 1
        %v4717 = vrot.slane %v4422, 1
        %v4718 = vsel %vm1885, %v4716, %v4717
        %v4719 = vrot.slane %v4695, 1
        %v4720 = vrot.slane %v4423, 1
        %v4721 = vsel %vm1885, %v4719, %v4720
        %v4722 = vrot.slane %v4696, 1
        %v4723 = vrot.slane %v4424, 1
        %v4724 = vsel %vm1885, %v4722, %v4723
        %v4725 = vrot.slane %v4697, 1
        %v4726 = vrot.slane %v4425, 1
        %v4727 = vsel %vm1885, %v4725, %v4726
        %v4728 = vrot.slane %v4698, 1
        %v4729 = vrot.slane %v4426, 1
        %v4730 = vsel %vm1885, %v4728, %v4729
        %v4731 = vrot.slane %v4699, 1
        %v4732 = vrot.slane %v4427, 1
        %v4733 = vsel %vm1885, %v4731, %v4732
        %v4734 = vrot.slane %v4700, 1
        %v4735 = vrot.slane %v4428, 1
        %v4736 = vsel %vm1885, %v4734, %v4735
        %v4737 = vrot.slane %v4701, 1
        %v4738 = vrot.slane %v4429, 1
        %v4739 = vsel %vm1885, %v4737, %v4738
        %v4740 = vrot.slane %v4702, 1
        %v4741 = vrot.slane %v4430, 1
        %v4742 = vsel %vm1885, %v4740, %v4741
        %v4743 = vrot.slane %v4703, 1
        %v4744 = vrot.slane %v4431, 1
        %v4745 = vsel %vm1885, %v4743, %v4744
        %v4746 = vrot.slane %v4704, 1
        %v4747 = vrot.slane %v4432, 1
        %v4748 = vsel %vm1885, %v4746, %v4747
        %v4749 = vrot.slane %v4705, 1
        %v4750 = vrot.slane %v4433, 1
        %v4751 = vsel %vm1885, %v4749, %v4750
        %v4752 = vrot.slane %v4706, 1
        %v4753 = vrot.slane %v4434, 1
        %v4754 = vsel %vm1885, %v4752, %v4753
        %4755 = vrot.lane.b32.xlu0 %v4709, 16
        %v4756 = vpop.permute.xlu0 %4755
        %4757 = vrot.lane.b32.xlu0 %v4712, 16
        %v4758 = vpop.permute.xlu0 %4757
        %4759 = vrot.lane.b32.xlu0 %v4715, 16
        %v4760 = vpop.permute.xlu0 %4759
        %4761 = vrot.lane.b32.xlu0 %v4718, 16
        %v4762 = vpop.permute.xlu0 %4761
        %4763 = vrot.lane.b32.xlu0 %v4721, 16
        %v4764 = vpop.permute.xlu0 %4763
        %4765 = vrot.lane.b32.xlu0 %v4724, 16
        %v4766 = vpop.permute.xlu0 %4765
        %4767 = vrot.lane.b32.xlu0 %v4727, 16
        %v4768 = vpop.permute.xlu0 %4767
        %4769 = vrot.lane.b32.xlu0 %v4730, 16
        %v4770 = vpop.permute.xlu0 %4769
        %4771 = vrot.lane.b32.xlu0 %v4733, 16
        %v4772 = vpop.permute.xlu0 %4771
        %4773 = vrot.lane.b32.xlu0 %v4736, 16
        %v4774 = vpop.permute.xlu0 %4773
        %4775 = vrot.lane.b32.xlu0 %v4739, 16
        %v4776 = vpop.permute.xlu0 %4775
        %4777 = vrot.lane.b32.xlu0 %v4742, 16
        %v4778 = vpop.permute.xlu0 %4777
        %4779 = vrot.lane.b32.xlu0 %v4745, 16
        %v4780 = vpop.permute.xlu0 %4779
        %4781 = vrot.lane.b32.xlu0 %v4748, 16
        %v4782 = vpop.permute.xlu0 %4781
        %4783 = vrot.lane.b32.xlu0 %v4751, 16
        %v4784 = vpop.permute.xlu0 %4783
        %4785 = vrot.lane.b32.xlu0 %v4754, 16
        %v4786 = vpop.permute.xlu0 %4785
        %v4819 = vunpack.c.l.b16 %v4178
        %v4820 = vunpack.c.l.b16 %v4179
        %v4821 = vunpack.c.l.b16 %v4180
        %v4822 = vunpack.c.l.b16 %v4181
        %v4823 = vunpack.c.l.b16 %v4182
        %v4824 = vunpack.c.l.b16 %v4183
        %v4825 = vunpack.c.l.b16 %v4184
        %v4826 = vunpack.c.l.b16 %v4185
        %v4827 = vunpack.c.l.b16 %v4186
        %v4828 = vunpack.c.l.b16 %v4187
        %v4829 = vunpack.c.l.b16 %v4188
        %v4830 = vunpack.c.l.b16 %v4189
        %v4831 = vunpack.c.l.b16 %v4190
        %v4832 = vunpack.c.l.b16 %v4191
        %v4833 = vunpack.c.l.b16 %v4192
        %v4834 = vunpack.c.l.b16 %v4193
        %v4835 = vunpack.c.l.b16 %v4194
        %v4836 = vunpack.c.l.b16 %v4195
        %v4837 = vunpack.c.l.b16 %v4196
        %v4838 = vunpack.c.l.b16 %v4197
        %v4839 = vunpack.c.l.b16 %v4198
        %v4840 = vunpack.c.l.b16 %v4199
        %v4841 = vunpack.c.l.b16 %v4200
        %v4842 = vunpack.c.l.b16 %v4201
        %v4843 = vunpack.c.l.b16 %v4202
        %v4844 = vunpack.c.l.b16 %v4203
        %v4845 = vunpack.c.l.b16 %v4204
        %v4846 = vunpack.c.l.b16 %v4205
        %v4847 = vunpack.c.l.b16 %v4206
        %v4848 = vunpack.c.l.b16 %v4207
        %v4849 = vunpack.c.l.b16 %v4208
        %v4850 = vunpack.c.l.b16 %v4209
        %v4851 = vpack.c.b16 %v4820, %v4819
        %v4852 = vpack.c.b16 %v4822, %v4821
        %v4853 = vpack.c.b16 %v4824, %v4823
        %v4854 = vpack.c.b16 %v4826, %v4825
        %v4855 = vpack.c.b16 %v4828, %v4827
        %v4856 = vpack.c.b16 %v4830, %v4829
        %v4857 = vpack.c.b16 %v4832, %v4831
        %v4858 = vpack.c.b16 %v4834, %v4833
        %v4859 = vpack.c.b16 %v4836, %v4835
        %v4860 = vpack.c.b16 %v4838, %v4837
        %v4861 = vpack.c.b16 %v4840, %v4839
        %v4862 = vpack.c.b16 %v4842, %v4841
        %v4863 = vpack.c.b16 %v4844, %v4843
        %v4864 = vpack.c.b16 %v4846, %v4845
        %v4865 = vpack.c.b16 %v4848, %v4847
        %v4866 = vpack.c.b16 %v4850, %v4849
        %4867 = vrot.lane.b32.xlu0 %v4851, 24
        %v4868 = vpop.permute.xlu0 %4867
        %4869 = vrot.lane.b32.xlu0 %v4852, 24
        %v4870 = vpop.permute.xlu0 %4869
        %4871 = vrot.lane.b32.xlu0 %v4853, 24
        %v4872 = vpop.permute.xlu0 %4871
        %4873 = vrot.lane.b32.xlu0 %v4854, 24
        %v4874 = vpop.permute.xlu0 %4873
        %4875 = vrot.lane.b32.xlu0 %v4855, 24
        %v4876 = vpop.permute.xlu0 %4875
        %4877 = vrot.lane.b32.xlu0 %v4856, 24
        %v4878 = vpop.permute.xlu0 %4877
        %4879 = vrot.lane.b32.xlu0 %v4857, 24
        %v4880 = vpop.permute.xlu0 %4879
        %4881 = vrot.lane.b32.xlu0 %v4858, 24
        %v4882 = vpop.permute.xlu0 %4881
        %4883 = vrot.lane.b32.xlu0 %v4859, 24
        %v4884 = vpop.permute.xlu0 %4883
        %4885 = vrot.lane.b32.xlu0 %v4860, 24
        %v4886 = vpop.permute.xlu0 %4885
        %4887 = vrot.lane.b32.xlu0 %v4861, 24
        %v4888 = vpop.permute.xlu0 %4887
        %4889 = vrot.lane.b32.xlu0 %v4862, 24
        %v4890 = vpop.permute.xlu0 %4889
        %4891 = vrot.lane.b32.xlu0 %v4863, 24
        %v4892 = vpop.permute.xlu0 %4891
        %4893 = vrot.lane.b32.xlu0 %v4864, 24
        %v4894 = vpop.permute.xlu0 %4893
        %4895 = vrot.lane.b32.xlu0 %v4865, 24
        %v4896 = vpop.permute.xlu0 %4895
        %4897 = vrot.lane.b32.xlu0 %v4866, 24
        %v4898 = vpop.permute.xlu0 %4897
        %v4915 = vunpack.c.l.b16 %v4210
        %v4916 = vunpack.c.l.b16 %v4211
        %v4917 = vunpack.c.l.b16 %v4212
        %v4918 = vunpack.c.l.b16 %v4213
        %v4919 = vunpack.c.l.b16 %v4214
        %v4920 = vunpack.c.l.b16 %v4215
        %v4921 = vunpack.c.l.b16 %v4216
        %v4922 = vunpack.c.l.b16 %v4217
        %v4923 = vunpack.c.l.b16 %v4218
        %v4924 = vunpack.c.l.b16 %v4219
        %v4925 = vunpack.c.l.b16 %v4220
        %v4926 = vunpack.c.l.b16 %v4221
        %v4927 = vunpack.c.l.b16 %v4222
        %v4928 = vunpack.c.l.b16 %v4223
        %v4929 = vunpack.c.l.b16 %v4224
        %v4930 = vunpack.c.l.b16 %v4225
        %v4931 = vpack.c.b16 %v4915, %v4915
        %v4932 = vpack.c.b16 %v4916, %v4916
        %v4933 = vpack.c.b16 %v4917, %v4917
        %v4934 = vpack.c.b16 %v4918, %v4918
        %v4935 = vpack.c.b16 %v4919, %v4919
        %v4936 = vpack.c.b16 %v4920, %v4920
        %v4937 = vpack.c.b16 %v4921, %v4921
        %v4938 = vpack.c.b16 %v4922, %v4922
        %v4939 = vpack.c.b16 %v4923, %v4923
        %v4940 = vpack.c.b16 %v4924, %v4924
        %v4941 = vpack.c.b16 %v4925, %v4925
        %v4942 = vpack.c.b16 %v4926, %v4926
        %v4943 = vpack.c.b16 %v4927, %v4927
        %v4944 = vpack.c.b16 %v4928, %v4928
        %v4945 = vpack.c.b16 %v4929, %v4929
        %v4946 = vpack.c.b16 %v4930, %v4930
        %v4948 = vshrl.u32 %v4851, 16
        %v4950 = vshll.u32 %v4851, 16
        %v4952 = vrot.slane %v4950, 1
        %v4953 = vor.u32 %v4948, %v4952
        %v4955 = vshll.u32 %v4931, 16
        %v4957 = vrot.slane %v4955, 1
        %v4958 = vsel %vm1612, %v4953, %v4957
        %v4960 = vshrl.u32 %v4852, 16
        %v4962 = vshll.u32 %v4852, 16
        %v4964 = vrot.slane %v4962, 1
        %v4965 = vor.u32 %v4960, %v4964
        %v4967 = vshll.u32 %v4932, 16
        %v4969 = vrot.slane %v4967, 1
        %v4970 = vsel %vm1612, %v4965, %v4969
        %v4972 = vshrl.u32 %v4853, 16
        %v4974 = vshll.u32 %v4853, 16
        %v4976 = vrot.slane %v4974, 1
        %v4977 = vor.u32 %v4972, %v4976
        %v4979 = vshll.u32 %v4933, 16
        %v4981 = vrot.slane %v4979, 1
        %v4982 = vsel %vm1612, %v4977, %v4981
        %v4984 = vshrl.u32 %v4854, 16
        %v4986 = vshll.u32 %v4854, 16
        %v4988 = vrot.slane %v4986, 1
        %v4989 = vor.u32 %v4984, %v4988
        %v4991 = vshll.u32 %v4934, 16
        %v4993 = vrot.slane %v4991, 1
        %v4994 = vsel %vm1612, %v4989, %v4993
        %v4996 = vshrl.u32 %v4855, 16
        %v4998 = vshll.u32 %v4855, 16
        %v5000 = vrot.slane %v4998, 1
        %v5001 = vor.u32 %v4996, %v5000
        %v5003 = vshll.u32 %v4935, 16
        %v5005 = vrot.slane %v5003, 1
        %v5006 = vsel %vm1612, %v5001, %v5005
        %v5008 = vshrl.u32 %v4856, 16
        %v5010 = vshll.u32 %v4856, 16
        %v5012 = vrot.slane %v5010, 1
        %v5013 = vor.u32 %v5008, %v5012
        %v5015 = vshll.u32 %v4936, 16
        %v5017 = vrot.slane %v5015, 1
        %v5018 = vsel %vm1612, %v5013, %v5017
        %v5020 = vshrl.u32 %v4857, 16
        %v5022 = vshll.u32 %v4857, 16
        %v5024 = vrot.slane %v5022, 1
        %v5025 = vor.u32 %v5020, %v5024
        %v5027 = vshll.u32 %v4937, 16
        %v5029 = vrot.slane %v5027, 1
        %v5030 = vsel %vm1612, %v5025, %v5029
        %v5032 = vshrl.u32 %v4858, 16
        %v5034 = vshll.u32 %v4858, 16
        %v5036 = vrot.slane %v5034, 1
        %v5037 = vor.u32 %v5032, %v5036
        %v5039 = vshll.u32 %v4938, 16
        %v5041 = vrot.slane %v5039, 1
        %v5042 = vsel %vm1612, %v5037, %v5041
        %v5044 = vshrl.u32 %v4859, 16
        %v5046 = vshll.u32 %v4859, 16
        %v5048 = vrot.slane %v5046, 1
        %v5049 = vor.u32 %v5044, %v5048
        %v5051 = vshll.u32 %v4939, 16
        %v5053 = vrot.slane %v5051, 1
        %v5054 = vsel %vm1612, %v5049, %v5053
        %v5056 = vshrl.u32 %v4860, 16
        %v5058 = vshll.u32 %v4860, 16
        %v5060 = vrot.slane %v5058, 1
        %v5061 = vor.u32 %v5056, %v5060
        %v5063 = vshll.u32 %v4940, 16
        %v5065 = vrot.slane %v5063, 1
        %v5066 = vsel %vm1612, %v5061, %v5065
        %v5068 = vshrl.u32 %v4861, 16
        %v5070 = vshll.u32 %v4861, 16
        %v5072 = vrot.slane %v5070, 1
        %v5073 = vor.u32 %v5068, %v5072
        %v5075 = vshll.u32 %v4941, 16
        %v5077 = vrot.slane %v5075, 1
        %v5078 = vsel %vm1612, %v5073, %v5077
        %v5080 = vshrl.u32 %v4862, 16
        %v5082 = vshll.u32 %v4862, 16
        %v5084 = vrot.slane %v5082, 1
        %v5085 = vor.u32 %v5080, %v5084
        %v5087 = vshll.u32 %v4942, 16
        %v5089 = vrot.slane %v5087, 1
        %v5090 = vsel %vm1612, %v5085, %v5089
        %v5092 = vshrl.u32 %v4863, 16
        %v5094 = vshll.u32 %v4863, 16
        %v5096 = vrot.slane %v5094, 1
        %v5097 = vor.u32 %v5092, %v5096
        %v5099 = vshll.u32 %v4943, 16
        %v5101 = vrot.slane %v5099, 1
        %v5102 = vsel %vm1612, %v5097, %v5101
        %v5104 = vshrl.u32 %v4864, 16
        %v5106 = vshll.u32 %v4864, 16
        %v5108 = vrot.slane %v5106, 1
        %v5109 = vor.u32 %v5104, %v5108
        %v5111 = vshll.u32 %v4944, 16
        %v5113 = vrot.slane %v5111, 1
        %v5114 = vsel %vm1612, %v5109, %v5113
        %v5116 = vshrl.u32 %v4865, 16
        %v5118 = vshll.u32 %v4865, 16
        %v5120 = vrot.slane %v5118, 1
        %v5121 = vor.u32 %v5116, %v5120
        %v5123 = vshll.u32 %v4945, 16
        %v5125 = vrot.slane %v5123, 1
        %v5126 = vsel %vm1612, %v5121, %v5125
        %v5128 = vshrl.u32 %v4866, 16
        %v5130 = vshll.u32 %v4866, 16
        %v5132 = vrot.slane %v5130, 1
        %v5133 = vor.u32 %v5128, %v5132
        %v5135 = vshll.u32 %v4946, 16
        %v5137 = vrot.slane %v5135, 1
        %v5138 = vsel %vm1612, %v5133, %v5137
        %5139 = vrot.lane.b32.xlu0 %v4958, 32
        %v5140 = vpop.permute.xlu0 %5139
        %5141 = vrot.lane.b32.xlu0 %v4970, 32
        %v5142 = vpop.permute.xlu0 %5141
        %5143 = vrot.lane.b32.xlu0 %v4982, 32
        %v5144 = vpop.permute.xlu0 %5143
        %5145 = vrot.lane.b32.xlu0 %v4994, 32
        %v5146 = vpop.permute.xlu0 %5145
        %5147 = vrot.lane.b32.xlu0 %v5006, 32
        %v5148 = vpop.permute.xlu0 %5147
        %5149 = vrot.lane.b32.xlu0 %v5018, 32
        %v5150 = vpop.permute.xlu0 %5149
        %5151 = vrot.lane.b32.xlu0 %v5030, 32
        %v5152 = vpop.permute.xlu0 %5151
        %5153 = vrot.lane.b32.xlu0 %v5042, 32
        %v5154 = vpop.permute.xlu0 %5153
        %5155 = vrot.lane.b32.xlu0 %v5054, 32
        %v5156 = vpop.permute.xlu0 %5155
        %5157 = vrot.lane.b32.xlu0 %v5066, 32
        %v5158 = vpop.permute.xlu0 %5157
        %5159 = vrot.lane.b32.xlu0 %v5078, 32
        %v5160 = vpop.permute.xlu0 %5159
        %5161 = vrot.lane.b32.xlu0 %v5090, 32
        %v5162 = vpop.permute.xlu0 %5161
        %5163 = vrot.lane.b32.xlu0 %v5102, 32
        %v5164 = vpop.permute.xlu0 %5163
        %5165 = vrot.lane.b32.xlu0 %v5114, 32
        %v5166 = vpop.permute.xlu0 %5165
        %5167 = vrot.lane.b32.xlu0 %v5126, 32
        %v5168 = vpop.permute.xlu0 %5167
        %5169 = vrot.lane.b32.xlu0 %v5138, 32
        %v5170 = vpop.permute.xlu0 %5169
        %v5187 = vunpack.c.l.b16 %v4226
        %v5188 = vunpack.c.l.b16 %v4227
        %v5189 = vunpack.c.l.b16 %v4228
        %v5190 = vunpack.c.l.b16 %v4229
        %v5191 = vunpack.c.l.b16 %v4230
        %v5192 = vunpack.c.l.b16 %v4231
        %v5193 = vunpack.c.l.b16 %v4232
        %v5194 = vunpack.c.l.b16 %v4233
        %v5195 = vunpack.c.l.b16 %v4234
        %v5196 = vunpack.c.l.b16 %v4235
        %v5197 = vunpack.c.l.b16 %v4236
        %v5198 = vunpack.c.l.b16 %v4237
        %v5199 = vunpack.c.l.b16 %v4238
        %v5200 = vunpack.c.l.b16 %v4239
        %v5201 = vunpack.c.l.b16 %v4240
        %v5202 = vunpack.c.l.b16 %v4241
        %v5203 = vpack.c.b16 %v4820, %v5187
        %v5204 = vpack.c.b16 %v4822, %v5188
        %v5205 = vpack.c.b16 %v4824, %v5189
        %v5206 = vpack.c.b16 %v4826, %v5190
        %v5207 = vpack.c.b16 %v4828, %v5191
        %v5208 = vpack.c.b16 %v4830, %v5192
        %v5209 = vpack.c.b16 %v4832, %v5193
        %v5210 = vpack.c.b16 %v4834, %v5194
        %v5211 = vpack.c.b16 %v4836, %v5195
        %v5212 = vpack.c.b16 %v4838, %v5196
        %v5213 = vpack.c.b16 %v4840, %v5197
        %v5214 = vpack.c.b16 %v4842, %v5198
        %v5215 = vpack.c.b16 %v4844, %v5199
        %v5216 = vpack.c.b16 %v4846, %v5200
        %v5217 = vpack.c.b16 %v4848, %v5201
        %v5218 = vpack.c.b16 %v4850, %v5202
        %v5219 = vrot.slane %v5203, 1
        %v5220 = vrot.slane %v4931, 1
        %v5221 = vsel %vm1885, %v5219, %v5220
        %v5222 = vrot.slane %v5204, 1
        %v5223 = vrot.slane %v4932, 1
        %v5224 = vsel %vm1885, %v5222, %v5223
        %v5225 = vrot.slane %v5205, 1
        %v5226 = vrot.slane %v4933, 1
        %v5227 = vsel %vm1885, %v5225, %v5226
        %v5228 = vrot.slane %v5206, 1
        %v5229 = vrot.slane %v4934, 1
        %v5230 = vsel %vm1885, %v5228, %v5229
        %v5231 = vrot.slane %v5207, 1
        %v5232 = vrot.slane %v4935, 1
        %v5233 = vsel %vm1885, %v5231, %v5232
        %v5234 = vrot.slane %v5208, 1
        %v5235 = vrot.slane %v4936, 1
        %v5236 = vsel %vm1885, %v5234, %v5235
        %v5237 = vrot.slane %v5209, 1
        %v5238 = vrot.slane %v4937, 1
        %v5239 = vsel %vm1885, %v5237, %v5238
        %v5240 = vrot.slane %v5210, 1
        %v5241 = vrot.slane %v4938, 1
        %v5242 = vsel %vm1885, %v5240, %v5241
        %v5243 = vrot.slane %v5211, 1
        %v5244 = vrot.slane %v4939, 1
        %v5245 = vsel %vm1885, %v5243, %v5244
        %v5246 = vrot.slane %v5212, 1
        %v5247 = vrot.slane %v4940, 1
        %v5248 = vsel %vm1885, %v5246, %v5247
        %v5249 = vrot.slane %v5213, 1
        %v5250 = vrot.slane %v4941, 1
        %v5251 = vsel %vm1885, %v5249, %v5250
        %v5252 = vrot.slane %v5214, 1
        %v5253 = vrot.slane %v4942, 1
        %v5254 = vsel %vm1885, %v5252, %v5253
        %v5255 = vrot.slane %v5215, 1
        %v5256 = vrot.slane %v4943, 1
        %v5257 = vsel %vm1885, %v5255, %v5256
        %v5258 = vrot.slane %v5216, 1
        %v5259 = vrot.slane %v4944, 1
        %v5260 = vsel %vm1885, %v5258, %v5259
        %v5261 = vrot.slane %v5217, 1
        %v5262 = vrot.slane %v4945, 1
        %v5263 = vsel %vm1885, %v5261, %v5262
        %v5264 = vrot.slane %v5218, 1
        %v5265 = vrot.slane %v4946, 1
        %v5266 = vsel %vm1885, %v5264, %v5265
        %5267 = vrot.lane.b32.xlu0 %v5221, 40
        %v5268 = vpop.permute.xlu0 %5267
        %5269 = vrot.lane.b32.xlu0 %v5224, 40
        %v5270 = vpop.permute.xlu0 %5269
        %5271 = vrot.lane.b32.xlu0 %v5227, 40
        %v5272 = vpop.permute.xlu0 %5271
        %5273 = vrot.lane.b32.xlu0 %v5230, 40
        %v5274 = vpop.permute.xlu0 %5273
        %5275 = vrot.lane.b32.xlu0 %v5233, 40
        %v5276 = vpop.permute.xlu0 %5275
        %5277 = vrot.lane.b32.xlu0 %v5236, 40
        %v5278 = vpop.permute.xlu0 %5277
        %5279 = vrot.lane.b32.xlu0 %v5239, 40
        %v5280 = vpop.permute.xlu0 %5279
        %5281 = vrot.lane.b32.xlu0 %v5242, 40
        %v5282 = vpop.permute.xlu0 %5281
        %5283 = vrot.lane.b32.xlu0 %v5245, 40
        %v5284 = vpop.permute.xlu0 %5283
        %5285 = vrot.lane.b32.xlu0 %v5248, 40
        %v5286 = vpop.permute.xlu0 %5285
        %5287 = vrot.lane.b32.xlu0 %v5251, 40
        %v5288 = vpop.permute.xlu0 %5287
        %5289 = vrot.lane.b32.xlu0 %v5254, 40
        %v5290 = vpop.permute.xlu0 %5289
        %5291 = vrot.lane.b32.xlu0 %v5257, 40
        %v5292 = vpop.permute.xlu0 %5291
        %5293 = vrot.lane.b32.xlu0 %v5260, 40
        %v5294 = vpop.permute.xlu0 %5293
        %5295 = vrot.lane.b32.xlu0 %v5263, 40
        %v5296 = vpop.permute.xlu0 %5295
        %5297 = vrot.lane.b32.xlu0 %v5266, 40
        %v5298 = vpop.permute.xlu0 %5297
        %v5331 = vunpack.c.l.b16 %v4243
        %v5332 = vunpack.c.l.b16 %v4244
        %v5333 = vunpack.c.l.b16 %v4245
        %v5334 = vunpack.c.l.b16 %v4246
        %v5335 = vunpack.c.l.b16 %v4247
        %v5336 = vunpack.c.l.b16 %v4248
        %v5337 = vunpack.c.l.b16 %v4249
        %v5338 = vunpack.c.l.b16 %v4250
        %v5339 = vunpack.c.l.b16 %v4251
        %v5340 = vunpack.c.l.b16 %v4252
        %v5341 = vunpack.c.l.b16 %v4253
        %v5342 = vunpack.c.l.b16 %v4254
        %v5343 = vunpack.c.l.b16 %v4255
        %v5344 = vunpack.c.l.b16 %v4256
        %v5345 = vunpack.c.l.b16 %v4257
        %v5346 = vunpack.c.l.b16 %v4258
        %v5347 = vunpack.c.l.b16 %v4259
        %v5348 = vunpack.c.l.b16 %v4260
        %v5349 = vunpack.c.l.b16 %v4261
        %v5350 = vunpack.c.l.b16 %v4262
        %v5351 = vunpack.c.l.b16 %v4263
        %v5352 = vunpack.c.l.b16 %v4264
        %v5353 = vunpack.c.l.b16 %v4265
        %v5354 = vunpack.c.l.b16 %v4266
        %v5355 = vunpack.c.l.b16 %v4267
        %v5356 = vunpack.c.l.b16 %v4268
        %v5357 = vunpack.c.l.b16 %v4269
        %v5358 = vunpack.c.l.b16 %v4270
        %v5359 = vunpack.c.l.b16 %v4271
        %v5360 = vunpack.c.l.b16 %v4272
        %v5361 = vunpack.c.l.b16 %v4273
        %v5362 = vunpack.c.l.b16 %v4274
        %v5363 = vpack.c.b16 %v5332, %v5331
        %v5364 = vpack.c.b16 %v5334, %v5333
        %v5365 = vpack.c.b16 %v5336, %v5335
        %v5366 = vpack.c.b16 %v5338, %v5337
        %v5367 = vpack.c.b16 %v5340, %v5339
        %v5368 = vpack.c.b16 %v5342, %v5341
        %v5369 = vpack.c.b16 %v5344, %v5343
        %v5370 = vpack.c.b16 %v5346, %v5345
        %v5371 = vpack.c.b16 %v5348, %v5347
        %v5372 = vpack.c.b16 %v5350, %v5349
        %v5373 = vpack.c.b16 %v5352, %v5351
        %v5374 = vpack.c.b16 %v5354, %v5353
        %v5375 = vpack.c.b16 %v5356, %v5355
        %v5376 = vpack.c.b16 %v5358, %v5357
        %v5377 = vpack.c.b16 %v5360, %v5359
        %v5378 = vpack.c.b16 %v5362, %v5361
        %5379 = vrot.lane.b32.xlu0 %v5363, 48
        %v5380 = vpop.permute.xlu0 %5379
        %5381 = vrot.lane.b32.xlu0 %v5364, 48
        %v5382 = vpop.permute.xlu0 %5381
        %5383 = vrot.lane.b32.xlu0 %v5365, 48
        %v5384 = vpop.permute.xlu0 %5383
        %5385 = vrot.lane.b32.xlu0 %v5366, 48
        %v5386 = vpop.permute.xlu0 %5385
        %5387 = vrot.lane.b32.xlu0 %v5367, 48
        %v5388 = vpop.permute.xlu0 %5387
        %5389 = vrot.lane.b32.xlu0 %v5368, 48
        %v5390 = vpop.permute.xlu0 %5389
        %5391 = vrot.lane.b32.xlu0 %v5369, 48
        %v5392 = vpop.permute.xlu0 %5391
        %5393 = vrot.lane.b32.xlu0 %v5370, 48
        %v5394 = vpop.permute.xlu0 %5393
        %5395 = vrot.lane.b32.xlu0 %v5371, 48
        %v5396 = vpop.permute.xlu0 %5395
        %5397 = vrot.lane.b32.xlu0 %v5372, 48
        %v5398 = vpop.permute.xlu0 %5397
        %5399 = vrot.lane.b32.xlu0 %v5373, 48
        %v5400 = vpop.permute.xlu0 %5399
        %5401 = vrot.lane.b32.xlu0 %v5374, 48
        %v5402 = vpop.permute.xlu0 %5401
        %5403 = vrot.lane.b32.xlu0 %v5375, 48
        %v5404 = vpop.permute.xlu0 %5403
        %5405 = vrot.lane.b32.xlu0 %v5376, 48
        %v5406 = vpop.permute.xlu0 %5405
        %5407 = vrot.lane.b32.xlu0 %v5377, 48
        %v5408 = vpop.permute.xlu0 %5407
        %5409 = vrot.lane.b32.xlu0 %v5378, 48
        %v5410 = vpop.permute.xlu0 %5409
        %v5427 = vunpack.c.l.b16 %v4275
        %v5428 = vunpack.c.l.b16 %v4276
        %v5429 = vunpack.c.l.b16 %v4277
        %v5430 = vunpack.c.l.b16 %v4278
        %v5431 = vunpack.c.l.b16 %v4279
        %v5432 = vunpack.c.l.b16 %v4280
        %v5433 = vunpack.c.l.b16 %v4281
        %v5434 = vunpack.c.l.b16 %v4282
        %v5435 = vunpack.c.l.b16 %v4283
        %v5436 = vunpack.c.l.b16 %v4284
        %v5437 = vunpack.c.l.b16 %v4285
        %v5438 = vunpack.c.l.b16 %v4286
        %v5439 = vunpack.c.l.b16 %v4287
        %v5440 = vunpack.c.l.b16 %v4288
        %v5441 = vunpack.c.l.b16 %v4289
        %v5442 = vunpack.c.l.b16 %v4290
        %v5443 = vpack.c.b16 %v5427, %v5427
        %v5444 = vpack.c.b16 %v5428, %v5428
        %v5445 = vpack.c.b16 %v5429, %v5429
        %v5446 = vpack.c.b16 %v5430, %v5430
        %v5447 = vpack.c.b16 %v5431, %v5431
        %v5448 = vpack.c.b16 %v5432, %v5432
        %v5449 = vpack.c.b16 %v5433, %v5433
        %v5450 = vpack.c.b16 %v5434, %v5434
        %v5451 = vpack.c.b16 %v5435, %v5435
        %v5452 = vpack.c.b16 %v5436, %v5436
        %v5453 = vpack.c.b16 %v5437, %v5437
        %v5454 = vpack.c.b16 %v5438, %v5438
        %v5455 = vpack.c.b16 %v5439, %v5439
        %v5456 = vpack.c.b16 %v5440, %v5440
        %v5457 = vpack.c.b16 %v5441, %v5441
        %v5458 = vpack.c.b16 %v5442, %v5442
        %v5460 = vshrl.u32 %v5363, 16
        %v5462 = vshll.u32 %v5363, 16
        %v5464 = vrot.slane %v5462, 1
        %v5465 = vor.u32 %v5460, %v5464
        %v5467 = vshll.u32 %v5443, 16
        %v5469 = vrot.slane %v5467, 1
        %v5470 = vsel %vm1612, %v5465, %v5469
        %v5472 = vshrl.u32 %v5364, 16
        %v5474 = vshll.u32 %v5364, 16
        %v5476 = vrot.slane %v5474, 1
        %v5477 = vor.u32 %v5472, %v5476
        %v5479 = vshll.u32 %v5444, 16
        %v5481 = vrot.slane %v5479, 1
        %v5482 = vsel %vm1612, %v5477, %v5481
        %v5484 = vshrl.u32 %v5365, 16
        %v5486 = vshll.u32 %v5365, 16
        %v5488 = vrot.slane %v5486, 1
        %v5489 = vor.u32 %v5484, %v5488
        %v5491 = vshll.u32 %v5445, 16
        %v5493 = vrot.slane %v5491, 1
        %v5494 = vsel %vm1612, %v5489, %v5493
        %v5496 = vshrl.u32 %v5366, 16
        %v5498 = vshll.u32 %v5366, 16
        %v5500 = vrot.slane %v5498, 1
        %v5501 = vor.u32 %v5496, %v5500
        %v5503 = vshll.u32 %v5446, 16
        %v5505 = vrot.slane %v5503, 1
        %v5506 = vsel %vm1612, %v5501, %v5505
        %v5508 = vshrl.u32 %v5367, 16
        %v5510 = vshll.u32 %v5367, 16
        %v5512 = vrot.slane %v5510, 1
        %v5513 = vor.u32 %v5508, %v5512
        %v5515 = vshll.u32 %v5447, 16
        %v5517 = vrot.slane %v5515, 1
        %v5518 = vsel %vm1612, %v5513, %v5517
        %v5520 = vshrl.u32 %v5368, 16
        %v5522 = vshll.u32 %v5368, 16
        %v5524 = vrot.slane %v5522, 1
        %v5525 = vor.u32 %v5520, %v5524
        %v5527 = vshll.u32 %v5448, 16
        %v5529 = vrot.slane %v5527, 1
        %v5530 = vsel %vm1612, %v5525, %v5529
        %v5532 = vshrl.u32 %v5369, 16
        %v5534 = vshll.u32 %v5369, 16
        %v5536 = vrot.slane %v5534, 1
        %v5537 = vor.u32 %v5532, %v5536
        %v5539 = vshll.u32 %v5449, 16
        %v5541 = vrot.slane %v5539, 1
        %v5542 = vsel %vm1612, %v5537, %v5541
        %v5544 = vshrl.u32 %v5370, 16
        %v5546 = vshll.u32 %v5370, 16
        %v5548 = vrot.slane %v5546, 1
        %v5549 = vor.u32 %v5544, %v5548
        %v5551 = vshll.u32 %v5450, 16
        %v5553 = vrot.slane %v5551, 1
        %v5554 = vsel %vm1612, %v5549, %v5553
        %v5556 = vshrl.u32 %v5371, 16
        %v5558 = vshll.u32 %v5371, 16
        %v5560 = vrot.slane %v5558, 1
        %v5561 = vor.u32 %v5556, %v5560
        %v5563 = vshll.u32 %v5451, 16
        %v5565 = vrot.slane %v5563, 1
        %v5566 = vsel %vm1612, %v5561, %v5565
        %v5568 = vshrl.u32 %v5372, 16
        %v5570 = vshll.u32 %v5372, 16
        %v5572 = vrot.slane %v5570, 1
        %v5573 = vor.u32 %v5568, %v5572
        %v5575 = vshll.u32 %v5452, 16
        %v5577 = vrot.slane %v5575, 1
        %v5578 = vsel %vm1612, %v5573, %v5577
        %v5580 = vshrl.u32 %v5373, 16
        %v5582 = vshll.u32 %v5373, 16
        %v5584 = vrot.slane %v5582, 1
        %v5585 = vor.u32 %v5580, %v5584
        %v5587 = vshll.u32 %v5453, 16
        %v5589 = vrot.slane %v5587, 1
        %v5590 = vsel %vm1612, %v5585, %v5589
        %v5592 = vshrl.u32 %v5374, 16
        %v5594 = vshll.u32 %v5374, 16
        %v5596 = vrot.slane %v5594, 1
        %v5597 = vor.u32 %v5592, %v5596
        %v5599 = vshll.u32 %v5454, 16
        %v5601 = vrot.slane %v5599, 1
        %v5602 = vsel %vm1612, %v5597, %v5601
        %v5604 = vshrl.u32 %v5375, 16
        %v5606 = vshll.u32 %v5375, 16
        %v5608 = vrot.slane %v5606, 1
        %v5609 = vor.u32 %v5604, %v5608
        %v5611 = vshll.u32 %v5455, 16
        %v5613 = vrot.slane %v5611, 1
        %v5614 = vsel %vm1612, %v5609, %v5613
        %v5616 = vshrl.u32 %v5376, 16
        %v5618 = vshll.u32 %v5376, 16
        %v5620 = vrot.slane %v5618, 1
        %v5621 = vor.u32 %v5616, %v5620
        %v5623 = vshll.u32 %v5456, 16
        %v5625 = vrot.slane %v5623, 1
        %v5626 = vsel %vm1612, %v5621, %v5625
        %v5628 = vshrl.u32 %v5377, 16
        %v5630 = vshll.u32 %v5377, 16
        %v5632 = vrot.slane %v5630, 1
        %v5633 = vor.u32 %v5628, %v5632
        %v5635 = vshll.u32 %v5457, 16
        %v5637 = vrot.slane %v5635, 1
        %v5638 = vsel %vm1612, %v5633, %v5637
        %v5640 = vshrl.u32 %v5378, 16
        %v5642 = vshll.u32 %v5378, 16
        %v5644 = vrot.slane %v5642, 1
        %v5645 = vor.u32 %v5640, %v5644
        %v5647 = vshll.u32 %v5458, 16
        %v5649 = vrot.slane %v5647, 1
        %v5650 = vsel %vm1612, %v5645, %v5649
        %5651 = vrot.lane.b32.xlu0 %v5470, 56
        %v5652 = vpop.permute.xlu0 %5651
        %5653 = vrot.lane.b32.xlu0 %v5482, 56
        %v5654 = vpop.permute.xlu0 %5653
        %5655 = vrot.lane.b32.xlu0 %v5494, 56
        %v5656 = vpop.permute.xlu0 %5655
        %5657 = vrot.lane.b32.xlu0 %v5506, 56
        %v5658 = vpop.permute.xlu0 %5657
        %5659 = vrot.lane.b32.xlu0 %v5518, 56
        %v5660 = vpop.permute.xlu0 %5659
        %5661 = vrot.lane.b32.xlu0 %v5530, 56
        %v5662 = vpop.permute.xlu0 %5661
        %5663 = vrot.lane.b32.xlu0 %v5542, 56
        %v5664 = vpop.permute.xlu0 %5663
        %5665 = vrot.lane.b32.xlu0 %v5554, 56
        %v5666 = vpop.permute.xlu0 %5665
        %5667 = vrot.lane.b32.xlu0 %v5566, 56
        %v5668 = vpop.permute.xlu0 %5667
        %5669 = vrot.lane.b32.xlu0 %v5578, 56
        %v5670 = vpop.permute.xlu0 %5669
        %5671 = vrot.lane.b32.xlu0 %v5590, 56
        %v5672 = vpop.permute.xlu0 %5671
        %5673 = vrot.lane.b32.xlu0 %v5602, 56
        %v5674 = vpop.permute.xlu0 %5673
        %5675 = vrot.lane.b32.xlu0 %v5614, 56
        %v5676 = vpop.permute.xlu0 %5675
        %5677 = vrot.lane.b32.xlu0 %v5626, 56
        %v5678 = vpop.permute.xlu0 %5677
        %5679 = vrot.lane.b32.xlu0 %v5638, 56
        %v5680 = vpop.permute.xlu0 %5679
        %5681 = vrot.lane.b32.xlu0 %v5650, 56
        %v5682 = vpop.permute.xlu0 %5681
        %v5699 = vunpack.c.l.b16 %v4291
        %v5700 = vunpack.c.l.b16 %v4292
        %v5701 = vunpack.c.l.b16 %v4293
        %v5702 = vunpack.c.l.b16 %v4294
        %v5703 = vunpack.c.l.b16 %v4295
        %v5704 = vunpack.c.l.b16 %v4296
        %v5705 = vunpack.c.l.b16 %v4297
        %v5706 = vunpack.c.l.b16 %v4298
        %v5707 = vunpack.c.l.b16 %v4299
        %v5708 = vunpack.c.l.b16 %v4300
        %v5709 = vunpack.c.l.b16 %v4301
        %v5710 = vunpack.c.l.b16 %v4302
        %v5711 = vunpack.c.l.b16 %v4303
        %v5712 = vunpack.c.l.b16 %v4304
        %v5713 = vunpack.c.l.b16 %v4305
        %v5714 = vunpack.c.l.b16 %v4306
        %v5715 = vpack.c.b16 %v5332, %v5699
        %v5716 = vpack.c.b16 %v5334, %v5700
        %v5717 = vpack.c.b16 %v5336, %v5701
        %v5718 = vpack.c.b16 %v5338, %v5702
        %v5719 = vpack.c.b16 %v5340, %v5703
        %v5720 = vpack.c.b16 %v5342, %v5704
        %v5721 = vpack.c.b16 %v5344, %v5705
        %v5722 = vpack.c.b16 %v5346, %v5706
        %v5723 = vpack.c.b16 %v5348, %v5707
        %v5724 = vpack.c.b16 %v5350, %v5708
        %v5725 = vpack.c.b16 %v5352, %v5709
        %v5726 = vpack.c.b16 %v5354, %v5710
        %v5727 = vpack.c.b16 %v5356, %v5711
        %v5728 = vpack.c.b16 %v5358, %v5712
        %v5729 = vpack.c.b16 %v5360, %v5713
        %v5730 = vpack.c.b16 %v5362, %v5714
        %v5731 = vrot.slane %v5715, 1
        %v5732 = vrot.slane %v5443, 1
        %v5733 = vsel %vm1885, %v5731, %v5732
        %v5734 = vrot.slane %v5716, 1
        %v5735 = vrot.slane %v5444, 1
        %v5736 = vsel %vm1885, %v5734, %v5735
        %v5737 = vrot.slane %v5717, 1
        %v5738 = vrot.slane %v5445, 1
        %v5739 = vsel %vm1885, %v5737, %v5738
        %v5740 = vrot.slane %v5718, 1
        %v5741 = vrot.slane %v5446, 1
        %v5742 = vsel %vm1885, %v5740, %v5741
        %v5743 = vrot.slane %v5719, 1
        %v5744 = vrot.slane %v5447, 1
        %v5745 = vsel %vm1885, %v5743, %v5744
        %v5746 = vrot.slane %v5720, 1
        %v5747 = vrot.slane %v5448, 1
        %v5748 = vsel %vm1885, %v5746, %v5747
        %v5749 = vrot.slane %v5721, 1
        %v5750 = vrot.slane %v5449, 1
        %v5751 = vsel %vm1885, %v5749, %v5750
        %v5752 = vrot.slane %v5722, 1
        %v5753 = vrot.slane %v5450, 1
        %v5754 = vsel %vm1885, %v5752, %v5753
        %v5755 = vrot.slane %v5723, 1
        %v5756 = vrot.slane %v5451, 1
        %v5757 = vsel %vm1885, %v5755, %v5756
        %v5758 = vrot.slane %v5724, 1
        %v5759 = vrot.slane %v5452, 1
        %v5760 = vsel %vm1885, %v5758, %v5759
        %v5761 = vrot.slane %v5725, 1
        %v5762 = vrot.slane %v5453, 1
        %v5763 = vsel %vm1885, %v5761, %v5762
        %v5764 = vrot.slane %v5726, 1
        %v5765 = vrot.slane %v5454, 1
        %v5766 = vsel %vm1885, %v5764, %v5765
        %v5767 = vrot.slane %v5727, 1
        %v5768 = vrot.slane %v5455, 1
        %v5769 = vsel %vm1885, %v5767, %v5768
        %v5770 = vrot.slane %v5728, 1
        %v5771 = vrot.slane %v5456, 1
        %v5772 = vsel %vm1885, %v5770, %v5771
        %v5773 = vrot.slane %v5729, 1
        %v5774 = vrot.slane %v5457, 1
        %v5775 = vsel %vm1885, %v5773, %v5774
        %v5776 = vrot.slane %v5730, 1
        %v5777 = vrot.slane %v5458, 1
        %v5778 = vsel %vm1885, %v5776, %v5777
        %5779 = vrot.lane.b32.xlu0 %v5733, 64
        %v5780 = vpop.permute.xlu0 %5779
        %5781 = vrot.lane.b32.xlu0 %v5736, 64
        %v5782 = vpop.permute.xlu0 %5781
        %5783 = vrot.lane.b32.xlu0 %v5739, 64
        %v5784 = vpop.permute.xlu0 %5783
        %5785 = vrot.lane.b32.xlu0 %v5742, 64
        %v5786 = vpop.permute.xlu0 %5785
        %5787 = vrot.lane.b32.xlu0 %v5745, 64
        %v5788 = vpop.permute.xlu0 %5787
        %5789 = vrot.lane.b32.xlu0 %v5748, 64
        %v5790 = vpop.permute.xlu0 %5789
        %5791 = vrot.lane.b32.xlu0 %v5751, 64
        %v5792 = vpop.permute.xlu0 %5791
        %5793 = vrot.lane.b32.xlu0 %v5754, 64
        %v5794 = vpop.permute.xlu0 %5793
        %5795 = vrot.lane.b32.xlu0 %v5757, 64
        %v5796 = vpop.permute.xlu0 %5795
        %5797 = vrot.lane.b32.xlu0 %v5760, 64
        %v5798 = vpop.permute.xlu0 %5797
        %5799 = vrot.lane.b32.xlu0 %v5763, 64
        %v5800 = vpop.permute.xlu0 %5799
        %5801 = vrot.lane.b32.xlu0 %v5766, 64
        %v5802 = vpop.permute.xlu0 %5801
        %5803 = vrot.lane.b32.xlu0 %v5769, 64
        %v5804 = vpop.permute.xlu0 %5803
        %5805 = vrot.lane.b32.xlu0 %v5772, 64
        %v5806 = vpop.permute.xlu0 %5805
        %5807 = vrot.lane.b32.xlu0 %v5775, 64
        %v5808 = vpop.permute.xlu0 %5807
        %5809 = vrot.lane.b32.xlu0 %v5778, 64
        %v5810 = vpop.permute.xlu0 %5809
        %v5812 = vsel %vm452, %v4371, %v4628
        %v5814 = vsel %vm452, %v4372, %v4630
        %v5816 = vsel %vm452, %v4373, %v4632
        %v5818 = vsel %vm452, %v4374, %v4634
        %v5820 = vsel %vm452, %v4375, %v4636
        %v5822 = vsel %vm452, %v4376, %v4638
        %v5824 = vsel %vm452, %v4377, %v4640
        %v5826 = vsel %vm452, %v4378, %v4642
        %v5828 = vsel %vm452, %v4379, %v4644
        %v5830 = vsel %vm452, %v4380, %v4646
        %v5832 = vsel %vm452, %v4381, %v4648
        %v5834 = vsel %vm452, %v4382, %v4650
        %v5836 = vsel %vm452, %v4383, %v4652
        %v5838 = vsel %vm452, %v4384, %v4654
        %v5840 = vsel %vm452, %v4385, %v4656
        %v5842 = vsel %vm452, %v4386, %v4658
        %v5844 = vsel %vm2958, %v5812, %v4756
        %v5846 = vsel %vm2958, %v5814, %v4758
        %v5848 = vsel %vm2958, %v5816, %v4760
        %v5850 = vsel %vm2958, %v5818, %v4762
        %v5852 = vsel %vm2958, %v5820, %v4764
        %v5854 = vsel %vm2958, %v5822, %v4766
        %v5856 = vsel %vm2958, %v5824, %v4768
        %v5858 = vsel %vm2958, %v5826, %v4770
        %v5860 = vsel %vm2958, %v5828, %v4772
        %v5862 = vsel %vm2958, %v5830, %v4774
        %v5864 = vsel %vm2958, %v5832, %v4776
        %v5866 = vsel %vm2958, %v5834, %v4778
        %v5868 = vsel %vm2958, %v5836, %v4780
        %v5870 = vsel %vm2958, %v5838, %v4782
        %v5872 = vsel %vm2958, %v5840, %v4784
        %v5874 = vsel %vm2958, %v5842, %v4786
        %vm5875 = vcmask 195584
        %v5877 = vsel %vm5875, %v5844, %v4868
        %v5879 = vsel %vm5875, %v5846, %v4870
        %v5881 = vsel %vm5875, %v5848, %v4872
        %v5883 = vsel %vm5875, %v5850, %v4874
        %v5885 = vsel %vm5875, %v5852, %v4876
        %v5887 = vsel %vm5875, %v5854, %v4878
        %v5889 = vsel %vm5875, %v5856, %v4880
        %v5891 = vsel %vm5875, %v5858, %v4882
        %v5893 = vsel %vm5875, %v5860, %v4884
        %v5895 = vsel %vm5875, %v5862, %v4886
        %v5897 = vsel %vm5875, %v5864, %v4888
        %v5899 = vsel %vm5875, %v5866, %v4890
        %v5901 = vsel %vm5875, %v5868, %v4892
        %v5903 = vsel %vm5875, %v5870, %v4894
        %v5905 = vsel %vm5875, %v5872, %v4896
        %v5907 = vsel %vm5875, %v5874, %v4898
        %v5909 = vsel %vm2991, %v5877, %v5140
        %v5911 = vsel %vm2991, %v5879, %v5142
        %v5913 = vsel %vm2991, %v5881, %v5144
        %v5915 = vsel %vm2991, %v5883, %v5146
        %v5917 = vsel %vm2991, %v5885, %v5148
        %v5919 = vsel %vm2991, %v5887, %v5150
        %v5921 = vsel %vm2991, %v5889, %v5152
        %v5923 = vsel %vm2991, %v5891, %v5154
        %v5925 = vsel %vm2991, %v5893, %v5156
        %v5927 = vsel %vm2991, %v5895, %v5158
        %v5929 = vsel %vm2991, %v5897, %v5160
        %v5931 = vsel %vm2991, %v5899, %v5162
        %v5933 = vsel %vm2991, %v5901, %v5164
        %v5935 = vsel %vm2991, %v5903, %v5166
        %v5937 = vsel %vm2991, %v5905, %v5168
        %v5939 = vsel %vm2991, %v5907, %v5170
        %vm5940 = vcmask 326656
        %v5942 = vsel %vm5940, %v5909, %v5268
        %v5944 = vsel %vm5940, %v5911, %v5270
        %v5946 = vsel %vm5940, %v5913, %v5272
        %v5948 = vsel %vm5940, %v5915, %v5274
        %v5950 = vsel %vm5940, %v5917, %v5276
        %v5952 = vsel %vm5940, %v5919, %v5278
        %v5954 = vsel %vm5940, %v5921, %v5280
        %v5956 = vsel %vm5940, %v5923, %v5282
        %v5958 = vsel %vm5940, %v5925, %v5284
        %v5960 = vsel %vm5940, %v5927, %v5286
        %v5962 = vsel %vm5940, %v5929, %v5288
        %v5964 = vsel %vm5940, %v5931, %v5290
        %v5966 = vsel %vm5940, %v5933, %v5292
        %v5968 = vsel %vm5940, %v5935, %v5294
        %v5970 = vsel %vm5940, %v5937, %v5296
        %v5972 = vsel %vm5940, %v5939, %v5298
        %v5974 = vsel %vm3024, %v5942, %v5380
        %v5976 = vsel %vm3024, %v5944, %v5382
        %v5978 = vsel %vm3024, %v5946, %v5384
        %v5980 = vsel %vm3024, %v5948, %v5386
        %v5982 = vsel %vm3024, %v5950, %v5388
        %v5984 = vsel %vm3024, %v5952, %v5390
        %v5986 = vsel %vm3024, %v5954, %v5392
        %v5988 = vsel %vm3024, %v5956, %v5394
        %v5990 = vsel %vm3024, %v5958, %v5396
        %v5992 = vsel %vm3024, %v5960, %v5398
        %v5994 = vsel %vm3024, %v5962, %v5400
        %v5996 = vsel %vm3024, %v5964, %v5402
        %v5998 = vsel %vm3024, %v5966, %v5404
        %v6000 = vsel %vm3024, %v5968, %v5406
        %v6002 = vsel %vm3024, %v5970, %v5408
        %v6004 = vsel %vm3024, %v5972, %v5410
        %vm6005 = vcmask 457728
        %v6007 = vsel %vm6005, %v5974, %v5652
        %v6009 = vsel %vm6005, %v5976, %v5654
        %v6011 = vsel %vm6005, %v5978, %v5656
        %v6013 = vsel %vm6005, %v5980, %v5658
        %v6015 = vsel %vm6005, %v5982, %v5660
        %v6017 = vsel %vm6005, %v5984, %v5662
        %v6019 = vsel %vm6005, %v5986, %v5664
        %v6021 = vsel %vm6005, %v5988, %v5666
        %v6023 = vsel %vm6005, %v5990, %v5668
        %v6025 = vsel %vm6005, %v5992, %v5670
        %v6027 = vsel %vm6005, %v5994, %v5672
        %v6029 = vsel %vm6005, %v5996, %v5674
        %v6031 = vsel %vm6005, %v5998, %v5676
        %v6033 = vsel %vm6005, %v6000, %v5678
        %v6035 = vsel %vm6005, %v6002, %v5680
        %v6037 = vsel %vm6005, %v6004, %v5682
        %v6039 = vsel %vm3057, %v6007, %v5780
        %v6041 = vsel %vm3057, %v6009, %v5782
        %v6043 = vsel %vm3057, %v6011, %v5784
        %v6045 = vsel %vm3057, %v6013, %v5786
        %v6047 = vsel %vm3057, %v6015, %v5788
        %v6049 = vsel %vm3057, %v6017, %v5790
        %v6051 = vsel %vm3057, %v6019, %v5792
        %v6053 = vsel %vm3057, %v6021, %v5794
        %v6055 = vsel %vm3057, %v6023, %v5796
        %v6057 = vsel %vm3057, %v6025, %v5798
        %v6059 = vsel %vm3057, %v6027, %v5800
        %v6061 = vsel %vm3057, %v6029, %v5802
        %v6063 = vsel %vm3057, %v6031, %v5804
        %v6065 = vsel %vm3057, %v6033, %v5806
        %v6067 = vsel %vm3057, %v6035, %v5808
        %v6069 = vsel %vm3057, %v6037, %v5810
        %v6070 = vld [vmem:[%s3] sm:$0xf]
        %v6071 = vld [vmem:[%s3 + $0x4] sm:$0xf]
        %v6072 = vld [vmem:[%s3 + $0x8] sm:$0xf]
        %v6073 = vld [vmem:[%s3 + $0xc] sm:$0xf]
        %v6074 = vld [vmem:[%s3 + $0x10] sm:$0xf]
        %v6075 = vld [vmem:[%s3 + $0x14] sm:$0xf]
        %v6076 = vld [vmem:[%s3 + $0x18] sm:$0xf]
        %v6077 = vld [vmem:[%s3 + $0x1c] sm:$0xf]
        %v6078 = vld [vmem:[%s3 + $0x20] sm:$0xf]
        %v6079 = vld [vmem:[%s7] sm:$0x1]
        %v6081 = vlaneseq
        %v6082 = vshrl.u32 %v6081, 7
        %v6083 = vsub.s32 0, %v6082
        %v6084 = vrot.slane %v6079, %v6083
        %v6095 = vunpack.c.l.b16 %v6070
        %v6096 = vunpack.c.l.b16 %v6071
        %v6097 = vunpack.c.l.b16 %v6072
        %v6098 = vunpack.c.l.b16 %v6073
        %v6099 = vunpack.c.l.b16 %v6074
        %v6100 = vunpack.c.l.b16 %v6075
        %v6101 = vunpack.c.l.b16 %v6076
        %v6102 = vunpack.c.l.b16 %v6077
        %v6103 = vunpack.c.l.b16 %v6078
        %v6104 = vpack.c.b16 %v6096, %v6095
        %v6105 = vpack.c.b16 %v6098, %v6097
        %v6106 = vpack.c.b16 %v6100, %v6099
        %v6107 = vpack.c.b16 %v6102, %v6101
        %v6108 = vpack.c.b16 %v6103, %v6103
        %vm6113 = vcmask 588800
        %v6114 = vsel %vm6113, %v6039, 0
        %v6116 = vsel %vm6113, %v6041, 0
        %v6118 = vsel %vm6113, %v6043, 0
        %v6120 = vsel %vm6113, %v6045, 0
        %v6122 = vsel %vm6113, %v6047, 0
        %v6124 = vsel %vm6113, %v6049, 0
        %v6126 = vsel %vm6113, %v6051, 0
        %v6128 = vsel %vm6113, %v6053, 0
        %v6130 = vsel %vm6113, %v6055, 0
        %v6132 = vsel %vm6113, %v6057, 0
        %v6134 = vsel %vm6113, %v6059, 0
        %v6136 = vsel %vm6113, %v6061, 0
        %v6138 = vsel %vm6113, %v6063, 0
        %v6140 = vsel %vm6113, %v6065, 0
        %v6142 = vsel %vm6113, %v6067, 0
        %v6144 = vsel %vm6113, %v6069, 0
        %v6147 = vsel %vm501, %v6108, 0
        %6149 = vmatprep.subr.bf16.mxu0 0
        %6150 = vmatpush1.bf16.msra.mxu0 %v6104
        %6151 = vmatprep.subr.bf16.mxu0 0
        %6152 = vmatpush1.bf16.msra.mxu0 %v6105
        %6153 = vmatprep.subr.bf16.mxu0 0
        %6154 = vmatpush1.bf16.msra.mxu0 %v6106
        %6155 = vmatprep.subr.bf16.mxu0 0
        %6156 = vmatpush1.bf16.msra.mxu0 %v6107
        %6157 = vmatprep.subr.bf16.mxu0 0
        %6158 = vmatpush1.bf16.msra.mxu0 %v6147
        %6159 = vmatprep.subr.bf16.mxu0 0
        %6160 = vmatpush1.bf16.msra.mxu0 0
        %6161 = vmatprep.subr.bf16.mxu0 0
        %6162 = vmatpush1.bf16.msra.mxu0 0
        %6163 = vmatprep.subr.bf16.mxu0 0
        %6164 = vmatpush1.bf16.msra.mxu0 0
        %6165 = vmatprep.subr.bf16.mxu0 0
        %6166 = vmatpush1.bf16.msra.mxu0 0
        %6167 = vmatprep.subr.bf16.mxu0 0
        %6168 = vmatpush1.bf16.msra.mxu0 0
        %6169 = vmatprep.subr.bf16.mxu0 0
        %6170 = vmatpush1.bf16.msra.mxu0 0
        %6171 = vmatprep.subr.bf16.mxu0 0
        %6172 = vmatpush1.bf16.msra.mxu0 0
        %6173 = vmatprep.subr.bf16.mxu0 0
        %6174 = vmatpush1.bf16.msra.mxu0 0
        %6175 = vmatprep.subr.bf16.mxu0 0
        %6176 = vmatpush1.bf16.msra.mxu0 0
        %6177 = vmatprep.subr.bf16.mxu0 0
        %6178 = vmatpush1.bf16.msra.mxu0 0
        %6179 = vmatprep.subr.bf16.mxu0 0
        %6180 = vmatpush1.bf16.msra.mxu0 0
        %6181 = vmatprep.mubr.bf16.mxu0 0
        %6182 = vmatmul.mubr.bf16.gmra.mrb[0].mxu0 %v6114
        %v6183 = vpop.f32.mrb[0].mxu0
        %v6184 = vadd.f32 %v6084, %v6183
        %v6185 = vpop.f32.mrb[0].mxu0
        %v6186 = vpop.f32.mrb[0].mxu0
        %v6187 = vadd.f32 %v6084, %v6186
        %v6188 = vpop.f32.mrb[0].mxu0
        %6189 = vmatprep.mubr.bf16.mxu0 0
        %6190 = vmatmul.mubr.bf16.gmra.mrb[0].mxu0 %v6116
        %v6191 = vpop.f32.mrb[0].mxu0
        %v6192 = vadd.f32 %v6084, %v6191
        %v6193 = vpop.f32.mrb[0].mxu0
        %v6194 = vpop.f32.mrb[0].mxu0
        %v6195 = vadd.f32 %v6084, %v6194
        %v6196 = vpop.f32.mrb[0].mxu0
        %6197 = vmatprep.mubr.bf16.mxu0 0
        %6198 = vmatmul.mubr.bf16.gmra.mrb[0].mxu0 %v6118
        %v6199 = vpop.f32.mrb[0].mxu0
        %v6200 = vadd.f32 %v6084, %v6199
        %v6201 = vpop.f32.mrb[0].mxu0
        %v6202 = vpop.f32.mrb[0].mxu0
        %v6203 = vadd.f32 %v6084, %v6202
        %v6204 = vpop.f32.mrb[0].mxu0
        %6205 = vmatprep.mubr.bf16.mxu0 0
        %6206 = vmatmul.mubr.bf16.gmra.mrb[0].mxu0 %v6120
        %v6207 = vpop.f32.mrb[0].mxu0
        %v6208 = vadd.f32 %v6084, %v6207
        %v6209 = vpop.f32.mrb[0].mxu0
        %v6210 = vpop.f32.mrb[0].mxu0
        %v6211 = vadd.f32 %v6084, %v6210
        %v6212 = vpop.f32.mrb[0].mxu0
        %6213 = vmatprep.mubr.bf16.mxu0 0
        %6214 = vmatmul.mubr.bf16.gmra.mrb[0].mxu0 %v6122
        %v6215 = vpop.f32.mrb[0].mxu0
        %v6216 = vadd.f32 %v6084, %v6215
        %v6217 = vpop.f32.mrb[0].mxu0
        %v6218 = vpop.f32.mrb[0].mxu0
        %v6219 = vadd.f32 %v6084, %v6218
        %v6220 = vpop.f32.mrb[0].mxu0
        %6221 = vmatprep.mubr.bf16.mxu0 0
        %6222 = vmatmul.mubr.bf16.gmra.mrb[0].mxu0 %v6124
        %v6223 = vpop.f32.mrb[0].mxu0
        %v6224 = vadd.f32 %v6084, %v6223
        %v6225 = vpop.f32.mrb[0].mxu0
        %v6226 = vpop.f32.mrb[0].mxu0
        %v6227 = vadd.f32 %v6084, %v6226
        %v6228 = vpop.f32.mrb[0].mxu0
        %6229 = vmatprep.mubr.bf16.mxu0 0
        %6230 = vmatmul.mubr.bf16.gmra.mrb[0].mxu0 %v6126
        %v6231 = vpop.f32.mrb[0].mxu0
        %v6232 = vadd.f32 %v6084, %v6231
        %v6233 = vpop.f32.mrb[0].mxu0
        %v6234 = vpop.f32.mrb[0].mxu0
        %v6235 = vadd.f32 %v6084, %v6234
        %v6236 = vpop.f32.mrb[0].mxu0
        %6237 = vmatprep.mubr.bf16.mxu0 0
        %6238 = vmatmul.mubr.bf16.gmra.mrb[0].mxu0 %v6128
        %v6239 = vpop.f32.mrb[0].mxu0
        %v6240 = vadd.f32 %v6084, %v6239
        %v6241 = vpop.f32.mrb[0].mxu0
        %v6242 = vpop.f32.mrb[0].mxu0
        %v6243 = vadd.f32 %v6084, %v6242
        %v6244 = vpop.f32.mrb[0].mxu0
        %6245 = vmatprep.mubr.bf16.mxu0 0
        %6246 = vmatmul.mubr.bf16.gmra.mrb[0].mxu0 %v6130
        %v6247 = vpop.f32.mrb[0].mxu0
        %v6248 = vadd.f32 %v6084, %v6247
        %v6249 = vpop.f32.mrb[0].mxu0
        %v6250 = vpop.f32.mrb[0].mxu0
        %v6251 = vadd.f32 %v6084, %v6250
        %v6252 = vpop.f32.mrb[0].mxu0
        %6253 = vmatprep.mubr.bf16.mxu0 0
        %6254 = vmatmul.mubr.bf16.gmra.mrb[0].mxu0 %v6132
        %v6255 = vpop.f32.mrb[0].mxu0
        %v6256 = vadd.f32 %v6084, %v6255
        %v6257 = vpop.f32.mrb[0].mxu0
        %v6258 = vpop.f32.mrb[0].mxu0
        %v6259 = vadd.f32 %v6084, %v6258
        %v6260 = vpop.f32.mrb[0].mxu0
        %6261 = vmatprep.mubr.bf16.mxu0 0
        %6262 = vmatmul.mubr.bf16.gmra.mrb[0].mxu0 %v6134
        %v6263 = vpop.f32.mrb[0].mxu0
        %v6264 = vadd.f32 %v6084, %v6263
        %v6265 = vpop.f32.mrb[0].mxu0
        %v6266 = vpop.f32.mrb[0].mxu0
        %v6267 = vadd.f32 %v6084, %v6266
        %v6268 = vpop.f32.mrb[0].mxu0
        %6269 = vmatprep.mubr.bf16.mxu0 0
        %6270 = vmatmul.mubr.bf16.gmra.mrb[0].mxu0 %v6136
        %v6271 = vpop.f32.mrb[0].mxu0
        %v6272 = vadd.f32 %v6084, %v6271
        %v6273 = vpop.f32.mrb[0].mxu0
        %v6274 = vpop.f32.mrb[0].mxu0
        %v6275 = vadd.f32 %v6084, %v6274
        %v6276 = vpop.f32.mrb[0].mxu0
        %6277 = vmatprep.mubr.bf16.mxu0 0
        %6278 = vmatmul.mubr.bf16.gmra.mrb[0].mxu0 %v6138
        %v6279 = vpop.f32.mrb[0].mxu0
        %v6280 = vadd.f32 %v6084, %v6279
        %v6281 = vpop.f32.mrb[0].mxu0
        %v6282 = vpop.f32.mrb[0].mxu0
        %v6283 = vadd.f32 %v6084, %v6282
        %v6284 = vpop.f32.mrb[0].mxu0
        %6285 = vmatprep.mubr.bf16.mxu0 0
        %6286 = vmatmul.mubr.bf16.gmra.mrb[0].mxu0 %v6140
        %v6287 = vpop.f32.mrb[0].mxu0
        %v6288 = vadd.f32 %v6084, %v6287
        %v6289 = vpop.f32.mrb[0].mxu0
        %v6290 = vpop.f32.mrb[0].mxu0
        %v6291 = vadd.f32 %v6084, %v6290
        %v6292 = vpop.f32.mrb[0].mxu0
        %6293 = vmatprep.mubr.bf16.mxu0 0
        %6294 = vmatmul.mubr.bf16.gmra.mrb[0].mxu0 %v6142
        %v6295 = vpop.f32.mrb[0].mxu0
        %v6296 = vadd.f32 %v6084, %v6295
        %v6297 = vpop.f32.mrb[0].mxu0
        %v6298 = vpop.f32.mrb[0].mxu0
        %v6299 = vadd.f32 %v6084, %v6298
        %v6300 = vpop.f32.mrb[0].mxu0
        %6301 = vmatprep.mubr.bf16.mxu0 0
        %6302 = vmatmul.mubr.bf16.gmra.mrb[0].mxu0 %v6144
        %v6303 = vpop.f32.mrb[0].mxu0
        %v6304 = vadd.f32 %v6084, %v6303
        %v6305 = vpop.f32.mrb[0].mxu0
        %v6306 = vpop.f32.mrb[0].mxu0
        %v6307 = vadd.f32 %v6084, %v6306
        %v6308 = vpop.f32.mrb[0].mxu0
        %6309 = vdwg.mxu0
        %v6310 = vmax.f32 %v6184, 0.0
        %v6311 = vmax.f32 %v6187, 0.0
        %v6312 = vmax.f32 %v6192, 0.0
        %v6313 = vmax.f32 %v6195, 0.0
        %v6314 = vmax.f32 %v6200, 0.0
        %v6315 = vmax.f32 %v6203, 0.0
        %v6316 = vmax.f32 %v6208, 0.0
        %v6317 = vmax.f32 %v6211, 0.0
        %v6318 = vmax.f32 %v6216, 0.0
        %v6319 = vmax.f32 %v6219, 0.0
        %v6320 = vmax.f32 %v6224, 0.0
        %v6321 = vmax.f32 %v6227, 0.0
        %v6322 = vmax.f32 %v6232, 0.0
        %v6323 = vmax.f32 %v6235, 0.0
        %v6324 = vmax.f32 %v6240, 0.0
        %v6325 = vmax.f32 %v6243, 0.0
        %v6326 = vmax.f32 %v6248, 0.0
        %v6327 = vmax.f32 %v6251, 0.0
        %v6328 = vmax.f32 %v6256, 0.0
        %v6329 = vmax.f32 %v6259, 0.0
        %v6330 = vmax.f32 %v6264, 0.0
        %v6331 = vmax.f32 %v6267, 0.0
        %v6332 = vmax.f32 %v6272, 0.0
        %v6333 = vmax.f32 %v6275, 0.0
        %v6334 = vmax.f32 %v6280, 0.0
        %v6335 = vmax.f32 %v6283, 0.0
        %v6336 = vmax.f32 %v6288, 0.0
        %v6337 = vmax.f32 %v6291, 0.0
        %v6338 = vmax.f32 %v6296, 0.0
        %v6339 = vmax.f32 %v6299, 0.0
        %v6340 = vmax.f32 %v6304, 0.0
        %v6341 = vmax.f32 %v6307, 0.0
        %vm6342 = vcmask 27648
        %6343 = vst.msk [vmem:[#allocation4] sm:$0xf] %vm6342, 0
        %6344 = vst.msk [vmem:[#allocation4 + $0x4] sm:$0xf] %vm6342, 0
        %vm6345 = vcmask 24576
        %6346 = vst.msk [vmem:[#allocation4 + $0x8] sm:$0x1] %vm6345, 0
        %6347 = vst.msk [vmem:[#allocation4 + $0xc] sm:$0xf] %vm6342, 0
        %6348 = vst.msk [vmem:[#allocation4 + $0x10] sm:$0xf] %vm6342, 0
        %6349 = vst.msk [vmem:[#allocation4 + $0x14] sm:$0x1] %vm6345, 0
        %6350 = vst.msk [vmem:[#allocation4 + $0x18] sm:$0xf] %vm6342, 0
        %6351 = vst.msk [vmem:[#allocation4 + $0x1c] sm:$0xf] %vm6342, 0
        %6352 = vst.msk [vmem:[#allocation4 + $0x20] sm:$0x1] %vm6345, 0
        %6353 = vst.msk [vmem:[#allocation4 + $0x24] sm:$0xf] %vm6342, 0
        %6354 = vst.msk [vmem:[#allocation4 + $0x28] sm:$0xf] %vm6342, 0
        %6355 = vst.msk [vmem:[#allocation4 + $0x2c] sm:$0x1] %vm6345, 0
        %6356 = vst.msk [vmem:[#allocation4 + $0x30] sm:$0xf] %vm6342, 0
        %6357 = vst.msk [vmem:[#allocation4 + $0x34] sm:$0xf] %vm6342, 0
        %6358 = vst.msk [vmem:[#allocation4 + $0x38] sm:$0x1] %vm6345, 0
        %6359 = vst.msk [vmem:[#allocation4 + $0x3c] sm:$0xf] %vm6342, 0
        %6360 = vst.msk [vmem:[#allocation4 + $0x40] sm:$0xf] %vm6342, 0
        %6361 = vst.msk [vmem:[#allocation4 + $0x44] sm:$0x1] %vm6345, 0
        %6362 = vst.msk [vmem:[#allocation4 + $0x48] sm:$0xf] %vm6342, 0
        %6363 = vst.msk [vmem:[#allocation4 + $0x4c] sm:$0xf] %vm6342, 0
        %6364 = vst.msk [vmem:[#allocation4 + $0x50] sm:$0x1] %vm6345, 0
        %6365 = vst.msk [vmem:[#allocation4 + $0x54] sm:$0xf] %vm6342, 0
        %6366 = vst.msk [vmem:[#allocation4 + $0x58] sm:$0xf] %vm6342, 0
        %6367 = vst.msk [vmem:[#allocation4 + $0x5c] sm:$0x1] %vm6345, 0
        %6368 = vst.msk [vmem:[#allocation4 + $0x60] sm:$0xf] %vm6342, 0
        %6369 = vst.msk [vmem:[#allocation4 + $0x64] sm:$0xf] %vm6342, 0
        %6370 = vst.msk [vmem:[#allocation4 + $0x68] sm:$0x1] %vm6345, 0
        %6371 = vst.msk [vmem:[#allocation4 + $0x6c] sm:$0xf] %vm6342, 0
        %6372 = vst.msk [vmem:[#allocation4 + $0x70] sm:$0xf] %vm6342, 0
        %6373 = vst.msk [vmem:[#allocation4 + $0x74] sm:$0x1] %vm6345, 0
        %6374 = vst.msk [vmem:[#allocation4 + $0x78] sm:$0xf] %vm6342, 0
        %6375 = vst.msk [vmem:[#allocation4 + $0x7c] sm:$0xf] %vm6342, 0
        %6376 = vst.msk [vmem:[#allocation4 + $0x80] sm:$0x1] %vm6345, 0
        %6377 = vst.msk [vmem:[#allocation4 + $0x84] sm:$0xf] %vm6342, 0
        %6378 = vst.msk [vmem:[#allocation4 + $0x88] sm:$0xf] %vm6342, 0
        %6379 = vst.msk [vmem:[#allocation4 + $0x8c] sm:$0x1] %vm6345, 0
        %6380 = vst.msk [vmem:[#allocation4 + $0x90] sm:$0xf] %vm6342, 0
        %6381 = vst.msk [vmem:[#allocation4 + $0x94] sm:$0xf] %vm6342, 0
        %6382 = vst.msk [vmem:[#allocation4 + $0x98] sm:$0x1] %vm6345, 0
        %6383 = vst.msk [vmem:[#allocation4 + $0x9c] sm:$0xf] %vm6342, 0
        %6384 = vst.msk [vmem:[#allocation4 + $0xa0] sm:$0xf] %vm6342, 0
        %6385 = vst.msk [vmem:[#allocation4 + $0xa4] sm:$0x1] %vm6345, 0
        %6386 = vst.msk [vmem:[#allocation4 + $0xa8] sm:$0xf] %vm6342, 0
        %6387 = vst.msk [vmem:[#allocation4 + $0xac] sm:$0xf] %vm6342, 0
        %6388 = vst.msk [vmem:[#allocation4 + $0xb0] sm:$0x1] %vm6345, 0
        %6389 = vst.msk [vmem:[#allocation4 + $0xb4] sm:$0xf] %vm6342, 0
        %6390 = vst.msk [vmem:[#allocation4 + $0xb8] sm:$0xf] %vm6342, 0
        %6391 = vst.msk [vmem:[#allocation4 + $0xbc] sm:$0x1] %vm6345, 0
        %6392 = vst.msk [vmem:[#allocation4 + $0xc0] sm:$0xf] %vm6342, 0
        %6393 = vst.msk [vmem:[#allocation4 + $0xc4] sm:$0xf] %vm6342, 0
        %6394 = vst.msk [vmem:[#allocation4 + $0xc8] sm:$0x1] %vm6345, 0
        %6395 = vst.msk [vmem:[#allocation4 + $0xcc] sm:$0xf] %vm6342, 0
        %6396 = vst.msk [vmem:[#allocation4 + $0xd0] sm:$0xf] %vm6342, 0
        %6397 = vst.msk [vmem:[#allocation4 + $0xd4] sm:$0x1] %vm6345, 0
        %v6398 = vpack.c.bf16 %v6311, %v6310
        %v6399 = vpack.c.bf16 %v6313, %v6312
        %v6400 = vpack.c.bf16 %v6315, %v6314
        %v6401 = vpack.c.bf16 %v6317, %v6316
        %v6402 = vpack.c.bf16 %v6319, %v6318
        %v6403 = vpack.c.bf16 %v6321, %v6320
        %v6404 = vpack.c.bf16 %v6323, %v6322
        %v6405 = vpack.c.bf16 %v6325, %v6324
        %v6406 = vpack.c.bf16 %v6327, %v6326
        %v6407 = vpack.c.bf16 %v6329, %v6328
        %v6408 = vpack.c.bf16 %v6331, %v6330
        %v6409 = vpack.c.bf16 %v6333, %v6332
        %v6410 = vpack.c.bf16 %v6335, %v6334
        %v6411 = vpack.c.bf16 %v6337, %v6336
        %v6412 = vpack.c.bf16 %v6339, %v6338
        %v6413 = vpack.c.bf16 %v6341, %v6340
        %v6430 = vunpack.c.l.b16 %v6398
        %v6431 = vunpack.c.h.b16 %v6398
        %v6432 = vunpack.c.l.b16 %v6399
        %v6433 = vunpack.c.h.b16 %v6399
        %v6434 = vunpack.c.l.b16 %v6400
        %v6435 = vunpack.c.h.b16 %v6400
        %v6436 = vunpack.c.l.b16 %v6401
        %v6437 = vunpack.c.h.b16 %v6401
        %v6438 = vunpack.c.l.b16 %v6402
        %v6439 = vunpack.c.h.b16 %v6402
        %v6440 = vunpack.c.l.b16 %v6403
        %v6441 = vunpack.c.h.b16 %v6403
        %v6442 = vunpack.c.l.b16 %v6404
        %v6443 = vunpack.c.h.b16 %v6404
        %v6444 = vunpack.c.l.b16 %v6405
        %v6445 = vunpack.c.h.b16 %v6405
        %v6446 = vunpack.c.l.b16 %v6406
        %v6447 = vunpack.c.h.b16 %v6406
        %v6448 = vunpack.c.l.b16 %v6407
        %v6449 = vunpack.c.h.b16 %v6407
        %v6450 = vunpack.c.l.b16 %v6408
        %v6451 = vunpack.c.h.b16 %v6408
        %v6452 = vunpack.c.l.b16 %v6409
        %v6453 = vunpack.c.h.b16 %v6409
        %v6454 = vunpack.c.l.b16 %v6410
        %v6455 = vunpack.c.h.b16 %v6410
        %v6456 = vunpack.c.l.b16 %v6411
        %v6457 = vunpack.c.h.b16 %v6411
        %v6458 = vunpack.c.l.b16 %v6412
        %v6459 = vunpack.c.h.b16 %v6412
        %v6460 = vunpack.c.l.b16 %v6413
        %v6461 = vunpack.c.h.b16 %v6413
        %v6462 = vpack.c.b16 %v6430, %v6430
        %v6463 = vpack.c.b16 %v6431, %v6431
        %v6464 = vpack.c.b16 %v6432, %v6432
        %v6465 = vpack.c.b16 %v6433, %v6433
        %v6466 = vpack.c.b16 %v6434, %v6434
        %v6467 = vpack.c.b16 %v6435, %v6435
        %v6468 = vpack.c.b16 %v6436, %v6436
        %v6469 = vpack.c.b16 %v6437, %v6437
        %v6470 = vpack.c.b16 %v6438, %v6438
        %v6471 = vpack.c.b16 %v6439, %v6439
        %v6472 = vpack.c.b16 %v6440, %v6440
        %v6473 = vpack.c.b16 %v6441, %v6441
        %v6474 = vpack.c.b16 %v6442, %v6442
        %v6475 = vpack.c.b16 %v6443, %v6443
        %v6476 = vpack.c.b16 %v6444, %v6444
        %v6477 = vpack.c.b16 %v6445, %v6445
        %v6478 = vpack.c.b16 %v6446, %v6446
        %v6479 = vpack.c.b16 %v6447, %v6447
        %v6480 = vpack.c.b16 %v6448, %v6448
        %v6481 = vpack.c.b16 %v6449, %v6449
        %v6482 = vpack.c.b16 %v6450, %v6450
        %v6483 = vpack.c.b16 %v6451, %v6451
        %v6484 = vpack.c.b16 %v6452, %v6452
        %v6485 = vpack.c.b16 %v6453, %v6453
        %v6486 = vpack.c.b16 %v6454, %v6454
        %v6487 = vpack.c.b16 %v6455, %v6455
        %v6488 = vpack.c.b16 %v6456, %v6456
        %v6489 = vpack.c.b16 %v6457, %v6457
        %v6490 = vpack.c.b16 %v6458, %v6458
        %v6491 = vpack.c.b16 %v6459, %v6459
        %v6492 = vpack.c.b16 %v6460, %v6460
        %v6493 = vpack.c.b16 %v6461, %v6461
        %v6495 = vshrl.u32 %v6462, 16
        %v6497 = vrot.slane %v6495, 7
        %v6498 = vshll.u32 %v6462, 16
        %v6500 = vor.u32 %v6497, %v6498
        %v6501 = vrot.slane %v6497, 4
        %v6503 = vshrl.u32 %v6463, 16
        %v6505 = vrot.slane %v6503, 7
        %v6506 = vshll.u32 %v6463, 16
        %v6508 = vor.u32 %v6505, %v6506
        %v6509 = vsel %vm852, %v6501, %v6508
        %v6510 = vrot.slane %v6505, 4
        %v6512 = vshrl.u32 %v6464, 16
        %v6514 = vrot.slane %v6512, 7
        %v6515 = vshll.u32 %v6464, 16
        %v6517 = vor.u32 %v6514, %v6515
        %v6518 = vrot.slane %v6514, 4
        %v6520 = vshrl.u32 %v6465, 16
        %v6522 = vrot.slane %v6520, 7
        %v6523 = vshll.u32 %v6465, 16
        %v6525 = vor.u32 %v6522, %v6523
        %v6526 = vsel %vm852, %v6518, %v6525
        %v6527 = vrot.slane %v6522, 4
        %v6529 = vshrl.u32 %v6466, 16
        %v6531 = vrot.slane %v6529, 7
        %v6532 = vshll.u32 %v6466, 16
        %v6534 = vor.u32 %v6531, %v6532
        %v6535 = vrot.slane %v6531, 4
        %v6537 = vshrl.u32 %v6467, 16
        %v6539 = vrot.slane %v6537, 7
        %v6540 = vshll.u32 %v6467, 16
        %v6542 = vor.u32 %v6539, %v6540
        %v6543 = vsel %vm852, %v6535, %v6542
        %v6544 = vrot.slane %v6539, 4
        %v6546 = vshrl.u32 %v6468, 16
        %v6548 = vrot.slane %v6546, 7
        %v6549 = vshll.u32 %v6468, 16
        %v6551 = vor.u32 %v6548, %v6549
        %v6552 = vrot.slane %v6548, 4
        %v6554 = vshrl.u32 %v6469, 16
        %v6556 = vrot.slane %v6554, 7
        %v6557 = vshll.u32 %v6469, 16
        %v6559 = vor.u32 %v6556, %v6557
        %v6560 = vsel %vm852, %v6552, %v6559
        %v6561 = vrot.slane %v6556, 4
        %v6563 = vshrl.u32 %v6470, 16
        %v6565 = vrot.slane %v6563, 7
        %v6566 = vshll.u32 %v6470, 16
        %v6568 = vor.u32 %v6565, %v6566
        %v6569 = vrot.slane %v6565, 4
        %v6571 = vshrl.u32 %v6471, 16
        %v6573 = vrot.slane %v6571, 7
        %v6574 = vshll.u32 %v6471, 16
        %v6576 = vor.u32 %v6573, %v6574
        %v6577 = vsel %vm852, %v6569, %v6576
        %v6578 = vrot.slane %v6573, 4
        %v6580 = vshrl.u32 %v6472, 16
        %v6582 = vrot.slane %v6580, 7
        %v6583 = vshll.u32 %v6472, 16
        %v6585 = vor.u32 %v6582, %v6583
        %v6586 = vrot.slane %v6582, 4
        %v6588 = vshrl.u32 %v6473, 16
        %v6590 = vrot.slane %v6588, 7
        %v6591 = vshll.u32 %v6473, 16
        %v6593 = vor.u32 %v6590, %v6591
        %v6594 = vsel %vm852, %v6586, %v6593
        %v6595 = vrot.slane %v6590, 4
        %v6597 = vshrl.u32 %v6474, 16
        %v6599 = vrot.slane %v6597, 7
        %v6600 = vshll.u32 %v6474, 16
        %v6602 = vor.u32 %v6599, %v6600
        %v6603 = vrot.slane %v6599, 4
        %v6605 = vshrl.u32 %v6475, 16
        %v6607 = vrot.slane %v6605, 7
        %v6608 = vshll.u32 %v6475, 16
        %v6610 = vor.u32 %v6607, %v6608
        %v6611 = vsel %vm852, %v6603, %v6610
        %v6612 = vrot.slane %v6607, 4
        %v6614 = vshrl.u32 %v6476, 16
        %v6616 = vrot.slane %v6614, 7
        %v6617 = vshll.u32 %v6476, 16
        %v6619 = vor.u32 %v6616, %v6617
        %v6620 = vrot.slane %v6616, 4
        %v6622 = vshrl.u32 %v6477, 16
        %v6624 = vrot.slane %v6622, 7
        %v6625 = vshll.u32 %v6477, 16
        %v6627 = vor.u32 %v6624, %v6625
        %v6628 = vsel %vm852, %v6620, %v6627
        %v6629 = vrot.slane %v6624, 4
        %v6631 = vshrl.u32 %v6478, 16
        %v6633 = vrot.slane %v6631, 7
        %v6634 = vshll.u32 %v6478, 16
        %v6636 = vor.u32 %v6633, %v6634
        %v6637 = vrot.slane %v6633, 4
        %v6639 = vshrl.u32 %v6479, 16
        %v6641 = vrot.slane %v6639, 7
        %v6642 = vshll.u32 %v6479, 16
        %v6644 = vor.u32 %v6641, %v6642
        %v6645 = vsel %vm852, %v6637, %v6644
        %v6646 = vrot.slane %v6641, 4
        %v6648 = vshrl.u32 %v6480, 16
        %v6650 = vrot.slane %v6648, 7
        %v6651 = vshll.u32 %v6480, 16
        %v6653 = vor.u32 %v6650, %v6651
        %v6654 = vrot.slane %v6650, 4
        %v6656 = vshrl.u32 %v6481, 16
        %v6658 = vrot.slane %v6656, 7
        %v6659 = vshll.u32 %v6481, 16
        %v6661 = vor.u32 %v6658, %v6659
        %v6662 = vsel %vm852, %v6654, %v6661
        %v6663 = vrot.slane %v6658, 4
        %v6665 = vshrl.u32 %v6482, 16
        %v6667 = vrot.slane %v6665, 7
        %v6668 = vshll.u32 %v6482, 16
        %v6670 = vor.u32 %v6667, %v6668
        %v6671 = vrot.slane %v6667, 4
        %v6673 = vshrl.u32 %v6483, 16
        %v6675 = vrot.slane %v6673, 7
        %v6676 = vshll.u32 %v6483, 16
        %v6678 = vor.u32 %v6675, %v6676
        %v6679 = vsel %vm852, %v6671, %v6678
        %v6680 = vrot.slane %v6675, 4
        %v6682 = vshrl.u32 %v6484, 16
        %v6684 = vrot.slane %v6682, 7
        %v6685 = vshll.u32 %v6484, 16
        %v6687 = vor.u32 %v6684, %v6685
        %v6688 = vrot.slane %v6684, 4
        %v6690 = vshrl.u32 %v6485, 16
        %v6692 = vrot.slane %v6690, 7
        %v6693 = vshll.u32 %v6485, 16
        %v6695 = vor.u32 %v6692, %v6693
        %v6696 = vsel %vm852, %v6688, %v6695
        %v6697 = vrot.slane %v6692, 4
        %v6699 = vshrl.u32 %v6486, 16
        %v6701 = vrot.slane %v6699, 7
        %v6702 = vshll.u32 %v6486, 16
        %v6704 = vor.u32 %v6701, %v6702
        %v6705 = vrot.slane %v6701, 4
        %v6707 = vshrl.u32 %v6487, 16
        %v6709 = vrot.slane %v6707, 7
        %v6710 = vshll.u32 %v6487, 16
        %v6712 = vor.u32 %v6709, %v6710
        %v6713 = vsel %vm852, %v6705, %v6712
        %v6714 = vrot.slane %v6709, 4
        %v6716 = vshrl.u32 %v6488, 16
        %v6718 = vrot.slane %v6716, 7
        %v6719 = vshll.u32 %v6488, 16
        %v6721 = vor.u32 %v6718, %v6719
        %v6722 = vrot.slane %v6718, 4
        %v6724 = vshrl.u32 %v6489, 16
        %v6726 = vrot.slane %v6724, 7
        %v6727 = vshll.u32 %v6489, 16
        %v6729 = vor.u32 %v6726, %v6727
        %v6730 = vsel %vm852, %v6722, %v6729
        %v6731 = vrot.slane %v6726, 4
        %v6733 = vshrl.u32 %v6490, 16
        %v6735 = vrot.slane %v6733, 7
        %v6736 = vshll.u32 %v6490, 16
        %v6738 = vor.u32 %v6735, %v6736
        %v6739 = vrot.slane %v6735, 4
        %v6741 = vshrl.u32 %v6491, 16
        %v6743 = vrot.slane %v6741, 7
        %v6744 = vshll.u32 %v6491, 16
        %v6746 = vor.u32 %v6743, %v6744
        %v6747 = vsel %vm852, %v6739, %v6746
        %v6748 = vrot.slane %v6743, 4
        %v6750 = vshrl.u32 %v6492, 16
        %v6752 = vrot.slane %v6750, 7
        %v6753 = vshll.u32 %v6492, 16
        %v6755 = vor.u32 %v6752, %v6753
        %v6756 = vrot.slane %v6752, 4
        %v6758 = vshrl.u32 %v6493, 16
        %v6760 = vrot.slane %v6758, 7
        %v6761 = vshll.u32 %v6493, 16
        %v6763 = vor.u32 %v6760, %v6761
        %v6764 = vsel %vm852, %v6756, %v6763
        %v6765 = vrot.slane %v6760, 4
        %s6814 = scalar_lea.vmem [#allocation4], 12
        %vm6815 = vcmask 27648
        %vm6816 = vmand %vm6815, %vm1175
        %v6817 = vld [vmem:[%s6814] sm:$0xf]
        %v6818 = vsel %vm6816, %v6500, %v6817
        %6819 = vst [vmem:[%s6814] sm:$0xf] %v6818
        %6820 = vst.msk [vmem:[%s6814 + $0x4] sm:$0xf] %vm6342, %v6509
        %vm6821 = vcmask 24576
        %vm6822 = vmand %vm6821, %vm850
        %v6823 = vld [vmem:[%s6814 + $0x8] sm:$0x1]
        %v6824 = vsel %vm6822, %v6510, %v6823
        %6825 = vst [vmem:[%s6814 + $0x8] sm:$0x1] %v6824
        %v6826 = vld [vmem:[%s6814 + $0xc] sm:$0xf]
        %v6827 = vsel %vm6816, %v6517, %v6826
        %6828 = vst [vmem:[%s6814 + $0xc] sm:$0xf] %v6827
        %6829 = vst.msk [vmem:[%s6814 + $0x10] sm:$0xf] %vm6342, %v6526
        %v6830 = vld [vmem:[%s6814 + $0x14] sm:$0x1]
        %v6831 = vsel %vm6822, %v6527, %v6830
        %6832 = vst [vmem:[%s6814 + $0x14] sm:$0x1] %v6831
        %v6833 = vld [vmem:[%s6814 + $0x18] sm:$0xf]
        %v6834 = vsel %vm6816, %v6534, %v6833
        %6835 = vst [vmem:[%s6814 + $0x18] sm:$0xf] %v6834
        %6836 = vst.msk [vmem:[%s6814 + $0x1c] sm:$0xf] %vm6342, %v6543
        %v6837 = vld [vmem:[%s6814 + $0x20] sm:$0x1]
        %v6838 = vsel %vm6822, %v6544, %v6837
        %6839 = vst [vmem:[%s6814 + $0x20] sm:$0x1] %v6838
        %v6840 = vld [vmem:[%s6814 + $0x24] sm:$0xf]
        %v6841 = vsel %vm6816, %v6551, %v6840
        %6842 = vst [vmem:[%s6814 + $0x24] sm:$0xf] %v6841
        %6843 = vst.msk [vmem:[%s6814 + $0x28] sm:$0xf] %vm6342, %v6560
        %v6844 = vld [vmem:[%s6814 + $0x2c] sm:$0x1]
        %v6845 = vsel %vm6822, %v6561, %v6844
        %6846 = vst [vmem:[%s6814 + $0x2c] sm:$0x1] %v6845
        %v6847 = vld [vmem:[%s6814 + $0x30] sm:$0xf]
        %v6848 = vsel %vm6816, %v6568, %v6847
        %6849 = vst [vmem:[%s6814 + $0x30] sm:$0xf] %v6848
        %6850 = vst.msk [vmem:[%s6814 + $0x34] sm:$0xf] %vm6342, %v6577
        %v6851 = vld [vmem:[%s6814 + $0x38] sm:$0x1]
        %v6852 = vsel %vm6822, %v6578, %v6851
        %6853 = vst [vmem:[%s6814 + $0x38] sm:$0x1] %v6852
        %v6854 = vld [vmem:[%s6814 + $0x3c] sm:$0xf]
        %v6855 = vsel %vm6816, %v6585, %v6854
        %6856 = vst [vmem:[%s6814 + $0x3c] sm:$0xf] %v6855
        %6857 = vst.msk [vmem:[%s6814 + $0x40] sm:$0xf] %vm6342, %v6594
        %v6858 = vld [vmem:[%s6814 + $0x44] sm:$0x1]
        %v6859 = vsel %vm6822, %v6595, %v6858
        %6860 = vst [vmem:[%s6814 + $0x44] sm:$0x1] %v6859
        %v6861 = vld [vmem:[%s6814 + $0x48] sm:$0xf]
        %v6862 = vsel %vm6816, %v6602, %v6861
        %6863 = vst [vmem:[%s6814 + $0x48] sm:$0xf] %v6862
        %6864 = vst.msk [vmem:[%s6814 + $0x4c] sm:$0xf] %vm6342, %v6611
        %v6865 = vld [vmem:[%s6814 + $0x50] sm:$0x1]
        %v6866 = vsel %vm6822, %v6612, %v6865
        %6867 = vst [vmem:[%s6814 + $0x50] sm:$0x1] %v6866
        %v6868 = vld [vmem:[%s6814 + $0x54] sm:$0xf]
        %v6869 = vsel %vm6816, %v6619, %v6868
        %6870 = vst [vmem:[%s6814 + $0x54] sm:$0xf] %v6869
        %6871 = vst.msk [vmem:[%s6814 + $0x58] sm:$0xf] %vm6342, %v6628
        %v6872 = vld [vmem:[%s6814 + $0x5c] sm:$0x1]
        %v6873 = vsel %vm6822, %v6629, %v6872
        %6874 = vst [vmem:[%s6814 + $0x5c] sm:$0x1] %v6873
        %v6875 = vld [vmem:[%s6814 + $0x60] sm:$0xf]
        %v6876 = vsel %vm6816, %v6636, %v6875
        %6877 = vst [vmem:[%s6814 + $0x60] sm:$0xf] %v6876
        %6878 = vst.msk [vmem:[%s6814 + $0x64] sm:$0xf] %vm6342, %v6645
        %v6879 = vld [vmem:[%s6814 + $0x68] sm:$0x1]
        %v6880 = vsel %vm6822, %v6646, %v6879
        %6881 = vst [vmem:[%s6814 + $0x68] sm:$0x1] %v6880
        %v6882 = vld [vmem:[%s6814 + $0x6c] sm:$0xf]
        %v6883 = vsel %vm6816, %v6653, %v6882
        %6884 = vst [vmem:[%s6814 + $0x6c] sm:$0xf] %v6883
        %6885 = vst.msk [vmem:[%s6814 + $0x70] sm:$0xf] %vm6342, %v6662
        %v6886 = vld [vmem:[%s6814 + $0x74] sm:$0x1]
        %v6887 = vsel %vm6822, %v6663, %v6886
        %6888 = vst [vmem:[%s6814 + $0x74] sm:$0x1] %v6887
        %v6889 = vld [vmem:[%s6814 + $0x78] sm:$0xf]
        %v6890 = vsel %vm6816, %v6670, %v6889
        %6891 = vst [vmem:[%s6814 + $0x78] sm:$0xf] %v6890
        %6892 = vst.msk [vmem:[%s6814 + $0x7c] sm:$0xf] %vm6342, %v6679
        %v6893 = vld [vmem:[%s6814 + $0x80] sm:$0x1]
        %v6894 = vsel %vm6822, %v6680, %v6893
        %6895 = vst [vmem:[%s6814 + $0x80] sm:$0x1] %v6894
        %v6896 = vld [vmem:[%s6814 + $0x84] sm:$0xf]
        %v6897 = vsel %vm6816, %v6687, %v6896
        %6898 = vst [vmem:[%s6814 + $0x84] sm:$0xf] %v6897
        %6899 = vst.msk [vmem:[%s6814 + $0x88] sm:$0xf] %vm6342, %v6696
        %v6900 = vld [vmem:[%s6814 + $0x8c] sm:$0x1]
        %v6901 = vsel %vm6822, %v6697, %v6900
        %6902 = vst [vmem:[%s6814 + $0x8c] sm:$0x1] %v6901
        %v6903 = vld [vmem:[%s6814 + $0x90] sm:$0xf]
        %v6904 = vsel %vm6816, %v6704, %v6903
        %6905 = vst [vmem:[%s6814 + $0x90] sm:$0xf] %v6904
        %6906 = vst.msk [vmem:[%s6814 + $0x94] sm:$0xf] %vm6342, %v6713
        %v6907 = vld [vmem:[%s6814 + $0x98] sm:$0x1]
        %v6908 = vsel %vm6822, %v6714, %v6907
        %6909 = vst [vmem:[%s6814 + $0x98] sm:$0x1] %v6908
        %v6910 = vld [vmem:[%s6814 + $0x9c] sm:$0xf]
        %v6911 = vsel %vm6816, %v6721, %v6910
        %6912 = vst [vmem:[%s6814 + $0x9c] sm:$0xf] %v6911
        %6913 = vst.msk [vmem:[%s6814 + $0xa0] sm:$0xf] %vm6342, %v6730
        %v6914 = vld [vmem:[%s6814 + $0xa4] sm:$0x1]
        %v6915 = vsel %vm6822, %v6731, %v6914
        %6916 = vst [vmem:[%s6814 + $0xa4] sm:$0x1] %v6915
        %v6917 = vld [vmem:[%s6814 + $0xa8] sm:$0xf]
        %v6918 = vsel %vm6816, %v6738, %v6917
        %6919 = vst [vmem:[%s6814 + $0xa8] sm:$0xf] %v6918
        %6920 = vst.msk [vmem:[%s6814 + $0xac] sm:$0xf] %vm6342, %v6747
        %v6921 = vld [vmem:[%s6814 + $0xb0] sm:$0x1]
        %v6922 = vsel %vm6822, %v6748, %v6921
        %6923 = vst [vmem:[%s6814 + $0xb0] sm:$0x1] %v6922
        %v6924 = vld [vmem:[%s6814 + $0xb4] sm:$0xf]
        %v6925 = vsel %vm6816, %v6755, %v6924
        %6926 = vst [vmem:[%s6814 + $0xb4] sm:$0xf] %v6925
        %6927 = vst.msk [vmem:[%s6814 + $0xb8] sm:$0xf] %vm6342, %v6764
        %v6928 = vld [vmem:[%s6814 + $0xbc] sm:$0x1]
        %v6929 = vsel %vm6822, %v6765, %v6928
        %6930 = vst [vmem:[%s6814 + $0xbc] sm:$0x1] %v6929
        %v6931 = vld [vmem:[#allocation4] sm:$0xf]
        %v6932 = vld [vmem:[#allocation4 + $0x4] sm:$0xf]
        %v6933 = vld [vmem:[#allocation4 + $0xc] sm:$0xf]
        %v6934 = vld [vmem:[#allocation4 + $0x10] sm:$0xf]
        %v6935 = vld [vmem:[#allocation4 + $0x18] sm:$0xf]
        %v6936 = vld [vmem:[#allocation4 + $0x1c] sm:$0xf]
        %v6937 = vld [vmem:[#allocation4 + $0x24] sm:$0xf]
        %v6938 = vld [vmem:[#allocation4 + $0x28] sm:$0xf]
        %v6939 = vld [vmem:[#allocation4 + $0x30] sm:$0xf]
        %v6940 = vld [vmem:[#allocation4 + $0x34] sm:$0xf]
        %v6941 = vld [vmem:[#allocation4 + $0x3c] sm:$0xf]
        %v6942 = vld [vmem:[#allocation4 + $0x40] sm:$0xf]
        %v6943 = vld [vmem:[#allocation4 + $0x48] sm:$0xf]
        %v6944 = vld [vmem:[#allocation4 + $0x4c] sm:$0xf]
        %v6945 = vld [vmem:[#allocation4 + $0x54] sm:$0xf]
        %v6946 = vld [vmem:[#allocation4 + $0x58] sm:$0xf]
        %v6947 = vld [vmem:[#allocation4 + $0x60] sm:$0xf]
        %v6948 = vld [vmem:[#allocation4 + $0x64] sm:$0xf]
        %v6949 = vld [vmem:[#allocation4 + $0x6c] sm:$0xf]
        %v6950 = vld [vmem:[#allocation4 + $0x70] sm:$0xf]
        %v6951 = vld [vmem:[#allocation4 + $0x78] sm:$0xf]
        %v6952 = vld [vmem:[#allocation4 + $0x7c] sm:$0xf]
        %v6953 = vld [vmem:[#allocation4 + $0x84] sm:$0xf]
        %v6954 = vld [vmem:[#allocation4 + $0x88] sm:$0xf]
        %v6955 = vld [vmem:[#allocation4 + $0x90] sm:$0xf]
        %v6956 = vld [vmem:[#allocation4 + $0x94] sm:$0xf]
        %v6957 = vld [vmem:[#allocation4 + $0x9c] sm:$0xf]
        %v6958 = vld [vmem:[#allocation4 + $0xa0] sm:$0xf]
        %v6959 = vld [vmem:[#allocation4 + $0xa8] sm:$0xf]
        %v6960 = vld [vmem:[#allocation4 + $0xac] sm:$0xf]
        %v6961 = vld [vmem:[#allocation4 + $0xb4] sm:$0xf]
        %v6962 = vld [vmem:[#allocation4 + $0xb8] sm:$0xf]
        %v6963 = vld [vmem:[#allocation4 + $0x8] sm:$0x1]
        %v6964 = vld [vmem:[#allocation4 + $0x14] sm:$0x1]
        %v6965 = vld [vmem:[#allocation4 + $0x20] sm:$0x1]
        %v6966 = vld [vmem:[#allocation4 + $0x2c] sm:$0x1]
        %v6967 = vld [vmem:[#allocation4 + $0x38] sm:$0x1]
        %v6968 = vld [vmem:[#allocation4 + $0x44] sm:$0x1]
        %v6969 = vld [vmem:[#allocation4 + $0x50] sm:$0x1]
        %v6970 = vld [vmem:[#allocation4 + $0x5c] sm:$0x1]
        %v6971 = vld [vmem:[#allocation4 + $0x68] sm:$0x1]
        %v6972 = vld [vmem:[#allocation4 + $0x74] sm:$0x1]
        %v6973 = vld [vmem:[#allocation4 + $0x80] sm:$0x1]
        %v6974 = vld [vmem:[#allocation4 + $0x8c] sm:$0x1]
        %v6975 = vld [vmem:[#allocation4 + $0x98] sm:$0x1]
        %v6976 = vld [vmem:[#allocation4 + $0xa4] sm:$0x1]
        %v6977 = vld [vmem:[#allocation4 + $0xb0] sm:$0x1]
        %v6978 = vld [vmem:[#allocation4 + $0xbc] sm:$0x1]
        %v6979 = vld [vmem:[#allocation4] sm:$0xe]
        %v6980 = vld [vmem:[#allocation4 + $0xc] sm:$0xe]
        %v6981 = vld [vmem:[#allocation4 + $0x18] sm:$0xe]
        %v6982 = vld [vmem:[#allocation4 + $0x24] sm:$0xe]
        %v6983 = vld [vmem:[#allocation4 + $0x30] sm:$0xe]
        %v6984 = vld [vmem:[#allocation4 + $0x3c] sm:$0xe]
        %v6985 = vld [vmem:[#allocation4 + $0x48] sm:$0xe]
        %v6986 = vld [vmem:[#allocation4 + $0x54] sm:$0xe]
        %v6987 = vld [vmem:[#allocation4 + $0x60] sm:$0xe]
        %v6988 = vld [vmem:[#allocation4 + $0x6c] sm:$0xe]
        %v6989 = vld [vmem:[#allocation4 + $0x78] sm:$0xe]
        %v6990 = vld [vmem:[#allocation4 + $0x84] sm:$0xe]
        %v6991 = vld [vmem:[#allocation4 + $0x90] sm:$0xe]
        %v6992 = vld [vmem:[#allocation4 + $0x9c] sm:$0xe]
        %v6993 = vld [vmem:[#allocation4 + $0xa8] sm:$0xe]
        %v6994 = vld [vmem:[#allocation4 + $0xb4] sm:$0xe]
        %v6995 = vld [vmem:[%s6814] sm:$0xf]
        %v6996 = vld [vmem:[%s6814 + $0x4] sm:$0xf]
        %v6997 = vld [vmem:[%s6814 + $0xc] sm:$0xf]
        %v6998 = vld [vmem:[%s6814 + $0x10] sm:$0xf]
        %v6999 = vld [vmem:[%s6814 + $0x18] sm:$0xf]
        %v7000 = vld [vmem:[%s6814 + $0x1c] sm:$0xf]
        %v7001 = vld [vmem:[%s6814 + $0x24] sm:$0xf]
        %v7002 = vld [vmem:[%s6814 + $0x28] sm:$0xf]
        %v7003 = vld [vmem:[%s6814 + $0x30] sm:$0xf]
        %v7004 = vld [vmem:[%s6814 + $0x34] sm:$0xf]
        %v7005 = vld [vmem:[%s6814 + $0x3c] sm:$0xf]
        %v7006 = vld [vmem:[%s6814 + $0x40] sm:$0xf]
        %v7007 = vld [vmem:[%s6814 + $0x48] sm:$0xf]
        %v7008 = vld [vmem:[%s6814 + $0x4c] sm:$0xf]
        %v7009 = vld [vmem:[%s6814 + $0x54] sm:$0xf]
        %v7010 = vld [vmem:[%s6814 + $0x58] sm:$0xf]
        %v7011 = vld [vmem:[%s6814 + $0x60] sm:$0xf]
        %v7012 = vld [vmem:[%s6814 + $0x64] sm:$0xf]
        %v7013 = vld [vmem:[%s6814 + $0x6c] sm:$0xf]
        %v7014 = vld [vmem:[%s6814 + $0x70] sm:$0xf]
        %v7015 = vld [vmem:[%s6814 + $0x78] sm:$0xf]
        %v7016 = vld [vmem:[%s6814 + $0x7c] sm:$0xf]
        %v7017 = vld [vmem:[%s6814 + $0x84] sm:$0xf]
        %v7018 = vld [vmem:[%s6814 + $0x88] sm:$0xf]
        %v7019 = vld [vmem:[%s6814 + $0x90] sm:$0xf]
        %v7020 = vld [vmem:[%s6814 + $0x94] sm:$0xf]
        %v7021 = vld [vmem:[%s6814 + $0x9c] sm:$0xf]
        %v7022 = vld [vmem:[%s6814 + $0xa0] sm:$0xf]
        %v7023 = vld [vmem:[%s6814 + $0xa8] sm:$0xf]
        %v7024 = vld [vmem:[%s6814 + $0xac] sm:$0xf]
        %v7025 = vld [vmem:[%s6814 + $0xb4] sm:$0xf]
        %v7026 = vld [vmem:[%s6814 + $0xb8] sm:$0xf]
        %v7027 = vld [vmem:[%s6814 + $0x8] sm:$0x1]
        %v7028 = vld [vmem:[%s6814 + $0x14] sm:$0x1]
        %v7029 = vld [vmem:[%s6814 + $0x20] sm:$0x1]
        %v7030 = vld [vmem:[%s6814 + $0x2c] sm:$0x1]
        %v7031 = vld [vmem:[%s6814 + $0x38] sm:$0x1]
        %v7032 = vld [vmem:[%s6814 + $0x44] sm:$0x1]
        %v7033 = vld [vmem:[%s6814 + $0x50] sm:$0x1]
        %v7034 = vld [vmem:[%s6814 + $0x5c] sm:$0x1]
        %v7035 = vld [vmem:[%s6814 + $0x68] sm:$0x1]
        %v7036 = vld [vmem:[%s6814 + $0x74] sm:$0x1]
        %v7037 = vld [vmem:[%s6814 + $0x80] sm:$0x1]
        %v7038 = vld [vmem:[%s6814 + $0x8c] sm:$0x1]
        %v7039 = vld [vmem:[%s6814 + $0x98] sm:$0x1]
        %v7040 = vld [vmem:[%s6814 + $0xa4] sm:$0x1]
        %v7041 = vld [vmem:[%s6814 + $0xb0] sm:$0x1]
        %v7042 = vld [vmem:[%s6814 + $0xbc] sm:$0x1]
        %v7043 = vld [vmem:[%s6814] sm:$0xe]
        %v7044 = vld [vmem:[%s6814 + $0xc] sm:$0xe]
        %v7045 = vld [vmem:[%s6814 + $0x18] sm:$0xe]
        %v7046 = vld [vmem:[%s6814 + $0x24] sm:$0xe]
        %v7047 = vld [vmem:[%s6814 + $0x30] sm:$0xe]
        %v7048 = vld [vmem:[%s6814 + $0x3c] sm:$0xe]
        %v7049 = vld [vmem:[%s6814 + $0x48] sm:$0xe]
        %v7050 = vld [vmem:[%s6814 + $0x54] sm:$0xe]
        %v7051 = vld [vmem:[%s6814 + $0x60] sm:$0xe]
        %v7052 = vld [vmem:[%s6814 + $0x6c] sm:$0xe]
        %v7053 = vld [vmem:[%s6814 + $0x78] sm:$0xe]
        %v7054 = vld [vmem:[%s6814 + $0x84] sm:$0xe]
        %v7055 = vld [vmem:[%s6814 + $0x90] sm:$0xe]
        %v7056 = vld [vmem:[%s6814 + $0x9c] sm:$0xe]
        %v7057 = vld [vmem:[%s6814 + $0xa8] sm:$0xe]
        %v7058 = vld [vmem:[%s6814 + $0xb4] sm:$0xe]
        %s7059 = scalar_lea.vmem [#allocation4], 24
        %v7060 = vld [vmem:[%s7059] sm:$0xf]
        %v7061 = vld [vmem:[%s7059 + $0x4] sm:$0xf]
        %v7062 = vld [vmem:[%s7059 + $0xc] sm:$0xf]
        %v7063 = vld [vmem:[%s7059 + $0x10] sm:$0xf]
        %v7064 = vld [vmem:[%s7059 + $0x18] sm:$0xf]
        %v7065 = vld [vmem:[%s7059 + $0x1c] sm:$0xf]
        %v7066 = vld [vmem:[%s7059 + $0x24] sm:$0xf]
        %v7067 = vld [vmem:[%s7059 + $0x28] sm:$0xf]
        %v7068 = vld [vmem:[%s7059 + $0x30] sm:$0xf]
        %v7069 = vld [vmem:[%s7059 + $0x34] sm:$0xf]
        %v7070 = vld [vmem:[%s7059 + $0x3c] sm:$0xf]
        %v7071 = vld [vmem:[%s7059 + $0x40] sm:$0xf]
        %v7072 = vld [vmem:[%s7059 + $0x48] sm:$0xf]
        %v7073 = vld [vmem:[%s7059 + $0x4c] sm:$0xf]
        %v7074 = vld [vmem:[%s7059 + $0x54] sm:$0xf]
        %v7075 = vld [vmem:[%s7059 + $0x58] sm:$0xf]
        %v7076 = vld [vmem:[%s7059 + $0x60] sm:$0xf]
        %v7077 = vld [vmem:[%s7059 + $0x64] sm:$0xf]
        %v7078 = vld [vmem:[%s7059 + $0x6c] sm:$0xf]
        %v7079 = vld [vmem:[%s7059 + $0x70] sm:$0xf]
        %v7080 = vld [vmem:[%s7059 + $0x78] sm:$0xf]
        %v7081 = vld [vmem:[%s7059 + $0x7c] sm:$0xf]
        %v7082 = vld [vmem:[%s7059 + $0x84] sm:$0xf]
        %v7083 = vld [vmem:[%s7059 + $0x88] sm:$0xf]
        %v7084 = vld [vmem:[%s7059 + $0x90] sm:$0xf]
        %v7085 = vld [vmem:[%s7059 + $0x94] sm:$0xf]
        %v7086 = vld [vmem:[%s7059 + $0x9c] sm:$0xf]
        %v7087 = vld [vmem:[%s7059 + $0xa0] sm:$0xf]
        %v7088 = vld [vmem:[%s7059 + $0xa8] sm:$0xf]
        %v7089 = vld [vmem:[%s7059 + $0xac] sm:$0xf]
        %v7090 = vld [vmem:[%s7059 + $0xb4] sm:$0xf]
        %v7091 = vld [vmem:[%s7059 + $0xb8] sm:$0xf]
        %v7092 = vld [vmem:[%s7059 + $0x8] sm:$0x1]
        %v7093 = vld [vmem:[%s7059 + $0x14] sm:$0x1]
        %v7094 = vld [vmem:[%s7059 + $0x20] sm:$0x1]
        %v7095 = vld [vmem:[%s7059 + $0x2c] sm:$0x1]
        %v7096 = vld [vmem:[%s7059 + $0x38] sm:$0x1]
        %v7097 = vld [vmem:[%s7059 + $0x44] sm:$0x1]
        %v7098 = vld [vmem:[%s7059 + $0x50] sm:$0x1]
        %v7099 = vld [vmem:[%s7059 + $0x5c] sm:$0x1]
        %v7100 = vld [vmem:[%s7059 + $0x68] sm:$0x1]
        %v7101 = vld [vmem:[%s7059 + $0x74] sm:$0x1]
        %v7102 = vld [vmem:[%s7059 + $0x80] sm:$0x1]
        %v7103 = vld [vmem:[%s7059 + $0x8c] sm:$0x1]
        %v7104 = vld [vmem:[%s7059 + $0x98] sm:$0x1]
        %v7105 = vld [vmem:[%s7059 + $0xa4] sm:$0x1]
        %v7106 = vld [vmem:[%s7059 + $0xb0] sm:$0x1]
        %v7107 = vld [vmem:[%s7059 + $0xbc] sm:$0x1]
        %v7108 = vld [vmem:[%s7059] sm:$0xe]
        %v7109 = vld [vmem:[%s7059 + $0xc] sm:$0xe]
        %v7110 = vld [vmem:[%s7059 + $0x18] sm:$0xe]
        %v7111 = vld [vmem:[%s7059 + $0x24] sm:$0xe]
        %v7112 = vld [vmem:[%s7059 + $0x30] sm:$0xe]
        %v7113 = vld [vmem:[%s7059 + $0x3c] sm:$0xe]
        %v7114 = vld [vmem:[%s7059 + $0x48] sm:$0xe]
        %v7115 = vld [vmem:[%s7059 + $0x54] sm:$0xe]
        %v7116 = vld [vmem:[%s7059 + $0x60] sm:$0xe]
        %v7117 = vld [vmem:[%s7059 + $0x6c] sm:$0xe]
        %v7118 = vld [vmem:[%s7059 + $0x78] sm:$0xe]
        %v7119 = vld [vmem:[%s7059 + $0x84] sm:$0xe]
        %v7120 = vld [vmem:[%s7059 + $0x90] sm:$0xe]
        %v7121 = vld [vmem:[%s7059 + $0x9c] sm:$0xe]
        %v7122 = vld [vmem:[%s7059 + $0xa8] sm:$0xe]
        %v7123 = vld [vmem:[%s7059 + $0xb4] sm:$0xe]
        %v7156 = vunpack.c.l.b16 %v6931
        %v7157 = vunpack.c.l.b16 %v6932
        %v7158 = vunpack.c.l.b16 %v6933
        %v7159 = vunpack.c.l.b16 %v6934
        %v7160 = vunpack.c.l.b16 %v6935
        %v7161 = vunpack.c.l.b16 %v6936
        %v7162 = vunpack.c.l.b16 %v6937
        %v7163 = vunpack.c.l.b16 %v6938
        %v7164 = vunpack.c.l.b16 %v6939
        %v7165 = vunpack.c.l.b16 %v6940
        %v7166 = vunpack.c.l.b16 %v6941
        %v7167 = vunpack.c.l.b16 %v6942
        %v7168 = vunpack.c.l.b16 %v6943
        %v7169 = vunpack.c.l.b16 %v6944
        %v7170 = vunpack.c.l.b16 %v6945
        %v7171 = vunpack.c.l.b16 %v6946
        %v7172 = vunpack.c.l.b16 %v6947
        %v7173 = vunpack.c.l.b16 %v6948
        %v7174 = vunpack.c.l.b16 %v6949
        %v7175 = vunpack.c.l.b16 %v6950
        %v7176 = vunpack.c.l.b16 %v6951
        %v7177 = vunpack.c.l.b16 %v6952
        %v7178 = vunpack.c.l.b16 %v6953
        %v7179 = vunpack.c.l.b16 %v6954
        %v7180 = vunpack.c.l.b16 %v6955
        %v7181 = vunpack.c.l.b16 %v6956
        %v7182 = vunpack.c.l.b16 %v6957
        %v7183 = vunpack.c.l.b16 %v6958
        %v7184 = vunpack.c.l.b16 %v6959
        %v7185 = vunpack.c.l.b16 %v6960
        %v7186 = vunpack.c.l.b16 %v6961
        %v7187 = vunpack.c.l.b16 %v6962
        %v7188 = vpack.c.b16 %v7157, %v7156
        %v7189 = vpack.c.b16 %v7159, %v7158
        %v7190 = vpack.c.b16 %v7161, %v7160
        %v7191 = vpack.c.b16 %v7163, %v7162
        %v7192 = vpack.c.b16 %v7165, %v7164
        %v7193 = vpack.c.b16 %v7167, %v7166
        %v7194 = vpack.c.b16 %v7169, %v7168
        %v7195 = vpack.c.b16 %v7171, %v7170
        %v7196 = vpack.c.b16 %v7173, %v7172
        %v7197 = vpack.c.b16 %v7175, %v7174
        %v7198 = vpack.c.b16 %v7177, %v7176
        %v7199 = vpack.c.b16 %v7179, %v7178
        %v7200 = vpack.c.b16 %v7181, %v7180
        %v7201 = vpack.c.b16 %v7183, %v7182
        %v7202 = vpack.c.b16 %v7185, %v7184
        %v7203 = vpack.c.b16 %v7187, %v7186
        %v7220 = vunpack.c.l.b16 %v6963
        %v7221 = vunpack.c.l.b16 %v6964
        %v7222 = vunpack.c.l.b16 %v6965
        %v7223 = vunpack.c.l.b16 %v6966
        %v7224 = vunpack.c.l.b16 %v6967
        %v7225 = vunpack.c.l.b16 %v6968
        %v7226 = vunpack.c.l.b16 %v6969
        %v7227 = vunpack.c.l.b16 %v6970
        %v7228 = vunpack.c.l.b16 %v6971
        %v7229 = vunpack.c.l.b16 %v6972
        %v7230 = vunpack.c.l.b16 %v6973
        %v7231 = vunpack.c.l.b16 %v6974
        %v7232 = vunpack.c.l.b16 %v6975
        %v7233 = vunpack.c.l.b16 %v6976
        %v7234 = vunpack.c.l.b16 %v6977
        %v7235 = vunpack.c.l.b16 %v6978
        %v7236 = vpack.c.b16 %v7220, %v7220
        %v7237 = vpack.c.b16 %v7221, %v7221
        %v7238 = vpack.c.b16 %v7222, %v7222
        %v7239 = vpack.c.b16 %v7223, %v7223
        %v7240 = vpack.c.b16 %v7224, %v7224
        %v7241 = vpack.c.b16 %v7225, %v7225
        %v7242 = vpack.c.b16 %v7226, %v7226
        %v7243 = vpack.c.b16 %v7227, %v7227
        %v7244 = vpack.c.b16 %v7228, %v7228
        %v7245 = vpack.c.b16 %v7229, %v7229
        %v7246 = vpack.c.b16 %v7230, %v7230
        %v7247 = vpack.c.b16 %v7231, %v7231
        %v7248 = vpack.c.b16 %v7232, %v7232
        %v7249 = vpack.c.b16 %v7233, %v7233
        %v7250 = vpack.c.b16 %v7234, %v7234
        %v7251 = vpack.c.b16 %v7235, %v7235
        %v7253 = vshrl.u32 %v7188, 16
        %v7255 = vshll.u32 %v7188, 16
        %v7257 = vrot.slane %v7255, 1
        %v7258 = vor.u32 %v7253, %v7257
        %v7260 = vshll.u32 %v7236, 16
        %v7262 = vrot.slane %v7260, 1
        %v7263 = vsel %vm1612, %v7258, %v7262
        %v7265 = vshrl.u32 %v7189, 16
        %v7267 = vshll.u32 %v7189, 16
        %v7269 = vrot.slane %v7267, 1
        %v7270 = vor.u32 %v7265, %v7269
        %v7272 = vshll.u32 %v7237, 16
        %v7274 = vrot.slane %v7272, 1
        %v7275 = vsel %vm1612, %v7270, %v7274
        %v7277 = vshrl.u32 %v7190, 16
        %v7279 = vshll.u32 %v7190, 16
        %v7281 = vrot.slane %v7279, 1
        %v7282 = vor.u32 %v7277, %v7281
        %v7284 = vshll.u32 %v7238, 16
        %v7286 = vrot.slane %v7284, 1
        %v7287 = vsel %vm1612, %v7282, %v7286
        %v7289 = vshrl.u32 %v7191, 16
        %v7291 = vshll.u32 %v7191, 16
        %v7293 = vrot.slane %v7291, 1
        %v7294 = vor.u32 %v7289, %v7293
        %v7296 = vshll.u32 %v7239, 16
        %v7298 = vrot.slane %v7296, 1
        %v7299 = vsel %vm1612, %v7294, %v7298
        %v7301 = vshrl.u32 %v7192, 16
        %v7303 = vshll.u32 %v7192, 16
        %v7305 = vrot.slane %v7303, 1
        %v7306 = vor.u32 %v7301, %v7305
        %v7308 = vshll.u32 %v7240, 16
        %v7310 = vrot.slane %v7308, 1
        %v7311 = vsel %vm1612, %v7306, %v7310
        %v7313 = vshrl.u32 %v7193, 16
        %v7315 = vshll.u32 %v7193, 16
        %v7317 = vrot.slane %v7315, 1
        %v7318 = vor.u32 %v7313, %v7317
        %v7320 = vshll.u32 %v7241, 16
        %v7322 = vrot.slane %v7320, 1
        %v7323 = vsel %vm1612, %v7318, %v7322
        %v7325 = vshrl.u32 %v7194, 16
        %v7327 = vshll.u32 %v7194, 16
        %v7329 = vrot.slane %v7327, 1
        %v7330 = vor.u32 %v7325, %v7329
        %v7332 = vshll.u32 %v7242, 16
        %v7334 = vrot.slane %v7332, 1
        %v7335 = vsel %vm1612, %v7330, %v7334
        %v7337 = vshrl.u32 %v7195, 16
        %v7339 = vshll.u32 %v7195, 16
        %v7341 = vrot.slane %v7339, 1
        %v7342 = vor.u32 %v7337, %v7341
        %v7344 = vshll.u32 %v7243, 16
        %v7346 = vrot.slane %v7344, 1
        %v7347 = vsel %vm1612, %v7342, %v7346
        %v7349 = vshrl.u32 %v7196, 16
        %v7351 = vshll.u32 %v7196, 16
        %v7353 = vrot.slane %v7351, 1
        %v7354 = vor.u32 %v7349, %v7353
        %v7356 = vshll.u32 %v7244, 16
        %v7358 = vrot.slane %v7356, 1
        %v7359 = vsel %vm1612, %v7354, %v7358
        %v7361 = vshrl.u32 %v7197, 16
        %v7363 = vshll.u32 %v7197, 16
        %v7365 = vrot.slane %v7363, 1
        %v7366 = vor.u32 %v7361, %v7365
        %v7368 = vshll.u32 %v7245, 16
        %v7370 = vrot.slane %v7368, 1
        %v7371 = vsel %vm1612, %v7366, %v7370
        %v7373 = vshrl.u32 %v7198, 16
        %v7375 = vshll.u32 %v7198, 16
        %v7377 = vrot.slane %v7375, 1
        %v7378 = vor.u32 %v7373, %v7377
        %v7380 = vshll.u32 %v7246, 16
        %v7382 = vrot.slane %v7380, 1
        %v7383 = vsel %vm1612, %v7378, %v7382
        %v7385 = vshrl.u32 %v7199, 16
        %v7387 = vshll.u32 %v7199, 16
        %v7389 = vrot.slane %v7387, 1
        %v7390 = vor.u32 %v7385, %v7389
        %v7392 = vshll.u32 %v7247, 16
        %v7394 = vrot.slane %v7392, 1
        %v7395 = vsel %vm1612, %v7390, %v7394
        %v7397 = vshrl.u32 %v7200, 16
        %v7399 = vshll.u32 %v7200, 16
        %v7401 = vrot.slane %v7399, 1
        %v7402 = vor.u32 %v7397, %v7401
        %v7404 = vshll.u32 %v7248, 16
        %v7406 = vrot.slane %v7404, 1
        %v7407 = vsel %vm1612, %v7402, %v7406
        %v7409 = vshrl.u32 %v7201, 16
        %v7411 = vshll.u32 %v7201, 16
        %v7413 = vrot.slane %v7411, 1
        %v7414 = vor.u32 %v7409, %v7413
        %v7416 = vshll.u32 %v7249, 16
        %v7418 = vrot.slane %v7416, 1
        %v7419 = vsel %vm1612, %v7414, %v7418
        %v7421 = vshrl.u32 %v7202, 16
        %v7423 = vshll.u32 %v7202, 16
        %v7425 = vrot.slane %v7423, 1
        %v7426 = vor.u32 %v7421, %v7425
        %v7428 = vshll.u32 %v7250, 16
        %v7430 = vrot.slane %v7428, 1
        %v7431 = vsel %vm1612, %v7426, %v7430
        %v7433 = vshrl.u32 %v7203, 16
        %v7435 = vshll.u32 %v7203, 16
        %v7437 = vrot.slane %v7435, 1
        %v7438 = vor.u32 %v7433, %v7437
        %v7440 = vshll.u32 %v7251, 16
        %v7442 = vrot.slane %v7440, 1
        %v7443 = vsel %vm1612, %v7438, %v7442
        %7444 = vrot.lane.b32.xlu0 %v7263, 4
        %v7445 = vpop.permute.xlu0 %7444
        %7446 = vrot.lane.b32.xlu0 %v7275, 4
        %v7447 = vpop.permute.xlu0 %7446
        %7448 = vrot.lane.b32.xlu0 %v7287, 4
        %v7449 = vpop.permute.xlu0 %7448
        %7450 = vrot.lane.b32.xlu0 %v7299, 4
        %v7451 = vpop.permute.xlu0 %7450
        %7452 = vrot.lane.b32.xlu0 %v7311, 4
        %v7453 = vpop.permute.xlu0 %7452
        %7454 = vrot.lane.b32.xlu0 %v7323, 4
        %v7455 = vpop.permute.xlu0 %7454
        %7456 = vrot.lane.b32.xlu0 %v7335, 4
        %v7457 = vpop.permute.xlu0 %7456
        %7458 = vrot.lane.b32.xlu0 %v7347, 4
        %v7459 = vpop.permute.xlu0 %7458
        %7460 = vrot.lane.b32.xlu0 %v7359, 4
        %v7461 = vpop.permute.xlu0 %7460
        %7462 = vrot.lane.b32.xlu0 %v7371, 4
        %v7463 = vpop.permute.xlu0 %7462
        %7464 = vrot.lane.b32.xlu0 %v7383, 4
        %v7465 = vpop.permute.xlu0 %7464
        %7466 = vrot.lane.b32.xlu0 %v7395, 4
        %v7467 = vpop.permute.xlu0 %7466
        %7468 = vrot.lane.b32.xlu0 %v7407, 4
        %v7469 = vpop.permute.xlu0 %7468
        %7470 = vrot.lane.b32.xlu0 %v7419, 4
        %v7471 = vpop.permute.xlu0 %7470
        %7472 = vrot.lane.b32.xlu0 %v7431, 4
        %v7473 = vpop.permute.xlu0 %7472
        %7474 = vrot.lane.b32.xlu0 %v7443, 4
        %v7475 = vpop.permute.xlu0 %7474
        %v7492 = vunpack.c.l.b16 %v6979
        %v7493 = vunpack.c.l.b16 %v6980
        %v7494 = vunpack.c.l.b16 %v6981
        %v7495 = vunpack.c.l.b16 %v6982
        %v7496 = vunpack.c.l.b16 %v6983
        %v7497 = vunpack.c.l.b16 %v6984
        %v7498 = vunpack.c.l.b16 %v6985
        %v7499 = vunpack.c.l.b16 %v6986
        %v7500 = vunpack.c.l.b16 %v6987
        %v7501 = vunpack.c.l.b16 %v6988
        %v7502 = vunpack.c.l.b16 %v6989
        %v7503 = vunpack.c.l.b16 %v6990
        %v7504 = vunpack.c.l.b16 %v6991
        %v7505 = vunpack.c.l.b16 %v6992
        %v7506 = vunpack.c.l.b16 %v6993
        %v7507 = vunpack.c.l.b16 %v6994
        %v7508 = vpack.c.b16 %v7157, %v7492
        %v7509 = vpack.c.b16 %v7159, %v7493
        %v7510 = vpack.c.b16 %v7161, %v7494
        %v7511 = vpack.c.b16 %v7163, %v7495
        %v7512 = vpack.c.b16 %v7165, %v7496
        %v7513 = vpack.c.b16 %v7167, %v7497
        %v7514 = vpack.c.b16 %v7169, %v7498
        %v7515 = vpack.c.b16 %v7171, %v7499
        %v7516 = vpack.c.b16 %v7173, %v7500
        %v7517 = vpack.c.b16 %v7175, %v7501
        %v7518 = vpack.c.b16 %v7177, %v7502
        %v7519 = vpack.c.b16 %v7179, %v7503
        %v7520 = vpack.c.b16 %v7181, %v7504
        %v7521 = vpack.c.b16 %v7183, %v7505
        %v7522 = vpack.c.b16 %v7185, %v7506
        %v7523 = vpack.c.b16 %v7187, %v7507
        %v7524 = vrot.slane %v7508, 1
        %v7525 = vrot.slane %v7236, 1
        %v7526 = vsel %vm1885, %v7524, %v7525
        %v7527 = vrot.slane %v7509, 1
        %v7528 = vrot.slane %v7237, 1
        %v7529 = vsel %vm1885, %v7527, %v7528
        %v7530 = vrot.slane %v7510, 1
        %v7531 = vrot.slane %v7238, 1
        %v7532 = vsel %vm1885, %v7530, %v7531
        %v7533 = vrot.slane %v7511, 1
        %v7534 = vrot.slane %v7239, 1
        %v7535 = vsel %vm1885, %v7533, %v7534
        %v7536 = vrot.slane %v7512, 1
        %v7537 = vrot.slane %v7240, 1
        %v7538 = vsel %vm1885, %v7536, %v7537
        %v7539 = vrot.slane %v7513, 1
        %v7540 = vrot.slane %v7241, 1
        %v7541 = vsel %vm1885, %v7539, %v7540
        %v7542 = vrot.slane %v7514, 1
        %v7543 = vrot.slane %v7242, 1
        %v7544 = vsel %vm1885, %v7542, %v7543
        %v7545 = vrot.slane %v7515, 1
        %v7546 = vrot.slane %v7243, 1
        %v7547 = vsel %vm1885, %v7545, %v7546
        %v7548 = vrot.slane %v7516, 1
        %v7549 = vrot.slane %v7244, 1
        %v7550 = vsel %vm1885, %v7548, %v7549
        %v7551 = vrot.slane %v7517, 1
        %v7552 = vrot.slane %v7245, 1
        %v7553 = vsel %vm1885, %v7551, %v7552
        %v7554 = vrot.slane %v7518, 1
        %v7555 = vrot.slane %v7246, 1
        %v7556 = vsel %vm1885, %v7554, %v7555
        %v7557 = vrot.slane %v7519, 1
        %v7558 = vrot.slane %v7247, 1
        %v7559 = vsel %vm1885, %v7557, %v7558
        %v7560 = vrot.slane %v7520, 1
        %v7561 = vrot.slane %v7248, 1
        %v7562 = vsel %vm1885, %v7560, %v7561
        %v7563 = vrot.slane %v7521, 1
        %v7564 = vrot.slane %v7249, 1
        %v7565 = vsel %vm1885, %v7563, %v7564
        %v7566 = vrot.slane %v7522, 1
        %v7567 = vrot.slane %v7250, 1
        %v7568 = vsel %vm1885, %v7566, %v7567
        %v7569 = vrot.slane %v7523, 1
        %v7570 = vrot.slane %v7251, 1
        %v7571 = vsel %vm1885, %v7569, %v7570
        %7572 = vrot.lane.b32.xlu0 %v7526, 8
        %v7573 = vpop.permute.xlu0 %7572
        %7574 = vrot.lane.b32.xlu0 %v7529, 8
        %v7575 = vpop.permute.xlu0 %7574
        %7576 = vrot.lane.b32.xlu0 %v7532, 8
        %v7577 = vpop.permute.xlu0 %7576
        %7578 = vrot.lane.b32.xlu0 %v7535, 8
        %v7579 = vpop.permute.xlu0 %7578
        %7580 = vrot.lane.b32.xlu0 %v7538, 8
        %v7581 = vpop.permute.xlu0 %7580
        %7582 = vrot.lane.b32.xlu0 %v7541, 8
        %v7583 = vpop.permute.xlu0 %7582
        %7584 = vrot.lane.b32.xlu0 %v7544, 8
        %v7585 = vpop.permute.xlu0 %7584
        %7586 = vrot.lane.b32.xlu0 %v7547, 8
        %v7587 = vpop.permute.xlu0 %7586
        %7588 = vrot.lane.b32.xlu0 %v7550, 8
        %v7589 = vpop.permute.xlu0 %7588
        %7590 = vrot.lane.b32.xlu0 %v7553, 8
        %v7591 = vpop.permute.xlu0 %7590
        %7592 = vrot.lane.b32.xlu0 %v7556, 8
        %v7593 = vpop.permute.xlu0 %7592
        %7594 = vrot.lane.b32.xlu0 %v7559, 8
        %v7595 = vpop.permute.xlu0 %7594
        %7596 = vrot.lane.b32.xlu0 %v7562, 8
        %v7597 = vpop.permute.xlu0 %7596
        %7598 = vrot.lane.b32.xlu0 %v7565, 8
        %v7599 = vpop.permute.xlu0 %7598
        %7600 = vrot.lane.b32.xlu0 %v7568, 8
        %v7601 = vpop.permute.xlu0 %7600
        %7602 = vrot.lane.b32.xlu0 %v7571, 8
        %v7603 = vpop.permute.xlu0 %7602
        %v7636 = vunpack.c.l.b16 %v6995
        %v7637 = vunpack.c.l.b16 %v6996
        %v7638 = vunpack.c.l.b16 %v6997
        %v7639 = vunpack.c.l.b16 %v6998
        %v7640 = vunpack.c.l.b16 %v6999
        %v7641 = vunpack.c.l.b16 %v7000
        %v7642 = vunpack.c.l.b16 %v7001
        %v7643 = vunpack.c.l.b16 %v7002
        %v7644 = vunpack.c.l.b16 %v7003
        %v7645 = vunpack.c.l.b16 %v7004
        %v7646 = vunpack.c.l.b16 %v7005
        %v7647 = vunpack.c.l.b16 %v7006
        %v7648 = vunpack.c.l.b16 %v7007
        %v7649 = vunpack.c.l.b16 %v7008
        %v7650 = vunpack.c.l.b16 %v7009
        %v7651 = vunpack.c.l.b16 %v7010
        %v7652 = vunpack.c.l.b16 %v7011
        %v7653 = vunpack.c.l.b16 %v7012
        %v7654 = vunpack.c.l.b16 %v7013
        %v7655 = vunpack.c.l.b16 %v7014
        %v7656 = vunpack.c.l.b16 %v7015
        %v7657 = vunpack.c.l.b16 %v7016
        %v7658 = vunpack.c.l.b16 %v7017
        %v7659 = vunpack.c.l.b16 %v7018
        %v7660 = vunpack.c.l.b16 %v7019
        %v7661 = vunpack.c.l.b16 %v7020
        %v7662 = vunpack.c.l.b16 %v7021
        %v7663 = vunpack.c.l.b16 %v7022
        %v7664 = vunpack.c.l.b16 %v7023
        %v7665 = vunpack.c.l.b16 %v7024
        %v7666 = vunpack.c.l.b16 %v7025
        %v7667 = vunpack.c.l.b16 %v7026
        %v7668 = vpack.c.b16 %v7637, %v7636
        %v7669 = vpack.c.b16 %v7639, %v7638
        %v7670 = vpack.c.b16 %v7641, %v7640
        %v7671 = vpack.c.b16 %v7643, %v7642
        %v7672 = vpack.c.b16 %v7645, %v7644
        %v7673 = vpack.c.b16 %v7647, %v7646
        %v7674 = vpack.c.b16 %v7649, %v7648
        %v7675 = vpack.c.b16 %v7651, %v7650
        %v7676 = vpack.c.b16 %v7653, %v7652
        %v7677 = vpack.c.b16 %v7655, %v7654
        %v7678 = vpack.c.b16 %v7657, %v7656
        %v7679 = vpack.c.b16 %v7659, %v7658
        %v7680 = vpack.c.b16 %v7661, %v7660
        %v7681 = vpack.c.b16 %v7663, %v7662
        %v7682 = vpack.c.b16 %v7665, %v7664
        %v7683 = vpack.c.b16 %v7667, %v7666
        %7684 = vrot.lane.b32.xlu0 %v7668, 12
        %v7685 = vpop.permute.xlu0 %7684
        %7686 = vrot.lane.b32.xlu0 %v7669, 12
        %v7687 = vpop.permute.xlu0 %7686
        %7688 = vrot.lane.b32.xlu0 %v7670, 12
        %v7689 = vpop.permute.xlu0 %7688
        %7690 = vrot.lane.b32.xlu0 %v7671, 12
        %v7691 = vpop.permute.xlu0 %7690
        %7692 = vrot.lane.b32.xlu0 %v7672, 12
        %v7693 = vpop.permute.xlu0 %7692
        %7694 = vrot.lane.b32.xlu0 %v7673, 12
        %v7695 = vpop.permute.xlu0 %7694
        %7696 = vrot.lane.b32.xlu0 %v7674, 12
        %v7697 = vpop.permute.xlu0 %7696
        %7698 = vrot.lane.b32.xlu0 %v7675, 12
        %v7699 = vpop.permute.xlu0 %7698
        %7700 = vrot.lane.b32.xlu0 %v7676, 12
        %v7701 = vpop.permute.xlu0 %7700
        %7702 = vrot.lane.b32.xlu0 %v7677, 12
        %v7703 = vpop.permute.xlu0 %7702
        %7704 = vrot.lane.b32.xlu0 %v7678, 12
        %v7705 = vpop.permute.xlu0 %7704
        %7706 = vrot.lane.b32.xlu0 %v7679, 12
        %v7707 = vpop.permute.xlu0 %7706
        %7708 = vrot.lane.b32.xlu0 %v7680, 12
        %v7709 = vpop.permute.xlu0 %7708
        %7710 = vrot.lane.b32.xlu0 %v7681, 12
        %v7711 = vpop.permute.xlu0 %7710
        %7712 = vrot.lane.b32.xlu0 %v7682, 12
        %v7713 = vpop.permute.xlu0 %7712
        %7714 = vrot.lane.b32.xlu0 %v7683, 12
        %v7715 = vpop.permute.xlu0 %7714
        %v7732 = vunpack.c.l.b16 %v7027
        %v7733 = vunpack.c.l.b16 %v7028
        %v7734 = vunpack.c.l.b16 %v7029
        %v7735 = vunpack.c.l.b16 %v7030
        %v7736 = vunpack.c.l.b16 %v7031
        %v7737 = vunpack.c.l.b16 %v7032
        %v7738 = vunpack.c.l.b16 %v7033
        %v7739 = vunpack.c.l.b16 %v7034
        %v7740 = vunpack.c.l.b16 %v7035
        %v7741 = vunpack.c.l.b16 %v7036
        %v7742 = vunpack.c.l.b16 %v7037
        %v7743 = vunpack.c.l.b16 %v7038
        %v7744 = vunpack.c.l.b16 %v7039
        %v7745 = vunpack.c.l.b16 %v7040
        %v7746 = vunpack.c.l.b16 %v7041
        %v7747 = vunpack.c.l.b16 %v7042
        %v7748 = vpack.c.b16 %v7732, %v7732
        %v7749 = vpack.c.b16 %v7733, %v7733
        %v7750 = vpack.c.b16 %v7734, %v7734
        %v7751 = vpack.c.b16 %v7735, %v7735
        %v7752 = vpack.c.b16 %v7736, %v7736
        %v7753 = vpack.c.b16 %v7737, %v7737
        %v7754 = vpack.c.b16 %v7738, %v7738
        %v7755 = vpack.c.b16 %v7739, %v7739
        %v7756 = vpack.c.b16 %v7740, %v7740
        %v7757 = vpack.c.b16 %v7741, %v7741
        %v7758 = vpack.c.b16 %v7742, %v7742
        %v7759 = vpack.c.b16 %v7743, %v7743
        %v7760 = vpack.c.b16 %v7744, %v7744
        %v7761 = vpack.c.b16 %v7745, %v7745
        %v7762 = vpack.c.b16 %v7746, %v7746
        %v7763 = vpack.c.b16 %v7747, %v7747
        %v7765 = vshrl.u32 %v7668, 16
        %v7767 = vshll.u32 %v7668, 16
        %v7769 = vrot.slane %v7767, 1
        %v7770 = vor.u32 %v7765, %v7769
        %v7772 = vshll.u32 %v7748, 16
        %v7774 = vrot.slane %v7772, 1
        %v7775 = vsel %vm1612, %v7770, %v7774
        %v7777 = vshrl.u32 %v7669, 16
        %v7779 = vshll.u32 %v7669, 16
        %v7781 = vrot.slane %v7779, 1
        %v7782 = vor.u32 %v7777, %v7781
        %v7784 = vshll.u32 %v7749, 16
        %v7786 = vrot.slane %v7784, 1
        %v7787 = vsel %vm1612, %v7782, %v7786
        %v7789 = vshrl.u32 %v7670, 16
        %v7791 = vshll.u32 %v7670, 16
        %v7793 = vrot.slane %v7791, 1
        %v7794 = vor.u32 %v7789, %v7793
        %v7796 = vshll.u32 %v7750, 16
        %v7798 = vrot.slane %v7796, 1
        %v7799 = vsel %vm1612, %v7794, %v7798
        %v7801 = vshrl.u32 %v7671, 16
        %v7803 = vshll.u32 %v7671, 16
        %v7805 = vrot.slane %v7803, 1
        %v7806 = vor.u32 %v7801, %v7805
        %v7808 = vshll.u32 %v7751, 16
        %v7810 = vrot.slane %v7808, 1
        %v7811 = vsel %vm1612, %v7806, %v7810
        %v7813 = vshrl.u32 %v7672, 16
        %v7815 = vshll.u32 %v7672, 16
        %v7817 = vrot.slane %v7815, 1
        %v7818 = vor.u32 %v7813, %v7817
        %v7820 = vshll.u32 %v7752, 16
        %v7822 = vrot.slane %v7820, 1
        %v7823 = vsel %vm1612, %v7818, %v7822
        %v7825 = vshrl.u32 %v7673, 16
        %v7827 = vshll.u32 %v7673, 16
        %v7829 = vrot.slane %v7827, 1
        %v7830 = vor.u32 %v7825, %v7829
        %v7832 = vshll.u32 %v7753, 16
        %v7834 = vrot.slane %v7832, 1
        %v7835 = vsel %vm1612, %v7830, %v7834
        %v7837 = vshrl.u32 %v7674, 16
        %v7839 = vshll.u32 %v7674, 16
        %v7841 = vrot.slane %v7839, 1
        %v7842 = vor.u32 %v7837, %v7841
        %v7844 = vshll.u32 %v7754, 16
        %v7846 = vrot.slane %v7844, 1
        %v7847 = vsel %vm1612, %v7842, %v7846
        %v7849 = vshrl.u32 %v7675, 16
        %v7851 = vshll.u32 %v7675, 16
        %v7853 = vrot.slane %v7851, 1
        %v7854 = vor.u32 %v7849, %v7853
        %v7856 = vshll.u32 %v7755, 16
        %v7858 = vrot.slane %v7856, 1
        %v7859 = vsel %vm1612, %v7854, %v7858
        %v7861 = vshrl.u32 %v7676, 16
        %v7863 = vshll.u32 %v7676, 16
        %v7865 = vrot.slane %v7863, 1
        %v7866 = vor.u32 %v7861, %v7865
        %v7868 = vshll.u32 %v7756, 16
        %v7870 = vrot.slane %v7868, 1
        %v7871 = vsel %vm1612, %v7866, %v7870
        %v7873 = vshrl.u32 %v7677, 16
        %v7875 = vshll.u32 %v7677, 16
        %v7877 = vrot.slane %v7875, 1
        %v7878 = vor.u32 %v7873, %v7877
        %v7880 = vshll.u32 %v7757, 16
        %v7882 = vrot.slane %v7880, 1
        %v7883 = vsel %vm1612, %v7878, %v7882
        %v7885 = vshrl.u32 %v7678, 16
        %v7887 = vshll.u32 %v7678, 16
        %v7889 = vrot.slane %v7887, 1
        %v7890 = vor.u32 %v7885, %v7889
        %v7892 = vshll.u32 %v7758, 16
        %v7894 = vrot.slane %v7892, 1
        %v7895 = vsel %vm1612, %v7890, %v7894
        %v7897 = vshrl.u32 %v7679, 16
        %v7899 = vshll.u32 %v7679, 16
        %v7901 = vrot.slane %v7899, 1
        %v7902 = vor.u32 %v7897, %v7901
        %v7904 = vshll.u32 %v7759, 16
        %v7906 = vrot.slane %v7904, 1
        %v7907 = vsel %vm1612, %v7902, %v7906
        %v7909 = vshrl.u32 %v7680, 16
        %v7911 = vshll.u32 %v7680, 16
        %v7913 = vrot.slane %v7911, 1
        %v7914 = vor.u32 %v7909, %v7913
        %v7916 = vshll.u32 %v7760, 16
        %v7918 = vrot.slane %v7916, 1
        %v7919 = vsel %vm1612, %v7914, %v7918
        %v7921 = vshrl.u32 %v7681, 16
        %v7923 = vshll.u32 %v7681, 16
        %v7925 = vrot.slane %v7923, 1
        %v7926 = vor.u32 %v7921, %v7925
        %v7928 = vshll.u32 %v7761, 16
        %v7930 = vrot.slane %v7928, 1
        %v7931 = vsel %vm1612, %v7926, %v7930
        %v7933 = vshrl.u32 %v7682, 16
        %v7935 = vshll.u32 %v7682, 16
        %v7937 = vrot.slane %v7935, 1
        %v7938 = vor.u32 %v7933, %v7937
        %v7940 = vshll.u32 %v7762, 16
        %v7942 = vrot.slane %v7940, 1
        %v7943 = vsel %vm1612, %v7938, %v7942
        %v7945 = vshrl.u32 %v7683, 16
        %v7947 = vshll.u32 %v7683, 16
        %v7949 = vrot.slane %v7947, 1
        %v7950 = vor.u32 %v7945, %v7949
        %v7952 = vshll.u32 %v7763, 16
        %v7954 = vrot.slane %v7952, 1
        %v7955 = vsel %vm1612, %v7950, %v7954
        %7956 = vrot.lane.b32.xlu0 %v7775, 16
        %v7957 = vpop.permute.xlu0 %7956
        %7958 = vrot.lane.b32.xlu0 %v7787, 16
        %v7959 = vpop.permute.xlu0 %7958
        %7960 = vrot.lane.b32.xlu0 %v7799, 16
        %v7961 = vpop.permute.xlu0 %7960
        %7962 = vrot.lane.b32.xlu0 %v7811, 16
        %v7963 = vpop.permute.xlu0 %7962
        %7964 = vrot.lane.b32.xlu0 %v7823, 16
        %v7965 = vpop.permute.xlu0 %7964
        %7966 = vrot.lane.b32.xlu0 %v7835, 16
        %v7967 = vpop.permute.xlu0 %7966
        %7968 = vrot.lane.b32.xlu0 %v7847, 16
        %v7969 = vpop.permute.xlu0 %7968
        %7970 = vrot.lane.b32.xlu0 %v7859, 16
        %v7971 = vpop.permute.xlu0 %7970
        %7972 = vrot.lane.b32.xlu0 %v7871, 16
        %v7973 = vpop.permute.xlu0 %7972
        %7974 = vrot.lane.b32.xlu0 %v7883, 16
        %v7975 = vpop.permute.xlu0 %7974
        %7976 = vrot.lane.b32.xlu0 %v7895, 16
        %v7977 = vpop.permute.xlu0 %7976
        %7978 = vrot.lane.b32.xlu0 %v7907, 16
        %v7979 = vpop.permute.xlu0 %7978
        %7980 = vrot.lane.b32.xlu0 %v7919, 16
        %v7981 = vpop.permute.xlu0 %7980
        %7982 = vrot.lane.b32.xlu0 %v7931, 16
        %v7983 = vpop.permute.xlu0 %7982
        %7984 = vrot.lane.b32.xlu0 %v7943, 16
        %v7985 = vpop.permute.xlu0 %7984
        %7986 = vrot.lane.b32.xlu0 %v7955, 16
        %v7987 = vpop.permute.xlu0 %7986
        %v8004 = vunpack.c.l.b16 %v7043
        %v8005 = vunpack.c.l.b16 %v7044
        %v8006 = vunpack.c.l.b16 %v7045
        %v8007 = vunpack.c.l.b16 %v7046
        %v8008 = vunpack.c.l.b16 %v7047
        %v8009 = vunpack.c.l.b16 %v7048
        %v8010 = vunpack.c.l.b16 %v7049
        %v8011 = vunpack.c.l.b16 %v7050
        %v8012 = vunpack.c.l.b16 %v7051
        %v8013 = vunpack.c.l.b16 %v7052
        %v8014 = vunpack.c.l.b16 %v7053
        %v8015 = vunpack.c.l.b16 %v7054
        %v8016 = vunpack.c.l.b16 %v7055
        %v8017 = vunpack.c.l.b16 %v7056
        %v8018 = vunpack.c.l.b16 %v7057
        %v8019 = vunpack.c.l.b16 %v7058
        %v8020 = vpack.c.b16 %v7637, %v8004
        %v8021 = vpack.c.b16 %v7639, %v8005
        %v8022 = vpack.c.b16 %v7641, %v8006
        %v8023 = vpack.c.b16 %v7643, %v8007
        %v8024 = vpack.c.b16 %v7645, %v8008
        %v8025 = vpack.c.b16 %v7647, %v8009
        %v8026 = vpack.c.b16 %v7649, %v8010
        %v8027 = vpack.c.b16 %v7651, %v8011
        %v8028 = vpack.c.b16 %v7653, %v8012
        %v8029 = vpack.c.b16 %v7655, %v8013
        %v8030 = vpack.c.b16 %v7657, %v8014
        %v8031 = vpack.c.b16 %v7659, %v8015
        %v8032 = vpack.c.b16 %v7661, %v8016
        %v8033 = vpack.c.b16 %v7663, %v8017
        %v8034 = vpack.c.b16 %v7665, %v8018
        %v8035 = vpack.c.b16 %v7667, %v8019
        %v8036 = vrot.slane %v8020, 1
        %v8037 = vrot.slane %v7748, 1
        %v8038 = vsel %vm1885, %v8036, %v8037
        %v8039 = vrot.slane %v8021, 1
        %v8040 = vrot.slane %v7749, 1
        %v8041 = vsel %vm1885, %v8039, %v8040
        %v8042 = vrot.slane %v8022, 1
        %v8043 = vrot.slane %v7750, 1
        %v8044 = vsel %vm1885, %v8042, %v8043
        %v8045 = vrot.slane %v8023, 1
        %v8046 = vrot.slane %v7751, 1
        %v8047 = vsel %vm1885, %v8045, %v8046
        %v8048 = vrot.slane %v8024, 1
        %v8049 = vrot.slane %v7752, 1
        %v8050 = vsel %vm1885, %v8048, %v8049
        %v8051 = vrot.slane %v8025, 1
        %v8052 = vrot.slane %v7753, 1
        %v8053 = vsel %vm1885, %v8051, %v8052
        %v8054 = vrot.slane %v8026, 1
        %v8055 = vrot.slane %v7754, 1
        %v8056 = vsel %vm1885, %v8054, %v8055
        %v8057 = vrot.slane %v8027, 1
        %v8058 = vrot.slane %v7755, 1
        %v8059 = vsel %vm1885, %v8057, %v8058
        %v8060 = vrot.slane %v8028, 1
        %v8061 = vrot.slane %v7756, 1
        %v8062 = vsel %vm1885, %v8060, %v8061
        %v8063 = vrot.slane %v8029, 1
        %v8064 = vrot.slane %v7757, 1
        %v8065 = vsel %vm1885, %v8063, %v8064
        %v8066 = vrot.slane %v8030, 1
        %v8067 = vrot.slane %v7758, 1
        %v8068 = vsel %vm1885, %v8066, %v8067
        %v8069 = vrot.slane %v8031, 1
        %v8070 = vrot.slane %v7759, 1
        %v8071 = vsel %vm1885, %v8069, %v8070
        %v8072 = vrot.slane %v8032, 1
        %v8073 = vrot.slane %v7760, 1
        %v8074 = vsel %vm1885, %v8072, %v8073
        %v8075 = vrot.slane %v8033, 1
        %v8076 = vrot.slane %v7761, 1
        %v8077 = vsel %vm1885, %v8075, %v8076
        %v8078 = vrot.slane %v8034, 1
        %v8079 = vrot.slane %v7762, 1
        %v8080 = vsel %vm1885, %v8078, %v8079
        %v8081 = vrot.slane %v8035, 1
        %v8082 = vrot.slane %v7763, 1
        %v8083 = vsel %vm1885, %v8081, %v8082
        %8084 = vrot.lane.b32.xlu0 %v8038, 20
        %v8085 = vpop.permute.xlu0 %8084
        %8086 = vrot.lane.b32.xlu0 %v8041, 20
        %v8087 = vpop.permute.xlu0 %8086
        %8088 = vrot.lane.b32.xlu0 %v8044, 20
        %v8089 = vpop.permute.xlu0 %8088
        %8090 = vrot.lane.b32.xlu0 %v8047, 20
        %v8091 = vpop.permute.xlu0 %8090
        %8092 = vrot.lane.b32.xlu0 %v8050, 20
        %v8093 = vpop.permute.xlu0 %8092
        %8094 = vrot.lane.b32.xlu0 %v8053, 20
        %v8095 = vpop.permute.xlu0 %8094
        %8096 = vrot.lane.b32.xlu0 %v8056, 20
        %v8097 = vpop.permute.xlu0 %8096
        %8098 = vrot.lane.b32.xlu0 %v8059, 20
        %v8099 = vpop.permute.xlu0 %8098
        %8100 = vrot.lane.b32.xlu0 %v8062, 20
        %v8101 = vpop.permute.xlu0 %8100
        %8102 = vrot.lane.b32.xlu0 %v8065, 20
        %v8103 = vpop.permute.xlu0 %8102
        %8104 = vrot.lane.b32.xlu0 %v8068, 20
        %v8105 = vpop.permute.xlu0 %8104
        %8106 = vrot.lane.b32.xlu0 %v8071, 20
        %v8107 = vpop.permute.xlu0 %8106
        %8108 = vrot.lane.b32.xlu0 %v8074, 20
        %v8109 = vpop.permute.xlu0 %8108
        %8110 = vrot.lane.b32.xlu0 %v8077, 20
        %v8111 = vpop.permute.xlu0 %8110
        %8112 = vrot.lane.b32.xlu0 %v8080, 20
        %v8113 = vpop.permute.xlu0 %8112
        %8114 = vrot.lane.b32.xlu0 %v8083, 20
        %v8115 = vpop.permute.xlu0 %8114
        %v8148 = vunpack.c.l.b16 %v7060
        %v8149 = vunpack.c.l.b16 %v7061
        %v8150 = vunpack.c.l.b16 %v7062
        %v8151 = vunpack.c.l.b16 %v7063
        %v8152 = vunpack.c.l.b16 %v7064
        %v8153 = vunpack.c.l.b16 %v7065
        %v8154 = vunpack.c.l.b16 %v7066
        %v8155 = vunpack.c.l.b16 %v7067
        %v8156 = vunpack.c.l.b16 %v7068
        %v8157 = vunpack.c.l.b16 %v7069
        %v8158 = vunpack.c.l.b16 %v7070
        %v8159 = vunpack.c.l.b16 %v7071
        %v8160 = vunpack.c.l.b16 %v7072
        %v8161 = vunpack.c.l.b16 %v7073
        %v8162 = vunpack.c.l.b16 %v7074
        %v8163 = vunpack.c.l.b16 %v7075
        %v8164 = vunpack.c.l.b16 %v7076
        %v8165 = vunpack.c.l.b16 %v7077
        %v8166 = vunpack.c.l.b16 %v7078
        %v8167 = vunpack.c.l.b16 %v7079
        %v8168 = vunpack.c.l.b16 %v7080
        %v8169 = vunpack.c.l.b16 %v7081
        %v8170 = vunpack.c.l.b16 %v7082
        %v8171 = vunpack.c.l.b16 %v7083
        %v8172 = vunpack.c.l.b16 %v7084
        %v8173 = vunpack.c.l.b16 %v7085
        %v8174 = vunpack.c.l.b16 %v7086
        %v8175 = vunpack.c.l.b16 %v7087
        %v8176 = vunpack.c.l.b16 %v7088
        %v8177 = vunpack.c.l.b16 %v7089
        %v8178 = vunpack.c.l.b16 %v7090
        %v8179 = vunpack.c.l.b16 %v7091
        %v8180 = vpack.c.b16 %v8149, %v8148
        %v8181 = vpack.c.b16 %v8151, %v8150
        %v8182 = vpack.c.b16 %v8153, %v8152
        %v8183 = vpack.c.b16 %v8155, %v8154
        %v8184 = vpack.c.b16 %v8157, %v8156
        %v8185 = vpack.c.b16 %v8159, %v8158
        %v8186 = vpack.c.b16 %v8161, %v8160
        %v8187 = vpack.c.b16 %v8163, %v8162
        %v8188 = vpack.c.b16 %v8165, %v8164
        %v8189 = vpack.c.b16 %v8167, %v8166
        %v8190 = vpack.c.b16 %v8169, %v8168
        %v8191 = vpack.c.b16 %v8171, %v8170
        %v8192 = vpack.c.b16 %v8173, %v8172
        %v8193 = vpack.c.b16 %v8175, %v8174
        %v8194 = vpack.c.b16 %v8177, %v8176
        %v8195 = vpack.c.b16 %v8179, %v8178
        %8196 = vrot.lane.b32.xlu0 %v8180, 24
        %v8197 = vpop.permute.xlu0 %8196
        %8198 = vrot.lane.b32.xlu0 %v8181, 24
        %v8199 = vpop.permute.xlu0 %8198
        %8200 = vrot.lane.b32.xlu0 %v8182, 24
        %v8201 = vpop.permute.xlu0 %8200
        %8202 = vrot.lane.b32.xlu0 %v8183, 24
        %v8203 = vpop.permute.xlu0 %8202
        %8204 = vrot.lane.b32.xlu0 %v8184, 24
        %v8205 = vpop.permute.xlu0 %8204
        %8206 = vrot.lane.b32.xlu0 %v8185, 24
        %v8207 = vpop.permute.xlu0 %8206
        %8208 = vrot.lane.b32.xlu0 %v8186, 24
        %v8209 = vpop.permute.xlu0 %8208
        %8210 = vrot.lane.b32.xlu0 %v8187, 24
        %v8211 = vpop.permute.xlu0 %8210
        %8212 = vrot.lane.b32.xlu0 %v8188, 24
        %v8213 = vpop.permute.xlu0 %8212
        %8214 = vrot.lane.b32.xlu0 %v8189, 24
        %v8215 = vpop.permute.xlu0 %8214
        %8216 = vrot.lane.b32.xlu0 %v8190, 24
        %v8217 = vpop.permute.xlu0 %8216
        %8218 = vrot.lane.b32.xlu0 %v8191, 24
        %v8219 = vpop.permute.xlu0 %8218
        %8220 = vrot.lane.b32.xlu0 %v8192, 24
        %v8221 = vpop.permute.xlu0 %8220
        %8222 = vrot.lane.b32.xlu0 %v8193, 24
        %v8223 = vpop.permute.xlu0 %8222
        %8224 = vrot.lane.b32.xlu0 %v8194, 24
        %v8225 = vpop.permute.xlu0 %8224
        %8226 = vrot.lane.b32.xlu0 %v8195, 24
        %v8227 = vpop.permute.xlu0 %8226
        %v8244 = vunpack.c.l.b16 %v7092
        %v8245 = vunpack.c.l.b16 %v7093
        %v8246 = vunpack.c.l.b16 %v7094
        %v8247 = vunpack.c.l.b16 %v7095
        %v8248 = vunpack.c.l.b16 %v7096
        %v8249 = vunpack.c.l.b16 %v7097
        %v8250 = vunpack.c.l.b16 %v7098
        %v8251 = vunpack.c.l.b16 %v7099
        %v8252 = vunpack.c.l.b16 %v7100
        %v8253 = vunpack.c.l.b16 %v7101
        %v8254 = vunpack.c.l.b16 %v7102
        %v8255 = vunpack.c.l.b16 %v7103
        %v8256 = vunpack.c.l.b16 %v7104
        %v8257 = vunpack.c.l.b16 %v7105
        %v8258 = vunpack.c.l.b16 %v7106
        %v8259 = vunpack.c.l.b16 %v7107
        %v8260 = vpack.c.b16 %v8244, %v8244
        %v8261 = vpack.c.b16 %v8245, %v8245
        %v8262 = vpack.c.b16 %v8246, %v8246
        %v8263 = vpack.c.b16 %v8247, %v8247
        %v8264 = vpack.c.b16 %v8248, %v8248
        %v8265 = vpack.c.b16 %v8249, %v8249
        %v8266 = vpack.c.b16 %v8250, %v8250
        %v8267 = vpack.c.b16 %v8251, %v8251
        %v8268 = vpack.c.b16 %v8252, %v8252
        %v8269 = vpack.c.b16 %v8253, %v8253
        %v8270 = vpack.c.b16 %v8254, %v8254
        %v8271 = vpack.c.b16 %v8255, %v8255
        %v8272 = vpack.c.b16 %v8256, %v8256
        %v8273 = vpack.c.b16 %v8257, %v8257
        %v8274 = vpack.c.b16 %v8258, %v8258
        %v8275 = vpack.c.b16 %v8259, %v8259
        %v8277 = vshrl.u32 %v8180, 16
        %v8279 = vshll.u32 %v8180, 16
        %v8281 = vrot.slane %v8279, 1
        %v8282 = vor.u32 %v8277, %v8281
        %v8284 = vshll.u32 %v8260, 16
        %v8286 = vrot.slane %v8284, 1
        %v8287 = vsel %vm1612, %v8282, %v8286
        %v8289 = vshrl.u32 %v8181, 16
        %v8291 = vshll.u32 %v8181, 16
        %v8293 = vrot.slane %v8291, 1
        %v8294 = vor.u32 %v8289, %v8293
        %v8296 = vshll.u32 %v8261, 16
        %v8298 = vrot.slane %v8296, 1
        %v8299 = vsel %vm1612, %v8294, %v8298
        %v8301 = vshrl.u32 %v8182, 16
        %v8303 = vshll.u32 %v8182, 16
        %v8305 = vrot.slane %v8303, 1
        %v8306 = vor.u32 %v8301, %v8305
        %v8308 = vshll.u32 %v8262, 16
        %v8310 = vrot.slane %v8308, 1
        %v8311 = vsel %vm1612, %v8306, %v8310
        %v8313 = vshrl.u32 %v8183, 16
        %v8315 = vshll.u32 %v8183, 16
        %v8317 = vrot.slane %v8315, 1
        %v8318 = vor.u32 %v8313, %v8317
        %v8320 = vshll.u32 %v8263, 16
        %v8322 = vrot.slane %v8320, 1
        %v8323 = vsel %vm1612, %v8318, %v8322
        %v8325 = vshrl.u32 %v8184, 16
        %v8327 = vshll.u32 %v8184, 16
        %v8329 = vrot.slane %v8327, 1
        %v8330 = vor.u32 %v8325, %v8329
        %v8332 = vshll.u32 %v8264, 16
        %v8334 = vrot.slane %v8332, 1
        %v8335 = vsel %vm1612, %v8330, %v8334
        %v8337 = vshrl.u32 %v8185, 16
        %v8339 = vshll.u32 %v8185, 16
        %v8341 = vrot.slane %v8339, 1
        %v8342 = vor.u32 %v8337, %v8341
        %v8344 = vshll.u32 %v8265, 16
        %v8346 = vrot.slane %v8344, 1
        %v8347 = vsel %vm1612, %v8342, %v8346
        %v8349 = vshrl.u32 %v8186, 16
        %v8351 = vshll.u32 %v8186, 16
        %v8353 = vrot.slane %v8351, 1
        %v8354 = vor.u32 %v8349, %v8353
        %v8356 = vshll.u32 %v8266, 16
        %v8358 = vrot.slane %v8356, 1
        %v8359 = vsel %vm1612, %v8354, %v8358
        %v8361 = vshrl.u32 %v8187, 16
        %v8363 = vshll.u32 %v8187, 16
        %v8365 = vrot.slane %v8363, 1
        %v8366 = vor.u32 %v8361, %v8365
        %v8368 = vshll.u32 %v8267, 16
        %v8370 = vrot.slane %v8368, 1
        %v8371 = vsel %vm1612, %v8366, %v8370
        %v8373 = vshrl.u32 %v8188, 16
        %v8375 = vshll.u32 %v8188, 16
        %v8377 = vrot.slane %v8375, 1
        %v8378 = vor.u32 %v8373, %v8377
        %v8380 = vshll.u32 %v8268, 16
        %v8382 = vrot.slane %v8380, 1
        %v8383 = vsel %vm1612, %v8378, %v8382
        %v8385 = vshrl.u32 %v8189, 16
        %v8387 = vshll.u32 %v8189, 16
        %v8389 = vrot.slane %v8387, 1
        %v8390 = vor.u32 %v8385, %v8389
        %v8392 = vshll.u32 %v8269, 16
        %v8394 = vrot.slane %v8392, 1
        %v8395 = vsel %vm1612, %v8390, %v8394
        %v8397 = vshrl.u32 %v8190, 16
        %v8399 = vshll.u32 %v8190, 16
        %v8401 = vrot.slane %v8399, 1
        %v8402 = vor.u32 %v8397, %v8401
        %v8404 = vshll.u32 %v8270, 16
        %v8406 = vrot.slane %v8404, 1
        %v8407 = vsel %vm1612, %v8402, %v8406
        %v8409 = vshrl.u32 %v8191, 16
        %v8411 = vshll.u32 %v8191, 16
        %v8413 = vrot.slane %v8411, 1
        %v8414 = vor.u32 %v8409, %v8413
        %v8416 = vshll.u32 %v8271, 16
        %v8418 = vrot.slane %v8416, 1
        %v8419 = vsel %vm1612, %v8414, %v8418
        %v8421 = vshrl.u32 %v8192, 16
        %v8423 = vshll.u32 %v8192, 16
        %v8425 = vrot.slane %v8423, 1
        %v8426 = vor.u32 %v8421, %v8425
        %v8428 = vshll.u32 %v8272, 16
        %v8430 = vrot.slane %v8428, 1
        %v8431 = vsel %vm1612, %v8426, %v8430
        %v8433 = vshrl.u32 %v8193, 16
        %v8435 = vshll.u32 %v8193, 16
        %v8437 = vrot.slane %v8435, 1
        %v8438 = vor.u32 %v8433, %v8437
        %v8440 = vshll.u32 %v8273, 16
        %v8442 = vrot.slane %v8440, 1
        %v8443 = vsel %vm1612, %v8438, %v8442
        %v8445 = vshrl.u32 %v8194, 16
        %v8447 = vshll.u32 %v8194, 16
        %v8449 = vrot.slane %v8447, 1
        %v8450 = vor.u32 %v8445, %v8449
        %v8452 = vshll.u32 %v8274, 16
        %v8454 = vrot.slane %v8452, 1
        %v8455 = vsel %vm1612, %v8450, %v8454
        %v8457 = vshrl.u32 %v8195, 16
        %v8459 = vshll.u32 %v8195, 16
        %v8461 = vrot.slane %v8459, 1
        %v8462 = vor.u32 %v8457, %v8461
        %v8464 = vshll.u32 %v8275, 16
        %v8466 = vrot.slane %v8464, 1
        %v8467 = vsel %vm1612, %v8462, %v8466
        %8468 = vrot.lane.b32.xlu0 %v8287, 28
        %v8469 = vpop.permute.xlu0 %8468
        %8470 = vrot.lane.b32.xlu0 %v8299, 28
        %v8471 = vpop.permute.xlu0 %8470
        %8472 = vrot.lane.b32.xlu0 %v8311, 28
        %v8473 = vpop.permute.xlu0 %8472
        %8474 = vrot.lane.b32.xlu0 %v8323, 28
        %v8475 = vpop.permute.xlu0 %8474
        %8476 = vrot.lane.b32.xlu0 %v8335, 28
        %v8477 = vpop.permute.xlu0 %8476
        %8478 = vrot.lane.b32.xlu0 %v8347, 28
        %v8479 = vpop.permute.xlu0 %8478
        %8480 = vrot.lane.b32.xlu0 %v8359, 28
        %v8481 = vpop.permute.xlu0 %8480
        %8482 = vrot.lane.b32.xlu0 %v8371, 28
        %v8483 = vpop.permute.xlu0 %8482
        %8484 = vrot.lane.b32.xlu0 %v8383, 28
        %v8485 = vpop.permute.xlu0 %8484
        %8486 = vrot.lane.b32.xlu0 %v8395, 28
        %v8487 = vpop.permute.xlu0 %8486
        %8488 = vrot.lane.b32.xlu0 %v8407, 28
        %v8489 = vpop.permute.xlu0 %8488
        %8490 = vrot.lane.b32.xlu0 %v8419, 28
        %v8491 = vpop.permute.xlu0 %8490
        %8492 = vrot.lane.b32.xlu0 %v8431, 28
        %v8493 = vpop.permute.xlu0 %8492
        %8494 = vrot.lane.b32.xlu0 %v8443, 28
        %v8495 = vpop.permute.xlu0 %8494
        %8496 = vrot.lane.b32.xlu0 %v8455, 28
        %v8497 = vpop.permute.xlu0 %8496
        %8498 = vrot.lane.b32.xlu0 %v8467, 28
        %v8499 = vpop.permute.xlu0 %8498
        %v8516 = vunpack.c.l.b16 %v7108
        %v8517 = vunpack.c.l.b16 %v7109
        %v8518 = vunpack.c.l.b16 %v7110
        %v8519 = vunpack.c.l.b16 %v7111
        %v8520 = vunpack.c.l.b16 %v7112
        %v8521 = vunpack.c.l.b16 %v7113
        %v8522 = vunpack.c.l.b16 %v7114
        %v8523 = vunpack.c.l.b16 %v7115
        %v8524 = vunpack.c.l.b16 %v7116
        %v8525 = vunpack.c.l.b16 %v7117
        %v8526 = vunpack.c.l.b16 %v7118
        %v8527 = vunpack.c.l.b16 %v7119
        %v8528 = vunpack.c.l.b16 %v7120
        %v8529 = vunpack.c.l.b16 %v7121
        %v8530 = vunpack.c.l.b16 %v7122
        %v8531 = vunpack.c.l.b16 %v7123
        %v8532 = vpack.c.b16 %v8149, %v8516
        %v8533 = vpack.c.b16 %v8151, %v8517
        %v8534 = vpack.c.b16 %v8153, %v8518
        %v8535 = vpack.c.b16 %v8155, %v8519
        %v8536 = vpack.c.b16 %v8157, %v8520
        %v8537 = vpack.c.b16 %v8159, %v8521
        %v8538 = vpack.c.b16 %v8161, %v8522
        %v8539 = vpack.c.b16 %v8163, %v8523
        %v8540 = vpack.c.b16 %v8165, %v8524
        %v8541 = vpack.c.b16 %v8167, %v8525
        %v8542 = vpack.c.b16 %v8169, %v8526
        %v8543 = vpack.c.b16 %v8171, %v8527
        %v8544 = vpack.c.b16 %v8173, %v8528
        %v8545 = vpack.c.b16 %v8175, %v8529
        %v8546 = vpack.c.b16 %v8177, %v8530
        %v8547 = vpack.c.b16 %v8179, %v8531
        %v8548 = vrot.slane %v8532, 1
        %v8549 = vrot.slane %v8260, 1
        %v8550 = vsel %vm1885, %v8548, %v8549
        %v8551 = vrot.slane %v8533, 1
        %v8552 = vrot.slane %v8261, 1
        %v8553 = vsel %vm1885, %v8551, %v8552
        %v8554 = vrot.slane %v8534, 1
        %v8555 = vrot.slane %v8262, 1
        %v8556 = vsel %vm1885, %v8554, %v8555
        %v8557 = vrot.slane %v8535, 1
        %v8558 = vrot.slane %v8263, 1
        %v8559 = vsel %vm1885, %v8557, %v8558
        %v8560 = vrot.slane %v8536, 1
        %v8561 = vrot.slane %v8264, 1
        %v8562 = vsel %vm1885, %v8560, %v8561
        %v8563 = vrot.slane %v8537, 1
        %v8564 = vrot.slane %v8265, 1
        %v8565 = vsel %vm1885, %v8563, %v8564
        %v8566 = vrot.slane %v8538, 1
        %v8567 = vrot.slane %v8266, 1
        %v8568 = vsel %vm1885, %v8566, %v8567
        %v8569 = vrot.slane %v8539, 1
        %v8570 = vrot.slane %v8267, 1
        %v8571 = vsel %vm1885, %v8569, %v8570
        %v8572 = vrot.slane %v8540, 1
        %v8573 = vrot.slane %v8268, 1
        %v8574 = vsel %vm1885, %v8572, %v8573
        %v8575 = vrot.slane %v8541, 1
        %v8576 = vrot.slane %v8269, 1
        %v8577 = vsel %vm1885, %v8575, %v8576
        %v8578 = vrot.slane %v8542, 1
        %v8579 = vrot.slane %v8270, 1
        %v8580 = vsel %vm1885, %v8578, %v8579
        %v8581 = vrot.slane %v8543, 1
        %v8582 = vrot.slane %v8271, 1
        %v8583 = vsel %vm1885, %v8581, %v8582
        %v8584 = vrot.slane %v8544, 1
        %v8585 = vrot.slane %v8272, 1
        %v8586 = vsel %vm1885, %v8584, %v8585
        %v8587 = vrot.slane %v8545, 1
        %v8588 = vrot.slane %v8273, 1
        %v8589 = vsel %vm1885, %v8587, %v8588
        %v8590 = vrot.slane %v8546, 1
        %v8591 = vrot.slane %v8274, 1
        %v8592 = vsel %vm1885, %v8590, %v8591
        %v8593 = vrot.slane %v8547, 1
        %v8594 = vrot.slane %v8275, 1
        %v8595 = vsel %vm1885, %v8593, %v8594
        %8596 = vrot.lane.b32.xlu0 %v8550, 32
        %v8597 = vpop.permute.xlu0 %8596
        %8598 = vrot.lane.b32.xlu0 %v8553, 32
        %v8599 = vpop.permute.xlu0 %8598
        %8600 = vrot.lane.b32.xlu0 %v8556, 32
        %v8601 = vpop.permute.xlu0 %8600
        %8602 = vrot.lane.b32.xlu0 %v8559, 32
        %v8603 = vpop.permute.xlu0 %8602
        %8604 = vrot.lane.b32.xlu0 %v8562, 32
        %v8605 = vpop.permute.xlu0 %8604
        %8606 = vrot.lane.b32.xlu0 %v8565, 32
        %v8607 = vpop.permute.xlu0 %8606
        %8608 = vrot.lane.b32.xlu0 %v8568, 32
        %v8609 = vpop.permute.xlu0 %8608
        %8610 = vrot.lane.b32.xlu0 %v8571, 32
        %v8611 = vpop.permute.xlu0 %8610
        %8612 = vrot.lane.b32.xlu0 %v8574, 32
        %v8613 = vpop.permute.xlu0 %8612
        %8614 = vrot.lane.b32.xlu0 %v8577, 32
        %v8615 = vpop.permute.xlu0 %8614
        %8616 = vrot.lane.b32.xlu0 %v8580, 32
        %v8617 = vpop.permute.xlu0 %8616
        %8618 = vrot.lane.b32.xlu0 %v8583, 32
        %v8619 = vpop.permute.xlu0 %8618
        %8620 = vrot.lane.b32.xlu0 %v8586, 32
        %v8621 = vpop.permute.xlu0 %8620
        %8622 = vrot.lane.b32.xlu0 %v8589, 32
        %v8623 = vpop.permute.xlu0 %8622
        %8624 = vrot.lane.b32.xlu0 %v8592, 32
        %v8625 = vpop.permute.xlu0 %8624
        %8626 = vrot.lane.b32.xlu0 %v8595, 32
        %v8627 = vpop.permute.xlu0 %8626
        %vm8628 = vcmask 31744
        %v8630 = vsel %vm8628, %v7188, %v7445
        %v8632 = vsel %vm8628, %v7189, %v7447
        %v8634 = vsel %vm8628, %v7190, %v7449
        %v8636 = vsel %vm8628, %v7191, %v7451
        %v8638 = vsel %vm8628, %v7192, %v7453
        %v8640 = vsel %vm8628, %v7193, %v7455
        %v8642 = vsel %vm8628, %v7194, %v7457
        %v8644 = vsel %vm8628, %v7195, %v7459
        %v8646 = vsel %vm8628, %v7196, %v7461
        %v8648 = vsel %vm8628, %v7197, %v7463
        %v8650 = vsel %vm8628, %v7198, %v7465
        %v8652 = vsel %vm8628, %v7199, %v7467
        %v8654 = vsel %vm8628, %v7200, %v7469
        %v8656 = vsel %vm8628, %v7201, %v7471
        %v8658 = vsel %vm8628, %v7202, %v7473
        %v8660 = vsel %vm8628, %v7203, %v7475
        %v8662 = vsel %vm452, %v8630, %v7573
        %v8664 = vsel %vm452, %v8632, %v7575
        %v8666 = vsel %vm452, %v8634, %v7577
        %v8668 = vsel %vm452, %v8636, %v7579
        %v8670 = vsel %vm452, %v8638, %v7581
        %v8672 = vsel %vm452, %v8640, %v7583
        %v8674 = vsel %vm452, %v8642, %v7585
        %v8676 = vsel %vm452, %v8644, %v7587
        %v8678 = vsel %vm452, %v8646, %v7589
        %v8680 = vsel %vm452, %v8648, %v7591
        %v8682 = vsel %vm452, %v8650, %v7593
        %v8684 = vsel %vm452, %v8652, %v7595
        %v8686 = vsel %vm452, %v8654, %v7597
        %v8688 = vsel %vm452, %v8656, %v7599
        %v8690 = vsel %vm452, %v8658, %v7601
        %v8692 = vsel %vm452, %v8660, %v7603
        %vm8693 = vcmask 97280
        %v8695 = vsel %vm8693, %v8662, %v7685
        %v8697 = vsel %vm8693, %v8664, %v7687
        %v8699 = vsel %vm8693, %v8666, %v7689
        %v8701 = vsel %vm8693, %v8668, %v7691
        %v8703 = vsel %vm8693, %v8670, %v7693
        %v8705 = vsel %vm8693, %v8672, %v7695
        %v8707 = vsel %vm8693, %v8674, %v7697
        %v8709 = vsel %vm8693, %v8676, %v7699
        %v8711 = vsel %vm8693, %v8678, %v7701
        %v8713 = vsel %vm8693, %v8680, %v7703
        %v8715 = vsel %vm8693, %v8682, %v7705
        %v8717 = vsel %vm8693, %v8684, %v7707
        %v8719 = vsel %vm8693, %v8686, %v7709
        %v8721 = vsel %vm8693, %v8688, %v7711
        %v8723 = vsel %vm8693, %v8690, %v7713
        %v8725 = vsel %vm8693, %v8692, %v7715
        %v8727 = vsel %vm2958, %v8695, %v7957
        %v8729 = vsel %vm2958, %v8697, %v7959
        %v8731 = vsel %vm2958, %v8699, %v7961
        %v8733 = vsel %vm2958, %v8701, %v7963
        %v8735 = vsel %vm2958, %v8703, %v7965
        %v8737 = vsel %vm2958, %v8705, %v7967
        %v8739 = vsel %vm2958, %v8707, %v7969
        %v8741 = vsel %vm2958, %v8709, %v7971
        %v8743 = vsel %vm2958, %v8711, %v7973
        %v8745 = vsel %vm2958, %v8713, %v7975
        %v8747 = vsel %vm2958, %v8715, %v7977
        %v8749 = vsel %vm2958, %v8717, %v7979
        %v8751 = vsel %vm2958, %v8719, %v7981
        %v8753 = vsel %vm2958, %v8721, %v7983
        %v8755 = vsel %vm2958, %v8723, %v7985
        %v8757 = vsel %vm2958, %v8725, %v7987
        %vm8758 = vcmask 162816
        %v8760 = vsel %vm8758, %v8727, %v8085
        %v8762 = vsel %vm8758, %v8729, %v8087
        %v8764 = vsel %vm8758, %v8731, %v8089
        %v8766 = vsel %vm8758, %v8733, %v8091
        %v8768 = vsel %vm8758, %v8735, %v8093
        %v8770 = vsel %vm8758, %v8737, %v8095
        %v8772 = vsel %vm8758, %v8739, %v8097
        %v8774 = vsel %vm8758, %v8741, %v8099
        %v8776 = vsel %vm8758, %v8743, %v8101
        %v8778 = vsel %vm8758, %v8745, %v8103
        %v8780 = vsel %vm8758, %v8747, %v8105
        %v8782 = vsel %vm8758, %v8749, %v8107
        %v8784 = vsel %vm8758, %v8751, %v8109
        %v8786 = vsel %vm8758, %v8753, %v8111
        %v8788 = vsel %vm8758, %v8755, %v8113
        %v8790 = vsel %vm8758, %v8757, %v8115
        %v8792 = vsel %vm5875, %v8760, %v8197
        %v8794 = vsel %vm5875, %v8762, %v8199
        %v8796 = vsel %vm5875, %v8764, %v8201
        %v8798 = vsel %vm5875, %v8766, %v8203
        %v8800 = vsel %vm5875, %v8768, %v8205
        %v8802 = vsel %vm5875, %v8770, %v8207
        %v8804 = vsel %vm5875, %v8772, %v8209
        %v8806 = vsel %vm5875, %v8774, %v8211
        %v8808 = vsel %vm5875, %v8776, %v8213
        %v8810 = vsel %vm5875, %v8778, %v8215
        %v8812 = vsel %vm5875, %v8780, %v8217
        %v8814 = vsel %vm5875, %v8782, %v8219
        %v8816 = vsel %vm5875, %v8784, %v8221
        %v8818 = vsel %vm5875, %v8786, %v8223
        %v8820 = vsel %vm5875, %v8788, %v8225
        %v8822 = vsel %vm5875, %v8790, %v8227
        %vm8823 = vcmask 228352
        %v8825 = vsel %vm8823, %v8792, %v8469
        %v8827 = vsel %vm8823, %v8794, %v8471
        %v8829 = vsel %vm8823, %v8796, %v8473
        %v8831 = vsel %vm8823, %v8798, %v8475
        %v8833 = vsel %vm8823, %v8800, %v8477
        %v8835 = vsel %vm8823, %v8802, %v8479
        %v8837 = vsel %vm8823, %v8804, %v8481
        %v8839 = vsel %vm8823, %v8806, %v8483
        %v8841 = vsel %vm8823, %v8808, %v8485
        %v8843 = vsel %vm8823, %v8810, %v8487
        %v8845 = vsel %vm8823, %v8812, %v8489
        %v8847 = vsel %vm8823, %v8814, %v8491
        %v8849 = vsel %vm8823, %v8816, %v8493
        %v8851 = vsel %vm8823, %v8818, %v8495
        %v8853 = vsel %vm8823, %v8820, %v8497
        %v8855 = vsel %vm8823, %v8822, %v8499
        %v8857 = vsel %vm2991, %v8825, %v8597
        %v8859 = vsel %vm2991, %v8827, %v8599
        %v8861 = vsel %vm2991, %v8829, %v8601
        %v8863 = vsel %vm2991, %v8831, %v8603
        %v8865 = vsel %vm2991, %v8833, %v8605
        %v8867 = vsel %vm2991, %v8835, %v8607
        %v8869 = vsel %vm2991, %v8837, %v8609
        %v8871 = vsel %vm2991, %v8839, %v8611
        %v8873 = vsel %vm2991, %v8841, %v8613
        %v8875 = vsel %vm2991, %v8843, %v8615
        %v8877 = vsel %vm2991, %v8845, %v8617
        %v8879 = vsel %vm2991, %v8847, %v8619
        %v8881 = vsel %vm2991, %v8849, %v8621
        %v8883 = vsel %vm2991, %v8851, %v8623
        %v8885 = vsel %vm2991, %v8853, %v8625
        %v8887 = vsel %vm2991, %v8855, %v8627
        %v8888 = vld [vmem:[%s4] sm:$0xf]
        %v8889 = vld [vmem:[%s4 + $0x4] sm:$0xf]
        %v8890 = vld [vmem:[%s4 + $0x8] sm:$0xf]
        %v8891 = vld [vmem:[%s4 + $0xc] sm:$0xf]
        %v8892 = vld [vmem:[%s4 + $0x10] sm:$0x3]
        %v8893 = vld [vmem:[%s8] sm:$0x1]
        %v8895 = vlaneseq
        %v8896 = vshrl.u32 %v8895, 7
        %v8897 = vsub.s32 0, %v8896
        %v8898 = vrot.slane %v8893, %v8897
        %v8905 = vunpack.c.l.b16 %v8888
        %v8906 = vunpack.c.l.b16 %v8889
        %v8907 = vunpack.c.l.b16 %v8890
        %v8908 = vunpack.c.l.b16 %v8891
        %v8909 = vunpack.c.l.b16 %v8892
        %v8910 = vpack.c.b16 %v8906, %v8905
        %v8911 = vpack.c.b16 %v8908, %v8907
        %v8912 = vpack.c.b16 %v8909, %v8909
        %vm8915 = vcmask 293888
        %v8916 = vsel %vm8915, %v8857, 0
        %v8918 = vsel %vm8915, %v8859, 0
        %v8920 = vsel %vm8915, %v8861, 0
        %v8922 = vsel %vm8915, %v8863, 0
        %v8924 = vsel %vm8915, %v8865, 0
        %v8926 = vsel %vm8915, %v8867, 0
        %v8928 = vsel %vm8915, %v8869, 0
        %v8930 = vsel %vm8915, %v8871, 0
        %v8932 = vsel %vm8915, %v8873, 0
        %v8934 = vsel %vm8915, %v8875, 0
        %v8936 = vsel %vm8915, %v8877, 0
        %v8938 = vsel %vm8915, %v8879, 0
        %v8940 = vsel %vm8915, %v8881, 0
        %v8942 = vsel %vm8915, %v8883, 0
        %v8944 = vsel %vm8915, %v8885, 0
        %v8946 = vsel %vm8915, %v8887, 0
        %vm8948 = vcmask 1041408
        %v8950 = vsel %vm8948, %v8912, 0
        %8952 = vmatprep.subr.bf16.mxu0 0
        %8953 = vmatpush1.bf16.msra.mxu0 %v8910
        %8954 = vmatprep.subr.bf16.mxu0 0
        %8955 = vmatpush1.bf16.msra.mxu0 %v8911
        %8956 = vmatprep.subr.bf16.mxu0 0
        %8957 = vmatpush1.bf16.msra.mxu0 %v8950
        %8958 = vmatprep.subr.bf16.mxu0 0
        %8959 = vmatpush1.bf16.msra.mxu0 0
        %8960 = vmatprep.subr.bf16.mxu0 0
        %8961 = vmatpush1.bf16.msra.mxu0 0
        %8962 = vmatprep.subr.bf16.mxu0 0
        %8963 = vmatpush1.bf16.msra.mxu0 0
        %8964 = vmatprep.subr.bf16.mxu0 0
        %8965 = vmatpush1.bf16.msra.mxu0 0
        %8966 = vmatprep.subr.bf16.mxu0 0
        %8967 = vmatpush1.bf16.msra.mxu0 0
        %8968 = vmatprep.subr.bf16.mxu0 0
        %8969 = vmatpush1.bf16.msra.mxu0 0
        %8970 = vmatprep.subr.bf16.mxu0 0
        %8971 = vmatpush1.bf16.msra.mxu0 0
        %8972 = vmatprep.subr.bf16.mxu0 0
        %8973 = vmatpush1.bf16.msra.mxu0 0
        %8974 = vmatprep.subr.bf16.mxu0 0
        %8975 = vmatpush1.bf16.msra.mxu0 0
        %8976 = vmatprep.subr.bf16.mxu0 0
        %8977 = vmatpush1.bf16.msra.mxu0 0
        %8978 = vmatprep.subr.bf16.mxu0 0
        %8979 = vmatpush1.bf16.msra.mxu0 0
        %8980 = vmatprep.subr.bf16.mxu0 0
        %8981 = vmatpush1.bf16.msra.mxu0 0
        %8982 = vmatprep.subr.bf16.mxu0 0
        %8983 = vmatpush1.bf16.msra.mxu0 0
        %8984 = vmatprep.mubr.bf16.mxu0 0
        %8985 = vmatmul.mubr.bf16.gmra.mrb[0].mxu0 %v8916
        %v8986 = vpop.f32.mrb[0].mxu0
        %v8987 = vadd.f32 %v8898, %v8986
        %v8988 = vpop.f32.mrb[0].mxu0
        %v8989 = vpop.f32.mrb[0].mxu0
        %v8990 = vadd.f32 %v8898, %v8989
        %v8991 = vpop.f32.mrb[0].mxu0
        %8992 = vmatprep.mubr.bf16.mxu0 0
        %8993 = vmatmul.mubr.bf16.gmra.mrb[0].mxu0 %v8918
        %v8994 = vpop.f32.mrb[0].mxu0
        %v8995 = vadd.f32 %v8898, %v8994
        %v8996 = vpop.f32.mrb[0].mxu0
        %v8997 = vpop.f32.mrb[0].mxu0
        %v8998 = vadd.f32 %v8898, %v8997
        %v8999 = vpop.f32.mrb[0].mxu0
        %9000 = vmatprep.mubr.bf16.mxu0 0
        %9001 = vmatmul.mubr.bf16.gmra.mrb[0].mxu0 %v8920
        %v9002 = vpop.f32.mrb[0].mxu0
        %v9003 = vadd.f32 %v8898, %v9002
        %v9004 = vpop.f32.mrb[0].mxu0
        %v9005 = vpop.f32.mrb[0].mxu0
        %v9006 = vadd.f32 %v8898, %v9005
        %v9007 = vpop.f32.mrb[0].mxu0
        %9008 = vmatprep.mubr.bf16.mxu0 0
        %9009 = vmatmul.mubr.bf16.gmra.mrb[0].mxu0 %v8922
        %v9010 = vpop.f32.mrb[0].mxu0
        %v9011 = vadd.f32 %v8898, %v9010
        %v9012 = vpop.f32.mrb[0].mxu0
        %v9013 = vpop.f32.mrb[0].mxu0
        %v9014 = vadd.f32 %v8898, %v9013
        %v9015 = vpop.f32.mrb[0].mxu0
        %9016 = vmatprep.mubr.bf16.mxu0 0
        %9017 = vmatmul.mubr.bf16.gmra.mrb[0].mxu0 %v8924
        %v9018 = vpop.f32.mrb[0].mxu0
        %v9019 = vadd.f32 %v8898, %v9018
        %v9020 = vpop.f32.mrb[0].mxu0
        %v9021 = vpop.f32.mrb[0].mxu0
        %v9022 = vadd.f32 %v8898, %v9021
        %v9023 = vpop.f32.mrb[0].mxu0
        %9024 = vmatprep.mubr.bf16.mxu0 0
        %9025 = vmatmul.mubr.bf16.gmra.mrb[0].mxu0 %v8926
        %v9026 = vpop.f32.mrb[0].mxu0
        %v9027 = vadd.f32 %v8898, %v9026
        %v9028 = vpop.f32.mrb[0].mxu0
        %v9029 = vpop.f32.mrb[0].mxu0
        %v9030 = vadd.f32 %v8898, %v9029
        %v9031 = vpop.f32.mrb[0].mxu0
        %9032 = vmatprep.mubr.bf16.mxu0 0
        %9033 = vmatmul.mubr.bf16.gmra.mrb[0].mxu0 %v8928
        %v9034 = vpop.f32.mrb[0].mxu0
        %v9035 = vadd.f32 %v8898, %v9034
        %v9036 = vpop.f32.mrb[0].mxu0
        %v9037 = vpop.f32.mrb[0].mxu0
        %v9038 = vadd.f32 %v8898, %v9037
        %v9039 = vpop.f32.mrb[0].mxu0
        %9040 = vmatprep.mubr.bf16.mxu0 0
        %9041 = vmatmul.mubr.bf16.gmra.mrb[0].mxu0 %v8930
        %v9042 = vpop.f32.mrb[0].mxu0
        %v9043 = vadd.f32 %v8898, %v9042
        %v9044 = vpop.f32.mrb[0].mxu0
        %v9045 = vpop.f32.mrb[0].mxu0
        %v9046 = vadd.f32 %v8898, %v9045
        %v9047 = vpop.f32.mrb[0].mxu0
        %9048 = vmatprep.mubr.bf16.mxu0 0
        %9049 = vmatmul.mubr.bf16.gmra.mrb[0].mxu0 %v8932
        %v9050 = vpop.f32.mrb[0].mxu0
        %v9051 = vadd.f32 %v8898, %v9050
        %v9052 = vpop.f32.mrb[0].mxu0
        %v9053 = vpop.f32.mrb[0].mxu0
        %v9054 = vadd.f32 %v8898, %v9053
        %v9055 = vpop.f32.mrb[0].mxu0
        %9056 = vmatprep.mubr.bf16.mxu0 0
        %9057 = vmatmul.mubr.bf16.gmra.mrb[0].mxu0 %v8934
        %v9058 = vpop.f32.mrb[0].mxu0
        %v9059 = vadd.f32 %v8898, %v9058
        %v9060 = vpop.f32.mrb[0].mxu0
        %v9061 = vpop.f32.mrb[0].mxu0
        %v9062 = vadd.f32 %v8898, %v9061
        %v9063 = vpop.f32.mrb[0].mxu0
        %9064 = vmatprep.mubr.bf16.mxu0 0
        %9065 = vmatmul.mubr.bf16.gmra.mrb[0].mxu0 %v8936
        %v9066 = vpop.f32.mrb[0].mxu0
        %v9067 = vadd.f32 %v8898, %v9066
        %v9068 = vpop.f32.mrb[0].mxu0
        %v9069 = vpop.f32.mrb[0].mxu0
        %v9070 = vadd.f32 %v8898, %v9069
        %v9071 = vpop.f32.mrb[0].mxu0
        %9072 = vmatprep.mubr.bf16.mxu0 0
        %9073 = vmatmul.mubr.bf16.gmra.mrb[0].mxu0 %v8938
        %v9074 = vpop.f32.mrb[0].mxu0
        %v9075 = vadd.f32 %v8898, %v9074
        %v9076 = vpop.f32.mrb[0].mxu0
        %v9077 = vpop.f32.mrb[0].mxu0
        %v9078 = vadd.f32 %v8898, %v9077
        %v9079 = vpop.f32.mrb[0].mxu0
        %9080 = vmatprep.mubr.bf16.mxu0 0
        %9081 = vmatmul.mubr.bf16.gmra.mrb[0].mxu0 %v8940
        %v9082 = vpop.f32.mrb[0].mxu0
        %v9083 = vadd.f32 %v8898, %v9082
        %v9084 = vpop.f32.mrb[0].mxu0
        %v9085 = vpop.f32.mrb[0].mxu0
        %v9086 = vadd.f32 %v8898, %v9085
        %v9087 = vpop.f32.mrb[0].mxu0
        %9088 = vmatprep.mubr.bf16.mxu0 0
        %9089 = vmatmul.mubr.bf16.gmra.mrb[0].mxu0 %v8942
        %v9090 = vpop.f32.mrb[0].mxu0
        %v9091 = vadd.f32 %v8898, %v9090
        %v9092 = vpop.f32.mrb[0].mxu0
        %v9093 = vpop.f32.mrb[0].mxu0
        %v9094 = vadd.f32 %v8898, %v9093
        %v9095 = vpop.f32.mrb[0].mxu0
        %9096 = vmatprep.mubr.bf16.mxu0 0
        %9097 = vmatmul.mubr.bf16.gmra.mrb[0].mxu0 %v8944
        %v9098 = vpop.f32.mrb[0].mxu0
        %v9099 = vadd.f32 %v8898, %v9098
        %v9100 = vpop.f32.mrb[0].mxu0
        %v9101 = vpop.f32.mrb[0].mxu0
        %v9102 = vadd.f32 %v8898, %v9101
        %v9103 = vpop.f32.mrb[0].mxu0
        %9104 = vmatprep.mubr.bf16.mxu0 0
        %9105 = vmatmul.mubr.bf16.gmra.mrb[0].mxu0 %v8946
        %v9106 = vpop.f32.mrb[0].mxu0
        %v9107 = vadd.f32 %v8898, %v9106
        %v9108 = vpop.f32.mrb[0].mxu0
        %v9109 = vpop.f32.mrb[0].mxu0
        %v9110 = vadd.f32 %v8898, %v9109
        %v9111 = vpop.f32.mrb[0].mxu0
        %9112 = vdwg.mxu0
        %v9113 = vmax.f32 %v8987, 0.0
        %v9114 = vmax.f32 %v8990, 0.0
        %v9115 = vmax.f32 %v8995, 0.0
        %v9116 = vmax.f32 %v8998, 0.0
        %v9117 = vmax.f32 %v9003, 0.0
        %v9118 = vmax.f32 %v9006, 0.0
        %v9119 = vmax.f32 %v9011, 0.0
        %v9120 = vmax.f32 %v9014, 0.0
        %v9121 = vmax.f32 %v9019, 0.0
        %v9122 = vmax.f32 %v9022, 0.0
        %v9123 = vmax.f32 %v9027, 0.0
        %v9124 = vmax.f32 %v9030, 0.0
        %v9125 = vmax.f32 %v9035, 0.0
        %v9126 = vmax.f32 %v9038, 0.0
        %v9127 = vmax.f32 %v9043, 0.0
        %v9128 = vmax.f32 %v9046, 0.0
        %v9129 = vmax.f32 %v9051, 0.0
        %v9130 = vmax.f32 %v9054, 0.0
        %v9131 = vmax.f32 %v9059, 0.0
        %v9132 = vmax.f32 %v9062, 0.0
        %v9133 = vmax.f32 %v9067, 0.0
        %v9134 = vmax.f32 %v9070, 0.0
        %v9135 = vmax.f32 %v9075, 0.0
        %v9136 = vmax.f32 %v9078, 0.0
        %v9137 = vmax.f32 %v9083, 0.0
        %v9138 = vmax.f32 %v9086, 0.0
        %v9139 = vmax.f32 %v9091, 0.0
        %v9140 = vmax.f32 %v9094, 0.0
        %v9141 = vmax.f32 %v9099, 0.0
        %v9142 = vmax.f32 %v9102, 0.0
        %v9143 = vmax.f32 %v9107, 0.0
        %v9144 = vmax.f32 %v9110, 0.0
        %9177 = vrot.lane.b32.xlu0 %v3493, 16
        %v9178 = vpop.permute.xlu0 %9177
        %9179 = vrot.lane.b32.xlu0 %v3494, 16
        %v9180 = vpop.permute.xlu0 %9179
        %9181 = vrot.lane.b32.xlu0 %v3495, 16
        %v9182 = vpop.permute.xlu0 %9181
        %9183 = vrot.lane.b32.xlu0 %v3496, 16
        %v9184 = vpop.permute.xlu0 %9183
        %9185 = vrot.lane.b32.xlu0 %v3497, 16
        %v9186 = vpop.permute.xlu0 %9185
        %9187 = vrot.lane.b32.xlu0 %v3498, 16
        %v9188 = vpop.permute.xlu0 %9187
        %9189 = vrot.lane.b32.xlu0 %v3499, 16
        %v9190 = vpop.permute.xlu0 %9189
        %9191 = vrot.lane.b32.xlu0 %v3500, 16
        %v9192 = vpop.permute.xlu0 %9191
        %9193 = vrot.lane.b32.xlu0 %v3501, 16
        %v9194 = vpop.permute.xlu0 %9193
        %9195 = vrot.lane.b32.xlu0 %v3502, 16
        %v9196 = vpop.permute.xlu0 %9195
        %9197 = vrot.lane.b32.xlu0 %v3503, 16
        %v9198 = vpop.permute.xlu0 %9197
        %9199 = vrot.lane.b32.xlu0 %v3504, 16
        %v9200 = vpop.permute.xlu0 %9199
        %9201 = vrot.lane.b32.xlu0 %v3505, 16
        %v9202 = vpop.permute.xlu0 %9201
        %9203 = vrot.lane.b32.xlu0 %v3506, 16
        %v9204 = vpop.permute.xlu0 %9203
        %9205 = vrot.lane.b32.xlu0 %v3507, 16
        %v9206 = vpop.permute.xlu0 %9205
        %9207 = vrot.lane.b32.xlu0 %v3508, 16
        %v9208 = vpop.permute.xlu0 %9207
        %9209 = vrot.lane.b32.xlu0 %v3509, 16
        %v9210 = vpop.permute.xlu0 %9209
        %9211 = vrot.lane.b32.xlu0 %v3510, 16
        %v9212 = vpop.permute.xlu0 %9211
        %9213 = vrot.lane.b32.xlu0 %v3511, 16
        %v9214 = vpop.permute.xlu0 %9213
        %9215 = vrot.lane.b32.xlu0 %v3512, 16
        %v9216 = vpop.permute.xlu0 %9215
        %9217 = vrot.lane.b32.xlu0 %v3513, 16
        %v9218 = vpop.permute.xlu0 %9217
        %9219 = vrot.lane.b32.xlu0 %v3514, 16
        %v9220 = vpop.permute.xlu0 %9219
        %9221 = vrot.lane.b32.xlu0 %v3515, 16
        %v9222 = vpop.permute.xlu0 %9221
        %9223 = vrot.lane.b32.xlu0 %v3516, 16
        %v9224 = vpop.permute.xlu0 %9223
        %9225 = vrot.lane.b32.xlu0 %v3517, 16
        %v9226 = vpop.permute.xlu0 %9225
        %9227 = vrot.lane.b32.xlu0 %v3518, 16
        %v9228 = vpop.permute.xlu0 %9227
        %9229 = vrot.lane.b32.xlu0 %v3519, 16
        %v9230 = vpop.permute.xlu0 %9229
        %9231 = vrot.lane.b32.xlu0 %v3520, 16
        %v9232 = vpop.permute.xlu0 %9231
        %9233 = vrot.lane.b32.xlu0 %v3521, 16
        %v9234 = vpop.permute.xlu0 %9233
        %9235 = vrot.lane.b32.xlu0 %v3522, 16
        %v9236 = vpop.permute.xlu0 %9235
        %9237 = vrot.lane.b32.xlu0 %v3523, 16
        %v9238 = vpop.permute.xlu0 %9237
        %9239 = vrot.lane.b32.xlu0 %v3524, 16
        %v9240 = vpop.permute.xlu0 %9239
        %9305 = vrot.lane.b32.xlu0 %v6310, 24
        %v9306 = vpop.permute.xlu0 %9305
        %9307 = vrot.lane.b32.xlu0 %v6311, 24
        %v9308 = vpop.permute.xlu0 %9307
        %9309 = vrot.lane.b32.xlu0 %v6312, 24
        %v9310 = vpop.permute.xlu0 %9309
        %9311 = vrot.lane.b32.xlu0 %v6313, 24
        %v9312 = vpop.permute.xlu0 %9311
        %9313 = vrot.lane.b32.xlu0 %v6314, 24
        %v9314 = vpop.permute.xlu0 %9313
        %9315 = vrot.lane.b32.xlu0 %v6315, 24
        %v9316 = vpop.permute.xlu0 %9315
        %9317 = vrot.lane.b32.xlu0 %v6316, 24
        %v9318 = vpop.permute.xlu0 %9317
        %9319 = vrot.lane.b32.xlu0 %v6317, 24
        %v9320 = vpop.permute.xlu0 %9319
        %9321 = vrot.lane.b32.xlu0 %v6318, 24
        %v9322 = vpop.permute.xlu0 %9321
        %9323 = vrot.lane.b32.xlu0 %v6319, 24
        %v9324 = vpop.permute.xlu0 %9323
        %9325 = vrot.lane.b32.xlu0 %v6320, 24
        %v9326 = vpop.permute.xlu0 %9325
        %9327 = vrot.lane.b32.xlu0 %v6321, 24
        %v9328 = vpop.permute.xlu0 %9327
        %9329 = vrot.lane.b32.xlu0 %v6322, 24
        %v9330 = vpop.permute.xlu0 %9329
        %9331 = vrot.lane.b32.xlu0 %v6323, 24
        %v9332 = vpop.permute.xlu0 %9331
        %9333 = vrot.lane.b32.xlu0 %v6324, 24
        %v9334 = vpop.permute.xlu0 %9333
        %9335 = vrot.lane.b32.xlu0 %v6325, 24
        %v9336 = vpop.permute.xlu0 %9335
        %9337 = vrot.lane.b32.xlu0 %v6326, 24
        %v9338 = vpop.permute.xlu0 %9337
        %9339 = vrot.lane.b32.xlu0 %v6327, 24
        %v9340 = vpop.permute.xlu0 %9339
        %9341 = vrot.lane.b32.xlu0 %v6328, 24
        %v9342 = vpop.permute.xlu0 %9341
        %9343 = vrot.lane.b32.xlu0 %v6329, 24
        %v9344 = vpop.permute.xlu0 %9343
        %9345 = vrot.lane.b32.xlu0 %v6330, 24
        %v9346 = vpop.permute.xlu0 %9345
        %9347 = vrot.lane.b32.xlu0 %v6331, 24
        %v9348 = vpop.permute.xlu0 %9347
        %9349 = vrot.lane.b32.xlu0 %v6332, 24
        %v9350 = vpop.permute.xlu0 %9349
        %9351 = vrot.lane.b32.xlu0 %v6333, 24
        %v9352 = vpop.permute.xlu0 %9351
        %9353 = vrot.lane.b32.xlu0 %v6334, 24
        %v9354 = vpop.permute.xlu0 %9353
        %9355 = vrot.lane.b32.xlu0 %v6335, 24
        %v9356 = vpop.permute.xlu0 %9355
        %9357 = vrot.lane.b32.xlu0 %v6336, 24
        %v9358 = vpop.permute.xlu0 %9357
        %9359 = vrot.lane.b32.xlu0 %v6337, 24
        %v9360 = vpop.permute.xlu0 %9359
        %9361 = vrot.lane.b32.xlu0 %v6338, 24
        %v9362 = vpop.permute.xlu0 %9361
        %9363 = vrot.lane.b32.xlu0 %v6339, 24
        %v9364 = vpop.permute.xlu0 %9363
        %9365 = vrot.lane.b32.xlu0 %v6340, 24
        %v9366 = vpop.permute.xlu0 %9365
        %9367 = vrot.lane.b32.xlu0 %v6341, 24
        %v9368 = vpop.permute.xlu0 %9367
        %9433 = vrot.lane.b32.xlu0 %v9113, 28
        %v9434 = vpop.permute.xlu0 %9433
        %9435 = vrot.lane.b32.xlu0 %v9114, 28
        %v9436 = vpop.permute.xlu0 %9435
        %9437 = vrot.lane.b32.xlu0 %v9115, 28
        %v9438 = vpop.permute.xlu0 %9437
        %9439 = vrot.lane.b32.xlu0 %v9116, 28
        %v9440 = vpop.permute.xlu0 %9439
        %9441 = vrot.lane.b32.xlu0 %v9117, 28
        %v9442 = vpop.permute.xlu0 %9441
        %9443 = vrot.lane.b32.xlu0 %v9118, 28
        %v9444 = vpop.permute.xlu0 %9443
        %9445 = vrot.lane.b32.xlu0 %v9119, 28
        %v9446 = vpop.permute.xlu0 %9445
        %9447 = vrot.lane.b32.xlu0 %v9120, 28
        %v9448 = vpop.permute.xlu0 %9447
        %9449 = vrot.lane.b32.xlu0 %v9121, 28
        %v9450 = vpop.permute.xlu0 %9449
        %9451 = vrot.lane.b32.xlu0 %v9122, 28
        %v9452 = vpop.permute.xlu0 %9451
        %9453 = vrot.lane.b32.xlu0 %v9123, 28
        %v9454 = vpop.permute.xlu0 %9453
        %9455 = vrot.lane.b32.xlu0 %v9124, 28
        %v9456 = vpop.permute.xlu0 %9455
        %9457 = vrot.lane.b32.xlu0 %v9125, 28
        %v9458 = vpop.permute.xlu0 %9457
        %9459 = vrot.lane.b32.xlu0 %v9126, 28
        %v9460 = vpop.permute.xlu0 %9459
        %9461 = vrot.lane.b32.xlu0 %v9127, 28
        %v9462 = vpop.permute.xlu0 %9461
        %9463 = vrot.lane.b32.xlu0 %v9128, 28
        %v9464 = vpop.permute.xlu0 %9463
        %9465 = vrot.lane.b32.xlu0 %v9129, 28
        %v9466 = vpop.permute.xlu0 %9465
        %9467 = vrot.lane.b32.xlu0 %v9130, 28
        %v9468 = vpop.permute.xlu0 %9467
        %9469 = vrot.lane.b32.xlu0 %v9131, 28
        %v9470 = vpop.permute.xlu0 %9469
        %9471 = vrot.lane.b32.xlu0 %v9132, 28
        %v9472 = vpop.permute.xlu0 %9471
        %9473 = vrot.lane.b32.xlu0 %v9133, 28
        %v9474 = vpop.permute.xlu0 %9473
        %9475 = vrot.lane.b32.xlu0 %v9134, 28
        %v9476 = vpop.permute.xlu0 %9475
        %9477 = vrot.lane.b32.xlu0 %v9135, 28
        %v9478 = vpop.permute.xlu0 %9477
        %9479 = vrot.lane.b32.xlu0 %v9136, 28
        %v9480 = vpop.permute.xlu0 %9479
        %9481 = vrot.lane.b32.xlu0 %v9137, 28
        %v9482 = vpop.permute.xlu0 %9481
        %9483 = vrot.lane.b32.xlu0 %v9138, 28
        %v9484 = vpop.permute.xlu0 %9483
        %9485 = vrot.lane.b32.xlu0 %v9139, 28
        %v9486 = vpop.permute.xlu0 %9485
        %9487 = vrot.lane.b32.xlu0 %v9140, 28
        %v9488 = vpop.permute.xlu0 %9487
        %9489 = vrot.lane.b32.xlu0 %v9141, 28
        %v9490 = vpop.permute.xlu0 %9489
        %9491 = vrot.lane.b32.xlu0 %v9142, 28
        %v9492 = vpop.permute.xlu0 %9491
        %9493 = vrot.lane.b32.xlu0 %v9143, 28
        %v9494 = vpop.permute.xlu0 %9493
        %9495 = vrot.lane.b32.xlu0 %v9144, 28
        %v9496 = vpop.permute.xlu0 %9495
        %v9529 = vsel %vm2958, %v666, %v9178
        %v9530 = vsel %vm2958, %v667, %v9180
        %v9531 = vsel %vm2958, %v668, %v9182
        %v9532 = vsel %vm2958, %v669, %v9184
        %v9533 = vsel %vm2958, %v670, %v9186
        %v9534 = vsel %vm2958, %v671, %v9188
        %v9535 = vsel %vm2958, %v672, %v9190
        %v9536 = vsel %vm2958, %v673, %v9192
        %v9537 = vsel %vm2958, %v674, %v9194
        %v9538 = vsel %vm2958, %v675, %v9196
        %v9539 = vsel %vm2958, %v676, %v9198
        %v9540 = vsel %vm2958, %v677, %v9200
        %v9541 = vsel %vm2958, %v678, %v9202
        %v9542 = vsel %vm2958, %v679, %v9204
        %v9543 = vsel %vm2958, %v680, %v9206
        %v9544 = vsel %vm2958, %v681, %v9208
        %v9545 = vsel %vm2958, %v682, %v9210
        %v9546 = vsel %vm2958, %v683, %v9212
        %v9547 = vsel %vm2958, %v684, %v9214
        %v9548 = vsel %vm2958, %v685, %v9216
        %v9549 = vsel %vm2958, %v686, %v9218
        %v9550 = vsel %vm2958, %v687, %v9220
        %v9551 = vsel %vm2958, %v688, %v9222
        %v9552 = vsel %vm2958, %v689, %v9224
        %v9553 = vsel %vm2958, %v690, %v9226
        %v9554 = vsel %vm2958, %v691, %v9228
        %v9555 = vsel %vm2958, %v692, %v9230
        %v9556 = vsel %vm2958, %v693, %v9232
        %v9557 = vsel %vm2958, %v694, %v9234
        %v9558 = vsel %vm2958, %v695, %v9236
        %v9559 = vsel %vm2958, %v696, %v9238
        %v9560 = vsel %vm2958, %v697, %v9240
        %v9561 = vsel %vm5875, %v9529, %v9306
        %v9562 = vsel %vm5875, %v9530, %v9308
        %v9563 = vsel %vm5875, %v9531, %v9310
        %v9564 = vsel %vm5875, %v9532, %v9312
        %v9565 = vsel %vm5875, %v9533, %v9314
        %v9566 = vsel %vm5875, %v9534, %v9316
        %v9567 = vsel %vm5875, %v9535, %v9318
        %v9568 = vsel %vm5875, %v9536, %v9320
        %v9569 = vsel %vm5875, %v9537, %v9322
        %v9570 = vsel %vm5875, %v9538, %v9324
        %v9571 = vsel %vm5875, %v9539, %v9326
        %v9572 = vsel %vm5875, %v9540, %v9328
        %v9573 = vsel %vm5875, %v9541, %v9330
        %v9574 = vsel %vm5875, %v9542, %v9332
        %v9575 = vsel %vm5875, %v9543, %v9334
        %v9576 = vsel %vm5875, %v9544, %v9336
        %v9577 = vsel %vm5875, %v9545, %v9338
        %v9578 = vsel %vm5875, %v9546, %v9340
        %v9579 = vsel %vm5875, %v9547, %v9342
        %v9580 = vsel %vm5875, %v9548, %v9344
        %v9581 = vsel %vm5875, %v9549, %v9346
        %v9582 = vsel %vm5875, %v9550, %v9348
        %v9583 = vsel %vm5875, %v9551, %v9350
        %v9584 = vsel %vm5875, %v9552, %v9352
        %v9585 = vsel %vm5875, %v9553, %v9354
        %v9586 = vsel %vm5875, %v9554, %v9356
        %v9587 = vsel %vm5875, %v9555, %v9358
        %v9588 = vsel %vm5875, %v9556, %v9360
        %v9589 = vsel %vm5875, %v9557, %v9362
        %v9590 = vsel %vm5875, %v9558, %v9364
        %v9591 = vsel %vm5875, %v9559, %v9366
        %v9592 = vsel %vm5875, %v9560, %v9368
        %v9593 = vsel %vm8823, %v9561, %v9434
        %v9594 = vsel %vm8823, %v9562, %v9436
        %v9595 = vsel %vm8823, %v9563, %v9438
        %v9596 = vsel %vm8823, %v9564, %v9440
        %v9597 = vsel %vm8823, %v9565, %v9442
        %v9598 = vsel %vm8823, %v9566, %v9444
        %v9599 = vsel %vm8823, %v9567, %v9446
        %v9600 = vsel %vm8823, %v9568, %v9448
        %v9601 = vsel %vm8823, %v9569, %v9450
        %v9602 = vsel %vm8823, %v9570, %v9452
        %v9603 = vsel %vm8823, %v9571, %v9454
        %v9604 = vsel %vm8823, %v9572, %v9456
        %v9605 = vsel %vm8823, %v9573, %v9458
        %v9606 = vsel %vm8823, %v9574, %v9460
        %v9607 = vsel %vm8823, %v9575, %v9462
        %v9608 = vsel %vm8823, %v9576, %v9464
        %v9609 = vsel %vm8823, %v9577, %v9466
        %v9610 = vsel %vm8823, %v9578, %v9468
        %v9611 = vsel %vm8823, %v9579, %v9470
        %v9612 = vsel %vm8823, %v9580, %v9472
        %v9613 = vsel %vm8823, %v9581, %v9474
        %v9614 = vsel %vm8823, %v9582, %v9476
        %v9615 = vsel %vm8823, %v9583, %v9478
        %v9616 = vsel %vm8823, %v9584, %v9480
        %v9617 = vsel %vm8823, %v9585, %v9482
        %v9618 = vsel %vm8823, %v9586, %v9484
        %v9619 = vsel %vm8823, %v9587, %v9486
        %v9620 = vsel %vm8823, %v9588, %v9488
        %v9621 = vsel %vm8823, %v9589, %v9490
        %v9622 = vsel %vm8823, %v9590, %v9492
        %v9623 = vsel %vm8823, %v9591, %v9494
        %v9624 = vsel %vm8823, %v9592, %v9496
        %9625 = vst.msk [vmem:[%s325] sm:$0xff] %vm2991, %v9593
        %9626 = vst.msk [vmem:[%s325 + $0x8] sm:$0xff] %vm2991, %v9594
        %9627 = vst.msk [vmem:[%s325 + $0x10] sm:$0xff] %vm2991, %v9595
        %9628 = vst.msk [vmem:[%s325 + $0x18] sm:$0xff] %vm2991, %v9596
        %9629 = vst.msk [vmem:[%s325 + $0x20] sm:$0xff] %vm2991, %v9597
        %9630 = vst.msk [vmem:[%s325 + $0x28] sm:$0xff] %vm2991, %v9598
        %9631 = vst.msk [vmem:[%s325 + $0x30] sm:$0xff] %vm2991, %v9599
        %9632 = vst.msk [vmem:[%s325 + $0x38] sm:$0xff] %vm2991, %v9600
        %9633 = vst.msk [vmem:[%s325 + $0x40] sm:$0xff] %vm2991, %v9601
        %9634 = vst.msk [vmem:[%s325 + $0x48] sm:$0xff] %vm2991, %v9602
        %9635 = vst.msk [vmem:[%s325 + $0x50] sm:$0xff] %vm2991, %v9603
        %9636 = vst.msk [vmem:[%s325 + $0x58] sm:$0xff] %vm2991, %v9604
        %9637 = vst.msk [vmem:[%s325 + $0x60] sm:$0xff] %vm2991, %v9605
        %9638 = vst.msk [vmem:[%s325 + $0x68] sm:$0xff] %vm2991, %v9606
        %9639 = vst.msk [vmem:[%s325 + $0x70] sm:$0xff] %vm2991, %v9607
        %9640 = vst.msk [vmem:[%s325 + $0x78] sm:$0xff] %vm2991, %v9608
        %9641 = vst.msk [vmem:[%s325 + $0x80] sm:$0xff] %vm2991, %v9609
        %9642 = vst.msk [vmem:[%s325 + $0x88] sm:$0xff] %vm2991, %v9610
        %9643 = vst.msk [vmem:[%s325 + $0x90] sm:$0xff] %vm2991, %v9611
        %9644 = vst.msk [vmem:[%s325 + $0x98] sm:$0xff] %vm2991, %v9612
        %9645 = vst.msk [vmem:[%s325 + $0xa0] sm:$0xff] %vm2991, %v9613
        %9646 = vst.msk [vmem:[%s325 + $0xa8] sm:$0xff] %vm2991, %v9614
        %9647 = vst.msk [vmem:[%s325 + $0xb0] sm:$0xff] %vm2991, %v9615
        %9648 = vst.msk [vmem:[%s325 + $0xb8] sm:$0xff] %vm2991, %v9616
        %9649 = vst.msk [vmem:[%s325 + $0xc0] sm:$0xff] %vm2991, %v9617
        %9650 = vst.msk [vmem:[%s325 + $0xc8] sm:$0xff] %vm2991, %v9618
        %9651 = vst.msk [vmem:[%s325 + $0xd0] sm:$0xff] %vm2991, %v9619
        %9652 = vst.msk [vmem:[%s325 + $0xd8] sm:$0xff] %vm2991, %v9620
        %9653 = vst.msk [vmem:[%s325 + $0xe0] sm:$0xff] %vm2991, %v9621
        %9654 = vst.msk [vmem:[%s325 + $0xe8] sm:$0xff] %vm2991, %v9622
        %9655 = vst.msk [vmem:[%s325 + $0xf0] sm:$0xff] %vm2991, %v9623
        %9656 = vst.msk [vmem:[%s325 + $0xf8] sm:$0xff] %vm2991, %v9624
        %s9657 = sand.u32 %s225, 1
        %s9658 = scalar_lea.sflag [#allocation6], %s9657
        %s9659 = sand.u32 %s225, 1
        %s9660 = smul.addr %s9659, 256
        %s9661 = scalar_lea.vmem [#allocation5], %s9660
        // Predicated region
        $region57: #{tpu_custom_call.1} parent=55 // pred_check
          %p9662 = pneg %p235
        $region58: #{tpu_custom_call.1} parent=55 // pred_check_branch
          %9664 = sbr.rel (%p9662) target = $region60
        $region59: #{tpu_custom_call.1} parent=55 // pred_region
          %s9666 = ssub.s32 4096, 4096
          %9667 = vsyncadd %s9658, %s9666
          %s9668 = smul.addr %s23, 32
          %s9669 = smul.addr %s9668, 128
          %s9670 = scalar_lea.hbm %s9, %s9669
          %s9671 = sshll.u32 %s9661, 4
          %s9672 = int_to_ptr.vmem [resolvable:$true] %s9671
          %9677 = dma.vmem_to_hbm [thread:$0]  %s9672, 4096, %s9670, %s9658, 128, 128, 8
        $region60: #{tpu_custom_call.1} parent=55 // pred_fallthru
          _
      $region56: #{tpu_custom_call.1} parent=5 // pred_fallthru
        _
      %p9678 = scmp.le.s32.totalorder 2, %s18
      // Predicated region
      $region61: #{tpu_custom_call.1} parent=5 // pred_check
        %p9679 = pneg %p9678
      $region62: #{tpu_custom_call.1} parent=5 // pred_check_branch
        %9681 = sbr.rel (%p9679) target = $region64
      $region63: #{tpu_custom_call.1} parent=5 // pred_region
        %s9682 = ssub.s32 %s18, 2
        // Predicated region
        $region65: #{tpu_custom_call.1} parent=63 // pred_check
          %p9683 = pneg %p241
        $region66: #{tpu_custom_call.1} parent=63 // pred_check_branch
          %9685 = sbr.rel (%p9683) target = $region68
        $region67: #{tpu_custom_call.1} parent=63 // pred_region
          %s9686 = sand.u32 %s226, 1
          %s9687 = scalar_lea.sflag [#allocation6], %s9686
          %s9688 = sand.u32 %s226, 1
          %s9689 = smul.addr %s9688, 256
          %s9690 = scalar_lea.vmem [#allocation5], %s9689
          %9691 = dma.done %s9687, 4096
        $region68: #{tpu_custom_call.1} parent=63 // pred_fallthru
          _
      $region64: #{tpu_custom_call.1} parent=5 // pred_fallthru
        _
    $region6: #{tpu_custom_call.1} parent=1 // loop_footer
      %s22 = sadd.s32 1, %s18
    $region7: #{tpu_custom_call.1} parent=1 // loop_footer_branch
      %17 = sbr.rel target = $region3
    $region8: #{tpu_custom_call.1} parent=1 // loop_exit
      _
    %9692 = vsyncpa [#allocation6], 1
    %s9693 = scalar_lea.sflag [#allocation6], 1
    %9694 = vsyncpa %s9693, 1

</llo_original>
